<compile_context>
chip_gen: v6e
topology: v6e:2x2x1
jax: 0.10.0
libtpu: 0.0.40
codegen_flags: <defaults>
</compile_context>

<pallas_src>
import jax
import jax.numpy as jnp
from jax import lax
from jax.experimental import pallas as pl
from jax.experimental.pallas import tpu as pltpu

HIDDEN = 32        # args['hiddenSize']
EMB = 32           # embedding dim (LM.embedding)
VOCAB = 50
CHARGENUM = 5      # args['chargenum']
TEMPERATURE = 1.0  # args['temperature'] (hard sample = argmax, temperature-invariant)
EPS = 1e-6
GUMBEL_EPS = 1e-20

VMEM = pl.BlockSpec(memory_space=pltpu.MemorySpace.VMEM)


# ------------------------------ in-kernel helpers ------------------------------

def _logsumexp(x):
    m = jnp.max(x, axis=-1, keepdims=True)
    return jnp.log(jnp.sum(jnp.exp(x - m), axis=-1, keepdims=True)) + m


def _nll_from_linear(z, w, b, labels):
    """ChargeClassifier = Linear + LogSoftmax, plus NLLLoss(reduction='none'). [B,1]."""
    logits = jnp.dot(z, w, preferred_element_type=jnp.float32) + b
    logp = logits - _logsumexp(logits)
    onehot = (lax.broadcasted_iota(jnp.int32, logits.shape, 1) == labels).astype(jnp.float32)
    return -jnp.sum(logp * onehot, axis=-1, keepdims=True)


def _lstm_layer(x, gx_ref, out_ref, wih, whh, bias, S, B, W):
    """One fused multi-direction LSTM layer.

    W is the width of the 'forward-time' half of the state (W = H for a single
    bidirectional encoder, W = 2H when two encoders are fused side by side).
    State width = 2W, gates = 8W with column blocks i | f | o | g (each 2W wide,
    [forward units | backward units] inside each block).

    x       : [S*B, Din] time-major flat value (row = t*B + b)
    gx_ref  : VMEM scratch ref, columns 0:8W hold hoisted input-gate projections
    out_ref : VMEM scratch ref, columns 0:2W get the layer output
              (row t*B+b = [h_fw(t) | h_bw(t)])
    Returns the final hidden state [B, 2W] = [h_n_fw | h_n_bw].
    """
    G = 8 * W
    # hoisted input projection + bias: one MXU matmul for the whole sequence
    gx_ref[:, 0:G] = jnp.dot(x, wih, preferred_element_type=jnp.float32) + bias

    lane = lax.broadcasted_iota(jnp.int32, (1, G), 1)
    is_fw = (lane % (2 * W)) < W          # forward-time half of every gate block
    is_g = lane >= 6 * W                  # cell-candidate (tanh) block

    h = jnp.zeros((B, 2 * W), jnp.float32)
    c = jnp.zeros((B, 2 * W), jnp.float32)

    def step_math(gf, gb, h, c):
        gates = jnp.where(is_fw, gf, gb) + jnp.dot(
            h, whh, preferred_element_type=jnp.float32)
        # single tanh over the full gate width; sigmoid(x) = 0.5*tanh(0.5x)+0.5
        th = jnp.tanh(jnp.where(is_g, gates, 0.5 * gates))
        acts = jnp.where(is_g, th, 0.5 * th + 0.5)
        i = acts[:, 0:2 * W]
        f = acts[:, 2 * W:4 * W]
        o = acts[:, 4 * W:6 * W]
        g = acts[:, 6 * W:8 * W]
        c = f * c + i * g
        h = o * jnp.tanh(c)
        return h, c

    if S <= 16:
        # short fixed trip count -> static unroll (LLO sees the whole recurrence)
        for s in range(S):
            rf = s * B
            rb = (S - 1 - s) * B
            gf = gx_ref[pl.ds(rf, B), 0:G]
            gb = gx_ref[pl.ds(rb, B), 0:G]
            h, c = step_math(gf, gb, h, c)
            out_ref[pl.ds(rf, B), 0:W] = h[:, 0:W]           # fw output at time s
            out_ref[pl.ds(rb, B), W:2 * W] = h[:, W:2 * W]   # bw output at time S-1-s
    else:
        def body(s, hc):
            h, c = hc
            rf = pl.multiple_of(s * B, 8)
            rb = pl.multiple_of((S - 1 - s) * B, 8)
            gf = gx_ref[pl.ds(rf, B), 0:G]
            gb = gx_ref[pl.ds(rb, B), 0:G]
            h, c = step_math(gf, gb, h, c)
            out_ref[pl.ds(rf, B), 0:W] = h[:, 0:W]
            out_ref[pl.ds(rb, B), W:2 * W] = h[:, W:2 * W]
            return (h, c)
        h, c = lax.fori_loop(0, S, body, (h, c))
    return h


# ----------------------------------- kernel -----------------------------------

def fused_forward_kernel(emb_ref, mask_ref, gnoise_ref, labels_ref, logprior_ref,
                         f0i_ref, f0h_ref, f0b_ref, f1i_ref, f1h_ref, f1b_ref,
                         m0i_ref, m0h_ref, m0b_ref, m1i_ref, m1h_ref, m1b_ref,
                         attm_ref, cw_ref, cb_ref, zw_ref, zb_ref, fw_ref, fb_ref,
                         z_best_ref, z_samp_ref, scal_ref, logpz_ref,
                         gx_buf, l0_buf, eo_buf):
    SB = emb_ref.shape[0]
    B = labels_ref.shape[0]
    S = SB // B
    H = HIDDEN
    H2, H3, H4 = 2 * H, 3 * H, 4 * H

    emb = emb_ref[...]                                                # [S*B, E]

    # ---------------- fused encoder_all + encoder_select (W = 2H) ----------------
    # hidden / output column layout: [all_fw | sel_fw | all_bw | sel_bw]
    h0 = _lstm_layer(emb, gx_buf, l0_buf,
                     f0i_ref[...], f0h_ref[...], f0b_ref[...], S, B, 2 * H)
    h1 = _lstm_layer(l0_buf[...], gx_buf, eo_buf,
                     f1i_ref[...], f1h_ref[...], f1b_ref[...], S, B, 2 * H)
    eo = eo_buf[...]                                                  # [S*B, 4H]

    # ---------------- attention over enc_all outputs + classifier(best) ----------
    # en_hidden = [h_l0_fw | h_l0_bw | h_l1_fw | h_l1_bw] of encoder_all
    en_hidden = jnp.concatenate([h0[:, 0:H], h0[:, H2:H3],
                                 h1[:, 0:H], h1[:, H2:H3]], axis=-1)  # [B, 4H]
    # attm rows for the "select" columns are zero, so this equals eo_all @ attm
    att1 = jnp.dot(eo, attm_ref[...], preferred_element_type=jnp.float32)  # [S*B, 4H]
    cols = []
    for t in range(S):
        blk = att1[t * B:(t + 1) * B, :]
        cols.append(jnp.sum(blk * en_hidden, axis=-1, keepdims=True))       # [B,1]
    att2 = jnp.concatenate(cols, axis=-1)                                   # [B,S]
    att2 = att2 - jnp.max(att2, axis=-1, keepdims=True)
    attw = jnp.exp(att2)
    attw = attw / jnp.sum(attw, axis=-1, keepdims=True)                     # softmax over time
    zb4 = jnp.zeros((B, H4), jnp.float32)
    for t in range(S):
        zb4 = zb4 + attw[:, t:t + 1] * eo[t * B:(t + 1) * B, :]
    z_best = jnp.concatenate([zb4[:, 0:H], zb4[:, H2:H3]], axis=-1)         # [B,2H]
    z_best_ref[...] = z_best
    loss_all = _nll_from_linear(z_best, cw_ref[...], cb_ref[...], labels_ref[...])

    # ---------------- x_2_prob_z on enc_select outputs, I(x;z), sampling ---------
    # zw rows for the "all" columns are zero, so this equals eo_select @ zw
    zl = jnp.dot(eo, zw_ref[...], preferred_element_type=jnp.float32) + zb_ref[...]  # [S*B,2]
    logzp = zl - _logsumexp(zl)                                       # stable log softmax
    zp = jnp.exp(logzp)
    kl = zp * (logzp - logprior_ref[...]) + EPS                       # matches torch (+eps)
    klsum = jnp.sum(kl, axis=-1, keepdims=True)                       # [S*B, 1]
    ixz = klsum[0:B, :]
    for t in range(1, S):
        ixz = ixz + klsum[t * B:(t + 1) * B, :]
    ixz = ixz * 0.01                                                  # [B, 1]

    mask = mask_ref[...]                                              # [S*B, 1]
    pert = zl + gnoise_ref[...]
    # hard gumbel-softmax sample == argmax(z_logit + gumbel noise), gated by padding mask
    s1 = jnp.where(pert[:, 1:2] > pert[:, 0:1], 1.0, 0.0) * mask      # sampled_seq[:, :, 1]
    logpz_rows = jnp.where(s1 == 0.0, logzp[:, 0:1], logzp[:, 1:2]) * mask
    logpz_ref[...] = jnp.concatenate(
        [logpz_rows[t * B:(t + 1) * B, :] for t in range(S)], axis=-1)      # [B, S]

    # ---------------- encoder_mask on rationale-gated embeddings -----------------
    # TODO(synk): PyTorch Encoder uses pack_padded_sequence(lengths); here the full padded
    # length is processed (attention/KL/max-pool include padded steps) - only the sampled
    # gate carries the padding mask.
    xm = emb * s1                                                     # [S*B, E] * [S*B, 1]
    _lstm_layer(xm, gx_buf, l0_buf,
                m0i_ref[...], m0h_ref[...], m0b_ref[...], S, B, H)
    _lstm_layer(l0_buf[:, 0:H2], gx_buf, eo_buf,
                m1i_ref[...], m1h_ref[...], m1b_ref[...], S, B, H)

    # ---------------- z_to_fea + max over time + classifier(sampled) -------------
    fea = jnp.dot(eo_buf[:, 0:H2], fw_ref[...],
                  preferred_element_type=jnp.float32) + fb_ref[...]   # [S*B, 2H]
    z = fea[0:B, :]
    for t in range(1, S):
        z = jnp.maximum(z, fea[t * B:(t + 1) * B, :])
    z_samp_ref[...] = z
    loss = _nll_from_linear(z, cw_ref[...], cb_ref[...], labels_ref[...])

    # packed per-sample scalars: [recon_loss, recon_loss_all, I_x_z, 0]
    scal_ref[...] = jnp.concatenate([loss, loss_all, ixz, jnp.zeros_like(loss)], axis=-1)


# -------------------------------- kernel wrapper --------------------------------

def fused_forward(params, emb_flat, mask_flat, gnoise_flat, labels2d, S):
    SB = emb_flat.shape[0]
    B = labels2d.shape[0]
    H = HIDDEN
    fe, me = params['enc_fused'], params['enc_mask']
    return pl.pallas_call(
        fused_forward_kernel,
        out_shape=(jax.ShapeDtypeStruct((B, 2 * H), jnp.float32),   # z_nero_best
                   jax.ShapeDtypeStruct((B, 2 * H), jnp.float32),   # z_nero_sampled
                   jax.ShapeDtypeStruct((B, 4), jnp.float32),       # [loss, loss_all, ixz, 0]
                   jax.ShapeDtypeStruct((B, S), jnp.float32)),      # logpz (lane-dense [B,S])
        in_specs=[VMEM] * 24,
        out_specs=(VMEM,) * 4,
        scratch_shapes=[pltpu.VMEM((SB, 16 * H), jnp.float32),      # gate projections (reused)
                        pltpu.VMEM((SB, 4 * H), jnp.float32),       # layer-0 outputs (reused)
                        pltpu.VMEM((SB, 4 * H), jnp.float32)],      # layer-1 outputs (reused)
    )(emb_flat, mask_flat, gnoise_flat, labels2d, params['log_prior'],
      fe['l0']['wih'], fe['l0']['whh'], fe['l0']['b'],
      fe['l1']['wih'], fe['l1']['whh'], fe['l1']['b'],
      me['l0']['wih'], me['l0']['whh'], me['l0']['b'],
      me['l1']['wih'], me['l1']['whh'], me['l1']['b'],
      params['attm4'], params['cw'], params['cb'],
      params['zw4'], params['zb'], params['fw'], params['fb'])


# ----------------------------------- forward ------------------------------------

def forward(params, enc_input, labels, key):
    B, S = enc_input.shape
    B_pad = ((B + 7) // 8) * 8                                        # sublane-align batch
    pad = B_pad - B

    mask = jnp.sign(enc_input).astype(jnp.float32)                    # [B, S]
    emb = jnp.take(params['embedding'], enc_input, axis=0)            # [B, S, E]

    # gumbel noise for the ST sampler (randomness stays in plain JAX glue)
    # TODO(synk): straight-through soft gradient of gumbel_softmax(hard=True) is not
    # reproduced; this is a forward-pass implementation.
    U = jax.random.uniform(key, (B, S, 2), jnp.float32)
    gumbel = -jnp.log(-jnp.log(U + GUMBEL_EPS) + GUMBEL_EPS)

    if pad:
        emb = jnp.pad(emb, ((0, pad), (0, 0), (0, 0)))
        mask = jnp.pad(mask, ((0, pad), (0, 0)))
        gumbel = jnp.pad(gumbel, ((0, pad), (0, 0), (0, 0)))
        labels_p = jnp.pad(labels, (0, pad))
    else:
        labels_p = labels

    # time-major flat layout used inside the kernel: row = t*B_pad + b
    emb_flat = jnp.transpose(emb, (1, 0, 2)).reshape(S * B_pad, EMB)
    mask_flat = jnp.transpose(mask, (1, 0)).reshape(S * B_pad, 1)
    gumbel_flat = jnp.transpose(gumbel, (1, 0, 2)).reshape(S * B_pad, 2)
    labels2d = labels_p.reshape(B_pad, 1).astype(jnp.int32)

    z_best, z_samp, scal, logpz_p = fused_forward(
        params, emb_flat, mask_flat, gumbel_flat, labels2d, S)

    z_nero_best = z_best[:B]
    z_nero_sampled = z_samp[:B]
    recon_loss = scal[:B, 0]
    recon_loss_all = scal[:B, 1]
    I_x_z = scal[:B, 2]
    logpz = logpz_p[:B]                                               # [B, S]

    # TODO(synk): LM.LMloss is an external pretrained language-model regularizer with no
    # specification available here; omega is stubbed to zeros.
    omega = jnp.zeros((B,), jnp.float32)

    optional = {
        'recon_loss': jnp.mean(recon_loss),
        'recon_best': jnp.mean(recon_loss_all),
        'I_x_z': jnp.mean(I_x_z),
        'zdiff': jnp.mean(omega),
    }
    return (recon_loss, recon_loss_all, 0.0003 * I_x_z, 0.005 * omega,
            z_nero_best, z_nero_sampled, logpz, optional)


# -------------------------------- parameter init --------------------------------

def init_linear(key, din, dout):
    k1, k2 = jax.random.split(key)
    s = float(din) ** -0.5
    w = jax.random.uniform(k1, (din, dout), jnp.float32, -s, s)
    b = jax.random.uniform(k2, (1, dout), jnp.float32, -s, s)
    return w, b


def _init_dir(key, din, H):
    """One LSTM direction: wih [din,4H], whh [H,4H], bias (b_ih + b_hh) [4H]."""
    k1, k2, k3, k4 = jax.random.split(key, 4)
    s = float(H) ** -0.5
    wih = jax.random.uniform(k1, (din, 4 * H), jnp.float32, -s, s)
    whh = jax.random.uniform(k2, (H, 4 * H), jnp.float32, -s, s)
    b = (jax.random.uniform(k3, (4 * H,), jnp.float32, -s, s)
         + jax.random.uniform(k4, (4 * H,), jnp.float32, -s, s))
    return wih, whh, b


def _pack_layer(units, din_f, H):
    """Pack per-direction LSTM weights into one fused layer.

    units: ordered [forward-time units..., backward-time units...], each a dict
      {'rows': [(dst_row, src_row, n), ...], 'wih', 'whh', 'b'}.
    Gate column blocks (i|f|o|g), each len(units)*H wide, unit-major inside.
    whh is block-diagonal: each unit's hidden slice only drives its own gates.
    """
    U = len(units)
    blk = U * H
    G = 4 * blk
    wih = jnp.zeros((din_f, G), jnp.float32)
    whh = jnp.zeros((blk, G), jnp.float32)
    b = jnp.zeros((1, G), jnp.float32)
    for ui, u in enumerate(units):
        for g in range(4):
            c0 = g * blk + ui * H
            for (dst, src, n) in u['rows']:
                wih = wih.at[dst:dst + n, c0:c0 + H].set(u['wih'][src:src + n, g * H:(g + 1) * H])
            whh = whh.at[ui * H:(ui + 1) * H, c0:c0 + H].set(u['whh'][:, g * H:(g + 1) * H])
            b = b.at[0, c0:c0 + H].set(u['b'][g * H:(g + 1) * H])
    return {'wih': wih, 'whh': whh, 'b': b}


def _unit(w, rows):
    wih, whh, b = w
    return {'rows': rows, 'wih': wih, 'whh': whh, 'b': b}


def init_fused_two_encoders(key, E, H):
    """encoder_all and encoder_select fused side by side.
    Unit order per layer: [all_fw, sel_fw, all_bw, sel_bw]; hidden/output columns follow it."""
    ka, ks = jax.random.split(key)
    ka0f, ka0b, ka1f, ka1b = jax.random.split(ka, 4)
    ks0f, ks0b, ks1f, ks1b = jax.random.split(ks, 4)
    # layer 0: both encoders read the same embedding
    l0 = _pack_layer([_unit(_init_dir(ka0f, E, H), [(0, 0, E)]),
                      _unit(_init_dir(ks0f, E, H), [(0, 0, E)]),
                      _unit(_init_dir(ka0b, E, H), [(0, 0, E)]),
                      _unit(_init_dir(ks0b, E, H), [(0, 0, E)])], E, H)
    # layer 1: fused layer-0 output layout is [all_fw | sel_fw | all_bw | sel_bw] (4H wide);
    # the "all" units read rows {0:H, 2H:3H}, the "sel" units rows {H:2H, 3H:4H}.
    rows_all = [(0, 0, H), (2 * H, H, H)]
    rows_sel = [(H, 0, H), (3 * H, H, H)]
    l1 = _pack_layer([_unit(_init_dir(ka1f, 2 * H, H), rows_all),
                      _unit(_init_dir(ks1f, 2 * H, H), rows_sel),
                      _unit(_init_dir(ka1b, 2 * H, H), rows_all),
                      _unit(_init_dir(ks1b, 2 * H, H), rows_sel)], 4 * H, H)
    return {'l0': l0, 'l1': l1}


def init_mask_encoder(key, E, H):
    k0f, k0b, k1f, k1b = jax.random.split(key, 4)
    l0 = _pack_layer([_unit(_init_dir(k0f, E, H), [(0, 0, E)]),
                      _unit(_init_dir(k0b, E, H), [(0, 0, E)])], E, H)
    l1 = _pack_layer([_unit(_init_dir(k1f, 2 * H, H), [(0, 0, 2 * H)]),
                      _unit(_init_dir(k1b, 2 * H, H), [(0, 0, 2 * H)])], 2 * H, H)
    return {'l0': l0, 'l1': l1}


def init_params(key):
    keys = jax.random.split(key, 8)
    H = HIDDEN
    p = {}
    p['embedding'] = 0.1 * jax.random.normal(keys[0], (VOCAB, EMB), jnp.float32)
    p['enc_fused'] = init_fused_two_encoders(keys[1], EMB, H)        # enc_all + enc_select
    p['enc_mask'] = init_mask_encoder(keys[3], EMB, H)
    # attm [2H,4H] lifted to the fused 4H output layout (zero rows for the "select" columns)
    attm = jax.random.uniform(keys[4], (2 * H, 4 * H), jnp.float32)  # torch.rand
    p['attm4'] = (jnp.zeros((4 * H, 4 * H), jnp.float32)
                  .at[0:H, :].set(attm[0:H, :])
                  .at[2 * H:3 * H, :].set(attm[H:2 * H, :]))
    # x_2_prob_z [2H,2] lifted likewise (zero rows for the "all" columns)
    zw, p['zb'] = init_linear(keys[5], 2 * H, 2)
    p['zw4'] = (jnp.zeros((4 * H, 2), jnp.float32)
                .at[H:2 * H, :].set(zw[0:H, :])
                .at[3 * H:4 * H, :].set(zw[H:2 * H, :]))
    p['fw'], p['fb'] = init_linear(keys[6], 2 * H, 2 * H)            # z_to_fea
    p['cw'], p['cb'] = init_linear(keys[7], 2 * H, CHARGENUM)        # ChargeClassifier
    p['log_prior'] = jnp.log(jnp.array([[0.9999, 0.0001]], jnp.float32))
    return p


# ------------------------------------- main --------------------------------------

if __name__ == "__main__":
    root = jax.random.PRNGKey(0)
    kp, kd1, kd2, kg = jax.random.split(root, 4)
    params = init_params(kp)

    B, S = 2, 8
    enc_input = jax.random.randint(kd1, (B, S), 1, VOCAB, dtype=jnp.int32)
    enc_input = enc_input.at[1, 6:].set(0)                 # some padding (mask = sign(input))
    labels = jax.random.randint(kd2, (B,), 0, CHARGENUM, dtype=jnp.int32)

    fwd = jax.jit(forward)
    outs = fwd(params, enc_input, labels, kg)
    outs = jax.block_until_ready(outs)

    losses, losses_best, I, om, z_best, z_samp, logpz, optional = outs
    assert losses.shape == (B,) and losses_best.shape == (B,)
    assert I.shape == (B,) and om.shape == (B,)
    assert z_best.shape == (B, 2 * HIDDEN) and z_samp.shape == (B, 2 * HIDDEN)
    assert logpz.shape == (B, S)
    assert bool(jnp.all(jnp.isfinite(losses))) and bool(jnp.all(jnp.isfinite(logpz)))
    assert all(bool(jnp.isfinite(v)) for v in optional.values())
    print("KERNEL_OK")
</pallas_src>

<mosaic_0001>
module attributes {stable_mosaic.version = 11 : i64} {
  func.func @fused_forward_kernel(%arg0: memref<64x32xf32, #tpu.memory_space<vmem>>, %arg1: memref<64x1xf32, #tpu.memory_space<vmem>>, %arg2: memref<64x2xf32, #tpu.memory_space<vmem>>, %arg3: memref<8x1xi32, #tpu.memory_space<vmem>>, %arg4: memref<1x2xf32, #tpu.memory_space<vmem>>, %arg5: memref<32x512xf32, #tpu.memory_space<vmem>>, %arg6: memref<128x512xf32, #tpu.memory_space<vmem>>, %arg7: memref<1x512xf32, #tpu.memory_space<vmem>>, %arg8: memref<128x512xf32, #tpu.memory_space<vmem>>, %arg9: memref<128x512xf32, #tpu.memory_space<vmem>>, %arg10: memref<1x512xf32, #tpu.memory_space<vmem>>, %arg11: memref<32x256xf32, #tpu.memory_space<vmem>>, %arg12: memref<64x256xf32, #tpu.memory_space<vmem>>, %arg13: memref<1x256xf32, #tpu.memory_space<vmem>>, %arg14: memref<64x256xf32, #tpu.memory_space<vmem>>, %arg15: memref<64x256xf32, #tpu.memory_space<vmem>>, %arg16: memref<1x256xf32, #tpu.memory_space<vmem>>, %arg17: memref<128x128xf32, #tpu.memory_space<vmem>>, %arg18: memref<64x5xf32, #tpu.memory_space<vmem>>, %arg19: memref<1x5xf32, #tpu.memory_space<vmem>>, %arg20: memref<128x2xf32, #tpu.memory_space<vmem>>, %arg21: memref<1x2xf32, #tpu.memory_space<vmem>>, %arg22: memref<64x64xf32, #tpu.memory_space<vmem>>, %arg23: memref<1x64xf32, #tpu.memory_space<vmem>>, %arg24: memref<8x64xf32, #tpu.memory_space<vmem>>, %arg25: memref<8x64xf32, #tpu.memory_space<vmem>>, %arg26: memref<8x4xf32, #tpu.memory_space<vmem>>, %arg27: memref<8x8xf32, #tpu.memory_space<vmem>>, %arg28: memref<64x512xf32, #tpu.memory_space<vmem>>, %arg29: memref<64x128xf32, #tpu.memory_space<vmem>>, %arg30: memref<64x128xf32, #tpu.memory_space<vmem>>) attributes {dimension_semantics = [], scalar_prefetch = 0 : i64, scratch_operands = 3 : i64, tpu.core_type = #tpu.core_type<tc>} {
    %c0 = arith.constant 0 : index
    %c0_0 = arith.constant 0 : index
    %0 = vector.load %arg0[%c0, %c0_0] : memref<64x32xf32, #tpu.memory_space<vmem>>, vector<64x32xf32>
    %c0_1 = arith.constant 0 : index
    %c0_2 = arith.constant 0 : index
    %1 = vector.load %arg5[%c0_1, %c0_2] : memref<32x512xf32, #tpu.memory_space<vmem>>, vector<32x512xf32>
    %c0_3 = arith.constant 0 : index
    %c0_4 = arith.constant 0 : index
    %2 = vector.load %arg6[%c0_3, %c0_4] : memref<128x512xf32, #tpu.memory_space<vmem>>, vector<128x512xf32>
    %c0_5 = arith.constant 0 : index
    %c0_6 = arith.constant 0 : index
    %3 = vector.load %arg7[%c0_5, %c0_6] : memref<1x512xf32, #tpu.memory_space<vmem>>, vector<1x512xf32>
    %cst = arith.constant dense<0.000000e+00> : vector<64x512xf32>
    %4 = tpu.matmul %0, %1, %cst {dimension_numbers = #tpu.dot_dimension_numbers<[1], [0], [0], [1], [0, 0, 1, 1], [], []>} : vector<64x32xf32>, vector<32x512xf32>, vector<64x512xf32> -> vector<64x512xf32>
    %5 = vector.broadcast %3 : vector<1x512xf32> to vector<64x512xf32>
    %6 = arith.addf %4, %5 : vector<64x512xf32>
    %c0_7 = arith.constant 0 : index
    %c0_8 = arith.constant 0 : index
    %7 = vector.load %arg28[%c0_7, %c0_8] : memref<64x512xf32, #tpu.memory_space<vmem>>, vector<64x512xf32>
    tpu.vector_store %arg28[%c0_7, %c0_8], %6 {strides = array<i32>} : memref<64x512xf32, #tpu.memory_space<vmem>>, vector<64x512xf32>,
    %8 = tpu.iota {dimensions = array<i32: 1>} : vector<1x512xi32>
    %c128_i32 = arith.constant 128 : i32
    %c0_i32 = arith.constant 0 : i32
    %9 = arith.cmpi eq, %c128_i32, %c0_i32 : i32
    %c1_i32 = arith.constant 1 : i32
    %10 = arith.select %9, %c1_i32, %c128_i32 : i32
    %11 = vector.broadcast %10 : i32 to vector<1x512xi32>
    %12 = arith.remsi %8, %11 : vector<1x512xi32>
    %c0_i32_9 = arith.constant 0 : i32
    %13 = vector.broadcast %c0_i32_9 : i32 to vector<1x512xi32>
    %14 = arith.cmpi ne, %12, %13 : vector<1x512xi32>
    %c0_i32_10 = arith.constant 0 : i32
    %15 = vector.broadcast %c0_i32_10 : i32 to vector<1x512xi32>
    %16 = arith.cmpi slt, %12, %15 : vector<1x512xi32>
    %c0_i32_11 = arith.constant 0 : i32
    %17 = arith.cmpi slt, %10, %c0_i32_11 : i32
    %18 = vector.broadcast %17 : i1 to vector<1x512xi1>
    %19 = vector.broadcast %18 : vector<1x512xi1> to vector<1x512xi1>
    %20 = arith.xori %16, %19 : vector<1x512xi1>
    %21 = arith.andi %20, %14 : vector<1x512xi1>
    %22 = vector.broadcast %10 : i32 to vector<1x512xi32>
    %23 = arith.addi %12, %22 : vector<1x512xi32>
    %24 = arith.select %21, %23, %12 : vector<1x512xi1>, vector<1x512xi32>
    %c64_i32 = arith.constant 64 : i32
    %25 = vector.broadcast %c64_i32 : i32 to vector<1x512xi32>
    %26 = arith.cmpi slt, %24, %25 : vector<1x512xi32>
    %c384_i32 = arith.constant 384 : i32
    %27 = vector.broadcast %c384_i32 : i32 to vector<1x512xi32>
    %28 = arith.cmpi sge, %8, %27 : vector<1x512xi32>
    %cst_12 = arith.constant 0.000000e+00 : f32
    %29 = vector.broadcast %cst_12 : f32 to vector<8x128xf32>
    %cst_13 = arith.constant 0.000000e+00 : f32
    %30 = vector.broadcast %cst_13 : f32 to vector<8x128xf32>
    %c0_14 = arith.constant 0 : index
    %c0_15 = arith.constant 0 : index
    %31 = vector.load %arg28[%c0_14, %c0_15] : memref<64x512xf32, #tpu.memory_space<vmem>>, vector<8x512xf32>
    %c56 = arith.constant 56 : index
    %c0_16 = arith.constant 0 : index
    %32 = vector.load %arg28[%c56, %c0_16] : memref<64x512xf32, #tpu.memory_space<vmem>>, vector<8x512xf32>
    %33 = vector.shape_cast %26 : vector<1x512xi1> to vector<1x512xi1>
    %34 = vector.broadcast %33 : vector<1x512xi1> to vector<8x512xi1>
    %35 = arith.select %34, %31, %32 : vector<8x512xi1>, vector<8x512xf32>
    %cst_17 = arith.constant dense<0.000000e+00> : vector<8x512xf32>
    %36 = tpu.matmul %29, %2, %cst_17 {dimension_numbers = #tpu.dot_dimension_numbers<[1], [0], [0], [1], [0, 0, 1, 1], [], []>} : vector<8x128xf32>, vector<128x512xf32>, vector<8x512xf32> -> vector<8x512xf32>
    %37 = arith.addf %35, %36 : vector<8x512xf32>
    %cst_18 = arith.constant 5.000000e-01 : f32
    %38 = vector.broadcast %cst_18 : f32 to vector<8x512xf32>
    %39 = arith.mulf %38, %37 : vector<8x512xf32>
    %40 = vector.shape_cast %28 : vector<1x512xi1> to vector<1x512xi1>
    %41 = vector.broadcast %40 : vector<1x512xi1> to vector<8x512xi1>
    %42 = arith.select %41, %37, %39 : vector<8x512xi1>, vector<8x512xf32>
    %43 = math.tanh %42 : vector<8x512xf32>
    %cst_19 = arith.constant 5.000000e-01 : f32
    %44 = vector.broadcast %cst_19 : f32 to vector<8x512xf32>
    %45 = arith.mulf %44, %43 : vector<8x512xf32>
    %cst_20 = arith.constant 5.000000e-01 : f32
    %46 = vector.broadcast %cst_20 : f32 to vector<8x512xf32>
    %47 = arith.addf %45, %46 : vector<8x512xf32>
    %48 = vector.shape_cast %28 : vector<1x512xi1> to vector<1x512xi1>
    %49 = vector.broadcast %48 : vector<1x512xi1> to vector<8x512xi1>
    %50 = arith.select %49, %43, %47 : vector<8x512xi1>, vector<8x512xf32>
    %51 = vector.extract_strided_slice %50 {offsets = [0, 0], sizes = [8, 128], strides = [1, 1]} : vector<8x512xf32> to vector<8x128xf32>
    %52 = vector.extract_strided_slice %50 {offsets = [0, 128], sizes = [8, 128], strides = [1, 1]} : vector<8x512xf32> to vector<8x128xf32>
    %53 = vector.extract_strided_slice %50 {offsets = [0, 256], sizes = [8, 128], strides = [1, 1]} : vector<8x512xf32> to vector<8x128xf32>
    %54 = vector.extract_strided_slice %50 {offsets = [0, 384], sizes = [8, 128], strides = [1, 1]} : vector<8x512xf32> to vector<8x128xf32>
    %55 = arith.mulf %52, %30 : vector<8x128xf32>
    %56 = arith.mulf %51, %54 : vector<8x128xf32>
    %57 = arith.addf %55, %56 : vector<8x128xf32>
    %58 = math.tanh %57 : vector<8x128xf32>
    %59 = arith.mulf %53, %58 : vector<8x128xf32>
    %60 = vector.extract_strided_slice %59 {offsets = [0, 0], sizes = [8, 64], strides = [1, 1]} : vector<8x128xf32> to vector<8x64xf32>
    %c0_21 = arith.constant 0 : index
    %c0_22 = arith.constant 0 : index
    %61 = vector.load %arg29[%c0_21, %c0_22] : memref<64x128xf32, #tpu.memory_space<vmem>>, vector<8x64xf32>
    tpu.vector_store %arg29[%c0_21, %c0_22], %60 {strides = array<i32>} : memref<64x128xf32, #tpu.memory_space<vmem>>, vector<8x64xf32>,
    %62 = vector.extract_strided_slice %59 {offsets = [0, 64], sizes = [8, 64], strides = [1, 1]} : vector<8x128xf32> to vector<8x64xf32>
    %c56_23 = arith.constant 56 : index
    %c64 = arith.constant 64 : index
    %63 = vector.load %arg29[%c56_23, %c64] : memref<64x128xf32, #tpu.memory_space<vmem>>, vector<8x64xf32>
    tpu.vector_store %arg29[%c56_23, %c64], %62 {strides = array<i32>} : memref<64x128xf32, #tpu.memory_space<vmem>>, vector<8x64xf32>,
    %c8 = arith.constant 8 : index
    %c0_24 = arith.constant 0 : index
    %64 = vector.load %arg28[%c8, %c0_24] : memref<64x512xf32, #tpu.memory_space<vmem>>, vector<8x512xf32>
    %c48 = arith.constant 48 : index
    %c0_25 = arith.constant 0 : index
    %65 = vector.load %arg28[%c48, %c0_25] : memref<64x512xf32, #tpu.memory_space<vmem>>, vector<8x512xf32>
    %66 = vector.shape_cast %26 : vector<1x512xi1> to vector<1x512xi1>
    %67 = vector.broadcast %66 : vector<1x512xi1> to vector<8x512xi1>
    %68 = arith.select %67, %64, %65 : vector<8x512xi1>, vector<8x512xf32>
    %cst_26 = arith.constant dense<0.000000e+00> : vector<8x512xf32>
    %69 = tpu.matmul %59, %2, %cst_26 {dimension_numbers = #tpu.dot_dimension_numbers<[1], [0], [0], [1], [0, 0, 1, 1], [], []>} : vector<8x128xf32>, vector<128x512xf32>, vector<8x512xf32> -> vector<8x512xf32>
    %70 = arith.addf %68, %69 : vector<8x512xf32>
    %cst_27 = arith.constant 5.000000e-01 : f32
    %71 = vector.broadcast %cst_27 : f32 to vector<8x512xf32>
    %72 = arith.mulf %71, %70 : vector<8x512xf32>
    %73 = vector.shape_cast %28 : vector<1x512xi1> to vector<1x512xi1>
    %74 = vector.broadcast %73 : vector<1x512xi1> to vector<8x512xi1>
    %75 = arith.select %74, %70, %72 : vector<8x512xi1>, vector<8x512xf32>
    %76 = math.tanh %75 : vector<8x512xf32>
    %cst_28 = arith.constant 5.000000e-01 : f32
    %77 = vector.broadcast %cst_28 : f32 to vector<8x512xf32>
    %78 = arith.mulf %77, %76 : vector<8x512xf32>
    %cst_29 = arith.constant 5.000000e-01 : f32
    %79 = vector.broadcast %cst_29 : f32 to vector<8x512xf32>
    %80 = arith.addf %78, %79 : vector<8x512xf32>
    %81 = vector.shape_cast %28 : vector<1x512xi1> to vector<1x512xi1>
    %82 = vector.broadcast %81 : vector<1x512xi1> to vector<8x512xi1>
    %83 = arith.select %82, %76, %80 : vector<8x512xi1>, vector<8x512xf32>
    %84 = vector.extract_strided_slice %83 {offsets = [0, 0], sizes = [8, 128], strides = [1, 1]} : vector<8x512xf32> to vector<8x128xf32>
    %85 = vector.extract_strided_slice %83 {offsets = [0, 128], sizes = [8, 128], strides = [1, 1]} : vector<8x512xf32> to vector<8x128xf32>
    %86 = vector.extract_strided_slice %83 {offsets = [0, 256], sizes = [8, 128], strides = [1, 1]} : vector<8x512xf32> to vector<8x128xf32>
    %87 = vector.extract_strided_slice %83 {offsets = [0, 384], sizes = [8, 128], strides = [1, 1]} : vector<8x512xf32> to vector<8x128xf32>
    %88 = arith.mulf %85, %57 : vector<8x128xf32>
    %89 = arith.mulf %84, %87 : vector<8x128xf32>
    %90 = arith.addf %88, %89 : vector<8x128xf32>
    %91 = math.tanh %90 : vector<8x128xf32>
    %92 = arith.mulf %86, %91 : vector<8x128xf32>
    %93 = vector.extract_strided_slice %92 {offsets = [0, 0], sizes = [8, 64], strides = [1, 1]} : vector<8x128xf32> to vector<8x64xf32>
    %c8_30 = arith.constant 8 : index
    %c0_31 = arith.constant 0 : index
    %94 = vector.load %arg29[%c8_30, %c0_31] : memref<64x128xf32, #tpu.memory_space<vmem>>, vector<8x64xf32>
    tpu.vector_store %arg29[%c8_30, %c0_31], %93 {strides = array<i32>} : memref<64x128xf32, #tpu.memory_space<vmem>>, vector<8x64xf32>,
    %95 = vector.extract_strided_slice %92 {offsets = [0, 64], sizes = [8, 64], strides = [1, 1]} : vector<8x128xf32> to vector<8x64xf32>
    %c48_32 = arith.constant 48 : index
    %c64_33 = arith.constant 64 : index
    %96 = vector.load %arg29[%c48_32, %c64_33] : memref<64x128xf32, #tpu.memory_space<vmem>>, vector<8x64xf32>
    tpu.vector_store %arg29[%c48_32, %c64_33], %95 {strides = array<i32>} : memref<64x128xf32, #tpu.memory_space<vmem>>, vector<8x64xf32>,
    %c16 = arith.constant 16 : index
    %c0_34 = arith.constant 0 : index
    %97 = vector.load %arg28[%c16, %c0_34] : memref<64x512xf32, #tpu.memory_space<vmem>>, vector<8x512xf32>
    %c40 = arith.constant 40 : index
    %c0_35 = arith.constant 0 : index
    %98 = vector.load %arg28[%c40, %c0_35] : memref<64x512xf32, #tpu.memory_space<vmem>>, vector<8x512xf32>
    %99 = vector.shape_cast %26 : vector<1x512xi1> to vector<1x512xi1>
    %100 = vector.broadcast %99 : vector<1x512xi1> to vector<8x512xi1>
    %101 = arith.select %100, %97, %98 : vector<8x512xi1>, vector<8x512xf32>
    %cst_36 = arith.constant dense<0.000000e+00> : vector<8x512xf32>
    %102 = tpu.matmul %92, %2, %cst_36 {dimension_numbers = #tpu.dot_dimension_numbers<[1], [0], [0], [1], [0, 0, 1, 1], [], []>} : vector<8x128xf32>, vector<128x512xf32>, vector<8x512xf32> -> vector<8x512xf32>
    %103 = arith.addf %101, %102 : vector<8x512xf32>
    %cst_37 = arith.constant 5.000000e-01 : f32
    %104 = vector.broadcast %cst_37 : f32 to vector<8x512xf32>
    %105 = arith.mulf %104, %103 : vector<8x512xf32>
    %106 = vector.shape_cast %28 : vector<1x512xi1> to vector<1x512xi1>
    %107 = vector.broadcast %106 : vector<1x512xi1> to vector<8x512xi1>
    %108 = arith.select %107, %103, %105 : vector<8x512xi1>, vector<8x512xf32>
    %109 = math.tanh %108 : vector<8x512xf32>
    %cst_38 = arith.constant 5.000000e-01 : f32
    %110 = vector.broadcast %cst_38 : f32 to vector<8x512xf32>
    %111 = arith.mulf %110, %109 : vector<8x512xf32>
    %cst_39 = arith.constant 5.000000e-01 : f32
    %112 = vector.broadcast %cst_39 : f32 to vector<8x512xf32>
    %113 = arith.addf %111, %112 : vector<8x512xf32>
    %114 = vector.shape_cast %28 : vector<1x512xi1> to vector<1x512xi1>
    %115 = vector.broadcast %114 : vector<1x512xi1> to vector<8x512xi1>
    %116 = arith.select %115, %109, %113 : vector<8x512xi1>, vector<8x512xf32>
    %117 = vector.extract_strided_slice %116 {offsets = [0, 0], sizes = [8, 128], strides = [1, 1]} : vector<8x512xf32> to vector<8x128xf32>
    %118 = vector.extract_strided_slice %116 {offsets = [0, 128], sizes = [8, 128], strides = [1, 1]} : vector<8x512xf32> to vector<8x128xf32>
    %119 = vector.extract_strided_slice %116 {offsets = [0, 256], sizes = [8, 128], strides = [1, 1]} : vector<8x512xf32> to vector<8x128xf32>
    %120 = vector.extract_strided_slice %116 {offsets = [0, 384], sizes = [8, 128], strides = [1, 1]} : vector<8x512xf32> to vector<8x128xf32>
    %121 = arith.mulf %118, %90 : vector<8x128xf32>
    %122 = arith.mulf %117, %120 : vector<8x128xf32>
    %123 = arith.addf %121, %122 : vector<8x128xf32>
    %124 = math.tanh %123 : vector<8x128xf32>
    %125 = arith.mulf %119, %124 : vector<8x128xf32>
    %126 = vector.extract_strided_slice %125 {offsets = [0, 0], sizes = [8, 64], strides = [1, 1]} : vector<8x128xf32> to vector<8x64xf32>
    %c16_40 = arith.constant 16 : index
    %c0_41 = arith.constant 0 : index
    %127 = vector.load %arg29[%c16_40, %c0_41] : memref<64x128xf32, #tpu.memory_space<vmem>>, vector<8x64xf32>
    tpu.vector_store %arg29[%c16_40, %c0_41], %126 {strides = array<i32>} : memref<64x128xf32, #tpu.memory_space<vmem>>, vector<8x64xf32>,
    %128 = vector.extract_strided_slice %125 {offsets = [0, 64], sizes = [8, 64], strides = [1, 1]} : vector<8x128xf32> to vector<8x64xf32>
    %c40_42 = arith.constant 40 : index
    %c64_43 = arith.constant 64 : index
    %129 = vector.load %arg29[%c40_42, %c64_43] : memref<64x128xf32, #tpu.memory_space<vmem>>, vector<8x64xf32>
    tpu.vector_store %arg29[%c40_42, %c64_43], %128 {strides = array<i32>} : memref<64x128xf32, #tpu.memory_space<vmem>>, vector<8x64xf32>,
    %c24 = arith.constant 24 : index
    %c0_44 = arith.constant 0 : index
    %130 = vector.load %arg28[%c24, %c0_44] : memref<64x512xf32, #tpu.memory_space<vmem>>, vector<8x512xf32>
    %c32 = arith.constant 32 : index
    %c0_45 = arith.constant 0 : index
    %131 = vector.load %arg28[%c32, %c0_45] : memref<64x512xf32, #tpu.memory_space<vmem>>, vector<8x512xf32>
    %132 = vector.shape_cast %26 : vector<1x512xi1> to vector<1x512xi1>
    %133 = vector.broadcast %132 : vector<1x512xi1> to vector<8x512xi1>
    %134 = arith.select %133, %130, %131 : vector<8x512xi1>, vector<8x512xf32>
    %cst_46 = arith.constant dense<0.000000e+00> : vector<8x512xf32>
    %135 = tpu.matmul %125, %2, %cst_46 {dimension_numbers = #tpu.dot_dimension_numbers<[1], [0], [0], [1], [0, 0, 1, 1], [], []>} : vector<8x128xf32>, vector<128x512xf32>, vector<8x512xf32> -> vector<8x512xf32>
    %136 = arith.addf %134, %135 : vector<8x512xf32>
    %cst_47 = arith.constant 5.000000e-01 : f32
    %137 = vector.broadcast %cst_47 : f32 to vector<8x512xf32>
    %138 = arith.mulf %137, %136 : vector<8x512xf32>
    %139 = vector.shape_cast %28 : vector<1x512xi1> to vector<1x512xi1>
    %140 = vector.broadcast %139 : vector<1x512xi1> to vector<8x512xi1>
    %141 = arith.select %140, %136, %138 : vector<8x512xi1>, vector<8x512xf32>
    %142 = math.tanh %141 : vector<8x512xf32>
    %cst_48 = arith.constant 5.000000e-01 : f32
    %143 = vector.broadcast %cst_48 : f32 to vector<8x512xf32>
    %144 = arith.mulf %143, %142 : vector<8x512xf32>
    %cst_49 = arith.constant 5.000000e-01 : f32
    %145 = vector.broadcast %cst_49 : f32 to vector<8x512xf32>
    %146 = arith.addf %144, %145 : vector<8x512xf32>
    %147 = vector.shape_cast %28 : vector<1x512xi1> to vector<1x512xi1>
    %148 = vector.broadcast %147 : vector<1x512xi1> to vector<8x512xi1>
    %149 = arith.select %148, %142, %146 : vector<8x512xi1>, vector<8x512xf32>
    %150 = vector.extract_strided_slice %149 {offsets = [0, 0], sizes = [8, 128], strides = [1, 1]} : vector<8x512xf32> to vector<8x128xf32>
    %151 = vector.extract_strided_slice %149 {offsets = [0, 128], sizes = [8, 128], strides = [1, 1]} : vector<8x512xf32> to vector<8x128xf32>
    %152 = vector.extract_strided_slice %149 {offsets = [0, 256], sizes = [8, 128], strides = [1, 1]} : vector<8x512xf32> to vector<8x128xf32>
    %153 = vector.extract_strided_slice %149 {offsets = [0, 384], sizes = [8, 128], strides = [1, 1]} : vector<8x512xf32> to vector<8x128xf32>
    %154 = arith.mulf %151, %123 : vector<8x128xf32>
    %155 = arith.mulf %150, %153 : vector<8x128xf32>
    %156 = arith.addf %154, %155 : vector<8x128xf32>
    %157 = math.tanh %156 : vector<8x128xf32>
    %158 = arith.mulf %152, %157 : vector<8x128xf32>
    %159 = vector.extract_strided_slice %158 {offsets = [0, 0], sizes = [8, 64], strides = [1, 1]} : vector<8x128xf32> to vector<8x64xf32>
    %c24_50 = arith.constant 24 : index
    %c0_51 = arith.constant 0 : index
    %160 = vector.load %arg29[%c24_50, %c0_51] : memref<64x128xf32, #tpu.memory_space<vmem>>, vector<8x64xf32>
    tpu.vector_store %arg29[%c24_50, %c0_51], %159 {strides = array<i32>} : memref<64x128xf32, #tpu.memory_space<vmem>>, vector<8x64xf32>,
    %161 = vector.extract_strided_slice %158 {offsets = [0, 64], sizes = [8, 64], strides = [1, 1]} : vector<8x128xf32> to vector<8x64xf32>
    %c32_52 = arith.constant 32 : index
    %c64_53 = arith.constant 64 : index
    %162 = vector.load %arg29[%c32_52, %c64_53] : memref<64x128xf32, #tpu.memory_space<vmem>>, vector<8x64xf32>
    tpu.vector_store %arg29[%c32_52, %c64_53], %161 {strides = array<i32>} : memref<64x128xf32, #tpu.memory_space<vmem>>, vector<8x64xf32>,
    %c32_54 = arith.constant 32 : index
    %c0_55 = arith.constant 0 : index
    %163 = vector.load %arg28[%c32_54, %c0_55] : memref<64x512xf32, #tpu.memory_space<vmem>>, vector<8x512xf32>
    %c24_56 = arith.constant 24 : index
    %c0_57 = arith.constant 0 : index
    %164 = vector.load %arg28[%c24_56, %c0_57] : memref<64x512xf32, #tpu.memory_space<vmem>>, vector<8x512xf32>
    %165 = vector.shape_cast %26 : vector<1x512xi1> to vector<1x512xi1>
    %166 = vector.broadcast %165 : vector<1x512xi1> to vector<8x512xi1>
    %167 = arith.select %166, %163, %164 : vector<8x512xi1>, vector<8x512xf32>
    %cst_58 = arith.constant dense<0.000000e+00> : vector<8x512xf32>
    %168 = tpu.matmul %158, %2, %cst_58 {dimension_numbers = #tpu.dot_dimension_numbers<[1], [0], [0], [1], [0, 0, 1, 1], [], []>} : vector<8x128xf32>, vector<128x512xf32>, vector<8x512xf32> -> vector<8x512xf32>
    %169 = arith.addf %167, %168 : vector<8x512xf32>
    %cst_59 = arith.constant 5.000000e-01 : f32
    %170 = vector.broadcast %cst_59 : f32 to vector<8x512xf32>
    %171 = arith.mulf %170, %169 : vector<8x512xf32>
    %172 = vector.shape_cast %28 : vector<1x512xi1> to vector<1x512xi1>
    %173 = vector.broadcast %172 : vector<1x512xi1> to vector<8x512xi1>
    %174 = arith.select %173, %169, %171 : vector<8x512xi1>, vector<8x512xf32>
    %175 = math.tanh %174 : vector<8x512xf32>
    %cst_60 = arith.constant 5.000000e-01 : f32
    %176 = vector.broadcast %cst_60 : f32 to vector<8x512xf32>
    %177 = arith.mulf %176, %175 : vector<8x512xf32>
    %cst_61 = arith.constant 5.000000e-01 : f32
    %178 = vector.broadcast %cst_61 : f32 to vector<8x512xf32>
    %179 = arith.addf %177, %178 : vector<8x512xf32>
    %180 = vector.shape_cast %28 : vector<1x512xi1> to vector<1x512xi1>
    %181 = vector.broadcast %180 : vector<1x512xi1> to vector<8x512xi1>
    %182 = arith.select %181, %175, %179 : vector<8x512xi1>, vector<8x512xf32>
    %183 = vector.extract_strided_slice %182 {offsets = [0, 0], sizes = [8, 128], strides = [1, 1]} : vector<8x512xf32> to vector<8x128xf32>
    %184 = vector.extract_strided_slice %182 {offsets = [0, 128], sizes = [8, 128], strides = [1, 1]} : vector<8x512xf32> to vector<8x128xf32>
    %185 = vector.extract_strided_slice %182 {offsets = [0, 256], sizes = [8, 128], strides = [1, 1]} : vector<8x512xf32> to vector<8x128xf32>
    %186 = vector.extract_strided_slice %182 {offsets = [0, 384], sizes = [8, 128], strides = [1, 1]} : vector<8x512xf32> to vector<8x128xf32>
    %187 = arith.mulf %184, %156 : vector<8x128xf32>
    %188 = arith.mulf %183, %186 : vector<8x128xf32>
    %189 = arith.addf %187, %188 : vector<8x128xf32>
    %190 = math.tanh %189 : vector<8x128xf32>
    %191 = arith.mulf %185, %190 : vector<8x128xf32>
    %192 = vector.extract_strided_slice %191 {offsets = [0, 0], sizes = [8, 64], strides = [1, 1]} : vector<8x128xf32> to vector<8x64xf32>
    %c32_62 = arith.constant 32 : index
    %c0_63 = arith.constant 0 : index
    %193 = vector.load %arg29[%c32_62, %c0_63] : memref<64x128xf32, #tpu.memory_space<vmem>>, vector<8x64xf32>
    tpu.vector_store %arg29[%c32_62, %c0_63], %192 {strides = array<i32>} : memref<64x128xf32, #tpu.memory_space<vmem>>, vector<8x64xf32>,
    %194 = vector.extract_strided_slice %191 {offsets = [0, 64], sizes = [8, 64], strides = [1, 1]} : vector<8x128xf32> to vector<8x64xf32>
    %c24_64 = arith.constant 24 : index
    %c64_65 = arith.constant 64 : index
    %195 = vector.load %arg29[%c24_64, %c64_65] : memref<64x128xf32, #tpu.memory_space<vmem>>, vector<8x64xf32>
    tpu.vector_store %arg29[%c24_64, %c64_65], %194 {strides = array<i32>} : memref<64x128xf32, #tpu.memory_space<vmem>>, vector<8x64xf32>,
    %c40_66 = arith.constant 40 : index
    %c0_67 = arith.constant 0 : index
    %196 = vector.load %arg28[%c40_66, %c0_67] : memref<64x512xf32, #tpu.memory_space<vmem>>, vector<8x512xf32>
    %c16_68 = arith.constant 16 : index
    %c0_69 = arith.constant 0 : index
    %197 = vector.load %arg28[%c16_68, %c0_69] : memref<64x512xf32, #tpu.memory_space<vmem>>, vector<8x512xf32>
    %198 = vector.shape_cast %26 : vector<1x512xi1> to vector<1x512xi1>
    %199 = vector.broadcast %198 : vector<1x512xi1> to vector<8x512xi1>
    %200 = arith.select %199, %196, %197 : vector<8x512xi1>, vector<8x512xf32>
    %cst_70 = arith.constant dense<0.000000e+00> : vector<8x512xf32>
    %201 = tpu.matmul %191, %2, %cst_70 {dimension_numbers = #tpu.dot_dimension_numbers<[1], [0], [0], [1], [0, 0, 1, 1], [], []>} : vector<8x128xf32>, vector<128x512xf32>, vector<8x512xf32> -> vector<8x512xf32>
    %202 = arith.addf %200, %201 : vector<8x512xf32>
    %cst_71 = arith.constant 5.000000e-01 : f32
    %203 = vector.broadcast %cst_71 : f32 to vector<8x512xf32>
    %204 = arith.mulf %203, %202 : vector<8x512xf32>
    %205 = vector.shape_cast %28 : vector<1x512xi1> to vector<1x512xi1>
    %206 = vector.broadcast %205 : vector<1x512xi1> to vector<8x512xi1>
    %207 = arith.select %206, %202, %204 : vector<8x512xi1>, vector<8x512xf32>
    %208 = math.tanh %207 : vector<8x512xf32>
    %cst_72 = arith.constant 5.000000e-01 : f32
    %209 = vector.broadcast %cst_72 : f32 to vector<8x512xf32>
    %210 = arith.mulf %209, %208 : vector<8x512xf32>
    %cst_73 = arith.constant 5.000000e-01 : f32
    %211 = vector.broadcast %cst_73 : f32 to vector<8x512xf32>
    %212 = arith.addf %210, %211 : vector<8x512xf32>
    %213 = vector.shape_cast %28 : vector<1x512xi1> to vector<1x512xi1>
    %214 = vector.broadcast %213 : vector<1x512xi1> to vector<8x512xi1>
    %215 = arith.select %214, %208, %212 : vector<8x512xi1>, vector<8x512xf32>
    %216 = vector.extract_strided_slice %215 {offsets = [0, 0], sizes = [8, 128], strides = [1, 1]} : vector<8x512xf32> to vector<8x128xf32>
    %217 = vector.extract_strided_slice %215 {offsets = [0, 128], sizes = [8, 128], strides = [1, 1]} : vector<8x512xf32> to vector<8x128xf32>
    %218 = vector.extract_strided_slice %215 {offsets = [0, 256], sizes = [8, 128], strides = [1, 1]} : vector<8x512xf32> to vector<8x128xf32>
    %219 = vector.extract_strided_slice %215 {offsets = [0, 384], sizes = [8, 128], strides = [1, 1]} : vector<8x512xf32> to vector<8x128xf32>
    %220 = arith.mulf %217, %189 : vector<8x128xf32>
    %221 = arith.mulf %216, %219 : vector<8x128xf32>
    %222 = arith.addf %220, %221 : vector<8x128xf32>
    %223 = math.tanh %222 : vector<8x128xf32>
    %224 = arith.mulf %218, %223 : vector<8x128xf32>
    %225 = vector.extract_strided_slice %224 {offsets = [0, 0], sizes = [8, 64], strides = [1, 1]} : vector<8x128xf32> to vector<8x64xf32>
    %c40_74 = arith.constant 40 : index
    %c0_75 = arith.constant 0 : index
    %226 = vector.load %arg29[%c40_74, %c0_75] : memref<64x128xf32, #tpu.memory_space<vmem>>, vector<8x64xf32>
    tpu.vector_store %arg29[%c40_74, %c0_75], %225 {strides = array<i32>} : memref<64x128xf32, #tpu.memory_space<vmem>>, vector<8x64xf32>,
    %227 = vector.extract_strided_slice %224 {offsets = [0, 64], sizes = [8, 64], strides = [1, 1]} : vector<8x128xf32> to vector<8x64xf32>
    %c16_76 = arith.constant 16 : index
    %c64_77 = arith.constant 64 : index
    %228 = vector.load %arg29[%c16_76, %c64_77] : memref<64x128xf32, #tpu.memory_space<vmem>>, vector<8x64xf32>
    tpu.vector_store %arg29[%c16_76, %c64_77], %227 {strides = array<i32>} : memref<64x128xf32, #tpu.memory_space<vmem>>, vector<8x64xf32>,
    %c48_78 = arith.constant 48 : index
    %c0_79 = arith.constant 0 : index
    %229 = vector.load %arg28[%c48_78, %c0_79] : memref<64x512xf32, #tpu.memory_space<vmem>>, vector<8x512xf32>
    %c8_80 = arith.constant 8 : index
    %c0_81 = arith.constant 0 : index
    %230 = vector.load %arg28[%c8_80, %c0_81] : memref<64x512xf32, #tpu.memory_space<vmem>>, vector<8x512xf32>
    %231 = vector.shape_cast %26 : vector<1x512xi1> to vector<1x512xi1>
    %232 = vector.broadcast %231 : vector<1x512xi1> to vector<8x512xi1>
    %233 = arith.select %232, %229, %230 : vector<8x512xi1>, vector<8x512xf32>
    %cst_82 = arith.constant dense<0.000000e+00> : vector<8x512xf32>
    %234 = tpu.matmul %224, %2, %cst_82 {dimension_numbers = #tpu.dot_dimension_numbers<[1], [0], [0], [1], [0, 0, 1, 1], [], []>} : vector<8x128xf32>, vector<128x512xf32>, vector<8x512xf32> -> vector<8x512xf32>
    %235 = arith.addf %233, %234 : vector<8x512xf32>
    %cst_83 = arith.constant 5.000000e-01 : f32
    %236 = vector.broadcast %cst_83 : f32 to vector<8x512xf32>
    %237 = arith.mulf %236, %235 : vector<8x512xf32>
    %238 = vector.shape_cast %28 : vector<1x512xi1> to vector<1x512xi1>
    %239 = vector.broadcast %238 : vector<1x512xi1> to vector<8x512xi1>
    %240 = arith.select %239, %235, %237 : vector<8x512xi1>, vector<8x512xf32>
    %241 = math.tanh %240 : vector<8x512xf32>
    %cst_84 = arith.constant 5.000000e-01 : f32
    %242 = vector.broadcast %cst_84 : f32 to vector<8x512xf32>
    %243 = arith.mulf %242, %241 : vector<8x512xf32>
    %cst_85 = arith.constant 5.000000e-01 : f32
    %244 = vector.broadcast %cst_85 : f32 to vector<8x512xf32>
    %245 = arith.addf %243, %244 : vector<8x512xf32>
    %246 = vector.shape_cast %28 : vector<1x512xi1> to vector<1x512xi1>
    %247 = vector.broadcast %246 : vector<1x512xi1> to vector<8x512xi1>
    %248 = arith.select %247, %241, %245 : vector<8x512xi1>, vector<8x512xf32>
    %249 = vector.extract_strided_slice %248 {offsets = [0, 0], sizes = [8, 128], strides = [1, 1]} : vector<8x512xf32> to vector<8x128xf32>
    %250 = vector.extract_strided_slice %248 {offsets = [0, 128], sizes = [8, 128], strides = [1, 1]} : vector<8x512xf32> to vector<8x128xf32>
    %251 = vector.extract_strided_slice %248 {offsets = [0, 256], sizes = [8, 128], strides = [1, 1]} : vector<8x512xf32> to vector<8x128xf32>
    %252 = vector.extract_strided_slice %248 {offsets = [0, 384], sizes = [8, 128], strides = [1, 1]} : vector<8x512xf32> to vector<8x128xf32>
    %253 = arith.mulf %250, %222 : vector<8x128xf32>
    %254 = arith.mulf %249, %252 : vector<8x128xf32>
    %255 = arith.addf %253, %254 : vector<8x128xf32>
    %256 = math.tanh %255 : vector<8x128xf32>
    %257 = arith.mulf %251, %256 : vector<8x128xf32>
    %258 = vector.extract_strided_slice %257 {offsets = [0, 0], sizes = [8, 64], strides = [1, 1]} : vector<8x128xf32> to vector<8x64xf32>
    %c48_86 = arith.constant 48 : index
    %c0_87 = arith.constant 0 : index
    %259 = vector.load %arg29[%c48_86, %c0_87] : memref<64x128xf32, #tpu.memory_space<vmem>>, vector<8x64xf32>
    tpu.vector_store %arg29[%c48_86, %c0_87], %258 {strides = array<i32>} : memref<64x128xf32, #tpu.memory_space<vmem>>, vector<8x64xf32>,
    %260 = vector.extract_strided_slice %257 {offsets = [0, 64], sizes = [8, 64], strides = [1, 1]} : vector<8x128xf32> to vector<8x64xf32>
    %c8_88 = arith.constant 8 : index
    %c64_89 = arith.constant 64 : index
    %261 = vector.load %arg29[%c8_88, %c64_89] : memref<64x128xf32, #tpu.memory_space<vmem>>, vector<8x64xf32>
    tpu.vector_store %arg29[%c8_88, %c64_89], %260 {strides = array<i32>} : memref<64x128xf32, #tpu.memory_space<vmem>>, vector<8x64xf32>,
    %c56_90 = arith.constant 56 : index
    %c0_91 = arith.constant 0 : index
    %262 = vector.load %arg28[%c56_90, %c0_91] : memref<64x512xf32, #tpu.memory_space<vmem>>, vector<8x512xf32>
    %c0_92 = arith.constant 0 : index
    %c0_93 = arith.constant 0 : index
    %263 = vector.load %arg28[%c0_92, %c0_93] : memref<64x512xf32, #tpu.memory_space<vmem>>, vector<8x512xf32>
    %264 = vector.shape_cast %26 : vector<1x512xi1> to vector<1x512xi1>
    %265 = vector.broadcast %264 : vector<1x512xi1> to vector<8x512xi1>
    %266 = arith.select %265, %262, %263 : vector<8x512xi1>, vector<8x512xf32>
    %cst_94 = arith.constant dense<0.000000e+00> : vector<8x512xf32>
    %267 = tpu.matmul %257, %2, %cst_94 {dimension_numbers = #tpu.dot_dimension_numbers<[1], [0], [0], [1], [0, 0, 1, 1], [], []>} : vector<8x128xf32>, vector<128x512xf32>, vector<8x512xf32> -> vector<8x512xf32>
    %268 = arith.addf %266, %267 : vector<8x512xf32>
    %cst_95 = arith.constant 5.000000e-01 : f32
    %269 = vector.broadcast %cst_95 : f32 to vector<8x512xf32>
    %270 = arith.mulf %269, %268 : vector<8x512xf32>
    %271 = vector.shape_cast %28 : vector<1x512xi1> to vector<1x512xi1>
    %272 = vector.broadcast %271 : vector<1x512xi1> to vector<8x512xi1>
    %273 = arith.select %272, %268, %270 : vector<8x512xi1>, vector<8x512xf32>
    %274 = math.tanh %273 : vector<8x512xf32>
    %cst_96 = arith.constant 5.000000e-01 : f32
    %275 = vector.broadcast %cst_96 : f32 to vector<8x512xf32>
    %276 = arith.mulf %275, %274 : vector<8x512xf32>
    %cst_97 = arith.constant 5.000000e-01 : f32
    %277 = vector.broadcast %cst_97 : f32 to vector<8x512xf32>
    %278 = arith.addf %276, %277 : vector<8x512xf32>
    %279 = vector.shape_cast %28 : vector<1x512xi1> to vector<1x512xi1>
    %280 = vector.broadcast %279 : vector<1x512xi1> to vector<8x512xi1>
    %281 = arith.select %280, %274, %278 : vector<8x512xi1>, vector<8x512xf32>
    %282 = vector.extract_strided_slice %281 {offsets = [0, 0], sizes = [8, 128], strides = [1, 1]} : vector<8x512xf32> to vector<8x128xf32>
    %283 = vector.extract_strided_slice %281 {offsets = [0, 128], sizes = [8, 128], strides = [1, 1]} : vector<8x512xf32> to vector<8x128xf32>
    %284 = vector.extract_strided_slice %281 {offsets = [0, 256], sizes = [8, 128], strides = [1, 1]} : vector<8x512xf32> to vector<8x128xf32>
    %285 = vector.extract_strided_slice %281 {offsets = [0, 384], sizes = [8, 128], strides = [1, 1]} : vector<8x512xf32> to vector<8x128xf32>
    %286 = arith.mulf %283, %255 : vector<8x128xf32>
    %287 = arith.mulf %282, %285 : vector<8x128xf32>
    %288 = arith.addf %286, %287 : vector<8x128xf32>
    %289 = math.tanh %288 : vector<8x128xf32>
    %290 = arith.mulf %284, %289 : vector<8x128xf32>
    %291 = vector.extract_strided_slice %290 {offsets = [0, 0], sizes = [8, 64], strides = [1, 1]} : vector<8x128xf32> to vector<8x64xf32>
    %c56_98 = arith.constant 56 : index
    %c0_99 = arith.constant 0 : index
    %292 = vector.load %arg29[%c56_98, %c0_99] : memref<64x128xf32, #tpu.memory_space<vmem>>, vector<8x64xf32>
    tpu.vector_store %arg29[%c56_98, %c0_99], %291 {strides = array<i32>} : memref<64x128xf32, #tpu.memory_space<vmem>>, vector<8x64xf32>,
    %293 = vector.extract_strided_slice %290 {offsets = [0, 64], sizes = [8, 64], strides = [1, 1]} : vector<8x128xf32> to vector<8x64xf32>
    %c0_100 = arith.constant 0 : index
    %c64_101 = arith.constant 64 : index
    %294 = vector.load %arg29[%c0_100, %c64_101] : memref<64x128xf32, #tpu.memory_space<vmem>>, vector<8x64xf32>
    tpu.vector_store %arg29[%c0_100, %c64_101], %293 {strides = array<i32>} : memref<64x128xf32, #tpu.memory_space<vmem>>, vector<8x64xf32>,
    %c0_102 = arith.constant 0 : index
    %c0_103 = arith.constant 0 : index
    %295 = vector.load %arg29[%c0_102, %c0_103] : memref<64x128xf32, #tpu.memory_space<vmem>>, vector<64x128xf32>
    %c0_104 = arith.constant 0 : index
    %c0_105 = arith.constant 0 : index
    %296 = vector.load %arg8[%c0_104, %c0_105] : memref<128x512xf32, #tpu.memory_space<vmem>>, vector<128x512xf32>
    %c0_106 = arith.constant 0 : index
    %c0_107 = arith.constant 0 : index
    %297 = vector.load %arg9[%c0_106, %c0_107] : memref<128x512xf32, #tpu.memory_space<vmem>>, vector<128x512xf32>
    %c0_108 = arith.constant 0 : index
    %c0_109 = arith.constant 0 : index
    %298 = vector.load %arg10[%c0_108, %c0_109] : memref<1x512xf32, #tpu.memory_space<vmem>>, vector<1x512xf32>
    %cst_110 = arith.constant dense<0.000000e+00> : vector<64x512xf32>
    %299 = tpu.matmul %295, %296, %cst_110 {dimension_numbers = #tpu.dot_dimension_numbers<[1], [0], [0], [1], [0, 0, 1, 1], [], []>} : vector<64x128xf32>, vector<128x512xf32>, vector<64x512xf32> -> vector<64x512xf32>
    %300 = vector.broadcast %298 : vector<1x512xf32> to vector<64x512xf32>
    %301 = arith.addf %299, %300 : vector<64x512xf32>
    %c0_111 = arith.constant 0 : index
    %c0_112 = arith.constant 0 : index
    %302 = vector.load %arg28[%c0_111, %c0_112] : memref<64x512xf32, #tpu.memory_space<vmem>>, vector<64x512xf32>
    tpu.vector_store %arg28[%c0_111, %c0_112], %301 {strides = array<i32>} : memref<64x512xf32, #tpu.memory_space<vmem>>, vector<64x512xf32>,
    %303 = tpu.iota {dimensions = array<i32: 1>} : vector<1x512xi32>
    %c128_i32_113 = arith.constant 128 : i32
    %c0_i32_114 = arith.constant 0 : i32
    %304 = arith.cmpi eq, %c128_i32_113, %c0_i32_114 : i32
    %c1_i32_115 = arith.constant 1 : i32
    %305 = arith.select %304, %c1_i32_115, %c128_i32_113 : i32
    %306 = vector.broadcast %305 : i32 to vector<1x512xi32>
    %307 = arith.remsi %303, %306 : vector<1x512xi32>
    %c0_i32_116 = arith.constant 0 : i32
    %308 = vector.broadcast %c0_i32_116 : i32 to vector<1x512xi32>
    %309 = arith.cmpi ne, %307, %308 : vector<1x512xi32>
    %c0_i32_117 = arith.constant 0 : i32
    %310 = vector.broadcast %c0_i32_117 : i32 to vector<1x512xi32>
    %311 = arith.cmpi slt, %307, %310 : vector<1x512xi32>
    %c0_i32_118 = arith.constant 0 : i32
    %312 = arith.cmpi slt, %305, %c0_i32_118 : i32
    %313 = vector.broadcast %312 : i1 to vector<1x512xi1>
    %314 = vector.broadcast %313 : vector<1x512xi1> to vector<1x512xi1>
    %315 = arith.xori %311, %314 : vector<1x512xi1>
    %316 = arith.andi %315, %309 : vector<1x512xi1>
    %317 = vector.broadcast %305 : i32 to vector<1x512xi32>
    %318 = arith.addi %307, %317 : vector<1x512xi32>
    %319 = arith.select %316, %318, %307 : vector<1x512xi1>, vector<1x512xi32>
    %c64_i32_119 = arith.constant 64 : i32
    %320 = vector.broadcast %c64_i32_119 : i32 to vector<1x512xi32>
    %321 = arith.cmpi slt, %319, %320 : vector<1x512xi32>
    %c384_i32_120 = arith.constant 384 : i32
    %322 = vector.broadcast %c384_i32_120 : i32 to vector<1x512xi32>
    %323 = arith.cmpi sge, %303, %322 : vector<1x512xi32>
    %cst_121 = arith.constant 0.000000e+00 : f32
    %324 = vector.broadcast %cst_121 : f32 to vector<8x128xf32>
    %cst_122 = arith.constant 0.000000e+00 : f32
    %325 = vector.broadcast %cst_122 : f32 to vector<8x128xf32>
    %c0_123 = arith.constant 0 : index
    %c0_124 = arith.constant 0 : index
    %326 = vector.load %arg28[%c0_123, %c0_124] : memref<64x512xf32, #tpu.memory_space<vmem>>, vector<8x512xf32>
    %c56_125 = arith.constant 56 : index
    %c0_126 = arith.constant 0 : index
    %327 = vector.load %arg28[%c56_125, %c0_126] : memref<64x512xf32, #tpu.memory_space<vmem>>, vector<8x512xf32>
    %328 = vector.shape_cast %321 : vector<1x512xi1> to vector<1x512xi1>
    %329 = vector.broadcast %328 : vector<1x512xi1> to vector<8x512xi1>
    %330 = arith.select %329, %326, %327 : vector<8x512xi1>, vector<8x512xf32>
    %cst_127 = arith.constant dense<0.000000e+00> : vector<8x512xf32>
    %331 = tpu.matmul %324, %297, %cst_127 {dimension_numbers = #tpu.dot_dimension_numbers<[1], [0], [0], [1], [0, 0, 1, 1], [], []>} : vector<8x128xf32>, vector<128x512xf32>, vector<8x512xf32> -> vector<8x512xf32>
    %332 = arith.addf %330, %331 : vector<8x512xf32>
    %cst_128 = arith.constant 5.000000e-01 : f32
    %333 = vector.broadcast %cst_128 : f32 to vector<8x512xf32>
    %334 = arith.mulf %333, %332 : vector<8x512xf32>
    %335 = vector.shape_cast %323 : vector<1x512xi1> to vector<1x512xi1>
    %336 = vector.broadcast %335 : vector<1x512xi1> to vector<8x512xi1>
    %337 = arith.select %336, %332, %334 : vector<8x512xi1>, vector<8x512xf32>
    %338 = math.tanh %337 : vector<8x512xf32>
    %cst_129 = arith.constant 5.000000e-01 : f32
    %339 = vector.broadcast %cst_129 : f32 to vector<8x512xf32>
    %340 = arith.mulf %339, %338 : vector<8x512xf32>
    %cst_130 = arith.constant 5.000000e-01 : f32
    %341 = vector.broadcast %cst_130 : f32 to vector<8x512xf32>
    %342 = arith.addf %340, %341 : vector<8x512xf32>
    %343 = vector.shape_cast %323 : vector<1x512xi1> to vector<1x512xi1>
    %344 = vector.broadcast %343 : vector<1x512xi1> to vector<8x512xi1>
    %345 = arith.select %344, %338, %342 : vector<8x512xi1>, vector<8x512xf32>
    %346 = vector.extract_strided_slice %345 {offsets = [0, 0], sizes = [8, 128], strides = [1, 1]} : vector<8x512xf32> to vector<8x128xf32>
    %347 = vector.extract_strided_slice %345 {offsets = [0, 128], sizes = [8, 128], strides = [1, 1]} : vector<8x512xf32> to vector<8x128xf32>
    %348 = vector.extract_strided_slice %345 {offsets = [0, 256], sizes = [8, 128], strides = [1, 1]} : vector<8x512xf32> to vector<8x128xf32>
    %349 = vector.extract_strided_slice %345 {offsets = [0, 384], sizes = [8, 128], strides = [1, 1]} : vector<8x512xf32> to vector<8x128xf32>
    %350 = arith.mulf %347, %325 : vector<8x128xf32>
    %351 = arith.mulf %346, %349 : vector<8x128xf32>
    %352 = arith.addf %350, %351 : vector<8x128xf32>
    %353 = math.tanh %352 : vector<8x128xf32>
    %354 = arith.mulf %348, %353 : vector<8x128xf32>
    %355 = vector.extract_strided_slice %354 {offsets = [0, 0], sizes = [8, 64], strides = [1, 1]} : vector<8x128xf32> to vector<8x64xf32>
    %c0_131 = arith.constant 0 : index
    %c0_132 = arith.constant 0 : index
    %356 = vector.load %arg30[%c0_131, %c0_132] : memref<64x128xf32, #tpu.memory_space<vmem>>, vector<8x64xf32>
    tpu.vector_store %arg30[%c0_131, %c0_132], %355 {strides = array<i32>} : memref<64x128xf32, #tpu.memory_space<vmem>>, vector<8x64xf32>,
    %357 = vector.extract_strided_slice %354 {offsets = [0, 64], sizes = [8, 64], strides = [1, 1]} : vector<8x128xf32> to vector<8x64xf32>
    %c56_133 = arith.constant 56 : index
    %c64_134 = arith.constant 64 : index
    %358 = vector.load %arg30[%c56_133, %c64_134] : memref<64x128xf32, #tpu.memory_space<vmem>>, vector<8x64xf32>
    tpu.vector_store %arg30[%c56_133, %c64_134], %357 {strides = array<i32>} : memref<64x128xf32, #tpu.memory_space<vmem>>, vector<8x64xf32>,
    %c8_135 = arith.constant 8 : index
    %c0_136 = arith.constant 0 : index
    %359 = vector.load %arg28[%c8_135, %c0_136] : memref<64x512xf32, #tpu.memory_space<vmem>>, vector<8x512xf32>
    %c48_137 = arith.constant 48 : index
    %c0_138 = arith.constant 0 : index
    %360 = vector.load %arg28[%c48_137, %c0_138] : memref<64x512xf32, #tpu.memory_space<vmem>>, vector<8x512xf32>
    %361 = vector.shape_cast %321 : vector<1x512xi1> to vector<1x512xi1>
    %362 = vector.broadcast %361 : vector<1x512xi1> to vector<8x512xi1>
    %363 = arith.select %362, %359, %360 : vector<8x512xi1>, vector<8x512xf32>
    %cst_139 = arith.constant dense<0.000000e+00> : vector<8x512xf32>
    %364 = tpu.matmul %354, %297, %cst_139 {dimension_numbers = #tpu.dot_dimension_numbers<[1], [0], [0], [1], [0, 0, 1, 1], [], []>} : vector<8x128xf32>, vector<128x512xf32>, vector<8x512xf32> -> vector<8x512xf32>
    %365 = arith.addf %363, %364 : vector<8x512xf32>
    %cst_140 = arith.constant 5.000000e-01 : f32
    %366 = vector.broadcast %cst_140 : f32 to vector<8x512xf32>
    %367 = arith.mulf %366, %365 : vector<8x512xf32>
    %368 = vector.shape_cast %323 : vector<1x512xi1> to vector<1x512xi1>
    %369 = vector.broadcast %368 : vector<1x512xi1> to vector<8x512xi1>
    %370 = arith.select %369, %365, %367 : vector<8x512xi1>, vector<8x512xf32>
    %371 = math.tanh %370 : vector<8x512xf32>
    %cst_141 = arith.constant 5.000000e-01 : f32
    %372 = vector.broadcast %cst_141 : f32 to vector<8x512xf32>
    %373 = arith.mulf %372, %371 : vector<8x512xf32>
    %cst_142 = arith.constant 5.000000e-01 : f32
    %374 = vector.broadcast %cst_142 : f32 to vector<8x512xf32>
    %375 = arith.addf %373, %374 : vector<8x512xf32>
    %376 = vector.shape_cast %323 : vector<1x512xi1> to vector<1x512xi1>
    %377 = vector.broadcast %376 : vector<1x512xi1> to vector<8x512xi1>
    %378 = arith.select %377, %371, %375 : vector<8x512xi1>, vector<8x512xf32>
    %379 = vector.extract_strided_slice %378 {offsets = [0, 0], sizes = [8, 128], strides = [1, 1]} : vector<8x512xf32> to vector<8x128xf32>
    %380 = vector.extract_strided_slice %378 {offsets = [0, 128], sizes = [8, 128], strides = [1, 1]} : vector<8x512xf32> to vector<8x128xf32>
    %381 = vector.extract_strided_slice %378 {offsets = [0, 256], sizes = [8, 128], strides = [1, 1]} : vector<8x512xf32> to vector<8x128xf32>
    %382 = vector.extract_strided_slice %378 {offsets = [0, 384], sizes = [8, 128], strides = [1, 1]} : vector<8x512xf32> to vector<8x128xf32>
    %383 = arith.mulf %380, %352 : vector<8x128xf32>
    %384 = arith.mulf %379, %382 : vector<8x128xf32>
    %385 = arith.addf %383, %384 : vector<8x128xf32>
    %386 = math.tanh %385 : vector<8x128xf32>
    %387 = arith.mulf %381, %386 : vector<8x128xf32>
    %388 = vector.extract_strided_slice %387 {offsets = [0, 0], sizes = [8, 64], strides = [1, 1]} : vector<8x128xf32> to vector<8x64xf32>
    %c8_143 = arith.constant 8 : index
    %c0_144 = arith.constant 0 : index
    %389 = vector.load %arg30[%c8_143, %c0_144] : memref<64x128xf32, #tpu.memory_space<vmem>>, vector<8x64xf32>
    tpu.vector_store %arg30[%c8_143, %c0_144], %388 {strides = array<i32>} : memref<64x128xf32, #tpu.memory_space<vmem>>, vector<8x64xf32>,
    %390 = vector.extract_strided_slice %387 {offsets = [0, 64], sizes = [8, 64], strides = [1, 1]} : vector<8x128xf32> to vector<8x64xf32>
    %c48_145 = arith.constant 48 : index
    %c64_146 = arith.constant 64 : index
    %391 = vector.load %arg30[%c48_145, %c64_146] : memref<64x128xf32, #tpu.memory_space<vmem>>, vector<8x64xf32>
    tpu.vector_store %arg30[%c48_145, %c64_146], %390 {strides = array<i32>} : memref<64x128xf32, #tpu.memory_space<vmem>>, vector<8x64xf32>,
    %c16_147 = arith.constant 16 : index
    %c0_148 = arith.constant 0 : index
    %392 = vector.load %arg28[%c16_147, %c0_148] : memref<64x512xf32, #tpu.memory_space<vmem>>, vector<8x512xf32>
    %c40_149 = arith.constant 40 : index
    %c0_150 = arith.constant 0 : index
    %393 = vector.load %arg28[%c40_149, %c0_150] : memref<64x512xf32, #tpu.memory_space<vmem>>, vector<8x512xf32>
    %394 = vector.shape_cast %321 : vector<1x512xi1> to vector<1x512xi1>
    %395 = vector.broadcast %394 : vector<1x512xi1> to vector<8x512xi1>
    %396 = arith.select %395, %392, %393 : vector<8x512xi1>, vector<8x512xf32>
    %cst_151 = arith.constant dense<0.000000e+00> : vector<8x512xf32>
    %397 = tpu.matmul %387, %297, %cst_151 {dimension_numbers = #tpu.dot_dimension_numbers<[1], [0], [0], [1], [0, 0, 1, 1], [], []>} : vector<8x128xf32>, vector<128x512xf32>, vector<8x512xf32> -> vector<8x512xf32>
    %398 = arith.addf %396, %397 : vector<8x512xf32>
    %cst_152 = arith.constant 5.000000e-01 : f32
    %399 = vector.broadcast %cst_152 : f32 to vector<8x512xf32>
    %400 = arith.mulf %399, %398 : vector<8x512xf32>
    %401 = vector.shape_cast %323 : vector<1x512xi1> to vector<1x512xi1>
    %402 = vector.broadcast %401 : vector<1x512xi1> to vector<8x512xi1>
    %403 = arith.select %402, %398, %400 : vector<8x512xi1>, vector<8x512xf32>
    %404 = math.tanh %403 : vector<8x512xf32>
    %cst_153 = arith.constant 5.000000e-01 : f32
    %405 = vector.broadcast %cst_153 : f32 to vector<8x512xf32>
    %406 = arith.mulf %405, %404 : vector<8x512xf32>
    %cst_154 = arith.constant 5.000000e-01 : f32
    %407 = vector.broadcast %cst_154 : f32 to vector<8x512xf32>
    %408 = arith.addf %406, %407 : vector<8x512xf32>
    %409 = vector.shape_cast %323 : vector<1x512xi1> to vector<1x512xi1>
    %410 = vector.broadcast %409 : vector<1x512xi1> to vector<8x512xi1>
    %411 = arith.select %410, %404, %408 : vector<8x512xi1>, vector<8x512xf32>
    %412 = vector.extract_strided_slice %411 {offsets = [0, 0], sizes = [8, 128], strides = [1, 1]} : vector<8x512xf32> to vector<8x128xf32>
    %413 = vector.extract_strided_slice %411 {offsets = [0, 128], sizes = [8, 128], strides = [1, 1]} : vector<8x512xf32> to vector<8x128xf32>
    %414 = vector.extract_strided_slice %411 {offsets = [0, 256], sizes = [8, 128], strides = [1, 1]} : vector<8x512xf32> to vector<8x128xf32>
    %415 = vector.extract_strided_slice %411 {offsets = [0, 384], sizes = [8, 128], strides = [1, 1]} : vector<8x512xf32> to vector<8x128xf32>
    %416 = arith.mulf %413, %385 : vector<8x128xf32>
    %417 = arith.mulf %412, %415 : vector<8x128xf32>
    %418 = arith.addf %416, %417 : vector<8x128xf32>
    %419 = math.tanh %418 : vector<8x128xf32>
    %420 = arith.mulf %414, %419 : vector<8x128xf32>
    %421 = vector.extract_strided_slice %420 {offsets = [0, 0], sizes = [8, 64], strides = [1, 1]} : vector<8x128xf32> to vector<8x64xf32>
    %c16_155 = arith.constant 16 : index
    %c0_156 = arith.constant 0 : index
    %422 = vector.load %arg30[%c16_155, %c0_156] : memref<64x128xf32, #tpu.memory_space<vmem>>, vector<8x64xf32>
    tpu.vector_store %arg30[%c16_155, %c0_156], %421 {strides = array<i32>} : memref<64x128xf32, #tpu.memory_space<vmem>>, vector<8x64xf32>,
    %423 = vector.extract_strided_slice %420 {offsets = [0, 64], sizes = [8, 64], strides = [1, 1]} : vector<8x128xf32> to vector<8x64xf32>
    %c40_157 = arith.constant 40 : index
    %c64_158 = arith.constant 64 : index
    %424 = vector.load %arg30[%c40_157, %c64_158] : memref<64x128xf32, #tpu.memory_space<vmem>>, vector<8x64xf32>
    tpu.vector_store %arg30[%c40_157, %c64_158], %423 {strides = array<i32>} : memref<64x128xf32, #tpu.memory_space<vmem>>, vector<8x64xf32>,
    %c24_159 = arith.constant 24 : index
    %c0_160 = arith.constant 0 : index
    %425 = vector.load %arg28[%c24_159, %c0_160] : memref<64x512xf32, #tpu.memory_space<vmem>>, vector<8x512xf32>
    %c32_161 = arith.constant 32 : index
    %c0_162 = arith.constant 0 : index
    %426 = vector.load %arg28[%c32_161, %c0_162] : memref<64x512xf32, #tpu.memory_space<vmem>>, vector<8x512xf32>
    %427 = vector.shape_cast %321 : vector<1x512xi1> to vector<1x512xi1>
    %428 = vector.broadcast %427 : vector<1x512xi1> to vector<8x512xi1>
    %429 = arith.select %428, %425, %426 : vector<8x512xi1>, vector<8x512xf32>
    %cst_163 = arith.constant dense<0.000000e+00> : vector<8x512xf32>
    %430 = tpu.matmul %420, %297, %cst_163 {dimension_numbers = #tpu.dot_dimension_numbers<[1], [0], [0], [1], [0, 0, 1, 1], [], []>} : vector<8x128xf32>, vector<128x512xf32>, vector<8x512xf32> -> vector<8x512xf32>
    %431 = arith.addf %429, %430 : vector<8x512xf32>
    %cst_164 = arith.constant 5.000000e-01 : f32
    %432 = vector.broadcast %cst_164 : f32 to vector<8x512xf32>
    %433 = arith.mulf %432, %431 : vector<8x512xf32>
    %434 = vector.shape_cast %323 : vector<1x512xi1> to vector<1x512xi1>
    %435 = vector.broadcast %434 : vector<1x512xi1> to vector<8x512xi1>
    %436 = arith.select %435, %431, %433 : vector<8x512xi1>, vector<8x512xf32>
    %437 = math.tanh %436 : vector<8x512xf32>
    %cst_165 = arith.constant 5.000000e-01 : f32
    %438 = vector.broadcast %cst_165 : f32 to vector<8x512xf32>
    %439 = arith.mulf %438, %437 : vector<8x512xf32>
    %cst_166 = arith.constant 5.000000e-01 : f32
    %440 = vector.broadcast %cst_166 : f32 to vector<8x512xf32>
    %441 = arith.addf %439, %440 : vector<8x512xf32>
    %442 = vector.shape_cast %323 : vector<1x512xi1> to vector<1x512xi1>
    %443 = vector.broadcast %442 : vector<1x512xi1> to vector<8x512xi1>
    %444 = arith.select %443, %437, %441 : vector<8x512xi1>, vector<8x512xf32>
    %445 = vector.extract_strided_slice %444 {offsets = [0, 0], sizes = [8, 128], strides = [1, 1]} : vector<8x512xf32> to vector<8x128xf32>
    %446 = vector.extract_strided_slice %444 {offsets = [0, 128], sizes = [8, 128], strides = [1, 1]} : vector<8x512xf32> to vector<8x128xf32>
    %447 = vector.extract_strided_slice %444 {offsets = [0, 256], sizes = [8, 128], strides = [1, 1]} : vector<8x512xf32> to vector<8x128xf32>
    %448 = vector.extract_strided_slice %444 {offsets = [0, 384], sizes = [8, 128], strides = [1, 1]} : vector<8x512xf32> to vector<8x128xf32>
    %449 = arith.mulf %446, %418 : vector<8x128xf32>
    %450 = arith.mulf %445, %448 : vector<8x128xf32>
    %451 = arith.addf %449, %450 : vector<8x128xf32>
    %452 = math.tanh %451 : vector<8x128xf32>
    %453 = arith.mulf %447, %452 : vector<8x128xf32>
    %454 = vector.extract_strided_slice %453 {offsets = [0, 0], sizes = [8, 64], strides = [1, 1]} : vector<8x128xf32> to vector<8x64xf32>
    %c24_167 = arith.constant 24 : index
    %c0_168 = arith.constant 0 : index
    %455 = vector.load %arg30[%c24_167, %c0_168] : memref<64x128xf32, #tpu.memory_space<vmem>>, vector<8x64xf32>
    tpu.vector_store %arg30[%c24_167, %c0_168], %454 {strides = array<i32>} : memref<64x128xf32, #tpu.memory_space<vmem>>, vector<8x64xf32>,
    %456 = vector.extract_strided_slice %453 {offsets = [0, 64], sizes = [8, 64], strides = [1, 1]} : vector<8x128xf32> to vector<8x64xf32>
    %c32_169 = arith.constant 32 : index
    %c64_170 = arith.constant 64 : index
    %457 = vector.load %arg30[%c32_169, %c64_170] : memref<64x128xf32, #tpu.memory_space<vmem>>, vector<8x64xf32>
    tpu.vector_store %arg30[%c32_169, %c64_170], %456 {strides = array<i32>} : memref<64x128xf32, #tpu.memory_space<vmem>>, vector<8x64xf32>,
    %c32_171 = arith.constant 32 : index
    %c0_172 = arith.constant 0 : index
    %458 = vector.load %arg28[%c32_171, %c0_172] : memref<64x512xf32, #tpu.memory_space<vmem>>, vector<8x512xf32>
    %c24_173 = arith.constant 24 : index
    %c0_174 = arith.constant 0 : index
    %459 = vector.load %arg28[%c24_173, %c0_174] : memref<64x512xf32, #tpu.memory_space<vmem>>, vector<8x512xf32>
    %460 = vector.shape_cast %321 : vector<1x512xi1> to vector<1x512xi1>
    %461 = vector.broadcast %460 : vector<1x512xi1> to vector<8x512xi1>
    %462 = arith.select %461, %458, %459 : vector<8x512xi1>, vector<8x512xf32>
    %cst_175 = arith.constant dense<0.000000e+00> : vector<8x512xf32>
    %463 = tpu.matmul %453, %297, %cst_175 {dimension_numbers = #tpu.dot_dimension_numbers<[1], [0], [0], [1], [0, 0, 1, 1], [], []>} : vector<8x128xf32>, vector<128x512xf32>, vector<8x512xf32> -> vector<8x512xf32>
    %464 = arith.addf %462, %463 : vector<8x512xf32>
    %cst_176 = arith.constant 5.000000e-01 : f32
    %465 = vector.broadcast %cst_176 : f32 to vector<8x512xf32>
    %466 = arith.mulf %465, %464 : vector<8x512xf32>
    %467 = vector.shape_cast %323 : vector<1x512xi1> to vector<1x512xi1>
    %468 = vector.broadcast %467 : vector<1x512xi1> to vector<8x512xi1>
    %469 = arith.select %468, %464, %466 : vector<8x512xi1>, vector<8x512xf32>
    %470 = math.tanh %469 : vector<8x512xf32>
    %cst_177 = arith.constant 5.000000e-01 : f32
    %471 = vector.broadcast %cst_177 : f32 to vector<8x512xf32>
    %472 = arith.mulf %471, %470 : vector<8x512xf32>
    %cst_178 = arith.constant 5.000000e-01 : f32
    %473 = vector.broadcast %cst_178 : f32 to vector<8x512xf32>
    %474 = arith.addf %472, %473 : vector<8x512xf32>
    %475 = vector.shape_cast %323 : vector<1x512xi1> to vector<1x512xi1>
    %476 = vector.broadcast %475 : vector<1x512xi1> to vector<8x512xi1>
    %477 = arith.select %476, %470, %474 : vector<8x512xi1>, vector<8x512xf32>
    %478 = vector.extract_strided_slice %477 {offsets = [0, 0], sizes = [8, 128], strides = [1, 1]} : vector<8x512xf32> to vector<8x128xf32>
    %479 = vector.extract_strided_slice %477 {offsets = [0, 128], sizes = [8, 128], strides = [1, 1]} : vector<8x512xf32> to vector<8x128xf32>
    %480 = vector.extract_strided_slice %477 {offsets = [0, 256], sizes = [8, 128], strides = [1, 1]} : vector<8x512xf32> to vector<8x128xf32>
    %481 = vector.extract_strided_slice %477 {offsets = [0, 384], sizes = [8, 128], strides = [1, 1]} : vector<8x512xf32> to vector<8x128xf32>
    %482 = arith.mulf %479, %451 : vector<8x128xf32>
    %483 = arith.mulf %478, %481 : vector<8x128xf32>
    %484 = arith.addf %482, %483 : vector<8x128xf32>
    %485 = math.tanh %484 : vector<8x128xf32>
    %486 = arith.mulf %480, %485 : vector<8x128xf32>
    %487 = vector.extract_strided_slice %486 {offsets = [0, 0], sizes = [8, 64], strides = [1, 1]} : vector<8x128xf32> to vector<8x64xf32>
    %c32_179 = arith.constant 32 : index
    %c0_180 = arith.constant 0 : index
    %488 = vector.load %arg30[%c32_179, %c0_180] : memref<64x128xf32, #tpu.memory_space<vmem>>, vector<8x64xf32>
    tpu.vector_store %arg30[%c32_179, %c0_180], %487 {strides = array<i32>} : memref<64x128xf32, #tpu.memory_space<vmem>>, vector<8x64xf32>,
    %489 = vector.extract_strided_slice %486 {offsets = [0, 64], sizes = [8, 64], strides = [1, 1]} : vector<8x128xf32> to vector<8x64xf32>
    %c24_181 = arith.constant 24 : index
    %c64_182 = arith.constant 64 : index
    %490 = vector.load %arg30[%c24_181, %c64_182] : memref<64x128xf32, #tpu.memory_space<vmem>>, vector<8x64xf32>
    tpu.vector_store %arg30[%c24_181, %c64_182], %489 {strides = array<i32>} : memref<64x128xf32, #tpu.memory_space<vmem>>, vector<8x64xf32>,
    %c40_183 = arith.constant 40 : index
    %c0_184 = arith.constant 0 : index
    %491 = vector.load %arg28[%c40_183, %c0_184] : memref<64x512xf32, #tpu.memory_space<vmem>>, vector<8x512xf32>
    %c16_185 = arith.constant 16 : index
    %c0_186 = arith.constant 0 : index
    %492 = vector.load %arg28[%c16_185, %c0_186] : memref<64x512xf32, #tpu.memory_space<vmem>>, vector<8x512xf32>
    %493 = vector.shape_cast %321 : vector<1x512xi1> to vector<1x512xi1>
    %494 = vector.broadcast %493 : vector<1x512xi1> to vector<8x512xi1>
    %495 = arith.select %494, %491, %492 : vector<8x512xi1>, vector<8x512xf32>
    %cst_187 = arith.constant dense<0.000000e+00> : vector<8x512xf32>
    %496 = tpu.matmul %486, %297, %cst_187 {dimension_numbers = #tpu.dot_dimension_numbers<[1], [0], [0], [1], [0, 0, 1, 1], [], []>} : vector<8x128xf32>, vector<128x512xf32>, vector<8x512xf32> -> vector<8x512xf32>
    %497 = arith.addf %495, %496 : vector<8x512xf32>
    %cst_188 = arith.constant 5.000000e-01 : f32
    %498 = vector.broadcast %cst_188 : f32 to vector<8x512xf32>
    %499 = arith.mulf %498, %497 : vector<8x512xf32>
    %500 = vector.shape_cast %323 : vector<1x512xi1> to vector<1x512xi1>
    %501 = vector.broadcast %500 : vector<1x512xi1> to vector<8x512xi1>
    %502 = arith.select %501, %497, %499 : vector<8x512xi1>, vector<8x512xf32>
    %503 = math.tanh %502 : vector<8x512xf32>
    %cst_189 = arith.constant 5.000000e-01 : f32
    %504 = vector.broadcast %cst_189 : f32 to vector<8x512xf32>
    %505 = arith.mulf %504, %503 : vector<8x512xf32>
    %cst_190 = arith.constant 5.000000e-01 : f32
    %506 = vector.broadcast %cst_190 : f32 to vector<8x512xf32>
    %507 = arith.addf %505, %506 : vector<8x512xf32>
    %508 = vector.shape_cast %323 : vector<1x512xi1> to vector<1x512xi1>
    %509 = vector.broadcast %508 : vector<1x512xi1> to vector<8x512xi1>
    %510 = arith.select %509, %503, %507 : vector<8x512xi1>, vector<8x512xf32>
    %511 = vector.extract_strided_slice %510 {offsets = [0, 0], sizes = [8, 128], strides = [1, 1]} : vector<8x512xf32> to vector<8x128xf32>
    %512 = vector.extract_strided_slice %510 {offsets = [0, 128], sizes = [8, 128], strides = [1, 1]} : vector<8x512xf32> to vector<8x128xf32>
    %513 = vector.extract_strided_slice %510 {offsets = [0, 256], sizes = [8, 128], strides = [1, 1]} : vector<8x512xf32> to vector<8x128xf32>
    %514 = vector.extract_strided_slice %510 {offsets = [0, 384], sizes = [8, 128], strides = [1, 1]} : vector<8x512xf32> to vector<8x128xf32>
    %515 = arith.mulf %512, %484 : vector<8x128xf32>
    %516 = arith.mulf %511, %514 : vector<8x128xf32>
    %517 = arith.addf %515, %516 : vector<8x128xf32>
    %518 = math.tanh %517 : vector<8x128xf32>
    %519 = arith.mulf %513, %518 : vector<8x128xf32>
    %520 = vector.extract_strided_slice %519 {offsets = [0, 0], sizes = [8, 64], strides = [1, 1]} : vector<8x128xf32> to vector<8x64xf32>
    %c40_191 = arith.constant 40 : index
    %c0_192 = arith.constant 0 : index
    %521 = vector.load %arg30[%c40_191, %c0_192] : memref<64x128xf32, #tpu.memory_space<vmem>>, vector<8x64xf32>
    tpu.vector_store %arg30[%c40_191, %c0_192], %520 {strides = array<i32>} : memref<64x128xf32, #tpu.memory_space<vmem>>, vector<8x64xf32>,
    %522 = vector.extract_strided_slice %519 {offsets = [0, 64], sizes = [8, 64], strides = [1, 1]} : vector<8x128xf32> to vector<8x64xf32>
    %c16_193 = arith.constant 16 : index
    %c64_194 = arith.constant 64 : index
    %523 = vector.load %arg30[%c16_193, %c64_194] : memref<64x128xf32, #tpu.memory_space<vmem>>, vector<8x64xf32>
    tpu.vector_store %arg30[%c16_193, %c64_194], %522 {strides = array<i32>} : memref<64x128xf32, #tpu.memory_space<vmem>>, vector<8x64xf32>,
    %c48_195 = arith.constant 48 : index
    %c0_196 = arith.constant 0 : index
    %524 = vector.load %arg28[%c48_195, %c0_196] : memref<64x512xf32, #tpu.memory_space<vmem>>, vector<8x512xf32>
    %c8_197 = arith.constant 8 : index
    %c0_198 = arith.constant 0 : index
    %525 = vector.load %arg28[%c8_197, %c0_198] : memref<64x512xf32, #tpu.memory_space<vmem>>, vector<8x512xf32>
    %526 = vector.shape_cast %321 : vector<1x512xi1> to vector<1x512xi1>
    %527 = vector.broadcast %526 : vector<1x512xi1> to vector<8x512xi1>
    %528 = arith.select %527, %524, %525 : vector<8x512xi1>, vector<8x512xf32>
    %cst_199 = arith.constant dense<0.000000e+00> : vector<8x512xf32>
    %529 = tpu.matmul %519, %297, %cst_199 {dimension_numbers = #tpu.dot_dimension_numbers<[1], [0], [0], [1], [0, 0, 1, 1], [], []>} : vector<8x128xf32>, vector<128x512xf32>, vector<8x512xf32> -> vector<8x512xf32>
    %530 = arith.addf %528, %529 : vector<8x512xf32>
    %cst_200 = arith.constant 5.000000e-01 : f32
    %531 = vector.broadcast %cst_200 : f32 to vector<8x512xf32>
    %532 = arith.mulf %531, %530 : vector<8x512xf32>
    %533 = vector.shape_cast %323 : vector<1x512xi1> to vector<1x512xi1>
    %534 = vector.broadcast %533 : vector<1x512xi1> to vector<8x512xi1>
    %535 = arith.select %534, %530, %532 : vector<8x512xi1>, vector<8x512xf32>
    %536 = math.tanh %535 : vector<8x512xf32>
    %cst_201 = arith.constant 5.000000e-01 : f32
    %537 = vector.broadcast %cst_201 : f32 to vector<8x512xf32>
    %538 = arith.mulf %537, %536 : vector<8x512xf32>
    %cst_202 = arith.constant 5.000000e-01 : f32
    %539 = vector.broadcast %cst_202 : f32 to vector<8x512xf32>
    %540 = arith.addf %538, %539 : vector<8x512xf32>
    %541 = vector.shape_cast %323 : vector<1x512xi1> to vector<1x512xi1>
    %542 = vector.broadcast %541 : vector<1x512xi1> to vector<8x512xi1>
    %543 = arith.select %542, %536, %540 : vector<8x512xi1>, vector<8x512xf32>
    %544 = vector.extract_strided_slice %543 {offsets = [0, 0], sizes = [8, 128], strides = [1, 1]} : vector<8x512xf32> to vector<8x128xf32>
    %545 = vector.extract_strided_slice %543 {offsets = [0, 128], sizes = [8, 128], strides = [1, 1]} : vector<8x512xf32> to vector<8x128xf32>
    %546 = vector.extract_strided_slice %543 {offsets = [0, 256], sizes = [8, 128], strides = [1, 1]} : vector<8x512xf32> to vector<8x128xf32>
    %547 = vector.extract_strided_slice %543 {offsets = [0, 384], sizes = [8, 128], strides = [1, 1]} : vector<8x512xf32> to vector<8x128xf32>
    %548 = arith.mulf %545, %517 : vector<8x128xf32>
    %549 = arith.mulf %544, %547 : vector<8x128xf32>
    %550 = arith.addf %548, %549 : vector<8x128xf32>
    %551 = math.tanh %550 : vector<8x128xf32>
    %552 = arith.mulf %546, %551 : vector<8x128xf32>
    %553 = vector.extract_strided_slice %552 {offsets = [0, 0], sizes = [8, 64], strides = [1, 1]} : vector<8x128xf32> to vector<8x64xf32>
    %c48_203 = arith.constant 48 : index
    %c0_204 = arith.constant 0 : index
    %554 = vector.load %arg30[%c48_203, %c0_204] : memref<64x128xf32, #tpu.memory_space<vmem>>, vector<8x64xf32>
    tpu.vector_store %arg30[%c48_203, %c0_204], %553 {strides = array<i32>} : memref<64x128xf32, #tpu.memory_space<vmem>>, vector<8x64xf32>,
    %555 = vector.extract_strided_slice %552 {offsets = [0, 64], sizes = [8, 64], strides = [1, 1]} : vector<8x128xf32> to vector<8x64xf32>
    %c8_205 = arith.constant 8 : index
    %c64_206 = arith.constant 64 : index
    %556 = vector.load %arg30[%c8_205, %c64_206] : memref<64x128xf32, #tpu.memory_space<vmem>>, vector<8x64xf32>
    tpu.vector_store %arg30[%c8_205, %c64_206], %555 {strides = array<i32>} : memref<64x128xf32, #tpu.memory_space<vmem>>, vector<8x64xf32>,
    %c56_207 = arith.constant 56 : index
    %c0_208 = arith.constant 0 : index
    %557 = vector.load %arg28[%c56_207, %c0_208] : memref<64x512xf32, #tpu.memory_space<vmem>>, vector<8x512xf32>
    %c0_209 = arith.constant 0 : index
    %c0_210 = arith.constant 0 : index
    %558 = vector.load %arg28[%c0_209, %c0_210] : memref<64x512xf32, #tpu.memory_space<vmem>>, vector<8x512xf32>
    %559 = vector.shape_cast %321 : vector<1x512xi1> to vector<1x512xi1>
    %560 = vector.broadcast %559 : vector<1x512xi1> to vector<8x512xi1>
    %561 = arith.select %560, %557, %558 : vector<8x512xi1>, vector<8x512xf32>
    %cst_211 = arith.constant dense<0.000000e+00> : vector<8x512xf32>
    %562 = tpu.matmul %552, %297, %cst_211 {dimension_numbers = #tpu.dot_dimension_numbers<[1], [0], [0], [1], [0, 0, 1, 1], [], []>} : vector<8x128xf32>, vector<128x512xf32>, vector<8x512xf32> -> vector<8x512xf32>
    %563 = arith.addf %561, %562 : vector<8x512xf32>
    %cst_212 = arith.constant 5.000000e-01 : f32
    %564 = vector.broadcast %cst_212 : f32 to vector<8x512xf32>
    %565 = arith.mulf %564, %563 : vector<8x512xf32>
    %566 = vector.shape_cast %323 : vector<1x512xi1> to vector<1x512xi1>
    %567 = vector.broadcast %566 : vector<1x512xi1> to vector<8x512xi1>
    %568 = arith.select %567, %563, %565 : vector<8x512xi1>, vector<8x512xf32>
    %569 = math.tanh %568 : vector<8x512xf32>
    %cst_213 = arith.constant 5.000000e-01 : f32
    %570 = vector.broadcast %cst_213 : f32 to vector<8x512xf32>
    %571 = arith.mulf %570, %569 : vector<8x512xf32>
    %cst_214 = arith.constant 5.000000e-01 : f32
    %572 = vector.broadcast %cst_214 : f32 to vector<8x512xf32>
    %573 = arith.addf %571, %572 : vector<8x512xf32>
    %574 = vector.shape_cast %323 : vector<1x512xi1> to vector<1x512xi1>
    %575 = vector.broadcast %574 : vector<1x512xi1> to vector<8x512xi1>
    %576 = arith.select %575, %569, %573 : vector<8x512xi1>, vector<8x512xf32>
    %577 = vector.extract_strided_slice %576 {offsets = [0, 0], sizes = [8, 128], strides = [1, 1]} : vector<8x512xf32> to vector<8x128xf32>
    %578 = vector.extract_strided_slice %576 {offsets = [0, 128], sizes = [8, 128], strides = [1, 1]} : vector<8x512xf32> to vector<8x128xf32>
    %579 = vector.extract_strided_slice %576 {offsets = [0, 256], sizes = [8, 128], strides = [1, 1]} : vector<8x512xf32> to vector<8x128xf32>
    %580 = vector.extract_strided_slice %576 {offsets = [0, 384], sizes = [8, 128], strides = [1, 1]} : vector<8x512xf32> to vector<8x128xf32>
    %581 = arith.mulf %578, %550 : vector<8x128xf32>
    %582 = arith.mulf %577, %580 : vector<8x128xf32>
    %583 = arith.addf %581, %582 : vector<8x128xf32>
    %584 = math.tanh %583 : vector<8x128xf32>
    %585 = arith.mulf %579, %584 : vector<8x128xf32>
    %586 = vector.extract_strided_slice %585 {offsets = [0, 0], sizes = [8, 64], strides = [1, 1]} : vector<8x128xf32> to vector<8x64xf32>
    %c56_215 = arith.constant 56 : index
    %c0_216 = arith.constant 0 : index
    %587 = vector.load %arg30[%c56_215, %c0_216] : memref<64x128xf32, #tpu.memory_space<vmem>>, vector<8x64xf32>
    tpu.vector_store %arg30[%c56_215, %c0_216], %586 {strides = array<i32>} : memref<64x128xf32, #tpu.memory_space<vmem>>, vector<8x64xf32>,
    %588 = vector.extract_strided_slice %585 {offsets = [0, 64], sizes = [8, 64], strides = [1, 1]} : vector<8x128xf32> to vector<8x64xf32>
    %c0_217 = arith.constant 0 : index
    %c64_218 = arith.constant 64 : index
    %589 = vector.load %arg30[%c0_217, %c64_218] : memref<64x128xf32, #tpu.memory_space<vmem>>, vector<8x64xf32>
    tpu.vector_store %arg30[%c0_217, %c64_218], %588 {strides = array<i32>} : memref<64x128xf32, #tpu.memory_space<vmem>>, vector<8x64xf32>,
    %c0_219 = arith.constant 0 : index
    %c0_220 = arith.constant 0 : index
    %590 = vector.load %arg30[%c0_219, %c0_220] : memref<64x128xf32, #tpu.memory_space<vmem>>, vector<64x128xf32>
    %591 = vector.extract_strided_slice %290 {offsets = [0, 0], sizes = [8, 32], strides = [1, 1]} : vector<8x128xf32> to vector<8x32xf32>
    %592 = vector.extract_strided_slice %290 {offsets = [0, 64], sizes = [8, 32], strides = [1, 1]} : vector<8x128xf32> to vector<8x32xf32>
    %593 = vector.extract_strided_slice %585 {offsets = [0, 0], sizes = [8, 32], strides = [1, 1]} : vector<8x128xf32> to vector<8x32xf32>
    %594 = vector.extract_strided_slice %585 {offsets = [0, 64], sizes = [8, 32], strides = [1, 1]} : vector<8x128xf32> to vector<8x32xf32>
    %595 = tpu.concatenate %591, %592, %593, %594 in 1 : vector<8x32xf32>, vector<8x32xf32>, vector<8x32xf32>, vector<8x32xf32> -> vector<8x128xf32>
    %c0_221 = arith.constant 0 : index
    %c0_222 = arith.constant 0 : index
    %596 = vector.load %arg17[%c0_221, %c0_222] : memref<128x128xf32, #tpu.memory_space<vmem>>, vector<128x128xf32>
    %cst_223 = arith.constant dense<0.000000e+00> : vector<64x128xf32>
    %597 = tpu.matmul %590, %596, %cst_223 {dimension_numbers = #tpu.dot_dimension_numbers<[1], [0], [0], [1], [0, 0, 1, 1], [], []>} : vector<64x128xf32>, vector<128x128xf32>, vector<64x128xf32> -> vector<64x128xf32>
    %598 = vector.extract_strided_slice %597 {offsets = [0, 0], sizes = [8, 128], strides = [1, 1]} : vector<64x128xf32> to vector<8x128xf32>
    %599 = arith.mulf %598, %595 : vector<8x128xf32>
    %cst_224 = arith.constant dense<0.000000e+00> : vector<8xf32>
    %600 = vector.multi_reduction <add>, %599, %cst_224 [1] : vector<8x128xf32> to vector<8xf32>
    %601 = vector.shape_cast %600 : vector<8xf32> to vector<8x1xf32>
    %602 = vector.extract_strided_slice %597 {offsets = [8, 0], sizes = [8, 128], strides = [1, 1]} : vector<64x128xf32> to vector<8x128xf32>
    %603 = arith.mulf %602, %595 : vector<8x128xf32>
    %cst_225 = arith.constant dense<0.000000e+00> : vector<8xf32>
    %604 = vector.multi_reduction <add>, %603, %cst_225 [1] : vector<8x128xf32> to vector<8xf32>
    %605 = vector.shape_cast %604 : vector<8xf32> to vector<8x1xf32>
    %606 = vector.extract_strided_slice %597 {offsets = [16, 0], sizes = [8, 128], strides = [1, 1]} : vector<64x128xf32> to vector<8x128xf32>
    %607 = arith.mulf %606, %595 : vector<8x128xf32>
    %cst_226 = arith.constant dense<0.000000e+00> : vector<8xf32>
    %608 = vector.multi_reduction <add>, %607, %cst_226 [1] : vector<8x128xf32> to vector<8xf32>
    %609 = vector.shape_cast %608 : vector<8xf32> to vector<8x1xf32>
    %610 = vector.extract_strided_slice %597 {offsets = [24, 0], sizes = [8, 128], strides = [1, 1]} : vector<64x128xf32> to vector<8x128xf32>
    %611 = arith.mulf %610, %595 : vector<8x128xf32>
    %cst_227 = arith.constant dense<0.000000e+00> : vector<8xf32>
    %612 = vector.multi_reduction <add>, %611, %cst_227 [1] : vector<8x128xf32> to vector<8xf32>
    %613 = vector.shape_cast %612 : vector<8xf32> to vector<8x1xf32>
    %614 = vector.extract_strided_slice %597 {offsets = [32, 0], sizes = [8, 128], strides = [1, 1]} : vector<64x128xf32> to vector<8x128xf32>
    %615 = arith.mulf %614, %595 : vector<8x128xf32>
    %cst_228 = arith.constant dense<0.000000e+00> : vector<8xf32>
    %616 = vector.multi_reduction <add>, %615, %cst_228 [1] : vector<8x128xf32> to vector<8xf32>
    %617 = vector.shape_cast %616 : vector<8xf32> to vector<8x1xf32>
    %618 = vector.extract_strided_slice %597 {offsets = [40, 0], sizes = [8, 128], strides = [1, 1]} : vector<64x128xf32> to vector<8x128xf32>
    %619 = arith.mulf %618, %595 : vector<8x128xf32>
    %cst_229 = arith.constant dense<0.000000e+00> : vector<8xf32>
    %620 = vector.multi_reduction <add>, %619, %cst_229 [1] : vector<8x128xf32> to vector<8xf32>
    %621 = vector.shape_cast %620 : vector<8xf32> to vector<8x1xf32>
    %622 = vector.extract_strided_slice %597 {offsets = [48, 0], sizes = [8, 128], strides = [1, 1]} : vector<64x128xf32> to vector<8x128xf32>
    %623 = arith.mulf %622, %595 : vector<8x128xf32>
    %cst_230 = arith.constant dense<0.000000e+00> : vector<8xf32>
    %624 = vector.multi_reduction <add>, %623, %cst_230 [1] : vector<8x128xf32> to vector<8xf32>
    %625 = vector.shape_cast %624 : vector<8xf32> to vector<8x1xf32>
    %626 = vector.extract_strided_slice %597 {offsets = [56, 0], sizes = [8, 128], strides = [1, 1]} : vector<64x128xf32> to vector<8x128xf32>
    %627 = arith.mulf %626, %595 : vector<8x128xf32>
    %cst_231 = arith.constant dense<0.000000e+00> : vector<8xf32>
    %628 = vector.multi_reduction <add>, %627, %cst_231 [1] : vector<8x128xf32> to vector<8xf32>
    %629 = vector.shape_cast %628 : vector<8xf32> to vector<8x1xf32>
    %630 = tpu.concatenate %601, %605, %609, %613, %617, %621, %625, %629 in 1 : vector<8x1xf32>, vector<8x1xf32>, vector<8x1xf32>, vector<8x1xf32>, vector<8x1xf32>, vector<8x1xf32>, vector<8x1xf32>, vector<8x1xf32> -> vector<8x8xf32>
    %cst_232 = arith.constant dense<0xFF800000> : vector<8xf32>
    %631 = vector.multi_reduction <maximumf>, %630, %cst_232 [1] : vector<8x8xf32> to vector<8xf32>
    %632 = vector.shape_cast %631 : vector<8xf32> to vector<8x1xf32>
    %633 = vector.broadcast %632 : vector<8x1xf32> to vector<8x8xf32>
    %634 = arith.subf %630, %633 : vector<8x8xf32>
    %635 = math.exp %634 : vector<8x8xf32>
    %cst_233 = arith.constant dense<0.000000e+00> : vector<8xf32>
    %636 = vector.multi_reduction <add>, %635, %cst_233 [1] : vector<8x8xf32> to vector<8xf32>
    %637 = vector.shape_cast %636 : vector<8xf32> to vector<8x1xf32>
    %638 = vector.broadcast %637 : vector<8x1xf32> to vector<8x8xf32>
    %639 = arith.divf %635, %638 : vector<8x8xf32>
    %cst_234 = arith.constant 0.000000e+00 : f32
    %640 = vector.broadcast %cst_234 : f32 to vector<8x128xf32>
    %641 = vector.extract_strided_slice %639 {offsets = [0, 0], sizes = [8, 1], strides = [1, 1]} : vector<8x8xf32> to vector<8x1xf32>
    %642 = vector.extract_strided_slice %590 {offsets = [0, 0], sizes = [8, 128], strides = [1, 1]} : vector<64x128xf32> to vector<8x128xf32>
    %643 = vector.broadcast %641 : vector<8x1xf32> to vector<8x128xf32>
    %644 = arith.mulf %643, %642 : vector<8x128xf32>
    %645 = arith.addf %640, %644 : vector<8x128xf32>
    %646 = vector.extract_strided_slice %639 {offsets = [0, 1], sizes = [8, 1], strides = [1, 1]} : vector<8x8xf32> to vector<8x1xf32>
    %647 = vector.extract_strided_slice %590 {offsets = [8, 0], sizes = [8, 128], strides = [1, 1]} : vector<64x128xf32> to vector<8x128xf32>
    %648 = vector.broadcast %646 : vector<8x1xf32> to vector<8x128xf32>
    %649 = arith.mulf %648, %647 : vector<8x128xf32>
    %650 = arith.addf %645, %649 : vector<8x128xf32>
    %651 = vector.extract_strided_slice %639 {offsets = [0, 2], sizes = [8, 1], strides = [1, 1]} : vector<8x8xf32> to vector<8x1xf32>
    %652 = vector.extract_strided_slice %590 {offsets = [16, 0], sizes = [8, 128], strides = [1, 1]} : vector<64x128xf32> to vector<8x128xf32>
    %653 = vector.broadcast %651 : vector<8x1xf32> to vector<8x128xf32>
    %654 = arith.mulf %653, %652 : vector<8x128xf32>
    %655 = arith.addf %650, %654 : vector<8x128xf32>
    %656 = vector.extract_strided_slice %639 {offsets = [0, 3], sizes = [8, 1], strides = [1, 1]} : vector<8x8xf32> to vector<8x1xf32>
    %657 = vector.extract_strided_slice %590 {offsets = [24, 0], sizes = [8, 128], strides = [1, 1]} : vector<64x128xf32> to vector<8x128xf32>
    %658 = vector.broadcast %656 : vector<8x1xf32> to vector<8x128xf32>
    %659 = arith.mulf %658, %657 : vector<8x128xf32>
    %660 = arith.addf %655, %659 : vector<8x128xf32>
    %661 = vector.extract_strided_slice %639 {offsets = [0, 4], sizes = [8, 1], strides = [1, 1]} : vector<8x8xf32> to vector<8x1xf32>
    %662 = vector.extract_strided_slice %590 {offsets = [32, 0], sizes = [8, 128], strides = [1, 1]} : vector<64x128xf32> to vector<8x128xf32>
    %663 = vector.broadcast %661 : vector<8x1xf32> to vector<8x128xf32>
    %664 = arith.mulf %663, %662 : vector<8x128xf32>
    %665 = arith.addf %660, %664 : vector<8x128xf32>
    %666 = vector.extract_strided_slice %639 {offsets = [0, 5], sizes = [8, 1], strides = [1, 1]} : vector<8x8xf32> to vector<8x1xf32>
    %667 = vector.extract_strided_slice %590 {offsets = [40, 0], sizes = [8, 128], strides = [1, 1]} : vector<64x128xf32> to vector<8x128xf32>
    %668 = vector.broadcast %666 : vector<8x1xf32> to vector<8x128xf32>
    %669 = arith.mulf %668, %667 : vector<8x128xf32>
    %670 = arith.addf %665, %669 : vector<8x128xf32>
    %671 = vector.extract_strided_slice %639 {offsets = [0, 6], sizes = [8, 1], strides = [1, 1]} : vector<8x8xf32> to vector<8x1xf32>
    %672 = vector.extract_strided_slice %590 {offsets = [48, 0], sizes = [8, 128], strides = [1, 1]} : vector<64x128xf32> to vector<8x128xf32>
    %673 = vector.broadcast %671 : vector<8x1xf32> to vector<8x128xf32>
    %674 = arith.mulf %673, %672 : vector<8x128xf32>
    %675 = arith.addf %670, %674 : vector<8x128xf32>
    %676 = vector.extract_strided_slice %639 {offsets = [0, 7], sizes = [8, 1], strides = [1, 1]} : vector<8x8xf32> to vector<8x1xf32>
    %677 = vector.extract_strided_slice %590 {offsets = [56, 0], sizes = [8, 128], strides = [1, 1]} : vector<64x128xf32> to vector<8x128xf32>
    %678 = vector.broadcast %676 : vector<8x1xf32> to vector<8x128xf32>
    %679 = arith.mulf %678, %677 : vector<8x128xf32>
    %680 = arith.addf %675, %679 : vector<8x128xf32>
    %681 = vector.extract_strided_slice %680 {offsets = [0, 0], sizes = [8, 32], strides = [1, 1]} : vector<8x128xf32> to vector<8x32xf32>
    %682 = vector.extract_strided_slice %680 {offsets = [0, 64], sizes = [8, 32], strides = [1, 1]} : vector<8x128xf32> to vector<8x32xf32>
    %683 = tpu.concatenate %681, %682 in 1 : vector<8x32xf32>, vector<8x32xf32> -> vector<8x64xf32>
    %c0_235 = arith.constant 0 : index
    %c0_236 = arith.constant 0 : index
    %684 = vector.load %arg24[%c0_235, %c0_236] : memref<8x64xf32, #tpu.memory_space<vmem>>, vector<8x64xf32>
    tpu.vector_store %arg24[%c0_235, %c0_236], %683 {strides = array<i32>} : memref<8x64xf32, #tpu.memory_space<vmem>>, vector<8x64xf32>,
    %c0_237 = arith.constant 0 : index
    %c0_238 = arith.constant 0 : index
    %685 = vector.load %arg18[%c0_237, %c0_238] : memref<64x5xf32, #tpu.memory_space<vmem>>, vector<64x5xf32>
    %c0_239 = arith.constant 0 : index
    %c0_240 = arith.constant 0 : index
    %686 = vector.load %arg19[%c0_239, %c0_240] : memref<1x5xf32, #tpu.memory_space<vmem>>, vector<1x5xf32>
    %c0_241 = arith.constant 0 : index
    %c0_242 = arith.constant 0 : index
    %687 = vector.load %arg3[%c0_241, %c0_242] : memref<8x1xi32, #tpu.memory_space<vmem>>, vector<8x1xi32>
    %cst_243 = arith.constant dense<0.000000e+00> : vector<8x5xf32>
    %688 = tpu.matmul %683, %685, %cst_243 {dimension_numbers = #tpu.dot_dimension_numbers<[1], [0], [0], [1], [0, 0, 1, 1], [], []>} : vector<8x64xf32>, vector<64x5xf32>, vector<8x5xf32> -> vector<8x5xf32>
    %689 = vector.broadcast %686 : vector<1x5xf32> to vector<8x5xf32>
    %690 = arith.addf %688, %689 : vector<8x5xf32>
    %cst_244 = arith.constant dense<0xFF800000> : vector<8xf32>
    %691 = vector.multi_reduction <maximumf>, %690, %cst_244 [1] : vector<8x5xf32> to vector<8xf32>
    %692 = vector.shape_cast %691 : vector<8xf32> to vector<8x1xf32>
    %693 = vector.broadcast %692 : vector<8x1xf32> to vector<8x5xf32>
    %694 = arith.subf %690, %693 : vector<8x5xf32>
    %695 = math.exp %694 : vector<8x5xf32>
    %cst_245 = arith.constant dense<0.000000e+00> : vector<8xf32>
    %696 = vector.multi_reduction <add>, %695, %cst_245 [1] : vector<8x5xf32> to vector<8xf32>
    %697 = vector.shape_cast %696 : vector<8xf32> to vector<8x1xf32>
    %698 = math.log %697 : vector<8x1xf32>
    %699 = arith.addf %698, %692 : vector<8x1xf32>
    %700 = vector.broadcast %699 : vector<8x1xf32> to vector<8x5xf32>
    %701 = arith.subf %690, %700 : vector<8x5xf32>
    %702 = tpu.iota {dimensions = array<i32: 1>} : vector<8x5xi32>
    %703 = vector.broadcast %687 : vector<8x1xi32> to vector<8x5xi32>
    %704 = arith.cmpi eq, %702, %703 : vector<8x5xi32>
    %705 = arith.extui %704 : vector<8x5xi1> to vector<8x5xi32>
    %706 = arith.sitofp %705 : vector<8x5xi32> to vector<8x5xf32>
    %707 = arith.mulf %701, %706 : vector<8x5xf32>
    %cst_246 = arith.constant dense<0.000000e+00> : vector<8xf32>
    %708 = vector.multi_reduction <add>, %707, %cst_246 [1] : vector<8x5xf32> to vector<8xf32>
    %709 = vector.shape_cast %708 : vector<8xf32> to vector<8x1xf32>
    %cst_247 = arith.constant 0.000000e+00 : f32
    %710 = vector.broadcast %cst_247 : f32 to vector<8x1xf32>
    %711 = arith.subf %710, %709 : vector<8x1xf32>
    %c0_248 = arith.constant 0 : index
    %c0_249 = arith.constant 0 : index
    %712 = vector.load %arg20[%c0_248, %c0_249] : memref<128x2xf32, #tpu.memory_space<vmem>>, vector<128x2xf32>
    %cst_250 = arith.constant dense<0.000000e+00> : vector<64x2xf32>
    %713 = tpu.matmul %590, %712, %cst_250 {dimension_numbers = #tpu.dot_dimension_numbers<[1], [0], [0], [1], [0, 0, 1, 1], [], []>} : vector<64x128xf32>, vector<128x2xf32>, vector<64x2xf32> -> vector<64x2xf32>
    %c0_251 = arith.constant 0 : index
    %c0_252 = arith.constant 0 : index
    %714 = vector.load %arg21[%c0_251, %c0_252] : memref<1x2xf32, #tpu.memory_space<vmem>>, vector<1x2xf32>
    %715 = vector.broadcast %714 : vector<1x2xf32> to vector<64x2xf32>
    %716 = arith.addf %713, %715 : vector<64x2xf32>
    %cst_253 = arith.constant dense<0xFF800000> : vector<64xf32>
    %717 = vector.multi_reduction <maximumf>, %716, %cst_253 [1] : vector<64x2xf32> to vector<64xf32>
    %718 = vector.shape_cast %717 : vector<64xf32> to vector<64x1xf32>
    %719 = vector.broadcast %718 : vector<64x1xf32> to vector<64x2xf32>
    %720 = arith.subf %716, %719 : vector<64x2xf32>
    %721 = math.exp %720 : vector<64x2xf32>
    %cst_254 = arith.constant dense<0.000000e+00> : vector<64xf32>
    %722 = vector.multi_reduction <add>, %721, %cst_254 [1] : vector<64x2xf32> to vector<64xf32>
    %723 = vector.shape_cast %722 : vector<64xf32> to vector<64x1xf32>
    %724 = math.log %723 : vector<64x1xf32>
    %725 = arith.addf %724, %718 : vector<64x1xf32>
    %726 = vector.broadcast %725 : vector<64x1xf32> to vector<64x2xf32>
    %727 = arith.subf %716, %726 : vector<64x2xf32>
    %728 = math.exp %727 : vector<64x2xf32>
    %c0_255 = arith.constant 0 : index
    %c0_256 = arith.constant 0 : index
    %729 = vector.load %arg4[%c0_255, %c0_256] : memref<1x2xf32, #tpu.memory_space<vmem>>, vector<1x2xf32>
    %730 = vector.broadcast %729 : vector<1x2xf32> to vector<64x2xf32>
    %731 = arith.subf %727, %730 : vector<64x2xf32>
    %732 = arith.mulf %728, %731 : vector<64x2xf32>
    %cst_257 = arith.constant 9.99999997E-7 : f32
    %733 = vector.broadcast %cst_257 : f32 to vector<64x2xf32>
    %734 = arith.addf %732, %733 : vector<64x2xf32>
    %cst_258 = arith.constant dense<0.000000e+00> : vector<64xf32>
    %735 = vector.multi_reduction <add>, %734, %cst_258 [1] : vector<64x2xf32> to vector<64xf32>
    %736 = vector.shape_cast %735 : vector<64xf32> to vector<64x1xf32>
    %737 = vector.extract_strided_slice %736 {offsets = [0, 0], sizes = [8, 1], strides = [1, 1]} : vector<64x1xf32> to vector<8x1xf32>
    %738 = vector.extract_strided_slice %736 {offsets = [8, 0], sizes = [8, 1], strides = [1, 1]} : vector<64x1xf32> to vector<8x1xf32>
    %739 = arith.addf %737, %738 : vector<8x1xf32>
    %740 = vector.extract_strided_slice %736 {offsets = [16, 0], sizes = [8, 1], strides = [1, 1]} : vector<64x1xf32> to vector<8x1xf32>
    %741 = arith.addf %739, %740 : vector<8x1xf32>
    %742 = vector.extract_strided_slice %736 {offsets = [24, 0], sizes = [8, 1], strides = [1, 1]} : vector<64x1xf32> to vector<8x1xf32>
    %743 = arith.addf %741, %742 : vector<8x1xf32>
    %744 = vector.extract_strided_slice %736 {offsets = [32, 0], sizes = [8, 1], strides = [1, 1]} : vector<64x1xf32> to vector<8x1xf32>
    %745 = arith.addf %743, %744 : vector<8x1xf32>
    %746 = vector.extract_strided_slice %736 {offsets = [40, 0], sizes = [8, 1], strides = [1, 1]} : vector<64x1xf32> to vector<8x1xf32>
    %747 = arith.addf %745, %746 : vector<8x1xf32>
    %748 = vector.extract_strided_slice %736 {offsets = [48, 0], sizes = [8, 1], strides = [1, 1]} : vector<64x1xf32> to vector<8x1xf32>
    %749 = arith.addf %747, %748 : vector<8x1xf32>
    %750 = vector.extract_strided_slice %736 {offsets = [56, 0], sizes = [8, 1], strides = [1, 1]} : vector<64x1xf32> to vector<8x1xf32>
    %751 = arith.addf %749, %750 : vector<8x1xf32>
    %cst_259 = arith.constant 0.00999999977 : f32
    %752 = vector.broadcast %cst_259 : f32 to vector<8x1xf32>
    %753 = arith.mulf %751, %752 : vector<8x1xf32>
    %c0_260 = arith.constant 0 : index
    %c0_261 = arith.constant 0 : index
    %754 = vector.load %arg1[%c0_260, %c0_261] : memref<64x1xf32, #tpu.memory_space<vmem>>, vector<64x1xf32>
    %c0_262 = arith.constant 0 : index
    %c0_263 = arith.constant 0 : index
    %755 = vector.load %arg2[%c0_262, %c0_263] : memref<64x2xf32, #tpu.memory_space<vmem>>, vector<64x2xf32>
    %756 = arith.addf %716, %755 : vector<64x2xf32>
    %757 = vector.extract_strided_slice %756 {offsets = [0, 1], sizes = [64, 1], strides = [1, 1]} : vector<64x2xf32> to vector<64x1xf32>
    %758 = vector.extract_strided_slice %756 {offsets = [0, 0], sizes = [64, 1], strides = [1, 1]} : vector<64x2xf32> to vector<64x1xf32>
    %759 = arith.cmpf ogt, %757, %758 : vector<64x1xf32>
    %cst_264 = arith.constant 1.000000e+00 : f32
    %cst_265 = arith.constant 0.000000e+00 : f32
    %760 = vector.broadcast %cst_264 : f32 to vector<64x1xf32>
    %761 = vector.broadcast %cst_265 : f32 to vector<64x1xf32>
    %762 = arith.select %759, %760, %761 : vector<64x1xi1>, vector<64x1xf32>
    %763 = arith.mulf %762, %754 : vector<64x1xf32>
    %cst_266 = arith.constant 0.000000e+00 : f32
    %764 = vector.broadcast %cst_266 : f32 to vector<64x1xf32>
    %765 = arith.cmpf oeq, %763, %764 : vector<64x1xf32>
    %766 = vector.extract_strided_slice %727 {offsets = [0, 0], sizes = [64, 1], strides = [1, 1]} : vector<64x2xf32> to vector<64x1xf32>
    %767 = vector.extract_strided_slice %727 {offsets = [0, 1], sizes = [64, 1], strides = [1, 1]} : vector<64x2xf32> to vector<64x1xf32>
    %768 = arith.select %765, %766, %767 : vector<64x1xi1>, vector<64x1xf32>
    %769 = arith.mulf %768, %754 : vector<64x1xf32>
    %770 = vector.extract_strided_slice %769 {offsets = [0, 0], sizes = [8, 1], strides = [1, 1]} : vector<64x1xf32> to vector<8x1xf32>
    %771 = vector.extract_strided_slice %769 {offsets = [8, 0], sizes = [8, 1], strides = [1, 1]} : vector<64x1xf32> to vector<8x1xf32>
    %772 = vector.extract_strided_slice %769 {offsets = [16, 0], sizes = [8, 1], strides = [1, 1]} : vector<64x1xf32> to vector<8x1xf32>
    %773 = vector.extract_strided_slice %769 {offsets = [24, 0], sizes = [8, 1], strides = [1, 1]} : vector<64x1xf32> to vector<8x1xf32>
    %774 = vector.extract_strided_slice %769 {offsets = [32, 0], sizes = [8, 1], strides = [1, 1]} : vector<64x1xf32> to vector<8x1xf32>
    %775 = vector.extract_strided_slice %769 {offsets = [40, 0], sizes = [8, 1], strides = [1, 1]} : vector<64x1xf32> to vector<8x1xf32>
    %776 = vector.extract_strided_slice %769 {offsets = [48, 0], sizes = [8, 1], strides = [1, 1]} : vector<64x1xf32> to vector<8x1xf32>
    %777 = vector.extract_strided_slice %769 {offsets = [56, 0], sizes = [8, 1], strides = [1, 1]} : vector<64x1xf32> to vector<8x1xf32>
    %778 = tpu.concatenate %770, %771, %772, %773, %774, %775, %776, %777 in 1 : vector<8x1xf32>, vector<8x1xf32>, vector<8x1xf32>, vector<8x1xf32>, vector<8x1xf32>, vector<8x1xf32>, vector<8x1xf32>, vector<8x1xf32> -> vector<8x8xf32>
    %c0_267 = arith.constant 0 : index
    %c0_268 = arith.constant 0 : index
    %779 = vector.load %arg27[%c0_267, %c0_268] : memref<8x8xf32, #tpu.memory_space<vmem>>, vector<8x8xf32>
    tpu.vector_store %arg27[%c0_267, %c0_268], %778 {strides = array<i32>} : memref<8x8xf32, #tpu.memory_space<vmem>>, vector<8x8xf32>,
    %780 = vector.broadcast %763 : vector<64x1xf32> to vector<64x32xf32>
    %781 = arith.mulf %0, %780 : vector<64x32xf32>
    %c0_269 = arith.constant 0 : index
    %c0_270 = arith.constant 0 : index
    %782 = vector.load %arg11[%c0_269, %c0_270] : memref<32x256xf32, #tpu.memory_space<vmem>>, vector<32x256xf32>
    %c0_271 = arith.constant 0 : index
    %c0_272 = arith.constant 0 : index
    %783 = vector.load %arg12[%c0_271, %c0_272] : memref<64x256xf32, #tpu.memory_space<vmem>>, vector<64x256xf32>
    %c0_273 = arith.constant 0 : index
    %c0_274 = arith.constant 0 : index
    %784 = vector.load %arg13[%c0_273, %c0_274] : memref<1x256xf32, #tpu.memory_space<vmem>>, vector<1x256xf32>
    %cst_275 = arith.constant dense<0.000000e+00> : vector<64x256xf32>
    %785 = tpu.matmul %781, %782, %cst_275 {dimension_numbers = #tpu.dot_dimension_numbers<[1], [0], [0], [1], [0, 0, 1, 1], [], []>} : vector<64x32xf32>, vector<32x256xf32>, vector<64x256xf32> -> vector<64x256xf32>
    %786 = vector.broadcast %784 : vector<1x256xf32> to vector<64x256xf32>
    %787 = arith.addf %785, %786 : vector<64x256xf32>
    %c0_276 = arith.constant 0 : index
    %c0_277 = arith.constant 0 : index
    %788 = vector.load %arg28[%c0_276, %c0_277] : memref<64x512xf32, #tpu.memory_space<vmem>>, vector<64x256xf32>
    tpu.vector_store %arg28[%c0_276, %c0_277], %787 {strides = array<i32>} : memref<64x512xf32, #tpu.memory_space<vmem>>, vector<64x256xf32>,
    %789 = tpu.iota {dimensions = array<i32: 1>} : vector<1x256xi32>
    %c64_i32_278 = arith.constant 64 : i32
    %c0_i32_279 = arith.constant 0 : i32
    %790 = arith.cmpi eq, %c64_i32_278, %c0_i32_279 : i32
    %c1_i32_280 = arith.constant 1 : i32
    %791 = arith.select %790, %c1_i32_280, %c64_i32_278 : i32
    %792 = vector.broadcast %791 : i32 to vector<1x256xi32>
    %793 = arith.remsi %789, %792 : vector<1x256xi32>
    %c0_i32_281 = arith.constant 0 : i32
    %794 = vector.broadcast %c0_i32_281 : i32 to vector<1x256xi32>
    %795 = arith.cmpi ne, %793, %794 : vector<1x256xi32>
    %c0_i32_282 = arith.constant 0 : i32
    %796 = vector.broadcast %c0_i32_282 : i32 to vector<1x256xi32>
    %797 = arith.cmpi slt, %793, %796 : vector<1x256xi32>
    %c0_i32_283 = arith.constant 0 : i32
    %798 = arith.cmpi slt, %791, %c0_i32_283 : i32
    %799 = vector.broadcast %798 : i1 to vector<1x256xi1>
    %800 = vector.broadcast %799 : vector<1x256xi1> to vector<1x256xi1>
    %801 = arith.xori %797, %800 : vector<1x256xi1>
    %802 = arith.andi %801, %795 : vector<1x256xi1>
    %803 = vector.broadcast %791 : i32 to vector<1x256xi32>
    %804 = arith.addi %793, %803 : vector<1x256xi32>
    %805 = arith.select %802, %804, %793 : vector<1x256xi1>, vector<1x256xi32>
    %c32_i32 = arith.constant 32 : i32
    %806 = vector.broadcast %c32_i32 : i32 to vector<1x256xi32>
    %807 = arith.cmpi slt, %805, %806 : vector<1x256xi32>
    %c192_i32 = arith.constant 192 : i32
    %808 = vector.broadcast %c192_i32 : i32 to vector<1x256xi32>
    %809 = arith.cmpi sge, %789, %808 : vector<1x256xi32>
    %cst_284 = arith.constant 0.000000e+00 : f32
    %810 = vector.broadcast %cst_284 : f32 to vector<8x64xf32>
    %cst_285 = arith.constant 0.000000e+00 : f32
    %811 = vector.broadcast %cst_285 : f32 to vector<8x64xf32>
    %c0_286 = arith.constant 0 : index
    %c0_287 = arith.constant 0 : index
    %812 = vector.load %arg28[%c0_286, %c0_287] : memref<64x512xf32, #tpu.memory_space<vmem>>, vector<8x256xf32>
    %c56_288 = arith.constant 56 : index
    %c0_289 = arith.constant 0 : index
    %813 = vector.load %arg28[%c56_288, %c0_289] : memref<64x512xf32, #tpu.memory_space<vmem>>, vector<8x256xf32>
    %814 = vector.shape_cast %807 : vector<1x256xi1> to vector<1x256xi1>
    %815 = vector.broadcast %814 : vector<1x256xi1> to vector<8x256xi1>
    %816 = arith.select %815, %812, %813 : vector<8x256xi1>, vector<8x256xf32>
    %cst_290 = arith.constant dense<0.000000e+00> : vector<8x256xf32>
    %817 = tpu.matmul %810, %783, %cst_290 {dimension_numbers = #tpu.dot_dimension_numbers<[1], [0], [0], [1], [0, 0, 1, 1], [], []>} : vector<8x64xf32>, vector<64x256xf32>, vector<8x256xf32> -> vector<8x256xf32>
    %818 = arith.addf %816, %817 : vector<8x256xf32>
    %cst_291 = arith.constant 5.000000e-01 : f32
    %819 = vector.broadcast %cst_291 : f32 to vector<8x256xf32>
    %820 = arith.mulf %819, %818 : vector<8x256xf32>
    %821 = vector.shape_cast %809 : vector<1x256xi1> to vector<1x256xi1>
    %822 = vector.broadcast %821 : vector<1x256xi1> to vector<8x256xi1>
    %823 = arith.select %822, %818, %820 : vector<8x256xi1>, vector<8x256xf32>
    %824 = math.tanh %823 : vector<8x256xf32>
    %cst_292 = arith.constant 5.000000e-01 : f32
    %825 = vector.broadcast %cst_292 : f32 to vector<8x256xf32>
    %826 = arith.mulf %825, %824 : vector<8x256xf32>
    %cst_293 = arith.constant 5.000000e-01 : f32
    %827 = vector.broadcast %cst_293 : f32 to vector<8x256xf32>
    %828 = arith.addf %826, %827 : vector<8x256xf32>
    %829 = vector.shape_cast %809 : vector<1x256xi1> to vector<1x256xi1>
    %830 = vector.broadcast %829 : vector<1x256xi1> to vector<8x256xi1>
    %831 = arith.select %830, %824, %828 : vector<8x256xi1>, vector<8x256xf32>
    %832 = vector.extract_strided_slice %831 {offsets = [0, 0], sizes = [8, 64], strides = [1, 1]} : vector<8x256xf32> to vector<8x64xf32>
    %833 = vector.extract_strided_slice %831 {offsets = [0, 64], sizes = [8, 64], strides = [1, 1]} : vector<8x256xf32> to vector<8x64xf32>
    %834 = vector.extract_strided_slice %831 {offsets = [0, 128], sizes = [8, 64], strides = [1, 1]} : vector<8x256xf32> to vector<8x64xf32>
    %835 = vector.extract_strided_slice %831 {offsets = [0, 192], sizes = [8, 64], strides = [1, 1]} : vector<8x256xf32> to vector<8x64xf32>
    %836 = arith.mulf %833, %811 : vector<8x64xf32>
    %837 = arith.mulf %832, %835 : vector<8x64xf32>
    %838 = arith.addf %836, %837 : vector<8x64xf32>
    %839 = math.tanh %838 : vector<8x64xf32>
    %840 = arith.mulf %834, %839 : vector<8x64xf32>
    %841 = vector.extract_strided_slice %840 {offsets = [0, 0], sizes = [8, 32], strides = [1, 1]} : vector<8x64xf32> to vector<8x32xf32>
    %c0_294 = arith.constant 0 : index
    %c0_295 = arith.constant 0 : index
    %842 = vector.load %arg29[%c0_294, %c0_295] : memref<64x128xf32, #tpu.memory_space<vmem>>, vector<8x32xf32>
    tpu.vector_store %arg29[%c0_294, %c0_295], %841 {strides = array<i32>} : memref<64x128xf32, #tpu.memory_space<vmem>>, vector<8x32xf32>,
    %843 = vector.extract_strided_slice %840 {offsets = [0, 32], sizes = [8, 32], strides = [1, 1]} : vector<8x64xf32> to vector<8x32xf32>
    %c56_296 = arith.constant 56 : index
    %c32_297 = arith.constant 32 : index
    %844 = vector.load %arg29[%c56_296, %c32_297] : memref<64x128xf32, #tpu.memory_space<vmem>>, vector<8x32xf32>
    tpu.vector_store %arg29[%c56_296, %c32_297], %843 {strides = array<i32>} : memref<64x128xf32, #tpu.memory_space<vmem>>, vector<8x32xf32>,
    %c8_298 = arith.constant 8 : index
    %c0_299 = arith.constant 0 : index
    %845 = vector.load %arg28[%c8_298, %c0_299] : memref<64x512xf32, #tpu.memory_space<vmem>>, vector<8x256xf32>
    %c48_300 = arith.constant 48 : index
    %c0_301 = arith.constant 0 : index
    %846 = vector.load %arg28[%c48_300, %c0_301] : memref<64x512xf32, #tpu.memory_space<vmem>>, vector<8x256xf32>
    %847 = vector.shape_cast %807 : vector<1x256xi1> to vector<1x256xi1>
    %848 = vector.broadcast %847 : vector<1x256xi1> to vector<8x256xi1>
    %849 = arith.select %848, %845, %846 : vector<8x256xi1>, vector<8x256xf32>
    %cst_302 = arith.constant dense<0.000000e+00> : vector<8x256xf32>
    %850 = tpu.matmul %840, %783, %cst_302 {dimension_numbers = #tpu.dot_dimension_numbers<[1], [0], [0], [1], [0, 0, 1, 1], [], []>} : vector<8x64xf32>, vector<64x256xf32>, vector<8x256xf32> -> vector<8x256xf32>
    %851 = arith.addf %849, %850 : vector<8x256xf32>
    %cst_303 = arith.constant 5.000000e-01 : f32
    %852 = vector.broadcast %cst_303 : f32 to vector<8x256xf32>
    %853 = arith.mulf %852, %851 : vector<8x256xf32>
    %854 = vector.shape_cast %809 : vector<1x256xi1> to vector<1x256xi1>
    %855 = vector.broadcast %854 : vector<1x256xi1> to vector<8x256xi1>
    %856 = arith.select %855, %851, %853 : vector<8x256xi1>, vector<8x256xf32>
    %857 = math.tanh %856 : vector<8x256xf32>
    %cst_304 = arith.constant 5.000000e-01 : f32
    %858 = vector.broadcast %cst_304 : f32 to vector<8x256xf32>
    %859 = arith.mulf %858, %857 : vector<8x256xf32>
    %cst_305 = arith.constant 5.000000e-01 : f32
    %860 = vector.broadcast %cst_305 : f32 to vector<8x256xf32>
    %861 = arith.addf %859, %860 : vector<8x256xf32>
    %862 = vector.shape_cast %809 : vector<1x256xi1> to vector<1x256xi1>
    %863 = vector.broadcast %862 : vector<1x256xi1> to vector<8x256xi1>
    %864 = arith.select %863, %857, %861 : vector<8x256xi1>, vector<8x256xf32>
    %865 = vector.extract_strided_slice %864 {offsets = [0, 0], sizes = [8, 64], strides = [1, 1]} : vector<8x256xf32> to vector<8x64xf32>
    %866 = vector.extract_strided_slice %864 {offsets = [0, 64], sizes = [8, 64], strides = [1, 1]} : vector<8x256xf32> to vector<8x64xf32>
    %867 = vector.extract_strided_slice %864 {offsets = [0, 128], sizes = [8, 64], strides = [1, 1]} : vector<8x256xf32> to vector<8x64xf32>
    %868 = vector.extract_strided_slice %864 {offsets = [0, 192], sizes = [8, 64], strides = [1, 1]} : vector<8x256xf32> to vector<8x64xf32>
    %869 = arith.mulf %866, %838 : vector<8x64xf32>
    %870 = arith.mulf %865, %868 : vector<8x64xf32>
    %871 = arith.addf %869, %870 : vector<8x64xf32>
    %872 = math.tanh %871 : vector<8x64xf32>
    %873 = arith.mulf %867, %872 : vector<8x64xf32>
    %874 = vector.extract_strided_slice %873 {offsets = [0, 0], sizes = [8, 32], strides = [1, 1]} : vector<8x64xf32> to vector<8x32xf32>
    %c8_306 = arith.constant 8 : index
    %c0_307 = arith.constant 0 : index
    %875 = vector.load %arg29[%c8_306, %c0_307] : memref<64x128xf32, #tpu.memory_space<vmem>>, vector<8x32xf32>
    tpu.vector_store %arg29[%c8_306, %c0_307], %874 {strides = array<i32>} : memref<64x128xf32, #tpu.memory_space<vmem>>, vector<8x32xf32>,
    %876 = vector.extract_strided_slice %873 {offsets = [0, 32], sizes = [8, 32], strides = [1, 1]} : vector<8x64xf32> to vector<8x32xf32>
    %c48_308 = arith.constant 48 : index
    %c32_309 = arith.constant 32 : index
    %877 = vector.load %arg29[%c48_308, %c32_309] : memref<64x128xf32, #tpu.memory_space<vmem>>, vector<8x32xf32>
    tpu.vector_store %arg29[%c48_308, %c32_309], %876 {strides = array<i32>} : memref<64x128xf32, #tpu.memory_space<vmem>>, vector<8x32xf32>,
    %c16_310 = arith.constant 16 : index
    %c0_311 = arith.constant 0 : index
    %878 = vector.load %arg28[%c16_310, %c0_311] : memref<64x512xf32, #tpu.memory_space<vmem>>, vector<8x256xf32>
    %c40_312 = arith.constant 40 : index
    %c0_313 = arith.constant 0 : index
    %879 = vector.load %arg28[%c40_312, %c0_313] : memref<64x512xf32, #tpu.memory_space<vmem>>, vector<8x256xf32>
    %880 = vector.shape_cast %807 : vector<1x256xi1> to vector<1x256xi1>
    %881 = vector.broadcast %880 : vector<1x256xi1> to vector<8x256xi1>
    %882 = arith.select %881, %878, %879 : vector<8x256xi1>, vector<8x256xf32>
    %cst_314 = arith.constant dense<0.000000e+00> : vector<8x256xf32>
    %883 = tpu.matmul %873, %783, %cst_314 {dimension_numbers = #tpu.dot_dimension_numbers<[1], [0], [0], [1], [0, 0, 1, 1], [], []>} : vector<8x64xf32>, vector<64x256xf32>, vector<8x256xf32> -> vector<8x256xf32>
    %884 = arith.addf %882, %883 : vector<8x256xf32>
    %cst_315 = arith.constant 5.000000e-01 : f32
    %885 = vector.broadcast %cst_315 : f32 to vector<8x256xf32>
    %886 = arith.mulf %885, %884 : vector<8x256xf32>
    %887 = vector.shape_cast %809 : vector<1x256xi1> to vector<1x256xi1>
    %888 = vector.broadcast %887 : vector<1x256xi1> to vector<8x256xi1>
    %889 = arith.select %888, %884, %886 : vector<8x256xi1>, vector<8x256xf32>
    %890 = math.tanh %889 : vector<8x256xf32>
    %cst_316 = arith.constant 5.000000e-01 : f32
    %891 = vector.broadcast %cst_316 : f32 to vector<8x256xf32>
    %892 = arith.mulf %891, %890 : vector<8x256xf32>
    %cst_317 = arith.constant 5.000000e-01 : f32
    %893 = vector.broadcast %cst_317 : f32 to vector<8x256xf32>
    %894 = arith.addf %892, %893 : vector<8x256xf32>
    %895 = vector.shape_cast %809 : vector<1x256xi1> to vector<1x256xi1>
    %896 = vector.broadcast %895 : vector<1x256xi1> to vector<8x256xi1>
    %897 = arith.select %896, %890, %894 : vector<8x256xi1>, vector<8x256xf32>
    %898 = vector.extract_strided_slice %897 {offsets = [0, 0], sizes = [8, 64], strides = [1, 1]} : vector<8x256xf32> to vector<8x64xf32>
    %899 = vector.extract_strided_slice %897 {offsets = [0, 64], sizes = [8, 64], strides = [1, 1]} : vector<8x256xf32> to vector<8x64xf32>
    %900 = vector.extract_strided_slice %897 {offsets = [0, 128], sizes = [8, 64], strides = [1, 1]} : vector<8x256xf32> to vector<8x64xf32>
    %901 = vector.extract_strided_slice %897 {offsets = [0, 192], sizes = [8, 64], strides = [1, 1]} : vector<8x256xf32> to vector<8x64xf32>
    %902 = arith.mulf %899, %871 : vector<8x64xf32>
    %903 = arith.mulf %898, %901 : vector<8x64xf32>
    %904 = arith.addf %902, %903 : vector<8x64xf32>
    %905 = math.tanh %904 : vector<8x64xf32>
    %906 = arith.mulf %900, %905 : vector<8x64xf32>
    %907 = vector.extract_strided_slice %906 {offsets = [0, 0], sizes = [8, 32], strides = [1, 1]} : vector<8x64xf32> to vector<8x32xf32>
    %c16_318 = arith.constant 16 : index
    %c0_319 = arith.constant 0 : index
    %908 = vector.load %arg29[%c16_318, %c0_319] : memref<64x128xf32, #tpu.memory_space<vmem>>, vector<8x32xf32>
    tpu.vector_store %arg29[%c16_318, %c0_319], %907 {strides = array<i32>} : memref<64x128xf32, #tpu.memory_space<vmem>>, vector<8x32xf32>,
    %909 = vector.extract_strided_slice %906 {offsets = [0, 32], sizes = [8, 32], strides = [1, 1]} : vector<8x64xf32> to vector<8x32xf32>
    %c40_320 = arith.constant 40 : index
    %c32_321 = arith.constant 32 : index
    %910 = vector.load %arg29[%c40_320, %c32_321] : memref<64x128xf32, #tpu.memory_space<vmem>>, vector<8x32xf32>
    tpu.vector_store %arg29[%c40_320, %c32_321], %909 {strides = array<i32>} : memref<64x128xf32, #tpu.memory_space<vmem>>, vector<8x32xf32>,
    %c24_322 = arith.constant 24 : index
    %c0_323 = arith.constant 0 : index
    %911 = vector.load %arg28[%c24_322, %c0_323] : memref<64x512xf32, #tpu.memory_space<vmem>>, vector<8x256xf32>
    %c32_324 = arith.constant 32 : index
    %c0_325 = arith.constant 0 : index
    %912 = vector.load %arg28[%c32_324, %c0_325] : memref<64x512xf32, #tpu.memory_space<vmem>>, vector<8x256xf32>
    %913 = vector.shape_cast %807 : vector<1x256xi1> to vector<1x256xi1>
    %914 = vector.broadcast %913 : vector<1x256xi1> to vector<8x256xi1>
    %915 = arith.select %914, %911, %912 : vector<8x256xi1>, vector<8x256xf32>
    %cst_326 = arith.constant dense<0.000000e+00> : vector<8x256xf32>
    %916 = tpu.matmul %906, %783, %cst_326 {dimension_numbers = #tpu.dot_dimension_numbers<[1], [0], [0], [1], [0, 0, 1, 1], [], []>} : vector<8x64xf32>, vector<64x256xf32>, vector<8x256xf32> -> vector<8x256xf32>
    %917 = arith.addf %915, %916 : vector<8x256xf32>
    %cst_327 = arith.constant 5.000000e-01 : f32
    %918 = vector.broadcast %cst_327 : f32 to vector<8x256xf32>
    %919 = arith.mulf %918, %917 : vector<8x256xf32>
    %920 = vector.shape_cast %809 : vector<1x256xi1> to vector<1x256xi1>
    %921 = vector.broadcast %920 : vector<1x256xi1> to vector<8x256xi1>
    %922 = arith.select %921, %917, %919 : vector<8x256xi1>, vector<8x256xf32>
    %923 = math.tanh %922 : vector<8x256xf32>
    %cst_328 = arith.constant 5.000000e-01 : f32
    %924 = vector.broadcast %cst_328 : f32 to vector<8x256xf32>
    %925 = arith.mulf %924, %923 : vector<8x256xf32>
    %cst_329 = arith.constant 5.000000e-01 : f32
    %926 = vector.broadcast %cst_329 : f32 to vector<8x256xf32>
    %927 = arith.addf %925, %926 : vector<8x256xf32>
    %928 = vector.shape_cast %809 : vector<1x256xi1> to vector<1x256xi1>
    %929 = vector.broadcast %928 : vector<1x256xi1> to vector<8x256xi1>
    %930 = arith.select %929, %923, %927 : vector<8x256xi1>, vector<8x256xf32>
    %931 = vector.extract_strided_slice %930 {offsets = [0, 0], sizes = [8, 64], strides = [1, 1]} : vector<8x256xf32> to vector<8x64xf32>
    %932 = vector.extract_strided_slice %930 {offsets = [0, 64], sizes = [8, 64], strides = [1, 1]} : vector<8x256xf32> to vector<8x64xf32>
    %933 = vector.extract_strided_slice %930 {offsets = [0, 128], sizes = [8, 64], strides = [1, 1]} : vector<8x256xf32> to vector<8x64xf32>
    %934 = vector.extract_strided_slice %930 {offsets = [0, 192], sizes = [8, 64], strides = [1, 1]} : vector<8x256xf32> to vector<8x64xf32>
    %935 = arith.mulf %932, %904 : vector<8x64xf32>
    %936 = arith.mulf %931, %934 : vector<8x64xf32>
    %937 = arith.addf %935, %936 : vector<8x64xf32>
    %938 = math.tanh %937 : vector<8x64xf32>
    %939 = arith.mulf %933, %938 : vector<8x64xf32>
    %940 = vector.extract_strided_slice %939 {offsets = [0, 0], sizes = [8, 32], strides = [1, 1]} : vector<8x64xf32> to vector<8x32xf32>
    %c24_330 = arith.constant 24 : index
    %c0_331 = arith.constant 0 : index
    %941 = vector.load %arg29[%c24_330, %c0_331] : memref<64x128xf32, #tpu.memory_space<vmem>>, vector<8x32xf32>
    tpu.vector_store %arg29[%c24_330, %c0_331], %940 {strides = array<i32>} : memref<64x128xf32, #tpu.memory_space<vmem>>, vector<8x32xf32>,
    %942 = vector.extract_strided_slice %939 {offsets = [0, 32], sizes = [8, 32], strides = [1, 1]} : vector<8x64xf32> to vector<8x32xf32>
    %c32_332 = arith.constant 32 : index
    %c32_333 = arith.constant 32 : index
    %943 = vector.load %arg29[%c32_332, %c32_333] : memref<64x128xf32, #tpu.memory_space<vmem>>, vector<8x32xf32>
    tpu.vector_store %arg29[%c32_332, %c32_333], %942 {strides = array<i32>} : memref<64x128xf32, #tpu.memory_space<vmem>>, vector<8x32xf32>,
    %c32_334 = arith.constant 32 : index
    %c0_335 = arith.constant 0 : index
    %944 = vector.load %arg28[%c32_334, %c0_335] : memref<64x512xf32, #tpu.memory_space<vmem>>, vector<8x256xf32>
    %c24_336 = arith.constant 24 : index
    %c0_337 = arith.constant 0 : index
    %945 = vector.load %arg28[%c24_336, %c0_337] : memref<64x512xf32, #tpu.memory_space<vmem>>, vector<8x256xf32>
    %946 = vector.shape_cast %807 : vector<1x256xi1> to vector<1x256xi1>
    %947 = vector.broadcast %946 : vector<1x256xi1> to vector<8x256xi1>
    %948 = arith.select %947, %944, %945 : vector<8x256xi1>, vector<8x256xf32>
    %cst_338 = arith.constant dense<0.000000e+00> : vector<8x256xf32>
    %949 = tpu.matmul %939, %783, %cst_338 {dimension_numbers = #tpu.dot_dimension_numbers<[1], [0], [0], [1], [0, 0, 1, 1], [], []>} : vector<8x64xf32>, vector<64x256xf32>, vector<8x256xf32> -> vector<8x256xf32>
    %950 = arith.addf %948, %949 : vector<8x256xf32>
    %cst_339 = arith.constant 5.000000e-01 : f32
    %951 = vector.broadcast %cst_339 : f32 to vector<8x256xf32>
    %952 = arith.mulf %951, %950 : vector<8x256xf32>
    %953 = vector.shape_cast %809 : vector<1x256xi1> to vector<1x256xi1>
    %954 = vector.broadcast %953 : vector<1x256xi1> to vector<8x256xi1>
    %955 = arith.select %954, %950, %952 : vector<8x256xi1>, vector<8x256xf32>
    %956 = math.tanh %955 : vector<8x256xf32>
    %cst_340 = arith.constant 5.000000e-01 : f32
    %957 = vector.broadcast %cst_340 : f32 to vector<8x256xf32>
    %958 = arith.mulf %957, %956 : vector<8x256xf32>
    %cst_341 = arith.constant 5.000000e-01 : f32
    %959 = vector.broadcast %cst_341 : f32 to vector<8x256xf32>
    %960 = arith.addf %958, %959 : vector<8x256xf32>
    %961 = vector.shape_cast %809 : vector<1x256xi1> to vector<1x256xi1>
    %962 = vector.broadcast %961 : vector<1x256xi1> to vector<8x256xi1>
    %963 = arith.select %962, %956, %960 : vector<8x256xi1>, vector<8x256xf32>
    %964 = vector.extract_strided_slice %963 {offsets = [0, 0], sizes = [8, 64], strides = [1, 1]} : vector<8x256xf32> to vector<8x64xf32>
    %965 = vector.extract_strided_slice %963 {offsets = [0, 64], sizes = [8, 64], strides = [1, 1]} : vector<8x256xf32> to vector<8x64xf32>
    %966 = vector.extract_strided_slice %963 {offsets = [0, 128], sizes = [8, 64], strides = [1, 1]} : vector<8x256xf32> to vector<8x64xf32>
    %967 = vector.extract_strided_slice %963 {offsets = [0, 192], sizes = [8, 64], strides = [1, 1]} : vector<8x256xf32> to vector<8x64xf32>
    %968 = arith.mulf %965, %937 : vector<8x64xf32>
    %969 = arith.mulf %964, %967 : vector<8x64xf32>
    %970 = arith.addf %968, %969 : vector<8x64xf32>
    %971 = math.tanh %970 : vector<8x64xf32>
    %972 = arith.mulf %966, %971 : vector<8x64xf32>
    %973 = vector.extract_strided_slice %972 {offsets = [0, 0], sizes = [8, 32], strides = [1, 1]} : vector<8x64xf32> to vector<8x32xf32>
    %c32_342 = arith.constant 32 : index
    %c0_343 = arith.constant 0 : index
    %974 = vector.load %arg29[%c32_342, %c0_343] : memref<64x128xf32, #tpu.memory_space<vmem>>, vector<8x32xf32>
    tpu.vector_store %arg29[%c32_342, %c0_343], %973 {strides = array<i32>} : memref<64x128xf32, #tpu.memory_space<vmem>>, vector<8x32xf32>,
    %975 = vector.extract_strided_slice %972 {offsets = [0, 32], sizes = [8, 32], strides = [1, 1]} : vector<8x64xf32> to vector<8x32xf32>
    %c24_344 = arith.constant 24 : index
    %c32_345 = arith.constant 32 : index
    %976 = vector.load %arg29[%c24_344, %c32_345] : memref<64x128xf32, #tpu.memory_space<vmem>>, vector<8x32xf32>
    tpu.vector_store %arg29[%c24_344, %c32_345], %975 {strides = array<i32>} : memref<64x128xf32, #tpu.memory_space<vmem>>, vector<8x32xf32>,
    %c40_346 = arith.constant 40 : index
    %c0_347 = arith.constant 0 : index
    %977 = vector.load %arg28[%c40_346, %c0_347] : memref<64x512xf32, #tpu.memory_space<vmem>>, vector<8x256xf32>
    %c16_348 = arith.constant 16 : index
    %c0_349 = arith.constant 0 : index
    %978 = vector.load %arg28[%c16_348, %c0_349] : memref<64x512xf32, #tpu.memory_space<vmem>>, vector<8x256xf32>
    %979 = vector.shape_cast %807 : vector<1x256xi1> to vector<1x256xi1>
    %980 = vector.broadcast %979 : vector<1x256xi1> to vector<8x256xi1>
    %981 = arith.select %980, %977, %978 : vector<8x256xi1>, vector<8x256xf32>
    %cst_350 = arith.constant dense<0.000000e+00> : vector<8x256xf32>
    %982 = tpu.matmul %972, %783, %cst_350 {dimension_numbers = #tpu.dot_dimension_numbers<[1], [0], [0], [1], [0, 0, 1, 1], [], []>} : vector<8x64xf32>, vector<64x256xf32>, vector<8x256xf32> -> vector<8x256xf32>
    %983 = arith.addf %981, %982 : vector<8x256xf32>
    %cst_351 = arith.constant 5.000000e-01 : f32
    %984 = vector.broadcast %cst_351 : f32 to vector<8x256xf32>
    %985 = arith.mulf %984, %983 : vector<8x256xf32>
    %986 = vector.shape_cast %809 : vector<1x256xi1> to vector<1x256xi1>
    %987 = vector.broadcast %986 : vector<1x256xi1> to vector<8x256xi1>
    %988 = arith.select %987, %983, %985 : vector<8x256xi1>, vector<8x256xf32>
    %989 = math.tanh %988 : vector<8x256xf32>
    %cst_352 = arith.constant 5.000000e-01 : f32
    %990 = vector.broadcast %cst_352 : f32 to vector<8x256xf32>
    %991 = arith.mulf %990, %989 : vector<8x256xf32>
    %cst_353 = arith.constant 5.000000e-01 : f32
    %992 = vector.broadcast %cst_353 : f32 to vector<8x256xf32>
    %993 = arith.addf %991, %992 : vector<8x256xf32>
    %994 = vector.shape_cast %809 : vector<1x256xi1> to vector<1x256xi1>
    %995 = vector.broadcast %994 : vector<1x256xi1> to vector<8x256xi1>
    %996 = arith.select %995, %989, %993 : vector<8x256xi1>, vector<8x256xf32>
    %997 = vector.extract_strided_slice %996 {offsets = [0, 0], sizes = [8, 64], strides = [1, 1]} : vector<8x256xf32> to vector<8x64xf32>
    %998 = vector.extract_strided_slice %996 {offsets = [0, 64], sizes = [8, 64], strides = [1, 1]} : vector<8x256xf32> to vector<8x64xf32>
    %999 = vector.extract_strided_slice %996 {offsets = [0, 128], sizes = [8, 64], strides = [1, 1]} : vector<8x256xf32> to vector<8x64xf32>
    %1000 = vector.extract_strided_slice %996 {offsets = [0, 192], sizes = [8, 64], strides = [1, 1]} : vector<8x256xf32> to vector<8x64xf32>
    %1001 = arith.mulf %998, %970 : vector<8x64xf32>
    %1002 = arith.mulf %997, %1000 : vector<8x64xf32>
    %1003 = arith.addf %1001, %1002 : vector<8x64xf32>
    %1004 = math.tanh %1003 : vector<8x64xf32>
    %1005 = arith.mulf %999, %1004 : vector<8x64xf32>
    %1006 = vector.extract_strided_slice %1005 {offsets = [0, 0], sizes = [8, 32], strides = [1, 1]} : vector<8x64xf32> to vector<8x32xf32>
    %c40_354 = arith.constant 40 : index
    %c0_355 = arith.constant 0 : index
    %1007 = vector.load %arg29[%c40_354, %c0_355] : memref<64x128xf32, #tpu.memory_space<vmem>>, vector<8x32xf32>
    tpu.vector_store %arg29[%c40_354, %c0_355], %1006 {strides = array<i32>} : memref<64x128xf32, #tpu.memory_space<vmem>>, vector<8x32xf32>,
    %1008 = vector.extract_strided_slice %1005 {offsets = [0, 32], sizes = [8, 32], strides = [1, 1]} : vector<8x64xf32> to vector<8x32xf32>
    %c16_356 = arith.constant 16 : index
    %c32_357 = arith.constant 32 : index
    %1009 = vector.load %arg29[%c16_356, %c32_357] : memref<64x128xf32, #tpu.memory_space<vmem>>, vector<8x32xf32>
    tpu.vector_store %arg29[%c16_356, %c32_357], %1008 {strides = array<i32>} : memref<64x128xf32, #tpu.memory_space<vmem>>, vector<8x32xf32>,
    %c48_358 = arith.constant 48 : index
    %c0_359 = arith.constant 0 : index
    %1010 = vector.load %arg28[%c48_358, %c0_359] : memref<64x512xf32, #tpu.memory_space<vmem>>, vector<8x256xf32>
    %c8_360 = arith.constant 8 : index
    %c0_361 = arith.constant 0 : index
    %1011 = vector.load %arg28[%c8_360, %c0_361] : memref<64x512xf32, #tpu.memory_space<vmem>>, vector<8x256xf32>
    %1012 = vector.shape_cast %807 : vector<1x256xi1> to vector<1x256xi1>
    %1013 = vector.broadcast %1012 : vector<1x256xi1> to vector<8x256xi1>
    %1014 = arith.select %1013, %1010, %1011 : vector<8x256xi1>, vector<8x256xf32>
    %cst_362 = arith.constant dense<0.000000e+00> : vector<8x256xf32>
    %1015 = tpu.matmul %1005, %783, %cst_362 {dimension_numbers = #tpu.dot_dimension_numbers<[1], [0], [0], [1], [0, 0, 1, 1], [], []>} : vector<8x64xf32>, vector<64x256xf32>, vector<8x256xf32> -> vector<8x256xf32>
    %1016 = arith.addf %1014, %1015 : vector<8x256xf32>
    %cst_363 = arith.constant 5.000000e-01 : f32
    %1017 = vector.broadcast %cst_363 : f32 to vector<8x256xf32>
    %1018 = arith.mulf %1017, %1016 : vector<8x256xf32>
    %1019 = vector.shape_cast %809 : vector<1x256xi1> to vector<1x256xi1>
    %1020 = vector.broadcast %1019 : vector<1x256xi1> to vector<8x256xi1>
    %1021 = arith.select %1020, %1016, %1018 : vector<8x256xi1>, vector<8x256xf32>
    %1022 = math.tanh %1021 : vector<8x256xf32>
    %cst_364 = arith.constant 5.000000e-01 : f32
    %1023 = vector.broadcast %cst_364 : f32 to vector<8x256xf32>
    %1024 = arith.mulf %1023, %1022 : vector<8x256xf32>
    %cst_365 = arith.constant 5.000000e-01 : f32
    %1025 = vector.broadcast %cst_365 : f32 to vector<8x256xf32>
    %1026 = arith.addf %1024, %1025 : vector<8x256xf32>
    %1027 = vector.shape_cast %809 : vector<1x256xi1> to vector<1x256xi1>
    %1028 = vector.broadcast %1027 : vector<1x256xi1> to vector<8x256xi1>
    %1029 = arith.select %1028, %1022, %1026 : vector<8x256xi1>, vector<8x256xf32>
    %1030 = vector.extract_strided_slice %1029 {offsets = [0, 0], sizes = [8, 64], strides = [1, 1]} : vector<8x256xf32> to vector<8x64xf32>
    %1031 = vector.extract_strided_slice %1029 {offsets = [0, 64], sizes = [8, 64], strides = [1, 1]} : vector<8x256xf32> to vector<8x64xf32>
    %1032 = vector.extract_strided_slice %1029 {offsets = [0, 128], sizes = [8, 64], strides = [1, 1]} : vector<8x256xf32> to vector<8x64xf32>
    %1033 = vector.extract_strided_slice %1029 {offsets = [0, 192], sizes = [8, 64], strides = [1, 1]} : vector<8x256xf32> to vector<8x64xf32>
    %1034 = arith.mulf %1031, %1003 : vector<8x64xf32>
    %1035 = arith.mulf %1030, %1033 : vector<8x64xf32>
    %1036 = arith.addf %1034, %1035 : vector<8x64xf32>
    %1037 = math.tanh %1036 : vector<8x64xf32>
    %1038 = arith.mulf %1032, %1037 : vector<8x64xf32>
    %1039 = vector.extract_strided_slice %1038 {offsets = [0, 0], sizes = [8, 32], strides = [1, 1]} : vector<8x64xf32> to vector<8x32xf32>
    %c48_366 = arith.constant 48 : index
    %c0_367 = arith.constant 0 : index
    %1040 = vector.load %arg29[%c48_366, %c0_367] : memref<64x128xf32, #tpu.memory_space<vmem>>, vector<8x32xf32>
    tpu.vector_store %arg29[%c48_366, %c0_367], %1039 {strides = array<i32>} : memref<64x128xf32, #tpu.memory_space<vmem>>, vector<8x32xf32>,
    %1041 = vector.extract_strided_slice %1038 {offsets = [0, 32], sizes = [8, 32], strides = [1, 1]} : vector<8x64xf32> to vector<8x32xf32>
    %c8_368 = arith.constant 8 : index
    %c32_369 = arith.constant 32 : index
    %1042 = vector.load %arg29[%c8_368, %c32_369] : memref<64x128xf32, #tpu.memory_space<vmem>>, vector<8x32xf32>
    tpu.vector_store %arg29[%c8_368, %c32_369], %1041 {strides = array<i32>} : memref<64x128xf32, #tpu.memory_space<vmem>>, vector<8x32xf32>,
    %c56_370 = arith.constant 56 : index
    %c0_371 = arith.constant 0 : index
    %1043 = vector.load %arg28[%c56_370, %c0_371] : memref<64x512xf32, #tpu.memory_space<vmem>>, vector<8x256xf32>
    %c0_372 = arith.constant 0 : index
    %c0_373 = arith.constant 0 : index
    %1044 = vector.load %arg28[%c0_372, %c0_373] : memref<64x512xf32, #tpu.memory_space<vmem>>, vector<8x256xf32>
    %1045 = vector.shape_cast %807 : vector<1x256xi1> to vector<1x256xi1>
    %1046 = vector.broadcast %1045 : vector<1x256xi1> to vector<8x256xi1>
    %1047 = arith.select %1046, %1043, %1044 : vector<8x256xi1>, vector<8x256xf32>
    %cst_374 = arith.constant dense<0.000000e+00> : vector<8x256xf32>
    %1048 = tpu.matmul %1038, %783, %cst_374 {dimension_numbers = #tpu.dot_dimension_numbers<[1], [0], [0], [1], [0, 0, 1, 1], [], []>} : vector<8x64xf32>, vector<64x256xf32>, vector<8x256xf32> -> vector<8x256xf32>
    %1049 = arith.addf %1047, %1048 : vector<8x256xf32>
    %cst_375 = arith.constant 5.000000e-01 : f32
    %1050 = vector.broadcast %cst_375 : f32 to vector<8x256xf32>
    %1051 = arith.mulf %1050, %1049 : vector<8x256xf32>
    %1052 = vector.shape_cast %809 : vector<1x256xi1> to vector<1x256xi1>
    %1053 = vector.broadcast %1052 : vector<1x256xi1> to vector<8x256xi1>
    %1054 = arith.select %1053, %1049, %1051 : vector<8x256xi1>, vector<8x256xf32>
    %1055 = math.tanh %1054 : vector<8x256xf32>
    %cst_376 = arith.constant 5.000000e-01 : f32
    %1056 = vector.broadcast %cst_376 : f32 to vector<8x256xf32>
    %1057 = arith.mulf %1056, %1055 : vector<8x256xf32>
    %cst_377 = arith.constant 5.000000e-01 : f32
    %1058 = vector.broadcast %cst_377 : f32 to vector<8x256xf32>
    %1059 = arith.addf %1057, %1058 : vector<8x256xf32>
    %1060 = vector.shape_cast %809 : vector<1x256xi1> to vector<1x256xi1>
    %1061 = vector.broadcast %1060 : vector<1x256xi1> to vector<8x256xi1>
    %1062 = arith.select %1061, %1055, %1059 : vector<8x256xi1>, vector<8x256xf32>
    %1063 = vector.extract_strided_slice %1062 {offsets = [0, 0], sizes = [8, 64], strides = [1, 1]} : vector<8x256xf32> to vector<8x64xf32>
    %1064 = vector.extract_strided_slice %1062 {offsets = [0, 64], sizes = [8, 64], strides = [1, 1]} : vector<8x256xf32> to vector<8x64xf32>
    %1065 = vector.extract_strided_slice %1062 {offsets = [0, 128], sizes = [8, 64], strides = [1, 1]} : vector<8x256xf32> to vector<8x64xf32>
    %1066 = vector.extract_strided_slice %1062 {offsets = [0, 192], sizes = [8, 64], strides = [1, 1]} : vector<8x256xf32> to vector<8x64xf32>
    %1067 = arith.mulf %1064, %1036 : vector<8x64xf32>
    %1068 = arith.mulf %1063, %1066 : vector<8x64xf32>
    %1069 = arith.addf %1067, %1068 : vector<8x64xf32>
    %1070 = math.tanh %1069 : vector<8x64xf32>
    %1071 = arith.mulf %1065, %1070 : vector<8x64xf32>
    %1072 = vector.extract_strided_slice %1071 {offsets = [0, 0], sizes = [8, 32], strides = [1, 1]} : vector<8x64xf32> to vector<8x32xf32>
    %c56_378 = arith.constant 56 : index
    %c0_379 = arith.constant 0 : index
    %1073 = vector.load %arg29[%c56_378, %c0_379] : memref<64x128xf32, #tpu.memory_space<vmem>>, vector<8x32xf32>
    tpu.vector_store %arg29[%c56_378, %c0_379], %1072 {strides = array<i32>} : memref<64x128xf32, #tpu.memory_space<vmem>>, vector<8x32xf32>,
    %1074 = vector.extract_strided_slice %1071 {offsets = [0, 32], sizes = [8, 32], strides = [1, 1]} : vector<8x64xf32> to vector<8x32xf32>
    %c0_380 = arith.constant 0 : index
    %c32_381 = arith.constant 32 : index
    %1075 = vector.load %arg29[%c0_380, %c32_381] : memref<64x128xf32, #tpu.memory_space<vmem>>, vector<8x32xf32>
    tpu.vector_store %arg29[%c0_380, %c32_381], %1074 {strides = array<i32>} : memref<64x128xf32, #tpu.memory_space<vmem>>, vector<8x32xf32>,
    %c0_382 = arith.constant 0 : index
    %c0_383 = arith.constant 0 : index
    %1076 = vector.load %arg29[%c0_382, %c0_383] : memref<64x128xf32, #tpu.memory_space<vmem>>, vector<64x64xf32>
    %c0_384 = arith.constant 0 : index
    %c0_385 = arith.constant 0 : index
    %1077 = vector.load %arg14[%c0_384, %c0_385] : memref<64x256xf32, #tpu.memory_space<vmem>>, vector<64x256xf32>
    %c0_386 = arith.constant 0 : index
    %c0_387 = arith.constant 0 : index
    %1078 = vector.load %arg15[%c0_386, %c0_387] : memref<64x256xf32, #tpu.memory_space<vmem>>, vector<64x256xf32>
    %c0_388 = arith.constant 0 : index
    %c0_389 = arith.constant 0 : index
    %1079 = vector.load %arg16[%c0_388, %c0_389] : memref<1x256xf32, #tpu.memory_space<vmem>>, vector<1x256xf32>
    %cst_390 = arith.constant dense<0.000000e+00> : vector<64x256xf32>
    %1080 = tpu.matmul %1076, %1077, %cst_390 {dimension_numbers = #tpu.dot_dimension_numbers<[1], [0], [0], [1], [0, 0, 1, 1], [], []>} : vector<64x64xf32>, vector<64x256xf32>, vector<64x256xf32> -> vector<64x256xf32>
    %1081 = vector.broadcast %1079 : vector<1x256xf32> to vector<64x256xf32>
    %1082 = arith.addf %1080, %1081 : vector<64x256xf32>
    %c0_391 = arith.constant 0 : index
    %c0_392 = arith.constant 0 : index
    %1083 = vector.load %arg28[%c0_391, %c0_392] : memref<64x512xf32, #tpu.memory_space<vmem>>, vector<64x256xf32>
    tpu.vector_store %arg28[%c0_391, %c0_392], %1082 {strides = array<i32>} : memref<64x512xf32, #tpu.memory_space<vmem>>, vector<64x256xf32>,
    %1084 = tpu.iota {dimensions = array<i32: 1>} : vector<1x256xi32>
    %c64_i32_393 = arith.constant 64 : i32
    %c0_i32_394 = arith.constant 0 : i32
    %1085 = arith.cmpi eq, %c64_i32_393, %c0_i32_394 : i32
    %c1_i32_395 = arith.constant 1 : i32
    %1086 = arith.select %1085, %c1_i32_395, %c64_i32_393 : i32
    %1087 = vector.broadcast %1086 : i32 to vector<1x256xi32>
    %1088 = arith.remsi %1084, %1087 : vector<1x256xi32>
    %c0_i32_396 = arith.constant 0 : i32
    %1089 = vector.broadcast %c0_i32_396 : i32 to vector<1x256xi32>
    %1090 = arith.cmpi ne, %1088, %1089 : vector<1x256xi32>
    %c0_i32_397 = arith.constant 0 : i32
    %1091 = vector.broadcast %c0_i32_397 : i32 to vector<1x256xi32>
    %1092 = arith.cmpi slt, %1088, %1091 : vector<1x256xi32>
    %c0_i32_398 = arith.constant 0 : i32
    %1093 = arith.cmpi slt, %1086, %c0_i32_398 : i32
    %1094 = vector.broadcast %1093 : i1 to vector<1x256xi1>
    %1095 = vector.broadcast %1094 : vector<1x256xi1> to vector<1x256xi1>
    %1096 = arith.xori %1092, %1095 : vector<1x256xi1>
    %1097 = arith.andi %1096, %1090 : vector<1x256xi1>
    %1098 = vector.broadcast %1086 : i32 to vector<1x256xi32>
    %1099 = arith.addi %1088, %1098 : vector<1x256xi32>
    %1100 = arith.select %1097, %1099, %1088 : vector<1x256xi1>, vector<1x256xi32>
    %c32_i32_399 = arith.constant 32 : i32
    %1101 = vector.broadcast %c32_i32_399 : i32 to vector<1x256xi32>
    %1102 = arith.cmpi slt, %1100, %1101 : vector<1x256xi32>
    %c192_i32_400 = arith.constant 192 : i32
    %1103 = vector.broadcast %c192_i32_400 : i32 to vector<1x256xi32>
    %1104 = arith.cmpi sge, %1084, %1103 : vector<1x256xi32>
    %cst_401 = arith.constant 0.000000e+00 : f32
    %1105 = vector.broadcast %cst_401 : f32 to vector<8x64xf32>
    %cst_402 = arith.constant 0.000000e+00 : f32
    %1106 = vector.broadcast %cst_402 : f32 to vector<8x64xf32>
    %c0_403 = arith.constant 0 : index
    %c0_404 = arith.constant 0 : index
    %1107 = vector.load %arg28[%c0_403, %c0_404] : memref<64x512xf32, #tpu.memory_space<vmem>>, vector<8x256xf32>
    %c56_405 = arith.constant 56 : index
    %c0_406 = arith.constant 0 : index
    %1108 = vector.load %arg28[%c56_405, %c0_406] : memref<64x512xf32, #tpu.memory_space<vmem>>, vector<8x256xf32>
    %1109 = vector.shape_cast %1102 : vector<1x256xi1> to vector<1x256xi1>
    %1110 = vector.broadcast %1109 : vector<1x256xi1> to vector<8x256xi1>
    %1111 = arith.select %1110, %1107, %1108 : vector<8x256xi1>, vector<8x256xf32>
    %cst_407 = arith.constant dense<0.000000e+00> : vector<8x256xf32>
    %1112 = tpu.matmul %1105, %1078, %cst_407 {dimension_numbers = #tpu.dot_dimension_numbers<[1], [0], [0], [1], [0, 0, 1, 1], [], []>} : vector<8x64xf32>, vector<64x256xf32>, vector<8x256xf32> -> vector<8x256xf32>
    %1113 = arith.addf %1111, %1112 : vector<8x256xf32>
    %cst_408 = arith.constant 5.000000e-01 : f32
    %1114 = vector.broadcast %cst_408 : f32 to vector<8x256xf32>
    %1115 = arith.mulf %1114, %1113 : vector<8x256xf32>
    %1116 = vector.shape_cast %1104 : vector<1x256xi1> to vector<1x256xi1>
    %1117 = vector.broadcast %1116 : vector<1x256xi1> to vector<8x256xi1>
    %1118 = arith.select %1117, %1113, %1115 : vector<8x256xi1>, vector<8x256xf32>
    %1119 = math.tanh %1118 : vector<8x256xf32>
    %cst_409 = arith.constant 5.000000e-01 : f32
    %1120 = vector.broadcast %cst_409 : f32 to vector<8x256xf32>
    %1121 = arith.mulf %1120, %1119 : vector<8x256xf32>
    %cst_410 = arith.constant 5.000000e-01 : f32
    %1122 = vector.broadcast %cst_410 : f32 to vector<8x256xf32>
    %1123 = arith.addf %1121, %1122 : vector<8x256xf32>
    %1124 = vector.shape_cast %1104 : vector<1x256xi1> to vector<1x256xi1>
    %1125 = vector.broadcast %1124 : vector<1x256xi1> to vector<8x256xi1>
    %1126 = arith.select %1125, %1119, %1123 : vector<8x256xi1>, vector<8x256xf32>
    %1127 = vector.extract_strided_slice %1126 {offsets = [0, 0], sizes = [8, 64], strides = [1, 1]} : vector<8x256xf32> to vector<8x64xf32>
    %1128 = vector.extract_strided_slice %1126 {offsets = [0, 64], sizes = [8, 64], strides = [1, 1]} : vector<8x256xf32> to vector<8x64xf32>
    %1129 = vector.extract_strided_slice %1126 {offsets = [0, 128], sizes = [8, 64], strides = [1, 1]} : vector<8x256xf32> to vector<8x64xf32>
    %1130 = vector.extract_strided_slice %1126 {offsets = [0, 192], sizes = [8, 64], strides = [1, 1]} : vector<8x256xf32> to vector<8x64xf32>
    %1131 = arith.mulf %1128, %1106 : vector<8x64xf32>
    %1132 = arith.mulf %1127, %1130 : vector<8x64xf32>
    %1133 = arith.addf %1131, %1132 : vector<8x64xf32>
    %1134 = math.tanh %1133 : vector<8x64xf32>
    %1135 = arith.mulf %1129, %1134 : vector<8x64xf32>
    %1136 = vector.extract_strided_slice %1135 {offsets = [0, 0], sizes = [8, 32], strides = [1, 1]} : vector<8x64xf32> to vector<8x32xf32>
    %c0_411 = arith.constant 0 : index
    %c0_412 = arith.constant 0 : index
    %1137 = vector.load %arg30[%c0_411, %c0_412] : memref<64x128xf32, #tpu.memory_space<vmem>>, vector<8x32xf32>
    tpu.vector_store %arg30[%c0_411, %c0_412], %1136 {strides = array<i32>} : memref<64x128xf32, #tpu.memory_space<vmem>>, vector<8x32xf32>,
    %1138 = vector.extract_strided_slice %1135 {offsets = [0, 32], sizes = [8, 32], strides = [1, 1]} : vector<8x64xf32> to vector<8x32xf32>
    %c56_413 = arith.constant 56 : index
    %c32_414 = arith.constant 32 : index
    %1139 = vector.load %arg30[%c56_413, %c32_414] : memref<64x128xf32, #tpu.memory_space<vmem>>, vector<8x32xf32>
    tpu.vector_store %arg30[%c56_413, %c32_414], %1138 {strides = array<i32>} : memref<64x128xf32, #tpu.memory_space<vmem>>, vector<8x32xf32>,
    %c8_415 = arith.constant 8 : index
    %c0_416 = arith.constant 0 : index
    %1140 = vector.load %arg28[%c8_415, %c0_416] : memref<64x512xf32, #tpu.memory_space<vmem>>, vector<8x256xf32>
    %c48_417 = arith.constant 48 : index
    %c0_418 = arith.constant 0 : index
    %1141 = vector.load %arg28[%c48_417, %c0_418] : memref<64x512xf32, #tpu.memory_space<vmem>>, vector<8x256xf32>
    %1142 = vector.shape_cast %1102 : vector<1x256xi1> to vector<1x256xi1>
    %1143 = vector.broadcast %1142 : vector<1x256xi1> to vector<8x256xi1>
    %1144 = arith.select %1143, %1140, %1141 : vector<8x256xi1>, vector<8x256xf32>
    %cst_419 = arith.constant dense<0.000000e+00> : vector<8x256xf32>
    %1145 = tpu.matmul %1135, %1078, %cst_419 {dimension_numbers = #tpu.dot_dimension_numbers<[1], [0], [0], [1], [0, 0, 1, 1], [], []>} : vector<8x64xf32>, vector<64x256xf32>, vector<8x256xf32> -> vector<8x256xf32>
    %1146 = arith.addf %1144, %1145 : vector<8x256xf32>
    %cst_420 = arith.constant 5.000000e-01 : f32
    %1147 = vector.broadcast %cst_420 : f32 to vector<8x256xf32>
    %1148 = arith.mulf %1147, %1146 : vector<8x256xf32>
    %1149 = vector.shape_cast %1104 : vector<1x256xi1> to vector<1x256xi1>
    %1150 = vector.broadcast %1149 : vector<1x256xi1> to vector<8x256xi1>
    %1151 = arith.select %1150, %1146, %1148 : vector<8x256xi1>, vector<8x256xf32>
    %1152 = math.tanh %1151 : vector<8x256xf32>
    %cst_421 = arith.constant 5.000000e-01 : f32
    %1153 = vector.broadcast %cst_421 : f32 to vector<8x256xf32>
    %1154 = arith.mulf %1153, %1152 : vector<8x256xf32>
    %cst_422 = arith.constant 5.000000e-01 : f32
    %1155 = vector.broadcast %cst_422 : f32 to vector<8x256xf32>
    %1156 = arith.addf %1154, %1155 : vector<8x256xf32>
    %1157 = vector.shape_cast %1104 : vector<1x256xi1> to vector<1x256xi1>
    %1158 = vector.broadcast %1157 : vector<1x256xi1> to vector<8x256xi1>
    %1159 = arith.select %1158, %1152, %1156 : vector<8x256xi1>, vector<8x256xf32>
    %1160 = vector.extract_strided_slice %1159 {offsets = [0, 0], sizes = [8, 64], strides = [1, 1]} : vector<8x256xf32> to vector<8x64xf32>
    %1161 = vector.extract_strided_slice %1159 {offsets = [0, 64], sizes = [8, 64], strides = [1, 1]} : vector<8x256xf32> to vector<8x64xf32>
    %1162 = vector.extract_strided_slice %1159 {offsets = [0, 128], sizes = [8, 64], strides = [1, 1]} : vector<8x256xf32> to vector<8x64xf32>
    %1163 = vector.extract_strided_slice %1159 {offsets = [0, 192], sizes = [8, 64], strides = [1, 1]} : vector<8x256xf32> to vector<8x64xf32>
    %1164 = arith.mulf %1161, %1133 : vector<8x64xf32>
    %1165 = arith.mulf %1160, %1163 : vector<8x64xf32>
    %1166 = arith.addf %1164, %1165 : vector<8x64xf32>
    %1167 = math.tanh %1166 : vector<8x64xf32>
    %1168 = arith.mulf %1162, %1167 : vector<8x64xf32>
    %1169 = vector.extract_strided_slice %1168 {offsets = [0, 0], sizes = [8, 32], strides = [1, 1]} : vector<8x64xf32> to vector<8x32xf32>
    %c8_423 = arith.constant 8 : index
    %c0_424 = arith.constant 0 : index
    %1170 = vector.load %arg30[%c8_423, %c0_424] : memref<64x128xf32, #tpu.memory_space<vmem>>, vector<8x32xf32>
    tpu.vector_store %arg30[%c8_423, %c0_424], %1169 {strides = array<i32>} : memref<64x128xf32, #tpu.memory_space<vmem>>, vector<8x32xf32>,
    %1171 = vector.extract_strided_slice %1168 {offsets = [0, 32], sizes = [8, 32], strides = [1, 1]} : vector<8x64xf32> to vector<8x32xf32>
    %c48_425 = arith.constant 48 : index
    %c32_426 = arith.constant 32 : index
    %1172 = vector.load %arg30[%c48_425, %c32_426] : memref<64x128xf32, #tpu.memory_space<vmem>>, vector<8x32xf32>
    tpu.vector_store %arg30[%c48_425, %c32_426], %1171 {strides = array<i32>} : memref<64x128xf32, #tpu.memory_space<vmem>>, vector<8x32xf32>,
    %c16_427 = arith.constant 16 : index
    %c0_428 = arith.constant 0 : index
    %1173 = vector.load %arg28[%c16_427, %c0_428] : memref<64x512xf32, #tpu.memory_space<vmem>>, vector<8x256xf32>
    %c40_429 = arith.constant 40 : index
    %c0_430 = arith.constant 0 : index
    %1174 = vector.load %arg28[%c40_429, %c0_430] : memref<64x512xf32, #tpu.memory_space<vmem>>, vector<8x256xf32>
    %1175 = vector.shape_cast %1102 : vector<1x256xi1> to vector<1x256xi1>
    %1176 = vector.broadcast %1175 : vector<1x256xi1> to vector<8x256xi1>
    %1177 = arith.select %1176, %1173, %1174 : vector<8x256xi1>, vector<8x256xf32>
    %cst_431 = arith.constant dense<0.000000e+00> : vector<8x256xf32>
    %1178 = tpu.matmul %1168, %1078, %cst_431 {dimension_numbers = #tpu.dot_dimension_numbers<[1], [0], [0], [1], [0, 0, 1, 1], [], []>} : vector<8x64xf32>, vector<64x256xf32>, vector<8x256xf32> -> vector<8x256xf32>
    %1179 = arith.addf %1177, %1178 : vector<8x256xf32>
    %cst_432 = arith.constant 5.000000e-01 : f32
    %1180 = vector.broadcast %cst_432 : f32 to vector<8x256xf32>
    %1181 = arith.mulf %1180, %1179 : vector<8x256xf32>
    %1182 = vector.shape_cast %1104 : vector<1x256xi1> to vector<1x256xi1>
    %1183 = vector.broadcast %1182 : vector<1x256xi1> to vector<8x256xi1>
    %1184 = arith.select %1183, %1179, %1181 : vector<8x256xi1>, vector<8x256xf32>
    %1185 = math.tanh %1184 : vector<8x256xf32>
    %cst_433 = arith.constant 5.000000e-01 : f32
    %1186 = vector.broadcast %cst_433 : f32 to vector<8x256xf32>
    %1187 = arith.mulf %1186, %1185 : vector<8x256xf32>
    %cst_434 = arith.constant 5.000000e-01 : f32
    %1188 = vector.broadcast %cst_434 : f32 to vector<8x256xf32>
    %1189 = arith.addf %1187, %1188 : vector<8x256xf32>
    %1190 = vector.shape_cast %1104 : vector<1x256xi1> to vector<1x256xi1>
    %1191 = vector.broadcast %1190 : vector<1x256xi1> to vector<8x256xi1>
    %1192 = arith.select %1191, %1185, %1189 : vector<8x256xi1>, vector<8x256xf32>
    %1193 = vector.extract_strided_slice %1192 {offsets = [0, 0], sizes = [8, 64], strides = [1, 1]} : vector<8x256xf32> to vector<8x64xf32>
    %1194 = vector.extract_strided_slice %1192 {offsets = [0, 64], sizes = [8, 64], strides = [1, 1]} : vector<8x256xf32> to vector<8x64xf32>
    %1195 = vector.extract_strided_slice %1192 {offsets = [0, 128], sizes = [8, 64], strides = [1, 1]} : vector<8x256xf32> to vector<8x64xf32>
    %1196 = vector.extract_strided_slice %1192 {offsets = [0, 192], sizes = [8, 64], strides = [1, 1]} : vector<8x256xf32> to vector<8x64xf32>
    %1197 = arith.mulf %1194, %1166 : vector<8x64xf32>
    %1198 = arith.mulf %1193, %1196 : vector<8x64xf32>
    %1199 = arith.addf %1197, %1198 : vector<8x64xf32>
    %1200 = math.tanh %1199 : vector<8x64xf32>
    %1201 = arith.mulf %1195, %1200 : vector<8x64xf32>
    %1202 = vector.extract_strided_slice %1201 {offsets = [0, 0], sizes = [8, 32], strides = [1, 1]} : vector<8x64xf32> to vector<8x32xf32>
    %c16_435 = arith.constant 16 : index
    %c0_436 = arith.constant 0 : index
    %1203 = vector.load %arg30[%c16_435, %c0_436] : memref<64x128xf32, #tpu.memory_space<vmem>>, vector<8x32xf32>
    tpu.vector_store %arg30[%c16_435, %c0_436], %1202 {strides = array<i32>} : memref<64x128xf32, #tpu.memory_space<vmem>>, vector<8x32xf32>,
    %1204 = vector.extract_strided_slice %1201 {offsets = [0, 32], sizes = [8, 32], strides = [1, 1]} : vector<8x64xf32> to vector<8x32xf32>
    %c40_437 = arith.constant 40 : index
    %c32_438 = arith.constant 32 : index
    %1205 = vector.load %arg30[%c40_437, %c32_438] : memref<64x128xf32, #tpu.memory_space<vmem>>, vector<8x32xf32>
    tpu.vector_store %arg30[%c40_437, %c32_438], %1204 {strides = array<i32>} : memref<64x128xf32, #tpu.memory_space<vmem>>, vector<8x32xf32>,
    %c24_439 = arith.constant 24 : index
    %c0_440 = arith.constant 0 : index
    %1206 = vector.load %arg28[%c24_439, %c0_440] : memref<64x512xf32, #tpu.memory_space<vmem>>, vector<8x256xf32>
    %c32_441 = arith.constant 32 : index
    %c0_442 = arith.constant 0 : index
    %1207 = vector.load %arg28[%c32_441, %c0_442] : memref<64x512xf32, #tpu.memory_space<vmem>>, vector<8x256xf32>
    %1208 = vector.shape_cast %1102 : vector<1x256xi1> to vector<1x256xi1>
    %1209 = vector.broadcast %1208 : vector<1x256xi1> to vector<8x256xi1>
    %1210 = arith.select %1209, %1206, %1207 : vector<8x256xi1>, vector<8x256xf32>
    %cst_443 = arith.constant dense<0.000000e+00> : vector<8x256xf32>
    %1211 = tpu.matmul %1201, %1078, %cst_443 {dimension_numbers = #tpu.dot_dimension_numbers<[1], [0], [0], [1], [0, 0, 1, 1], [], []>} : vector<8x64xf32>, vector<64x256xf32>, vector<8x256xf32> -> vector<8x256xf32>
    %1212 = arith.addf %1210, %1211 : vector<8x256xf32>
    %cst_444 = arith.constant 5.000000e-01 : f32
    %1213 = vector.broadcast %cst_444 : f32 to vector<8x256xf32>
    %1214 = arith.mulf %1213, %1212 : vector<8x256xf32>
    %1215 = vector.shape_cast %1104 : vector<1x256xi1> to vector<1x256xi1>
    %1216 = vector.broadcast %1215 : vector<1x256xi1> to vector<8x256xi1>
    %1217 = arith.select %1216, %1212, %1214 : vector<8x256xi1>, vector<8x256xf32>
    %1218 = math.tanh %1217 : vector<8x256xf32>
    %cst_445 = arith.constant 5.000000e-01 : f32
    %1219 = vector.broadcast %cst_445 : f32 to vector<8x256xf32>
    %1220 = arith.mulf %1219, %1218 : vector<8x256xf32>
    %cst_446 = arith.constant 5.000000e-01 : f32
    %1221 = vector.broadcast %cst_446 : f32 to vector<8x256xf32>
    %1222 = arith.addf %1220, %1221 : vector<8x256xf32>
    %1223 = vector.shape_cast %1104 : vector<1x256xi1> to vector<1x256xi1>
    %1224 = vector.broadcast %1223 : vector<1x256xi1> to vector<8x256xi1>
    %1225 = arith.select %1224, %1218, %1222 : vector<8x256xi1>, vector<8x256xf32>
    %1226 = vector.extract_strided_slice %1225 {offsets = [0, 0], sizes = [8, 64], strides = [1, 1]} : vector<8x256xf32> to vector<8x64xf32>
    %1227 = vector.extract_strided_slice %1225 {offsets = [0, 64], sizes = [8, 64], strides = [1, 1]} : vector<8x256xf32> to vector<8x64xf32>
    %1228 = vector.extract_strided_slice %1225 {offsets = [0, 128], sizes = [8, 64], strides = [1, 1]} : vector<8x256xf32> to vector<8x64xf32>
    %1229 = vector.extract_strided_slice %1225 {offsets = [0, 192], sizes = [8, 64], strides = [1, 1]} : vector<8x256xf32> to vector<8x64xf32>
    %1230 = arith.mulf %1227, %1199 : vector<8x64xf32>
    %1231 = arith.mulf %1226, %1229 : vector<8x64xf32>
    %1232 = arith.addf %1230, %1231 : vector<8x64xf32>
    %1233 = math.tanh %1232 : vector<8x64xf32>
    %1234 = arith.mulf %1228, %1233 : vector<8x64xf32>
    %1235 = vector.extract_strided_slice %1234 {offsets = [0, 0], sizes = [8, 32], strides = [1, 1]} : vector<8x64xf32> to vector<8x32xf32>
    %c24_447 = arith.constant 24 : index
    %c0_448 = arith.constant 0 : index
    %1236 = vector.load %arg30[%c24_447, %c0_448] : memref<64x128xf32, #tpu.memory_space<vmem>>, vector<8x32xf32>
    tpu.vector_store %arg30[%c24_447, %c0_448], %1235 {strides = array<i32>} : memref<64x128xf32, #tpu.memory_space<vmem>>, vector<8x32xf32>,
    %1237 = vector.extract_strided_slice %1234 {offsets = [0, 32], sizes = [8, 32], strides = [1, 1]} : vector<8x64xf32> to vector<8x32xf32>
    %c32_449 = arith.constant 32 : index
    %c32_450 = arith.constant 32 : index
    %1238 = vector.load %arg30[%c32_449, %c32_450] : memref<64x128xf32, #tpu.memory_space<vmem>>, vector<8x32xf32>
    tpu.vector_store %arg30[%c32_449, %c32_450], %1237 {strides = array<i32>} : memref<64x128xf32, #tpu.memory_space<vmem>>, vector<8x32xf32>,
    %c32_451 = arith.constant 32 : index
    %c0_452 = arith.constant 0 : index
    %1239 = vector.load %arg28[%c32_451, %c0_452] : memref<64x512xf32, #tpu.memory_space<vmem>>, vector<8x256xf32>
    %c24_453 = arith.constant 24 : index
    %c0_454 = arith.constant 0 : index
    %1240 = vector.load %arg28[%c24_453, %c0_454] : memref<64x512xf32, #tpu.memory_space<vmem>>, vector<8x256xf32>
    %1241 = vector.shape_cast %1102 : vector<1x256xi1> to vector<1x256xi1>
    %1242 = vector.broadcast %1241 : vector<1x256xi1> to vector<8x256xi1>
    %1243 = arith.select %1242, %1239, %1240 : vector<8x256xi1>, vector<8x256xf32>
    %cst_455 = arith.constant dense<0.000000e+00> : vector<8x256xf32>
    %1244 = tpu.matmul %1234, %1078, %cst_455 {dimension_numbers = #tpu.dot_dimension_numbers<[1], [0], [0], [1], [0, 0, 1, 1], [], []>} : vector<8x64xf32>, vector<64x256xf32>, vector<8x256xf32> -> vector<8x256xf32>
    %1245 = arith.addf %1243, %1244 : vector<8x256xf32>
    %cst_456 = arith.constant 5.000000e-01 : f32
    %1246 = vector.broadcast %cst_456 : f32 to vector<8x256xf32>
    %1247 = arith.mulf %1246, %1245 : vector<8x256xf32>
    %1248 = vector.shape_cast %1104 : vector<1x256xi1> to vector<1x256xi1>
    %1249 = vector.broadcast %1248 : vector<1x256xi1> to vector<8x256xi1>
    %1250 = arith.select %1249, %1245, %1247 : vector<8x256xi1>, vector<8x256xf32>
    %1251 = math.tanh %1250 : vector<8x256xf32>
    %cst_457 = arith.constant 5.000000e-01 : f32
    %1252 = vector.broadcast %cst_457 : f32 to vector<8x256xf32>
    %1253 = arith.mulf %1252, %1251 : vector<8x256xf32>
    %cst_458 = arith.constant 5.000000e-01 : f32
    %1254 = vector.broadcast %cst_458 : f32 to vector<8x256xf32>
    %1255 = arith.addf %1253, %1254 : vector<8x256xf32>
    %1256 = vector.shape_cast %1104 : vector<1x256xi1> to vector<1x256xi1>
    %1257 = vector.broadcast %1256 : vector<1x256xi1> to vector<8x256xi1>
    %1258 = arith.select %1257, %1251, %1255 : vector<8x256xi1>, vector<8x256xf32>
    %1259 = vector.extract_strided_slice %1258 {offsets = [0, 0], sizes = [8, 64], strides = [1, 1]} : vector<8x256xf32> to vector<8x64xf32>
    %1260 = vector.extract_strided_slice %1258 {offsets = [0, 64], sizes = [8, 64], strides = [1, 1]} : vector<8x256xf32> to vector<8x64xf32>
    %1261 = vector.extract_strided_slice %1258 {offsets = [0, 128], sizes = [8, 64], strides = [1, 1]} : vector<8x256xf32> to vector<8x64xf32>
    %1262 = vector.extract_strided_slice %1258 {offsets = [0, 192], sizes = [8, 64], strides = [1, 1]} : vector<8x256xf32> to vector<8x64xf32>
    %1263 = arith.mulf %1260, %1232 : vector<8x64xf32>
    %1264 = arith.mulf %1259, %1262 : vector<8x64xf32>
    %1265 = arith.addf %1263, %1264 : vector<8x64xf32>
    %1266 = math.tanh %1265 : vector<8x64xf32>
    %1267 = arith.mulf %1261, %1266 : vector<8x64xf32>
    %1268 = vector.extract_strided_slice %1267 {offsets = [0, 0], sizes = [8, 32], strides = [1, 1]} : vector<8x64xf32> to vector<8x32xf32>
    %c32_459 = arith.constant 32 : index
    %c0_460 = arith.constant 0 : index
    %1269 = vector.load %arg30[%c32_459, %c0_460] : memref<64x128xf32, #tpu.memory_space<vmem>>, vector<8x32xf32>
    tpu.vector_store %arg30[%c32_459, %c0_460], %1268 {strides = array<i32>} : memref<64x128xf32, #tpu.memory_space<vmem>>, vector<8x32xf32>,
    %1270 = vector.extract_strided_slice %1267 {offsets = [0, 32], sizes = [8, 32], strides = [1, 1]} : vector<8x64xf32> to vector<8x32xf32>
    %c24_461 = arith.constant 24 : index
    %c32_462 = arith.constant 32 : index
    %1271 = vector.load %arg30[%c24_461, %c32_462] : memref<64x128xf32, #tpu.memory_space<vmem>>, vector<8x32xf32>
    tpu.vector_store %arg30[%c24_461, %c32_462], %1270 {strides = array<i32>} : memref<64x128xf32, #tpu.memory_space<vmem>>, vector<8x32xf32>,
    %c40_463 = arith.constant 40 : index
    %c0_464 = arith.constant 0 : index
    %1272 = vector.load %arg28[%c40_463, %c0_464] : memref<64x512xf32, #tpu.memory_space<vmem>>, vector<8x256xf32>
    %c16_465 = arith.constant 16 : index
    %c0_466 = arith.constant 0 : index
    %1273 = vector.load %arg28[%c16_465, %c0_466] : memref<64x512xf32, #tpu.memory_space<vmem>>, vector<8x256xf32>
    %1274 = vector.shape_cast %1102 : vector<1x256xi1> to vector<1x256xi1>
    %1275 = vector.broadcast %1274 : vector<1x256xi1> to vector<8x256xi1>
    %1276 = arith.select %1275, %1272, %1273 : vector<8x256xi1>, vector<8x256xf32>
    %cst_467 = arith.constant dense<0.000000e+00> : vector<8x256xf32>
    %1277 = tpu.matmul %1267, %1078, %cst_467 {dimension_numbers = #tpu.dot_dimension_numbers<[1], [0], [0], [1], [0, 0, 1, 1], [], []>} : vector<8x64xf32>, vector<64x256xf32>, vector<8x256xf32> -> vector<8x256xf32>
    %1278 = arith.addf %1276, %1277 : vector<8x256xf32>
    %cst_468 = arith.constant 5.000000e-01 : f32
    %1279 = vector.broadcast %cst_468 : f32 to vector<8x256xf32>
    %1280 = arith.mulf %1279, %1278 : vector<8x256xf32>
    %1281 = vector.shape_cast %1104 : vector<1x256xi1> to vector<1x256xi1>
    %1282 = vector.broadcast %1281 : vector<1x256xi1> to vector<8x256xi1>
    %1283 = arith.select %1282, %1278, %1280 : vector<8x256xi1>, vector<8x256xf32>
    %1284 = math.tanh %1283 : vector<8x256xf32>
    %cst_469 = arith.constant 5.000000e-01 : f32
    %1285 = vector.broadcast %cst_469 : f32 to vector<8x256xf32>
    %1286 = arith.mulf %1285, %1284 : vector<8x256xf32>
    %cst_470 = arith.constant 5.000000e-01 : f32
    %1287 = vector.broadcast %cst_470 : f32 to vector<8x256xf32>
    %1288 = arith.addf %1286, %1287 : vector<8x256xf32>
    %1289 = vector.shape_cast %1104 : vector<1x256xi1> to vector<1x256xi1>
    %1290 = vector.broadcast %1289 : vector<1x256xi1> to vector<8x256xi1>
    %1291 = arith.select %1290, %1284, %1288 : vector<8x256xi1>, vector<8x256xf32>
    %1292 = vector.extract_strided_slice %1291 {offsets = [0, 0], sizes = [8, 64], strides = [1, 1]} : vector<8x256xf32> to vector<8x64xf32>
    %1293 = vector.extract_strided_slice %1291 {offsets = [0, 64], sizes = [8, 64], strides = [1, 1]} : vector<8x256xf32> to vector<8x64xf32>
    %1294 = vector.extract_strided_slice %1291 {offsets = [0, 128], sizes = [8, 64], strides = [1, 1]} : vector<8x256xf32> to vector<8x64xf32>
    %1295 = vector.extract_strided_slice %1291 {offsets = [0, 192], sizes = [8, 64], strides = [1, 1]} : vector<8x256xf32> to vector<8x64xf32>
    %1296 = arith.mulf %1293, %1265 : vector<8x64xf32>
    %1297 = arith.mulf %1292, %1295 : vector<8x64xf32>
    %1298 = arith.addf %1296, %1297 : vector<8x64xf32>
    %1299 = math.tanh %1298 : vector<8x64xf32>
    %1300 = arith.mulf %1294, %1299 : vector<8x64xf32>
    %1301 = vector.extract_strided_slice %1300 {offsets = [0, 0], sizes = [8, 32], strides = [1, 1]} : vector<8x64xf32> to vector<8x32xf32>
    %c40_471 = arith.constant 40 : index
    %c0_472 = arith.constant 0 : index
    %1302 = vector.load %arg30[%c40_471, %c0_472] : memref<64x128xf32, #tpu.memory_space<vmem>>, vector<8x32xf32>
    tpu.vector_store %arg30[%c40_471, %c0_472], %1301 {strides = array<i32>} : memref<64x128xf32, #tpu.memory_space<vmem>>, vector<8x32xf32>,
    %1303 = vector.extract_strided_slice %1300 {offsets = [0, 32], sizes = [8, 32], strides = [1, 1]} : vector<8x64xf32> to vector<8x32xf32>
    %c16_473 = arith.constant 16 : index
    %c32_474 = arith.constant 32 : index
    %1304 = vector.load %arg30[%c16_473, %c32_474] : memref<64x128xf32, #tpu.memory_space<vmem>>, vector<8x32xf32>
    tpu.vector_store %arg30[%c16_473, %c32_474], %1303 {strides = array<i32>} : memref<64x128xf32, #tpu.memory_space<vmem>>, vector<8x32xf32>,
    %c48_475 = arith.constant 48 : index
    %c0_476 = arith.constant 0 : index
    %1305 = vector.load %arg28[%c48_475, %c0_476] : memref<64x512xf32, #tpu.memory_space<vmem>>, vector<8x256xf32>
    %c8_477 = arith.constant 8 : index
    %c0_478 = arith.constant 0 : index
    %1306 = vector.load %arg28[%c8_477, %c0_478] : memref<64x512xf32, #tpu.memory_space<vmem>>, vector<8x256xf32>
    %1307 = vector.shape_cast %1102 : vector<1x256xi1> to vector<1x256xi1>
    %1308 = vector.broadcast %1307 : vector<1x256xi1> to vector<8x256xi1>
    %1309 = arith.select %1308, %1305, %1306 : vector<8x256xi1>, vector<8x256xf32>
    %cst_479 = arith.constant dense<0.000000e+00> : vector<8x256xf32>
    %1310 = tpu.matmul %1300, %1078, %cst_479 {dimension_numbers = #tpu.dot_dimension_numbers<[1], [0], [0], [1], [0, 0, 1, 1], [], []>} : vector<8x64xf32>, vector<64x256xf32>, vector<8x256xf32> -> vector<8x256xf32>
    %1311 = arith.addf %1309, %1310 : vector<8x256xf32>
    %cst_480 = arith.constant 5.000000e-01 : f32
    %1312 = vector.broadcast %cst_480 : f32 to vector<8x256xf32>
    %1313 = arith.mulf %1312, %1311 : vector<8x256xf32>
    %1314 = vector.shape_cast %1104 : vector<1x256xi1> to vector<1x256xi1>
    %1315 = vector.broadcast %1314 : vector<1x256xi1> to vector<8x256xi1>
    %1316 = arith.select %1315, %1311, %1313 : vector<8x256xi1>, vector<8x256xf32>
    %1317 = math.tanh %1316 : vector<8x256xf32>
    %cst_481 = arith.constant 5.000000e-01 : f32
    %1318 = vector.broadcast %cst_481 : f32 to vector<8x256xf32>
    %1319 = arith.mulf %1318, %1317 : vector<8x256xf32>
    %cst_482 = arith.constant 5.000000e-01 : f32
    %1320 = vector.broadcast %cst_482 : f32 to vector<8x256xf32>
    %1321 = arith.addf %1319, %1320 : vector<8x256xf32>
    %1322 = vector.shape_cast %1104 : vector<1x256xi1> to vector<1x256xi1>
    %1323 = vector.broadcast %1322 : vector<1x256xi1> to vector<8x256xi1>
    %1324 = arith.select %1323, %1317, %1321 : vector<8x256xi1>, vector<8x256xf32>
    %1325 = vector.extract_strided_slice %1324 {offsets = [0, 0], sizes = [8, 64], strides = [1, 1]} : vector<8x256xf32> to vector<8x64xf32>
    %1326 = vector.extract_strided_slice %1324 {offsets = [0, 64], sizes = [8, 64], strides = [1, 1]} : vector<8x256xf32> to vector<8x64xf32>
    %1327 = vector.extract_strided_slice %1324 {offsets = [0, 128], sizes = [8, 64], strides = [1, 1]} : vector<8x256xf32> to vector<8x64xf32>
    %1328 = vector.extract_strided_slice %1324 {offsets = [0, 192], sizes = [8, 64], strides = [1, 1]} : vector<8x256xf32> to vector<8x64xf32>
    %1329 = arith.mulf %1326, %1298 : vector<8x64xf32>
    %1330 = arith.mulf %1325, %1328 : vector<8x64xf32>
    %1331 = arith.addf %1329, %1330 : vector<8x64xf32>
    %1332 = math.tanh %1331 : vector<8x64xf32>
    %1333 = arith.mulf %1327, %1332 : vector<8x64xf32>
    %1334 = vector.extract_strided_slice %1333 {offsets = [0, 0], sizes = [8, 32], strides = [1, 1]} : vector<8x64xf32> to vector<8x32xf32>
    %c48_483 = arith.constant 48 : index
    %c0_484 = arith.constant 0 : index
    %1335 = vector.load %arg30[%c48_483, %c0_484] : memref<64x128xf32, #tpu.memory_space<vmem>>, vector<8x32xf32>
    tpu.vector_store %arg30[%c48_483, %c0_484], %1334 {strides = array<i32>} : memref<64x128xf32, #tpu.memory_space<vmem>>, vector<8x32xf32>,
    %1336 = vector.extract_strided_slice %1333 {offsets = [0, 32], sizes = [8, 32], strides = [1, 1]} : vector<8x64xf32> to vector<8x32xf32>
    %c8_485 = arith.constant 8 : index
    %c32_486 = arith.constant 32 : index
    %1337 = vector.load %arg30[%c8_485, %c32_486] : memref<64x128xf32, #tpu.memory_space<vmem>>, vector<8x32xf32>
    tpu.vector_store %arg30[%c8_485, %c32_486], %1336 {strides = array<i32>} : memref<64x128xf32, #tpu.memory_space<vmem>>, vector<8x32xf32>,
    %c56_487 = arith.constant 56 : index
    %c0_488 = arith.constant 0 : index
    %1338 = vector.load %arg28[%c56_487, %c0_488] : memref<64x512xf32, #tpu.memory_space<vmem>>, vector<8x256xf32>
    %c0_489 = arith.constant 0 : index
    %c0_490 = arith.constant 0 : index
    %1339 = vector.load %arg28[%c0_489, %c0_490] : memref<64x512xf32, #tpu.memory_space<vmem>>, vector<8x256xf32>
    %1340 = vector.shape_cast %1102 : vector<1x256xi1> to vector<1x256xi1>
    %1341 = vector.broadcast %1340 : vector<1x256xi1> to vector<8x256xi1>
    %1342 = arith.select %1341, %1338, %1339 : vector<8x256xi1>, vector<8x256xf32>
    %cst_491 = arith.constant dense<0.000000e+00> : vector<8x256xf32>
    %1343 = tpu.matmul %1333, %1078, %cst_491 {dimension_numbers = #tpu.dot_dimension_numbers<[1], [0], [0], [1], [0, 0, 1, 1], [], []>} : vector<8x64xf32>, vector<64x256xf32>, vector<8x256xf32> -> vector<8x256xf32>
    %1344 = arith.addf %1342, %1343 : vector<8x256xf32>
    %cst_492 = arith.constant 5.000000e-01 : f32
    %1345 = vector.broadcast %cst_492 : f32 to vector<8x256xf32>
    %1346 = arith.mulf %1345, %1344 : vector<8x256xf32>
    %1347 = vector.shape_cast %1104 : vector<1x256xi1> to vector<1x256xi1>
    %1348 = vector.broadcast %1347 : vector<1x256xi1> to vector<8x256xi1>
    %1349 = arith.select %1348, %1344, %1346 : vector<8x256xi1>, vector<8x256xf32>
    %1350 = math.tanh %1349 : vector<8x256xf32>
    %cst_493 = arith.constant 5.000000e-01 : f32
    %1351 = vector.broadcast %cst_493 : f32 to vector<8x256xf32>
    %1352 = arith.mulf %1351, %1350 : vector<8x256xf32>
    %cst_494 = arith.constant 5.000000e-01 : f32
    %1353 = vector.broadcast %cst_494 : f32 to vector<8x256xf32>
    %1354 = arith.addf %1352, %1353 : vector<8x256xf32>
    %1355 = vector.shape_cast %1104 : vector<1x256xi1> to vector<1x256xi1>
    %1356 = vector.broadcast %1355 : vector<1x256xi1> to vector<8x256xi1>
    %1357 = arith.select %1356, %1350, %1354 : vector<8x256xi1>, vector<8x256xf32>
    %1358 = vector.extract_strided_slice %1357 {offsets = [0, 0], sizes = [8, 64], strides = [1, 1]} : vector<8x256xf32> to vector<8x64xf32>
    %1359 = vector.extract_strided_slice %1357 {offsets = [0, 64], sizes = [8, 64], strides = [1, 1]} : vector<8x256xf32> to vector<8x64xf32>
    %1360 = vector.extract_strided_slice %1357 {offsets = [0, 128], sizes = [8, 64], strides = [1, 1]} : vector<8x256xf32> to vector<8x64xf32>
    %1361 = vector.extract_strided_slice %1357 {offsets = [0, 192], sizes = [8, 64], strides = [1, 1]} : vector<8x256xf32> to vector<8x64xf32>
    %1362 = arith.mulf %1359, %1331 : vector<8x64xf32>
    %1363 = arith.mulf %1358, %1361 : vector<8x64xf32>
    %1364 = arith.addf %1362, %1363 : vector<8x64xf32>
    %1365 = math.tanh %1364 : vector<8x64xf32>
    %1366 = arith.mulf %1360, %1365 : vector<8x64xf32>
    %1367 = vector.extract_strided_slice %1366 {offsets = [0, 0], sizes = [8, 32], strides = [1, 1]} : vector<8x64xf32> to vector<8x32xf32>
    %c56_495 = arith.constant 56 : index
    %c0_496 = arith.constant 0 : index
    %1368 = vector.load %arg30[%c56_495, %c0_496] : memref<64x128xf32, #tpu.memory_space<vmem>>, vector<8x32xf32>
    tpu.vector_store %arg30[%c56_495, %c0_496], %1367 {strides = array<i32>} : memref<64x128xf32, #tpu.memory_space<vmem>>, vector<8x32xf32>,
    %1369 = vector.extract_strided_slice %1366 {offsets = [0, 32], sizes = [8, 32], strides = [1, 1]} : vector<8x64xf32> to vector<8x32xf32>
    %c0_497 = arith.constant 0 : index
    %c32_498 = arith.constant 32 : index
    %1370 = vector.load %arg30[%c0_497, %c32_498] : memref<64x128xf32, #tpu.memory_space<vmem>>, vector<8x32xf32>
    tpu.vector_store %arg30[%c0_497, %c32_498], %1369 {strides = array<i32>} : memref<64x128xf32, #tpu.memory_space<vmem>>, vector<8x32xf32>,
    %c0_499 = arith.constant 0 : index
    %c0_500 = arith.constant 0 : index
    %1371 = vector.load %arg30[%c0_499, %c0_500] : memref<64x128xf32, #tpu.memory_space<vmem>>, vector<64x64xf32>
    %c0_501 = arith.constant 0 : index
    %c0_502 = arith.constant 0 : index
    %1372 = vector.load %arg22[%c0_501, %c0_502] : memref<64x64xf32, #tpu.memory_space<vmem>>, vector<64x64xf32>
    %cst_503 = arith.constant dense<0.000000e+00> : vector<64x64xf32>
    %1373 = tpu.matmul %1371, %1372, %cst_503 {dimension_numbers = #tpu.dot_dimension_numbers<[1], [0], [0], [1], [0, 0, 1, 1], [], []>} : vector<64x64xf32>, vector<64x64xf32>, vector<64x64xf32> -> vector<64x64xf32>
    %c0_504 = arith.constant 0 : index
    %c0_505 = arith.constant 0 : index
    %1374 = vector.load %arg23[%c0_504, %c0_505] : memref<1x64xf32, #tpu.memory_space<vmem>>, vector<1x64xf32>
    %1375 = vector.broadcast %1374 : vector<1x64xf32> to vector<64x64xf32>
    %1376 = arith.addf %1373, %1375 : vector<64x64xf32>
    %1377 = vector.extract_strided_slice %1376 {offsets = [0, 0], sizes = [8, 64], strides = [1, 1]} : vector<64x64xf32> to vector<8x64xf32>
    %1378 = vector.extract_strided_slice %1376 {offsets = [8, 0], sizes = [8, 64], strides = [1, 1]} : vector<64x64xf32> to vector<8x64xf32>
    %1379 = arith.maximumf %1377, %1378 : vector<8x64xf32>
    %1380 = vector.extract_strided_slice %1376 {offsets = [16, 0], sizes = [8, 64], strides = [1, 1]} : vector<64x64xf32> to vector<8x64xf32>
    %1381 = arith.maximumf %1379, %1380 : vector<8x64xf32>
    %1382 = vector.extract_strided_slice %1376 {offsets = [24, 0], sizes = [8, 64], strides = [1, 1]} : vector<64x64xf32> to vector<8x64xf32>
    %1383 = arith.maximumf %1381, %1382 : vector<8x64xf32>
    %1384 = vector.extract_strided_slice %1376 {offsets = [32, 0], sizes = [8, 64], strides = [1, 1]} : vector<64x64xf32> to vector<8x64xf32>
    %1385 = arith.maximumf %1383, %1384 : vector<8x64xf32>
    %1386 = vector.extract_strided_slice %1376 {offsets = [40, 0], sizes = [8, 64], strides = [1, 1]} : vector<64x64xf32> to vector<8x64xf32>
    %1387 = arith.maximumf %1385, %1386 : vector<8x64xf32>
    %1388 = vector.extract_strided_slice %1376 {offsets = [48, 0], sizes = [8, 64], strides = [1, 1]} : vector<64x64xf32> to vector<8x64xf32>
    %1389 = arith.maximumf %1387, %1388 : vector<8x64xf32>
    %1390 = vector.extract_strided_slice %1376 {offsets = [56, 0], sizes = [8, 64], strides = [1, 1]} : vector<64x64xf32> to vector<8x64xf32>
    %1391 = arith.maximumf %1389, %1390 : vector<8x64xf32>
    %c0_506 = arith.constant 0 : index
    %c0_507 = arith.constant 0 : index
    %1392 = vector.load %arg25[%c0_506, %c0_507] : memref<8x64xf32, #tpu.memory_space<vmem>>, vector<8x64xf32>
    tpu.vector_store %arg25[%c0_506, %c0_507], %1391 {strides = array<i32>} : memref<8x64xf32, #tpu.memory_space<vmem>>, vector<8x64xf32>,
    %c0_508 = arith.constant 0 : index
    %c0_509 = arith.constant 0 : index
    %1393 = vector.load %arg18[%c0_508, %c0_509] : memref<64x5xf32, #tpu.memory_space<vmem>>, vector<64x5xf32>
    %c0_510 = arith.constant 0 : index
    %c0_511 = arith.constant 0 : index
    %1394 = vector.load %arg19[%c0_510, %c0_511] : memref<1x5xf32, #tpu.memory_space<vmem>>, vector<1x5xf32>
    %c0_512 = arith.constant 0 : index
    %c0_513 = arith.constant 0 : index
    %1395 = vector.load %arg3[%c0_512, %c0_513] : memref<8x1xi32, #tpu.memory_space<vmem>>, vector<8x1xi32>
    %cst_514 = arith.constant dense<0.000000e+00> : vector<8x5xf32>
    %1396 = tpu.matmul %1391, %1393, %cst_514 {dimension_numbers = #tpu.dot_dimension_numbers<[1], [0], [0], [1], [0, 0, 1, 1], [], []>} : vector<8x64xf32>, vector<64x5xf32>, vector<8x5xf32> -> vector<8x5xf32>
    %1397 = vector.broadcast %1394 : vector<1x5xf32> to vector<8x5xf32>
    %1398 = arith.addf %1396, %1397 : vector<8x5xf32>
    %cst_515 = arith.constant dense<0xFF800000> : vector<8xf32>
    %1399 = vector.multi_reduction <maximumf>, %1398, %cst_515 [1] : vector<8x5xf32> to vector<8xf32>
    %1400 = vector.shape_cast %1399 : vector<8xf32> to vector<8x1xf32>
    %1401 = vector.broadcast %1400 : vector<8x1xf32> to vector<8x5xf32>
    %1402 = arith.subf %1398, %1401 : vector<8x5xf32>
    %1403 = math.exp %1402 : vector<8x5xf32>
    %cst_516 = arith.constant dense<0.000000e+00> : vector<8xf32>
    %1404 = vector.multi_reduction <add>, %1403, %cst_516 [1] : vector<8x5xf32> to vector<8xf32>
    %1405 = vector.shape_cast %1404 : vector<8xf32> to vector<8x1xf32>
    %1406 = math.log %1405 : vector<8x1xf32>
    %1407 = arith.addf %1406, %1400 : vector<8x1xf32>
    %1408 = vector.broadcast %1407 : vector<8x1xf32> to vector<8x5xf32>
    %1409 = arith.subf %1398, %1408 : vector<8x5xf32>
    %1410 = tpu.iota {dimensions = array<i32: 1>} : vector<8x5xi32>
    %1411 = vector.broadcast %1395 : vector<8x1xi32> to vector<8x5xi32>
    %1412 = arith.cmpi eq, %1410, %1411 : vector<8x5xi32>
    %1413 = arith.extui %1412 : vector<8x5xi1> to vector<8x5xi32>
    %1414 = arith.sitofp %1413 : vector<8x5xi32> to vector<8x5xf32>
    %1415 = arith.mulf %1409, %1414 : vector<8x5xf32>
    %cst_517 = arith.constant dense<0.000000e+00> : vector<8xf32>
    %1416 = vector.multi_reduction <add>, %1415, %cst_517 [1] : vector<8x5xf32> to vector<8xf32>
    %1417 = vector.shape_cast %1416 : vector<8xf32> to vector<8x1xf32>
    %cst_518 = arith.constant 0.000000e+00 : f32
    %1418 = vector.broadcast %cst_518 : f32 to vector<8x1xf32>
    %1419 = arith.subf %1418, %1417 : vector<8x1xf32>
    %cst_519 = arith.constant 0.000000e+00 : f32
    %1420 = vector.broadcast %cst_519 : f32 to vector<8x1xf32>
    %1421 = tpu.concatenate %1419, %711, %753, %1420 in 1 : vector<8x1xf32>, vector<8x1xf32>, vector<8x1xf32>, vector<8x1xf32> -> vector<8x4xf32>
    %c0_520 = arith.constant 0 : index
    %c0_521 = arith.constant 0 : index
    %1422 = vector.load %arg26[%c0_520, %c0_521] : memref<8x4xf32, #tpu.memory_space<vmem>>, vector<8x4xf32>
    tpu.vector_store %arg26[%c0_520, %c0_521], %1421 {strides = array<i32>} : memref<8x4xf32, #tpu.memory_space<vmem>>, vector<8x4xf32>,
    return
  }
}

</mosaic_0001>

<llo_original>
// kernel: forward.1
$region0: #{forward.1}
  #allocation0 [shape = 'u32[]', space=smem, size = 0x4, offset = 0x4, fixed_abs, tag = 'smem constant byte address 0x4 - core index']
  #allocation1 [shape = 'u32[144,128]{1,0:T(1,128)}', space=vmem, size = 0x12000, scoped, tag = 'internal scratch']
  #allocation2 [shape = 'f32[64,512]{1,0:T(8,128)}', space=vmem, size = 0x20000, scoped, tag = 'scratch operand']
  #allocation3 [shape = 'f32[64,128]{1,0:T(8,128)}', space=vmem, size = 0x8000, scoped, tag = 'scratch operand']
  #allocation4 [shape = 'f32[64,128]{1,0:T(8,128)}', space=vmem, size = 0x8000, scoped, tag = 'scratch operand']
  %s0 = inlined_call_operand.vmem [shape: f32[64,32], index: 0, kind: input, shape index: {}]
  %s1 = inlined_call_operand.vmem [shape: f32[64,1], index: 1, kind: input, shape index: {}]
  %s2 = inlined_call_operand.vmem [shape: f32[64,2], index: 2, kind: input, shape index: {}]
  %s3 = inlined_call_operand.vmem [shape: s32[8,1], index: 3, kind: input, shape index: {}]
  %s4 = inlined_call_operand.vmem [shape: f32[1,2], index: 4, kind: input, shape index: {}]
  %s5 = inlined_call_operand.vmem [shape: f32[32,512], index: 5, kind: input, shape index: {}]
  %s6 = inlined_call_operand.vmem [shape: f32[128,512], index: 6, kind: input, shape index: {}]
  %s7 = inlined_call_operand.vmem [shape: f32[1,512], index: 7, kind: input, shape index: {}]
  %s8 = inlined_call_operand.hbm [shape: f32[128,512], index: 8, kind: input, shape index: {}]
  %s9 = inlined_call_operand.hbm [shape: f32[128,512], index: 9, kind: input, shape index: {}]
  %s10 = inlined_call_operand.vmem [shape: f32[1,512], index: 10, kind: input, shape index: {}]
  %s11 = inlined_call_operand.vmem [shape: f32[32,256], index: 11, kind: input, shape index: {}]
  %s12 = inlined_call_operand.vmem [shape: f32[64,256], index: 12, kind: input, shape index: {}]
  %s13 = inlined_call_operand.hbm [shape: f32[1,256], index: 13, kind: input, shape index: {}]
  %s14 = inlined_call_operand.hbm [shape: f32[64,256], index: 14, kind: input, shape index: {}]
  %s15 = inlined_call_operand.hbm [shape: f32[64,256], index: 15, kind: input, shape index: {}]
  %s16 = inlined_call_operand.hbm [shape: f32[1,256], index: 16, kind: input, shape index: {}]
  %s17 = inlined_call_operand.hbm [shape: f32[128,128], index: 17, kind: input, shape index: {}]
  %s18 = inlined_call_operand.vmem [shape: f32[64,5], index: 18, kind: input, shape index: {}]
  %s19 = inlined_call_operand.hbm [shape: f32[1,5], index: 19, kind: input, shape index: {}]
  %s20 = inlined_call_operand.vmem [shape: f32[128,2], index: 20, kind: input, shape index: {}]
  %s21 = inlined_call_operand.hbm [shape: f32[1,2], index: 21, kind: input, shape index: {}]
  %s22 = inlined_call_operand.hbm [shape: f32[64,64], index: 22, kind: input, shape index: {}]
  %s23 = inlined_call_operand.hbm [shape: f32[1,64], index: 23, kind: input, shape index: {}]
  %s24 = inlined_call_operand.vmem [shape: f32[8,64], index: 24, kind: output, shape index: {0}]
  %s25 = inlined_call_operand.vmem [shape: f32[8,64], index: 25, kind: output, shape index: {1}]
  %s26 = inlined_call_operand.vmem [shape: f32[8,4], index: 26, kind: output, shape index: {2}]
  %s27 = inlined_call_operand.vmem [shape: f32[8,8], index: 27, kind: output, shape index: {3}]
  %28 = xla_tuple %s24, %s25, %s26, %s27
  %s29 = sld [smem:[#allocation0]]
  $region174: #{forward.1} parent=0
    _
  %s31 = ssub.s32 1, %s29
  %s32 = scalar_select 0, %s31, %s29
  $region1: #{forward.1} parent=0
    #allocation5 [shape = 'u8[262144]{0}', space=vmem, size = 0x40000, scoped, tag = 'input window, operand 8, single buffered']
    #allocation6 [shape = 's32[1]{0}', space=sflag, size = 0x4, scoped, tag = 'scoped memory for forward.1']
    #allocation7 [shape = 'u8[262144]{0}', space=vmem, size = 0x40000, scoped, tag = 'input window, operand 9, single buffered']
    #allocation8 [shape = 's32[1]{0}', space=sflag, size = 0x4, scoped, tag = 'scoped memory for forward.1']
    #allocation9 [shape = 'u8[1024]{0}', space=vmem, size = 0x400, scoped, tag = 'input window, operand 13, single buffered']
    #allocation10 [shape = 'u8[65536]{0}', space=vmem, size = 0x10000, scoped, tag = 'input window, operand 14, single buffered']
    #allocation11 [shape = 's32[1]{0}', space=sflag, size = 0x4, scoped, tag = 'scoped memory for forward.1']
    #allocation12 [shape = 'u8[65536]{0}', space=vmem, size = 0x10000, scoped, tag = 'input window, operand 15, single buffered']
    #allocation13 [shape = 'u8[1024]{0}', space=vmem, size = 0x400, scoped, tag = 'input window, operand 16, single buffered']
    #allocation14 [shape = 's32[1]{0}', space=sflag, size = 0x4, scoped, tag = 'scoped memory for forward.1']
    #allocation15 [shape = 'u8[65536]{0}', space=vmem, size = 0x10000, scoped, tag = 'input window, operand 17, single buffered']
    #allocation16 [shape = 'u8[512]{0}', space=vmem, size = 0x400, scoped, tag = 'input window, operand 19, single buffered']
    #allocation17 [shape = 's32[1]{0}', space=sflag, size = 0x4, scoped, tag = 'scoped memory for forward.1']
    #allocation18 [shape = 'u8[512]{0}', space=vmem, size = 0x400, scoped, tag = 'input window, operand 21, single buffered']
    #allocation19 [shape = 'u8[32768]{0}', space=vmem, size = 0x8000, scoped, tag = 'input window, operand 22, single buffered']
    #allocation20 [shape = 's32[1]{0}', space=sflag, size = 0x4, scoped, tag = 'scoped memory for forward.1']
    #allocation21 [shape = 'u8[512]{0}', space=vmem, size = 0x400, scoped, tag = 'input window, operand 23, single buffered']
    %33 = vsyncpa [#allocation6], 0
    %34 = vsyncpa [#allocation8], 0
    %35 = vsyncpa [#allocation11], 0
    %36 = vsyncpa [#allocation14], 0
    %37 = vsyncpa [#allocation17], 0
    %38 = vsyncpa [#allocation20], 0
    // Predicated region
    $region2: #{forward.1} parent=1 // pred_check
      _
    $region3: #{forward.1} parent=1 // pred_check_branch
      %40 = sbr.rel (0) target = $region5
    $region4: #{forward.1} parent=1 // pred_region
      _
    $region5: #{forward.1} parent=1 // pred_fallthru
      _
    // Predicated region
    $region6: #{forward.1} parent=1 // pred_check
      _
    $region7: #{forward.1} parent=1 // pred_check_branch
      %42 = sbr.rel (0) target = $region9
    $region8: #{forward.1} parent=1 // pred_region
      _
    $region9: #{forward.1} parent=1 // pred_fallthru
      _
    // Predicated region
    $region10: #{forward.1} parent=1 // pred_check
      _
    $region11: #{forward.1} parent=1 // pred_check_branch
      %44 = sbr.rel (0) target = $region13
    $region12: #{forward.1} parent=1 // pred_region
      _
    $region13: #{forward.1} parent=1 // pred_fallthru
      _
    // Predicated region
    $region14: #{forward.1} parent=1 // pred_check
      _
    $region15: #{forward.1} parent=1 // pred_check_branch
      %46 = sbr.rel (0) target = $region17
    $region16: #{forward.1} parent=1 // pred_region
      _
    $region17: #{forward.1} parent=1 // pred_fallthru
      _
    // Predicated region
    $region18: #{forward.1} parent=1 // pred_check
      _
    $region19: #{forward.1} parent=1 // pred_check_branch
      %48 = sbr.rel (0) target = $region21
    $region20: #{forward.1} parent=1 // pred_region
      _
    $region21: #{forward.1} parent=1 // pred_fallthru
      _
    // Predicated region
    $region22: #{forward.1} parent=1 // pred_check
      _
    $region23: #{forward.1} parent=1 // pred_check_branch
      %50 = sbr.rel (0) target = $region25
    $region24: #{forward.1} parent=1 // pred_region
      _
    $region25: #{forward.1} parent=1 // pred_fallthru
      _
    // Predicated region
    $region26: #{forward.1} parent=1 // pred_check
      _
    $region27: #{forward.1} parent=1 // pred_check_branch
      %52 = sbr.rel (0) target = $region29
    $region28: #{forward.1} parent=1 // pred_region
      _
    $region29: #{forward.1} parent=1 // pred_fallthru
      _
    // Predicated region
    $region30: #{forward.1} parent=1 // pred_check
      _
    $region31: #{forward.1} parent=1 // pred_check_branch
      %54 = sbr.rel (0) target = $region33
    $region32: #{forward.1} parent=1 // pred_region
      _
    $region33: #{forward.1} parent=1 // pred_fallthru
      _
    // Predicated region
    $region34: #{forward.1} parent=1 // pred_check
      _
    $region35: #{forward.1} parent=1 // pred_check_branch
      %56 = sbr.rel (0) target = $region37
    $region36: #{forward.1} parent=1 // pred_region
      %s58 = ssub.s32 8192, 8192
      %59 = vsyncadd [#allocation6], %s58
      %s60 = sshll.u32 [#allocation5], 4
      %s61 = int_to_ptr.vmem [resolvable:$true] %s60
      %66 = dma.hbm_to_vmem [thread:$0]  %s8, 8192, %s61, [#allocation6], 512, 512, 32
    $region37: #{forward.1} parent=1 // pred_fallthru
      _
    // Predicated region
    $region38: #{forward.1} parent=1 // pred_check
      _
    $region39: #{forward.1} parent=1 // pred_check_branch
      %68 = sbr.rel (0) target = $region41
    $region40: #{forward.1} parent=1 // pred_region
      %s70 = ssub.s32 8192, 8192
      %71 = vsyncadd [#allocation8], %s70
      %s72 = sshll.u32 [#allocation7], 4
      %s73 = int_to_ptr.vmem [resolvable:$true] %s72
      %78 = dma.hbm_to_vmem [thread:$0]  %s9, 8192, %s73, [#allocation8], 512, 512, 32
    $region41: #{forward.1} parent=1 // pred_fallthru
      _
    // Predicated region
    $region42: #{forward.1} parent=1 // pred_check
      _
    $region43: #{forward.1} parent=1 // pred_check_branch
      %80 = sbr.rel (0) target = $region45
    $region44: #{forward.1} parent=1 // pred_region
      _
    $region45: #{forward.1} parent=1 // pred_fallthru
      _
    // Predicated region
    $region46: #{forward.1} parent=1 // pred_check
      _
    $region47: #{forward.1} parent=1 // pred_check_branch
      %82 = sbr.rel (0) target = $region49
    $region48: #{forward.1} parent=1 // pred_region
      _
    $region49: #{forward.1} parent=1 // pred_fallthru
      _
    // Predicated region
    $region50: #{forward.1} parent=1 // pred_check
      _
    $region51: #{forward.1} parent=1 // pred_check_branch
      %84 = sbr.rel (0) target = $region53
    $region52: #{forward.1} parent=1 // pred_region
      _
    $region53: #{forward.1} parent=1 // pred_fallthru
      _
    // Predicated region
    $region54: #{forward.1} parent=1 // pred_check
      _
    $region55: #{forward.1} parent=1 // pred_check_branch
      %86 = sbr.rel (0) target = $region57
    $region56: #{forward.1} parent=1 // pred_region
      %s88 = ssub.s32 32, 32
      %89 = vsyncadd [#allocation8], %s88
      %s91 = sshll.u32 [#allocation9], 4
      %s92 = int_to_ptr.vmem [resolvable:$true] %s91
      %94 = dma.hbm_to_vmem [thread:$0]  %s13, 32, %s92, [#allocation8]
    $region57: #{forward.1} parent=1 // pred_fallthru
      _
    // Predicated region
    $region58: #{forward.1} parent=1 // pred_check
      _
    $region59: #{forward.1} parent=1 // pred_check_branch
      %96 = sbr.rel (0) target = $region61
    $region60: #{forward.1} parent=1 // pred_region
      %s98 = ssub.s32 2048, 2048
      %99 = vsyncadd [#allocation11], %s98
      %s100 = sshll.u32 [#allocation10], 4
      %s101 = int_to_ptr.vmem [resolvable:$true] %s100
      %106 = dma.hbm_to_vmem [thread:$0]  %s14, 2048, %s101, [#allocation11], 256, 256, 16
    $region61: #{forward.1} parent=1 // pred_fallthru
      _
    // Predicated region
    $region62: #{forward.1} parent=1 // pred_check
      _
    $region63: #{forward.1} parent=1 // pred_check_branch
      %108 = sbr.rel (0) target = $region65
    $region64: #{forward.1} parent=1 // pred_region
      %s110 = ssub.s32 2048, 2048
      %111 = vsyncadd [#allocation11], %s110
      %s112 = sshll.u32 [#allocation12], 4
      %s113 = int_to_ptr.vmem [resolvable:$true] %s112
      %118 = dma.hbm_to_vmem [thread:$0]  %s15, 2048, %s113, [#allocation11], 256, 256, 16
    $region65: #{forward.1} parent=1 // pred_fallthru
      _
    // Predicated region
    $region66: #{forward.1} parent=1 // pred_check
      _
    $region67: #{forward.1} parent=1 // pred_check_branch
      %120 = sbr.rel (0) target = $region69
    $region68: #{forward.1} parent=1 // pred_region
      %s122 = ssub.s32 32, 32
      %123 = vsyncadd [#allocation14], %s122
      %s125 = sshll.u32 [#allocation13], 4
      %s126 = int_to_ptr.vmem [resolvable:$true] %s125
      %128 = dma.hbm_to_vmem [thread:$0]  %s16, 32, %s126, [#allocation14]
    $region69: #{forward.1} parent=1 // pred_fallthru
      _
    // Predicated region
    $region70: #{forward.1} parent=1 // pred_check
      _
    $region71: #{forward.1} parent=1 // pred_check_branch
      %130 = sbr.rel (0) target = $region73
    $region72: #{forward.1} parent=1 // pred_region
      %s132 = ssub.s32 2048, 2048
      %133 = vsyncadd [#allocation14], %s132
      %s134 = sshll.u32 [#allocation15], 4
      %s135 = int_to_ptr.vmem [resolvable:$true] %s134
      %140 = dma.hbm_to_vmem [thread:$0]  %s17, 2048, %s135, [#allocation14], 128, 128, 8
    $region73: #{forward.1} parent=1 // pred_fallthru
      _
    // Predicated region
    $region74: #{forward.1} parent=1 // pred_check
      _
    $region75: #{forward.1} parent=1 // pred_check_branch
      %142 = sbr.rel (0) target = $region77
    $region76: #{forward.1} parent=1 // pred_region
      _
    $region77: #{forward.1} parent=1 // pred_fallthru
      _
    // Predicated region
    $region78: #{forward.1} parent=1 // pred_check
      _
    $region79: #{forward.1} parent=1 // pred_check_branch
      %144 = sbr.rel (0) target = $region81
    $region80: #{forward.1} parent=1 // pred_region
      %s146 = ssub.s32 16, 16
      %147 = vsyncadd [#allocation17], %s146
      %s149 = sshll.u32 [#allocation16], 4
      %s150 = int_to_ptr.vmem [resolvable:$true] %s149
      %152 = dma.hbm_to_vmem [thread:$0]  %s19, 16, %s150, [#allocation17]
    $region81: #{forward.1} parent=1 // pred_fallthru
      _
    // Predicated region
    $region82: #{forward.1} parent=1 // pred_check
      _
    $region83: #{forward.1} parent=1 // pred_check_branch
      %154 = sbr.rel (0) target = $region85
    $region84: #{forward.1} parent=1 // pred_region
      _
    $region85: #{forward.1} parent=1 // pred_fallthru
      _
    // Predicated region
    $region86: #{forward.1} parent=1 // pred_check
      _
    $region87: #{forward.1} parent=1 // pred_check_branch
      %156 = sbr.rel (0) target = $region89
    $region88: #{forward.1} parent=1 // pred_region
      %s158 = ssub.s32 16, 16
      %159 = vsyncadd [#allocation17], %s158
      %s161 = sshll.u32 [#allocation18], 4
      %s162 = int_to_ptr.vmem [resolvable:$true] %s161
      %164 = dma.hbm_to_vmem [thread:$0]  %s21, 16, %s162, [#allocation17]
    $region89: #{forward.1} parent=1 // pred_fallthru
      _
    // Predicated region
    $region90: #{forward.1} parent=1 // pred_check
      _
    $region91: #{forward.1} parent=1 // pred_check_branch
      %166 = sbr.rel (0) target = $region93
    $region92: #{forward.1} parent=1 // pred_region
      %s168 = ssub.s32 1024, 1024
      %169 = vsyncadd [#allocation20], %s168
      %s170 = sshll.u32 [#allocation19], 4
      %s171 = int_to_ptr.vmem [resolvable:$true] %s170
      %176 = dma.hbm_to_vmem [thread:$0]  %s22, 1024, %s171, [#allocation20], 128, 128, 8
    $region93: #{forward.1} parent=1 // pred_fallthru
      _
    // Predicated region
    $region94: #{forward.1} parent=1 // pred_check
      _
    $region95: #{forward.1} parent=1 // pred_check_branch
      %178 = sbr.rel (0) target = $region97
    $region96: #{forward.1} parent=1 // pred_region
      %s180 = ssub.s32 16, 16
      %181 = vsyncadd [#allocation20], %s180
      %s183 = sshll.u32 [#allocation21], 4
      %s184 = int_to_ptr.vmem [resolvable:$true] %s183
      %186 = dma.hbm_to_vmem [thread:$0]  %s23, 16, %s184, [#allocation20]
    $region97: #{forward.1} parent=1 // pred_fallthru
      _
    // Predicated region
    $region98: #{forward.1} parent=1 // pred_check
      _
    $region99: #{forward.1} parent=1 // pred_check_branch
      %188 = sbr.rel (0) target = $region101
    $region100: #{forward.1} parent=1 // pred_region
      %189 = dma.done [#allocation6], 8192
    $region101: #{forward.1} parent=1 // pred_fallthru
      _
    // Predicated region
    $region102: #{forward.1} parent=1 // pred_check
      _
    $region103: #{forward.1} parent=1 // pred_check_branch
      %191 = sbr.rel (0) target = $region105
    $region104: #{forward.1} parent=1 // pred_region
      %192 = dma.done [#allocation8], 8192
    $region105: #{forward.1} parent=1 // pred_fallthru
      _
    // Predicated region
    $region106: #{forward.1} parent=1 // pred_check
      _
    $region107: #{forward.1} parent=1 // pred_check_branch
      %194 = sbr.rel (0) target = $region109
    $region108: #{forward.1} parent=1 // pred_region
      %195 = dma.done [#allocation8], 32
    $region109: #{forward.1} parent=1 // pred_fallthru
      _
    // Predicated region
    $region110: #{forward.1} parent=1 // pred_check
      _
    $region111: #{forward.1} parent=1 // pred_check_branch
      %197 = sbr.rel (0) target = $region113
    $region112: #{forward.1} parent=1 // pred_region
      %198 = dma.done [#allocation11], 2048
    $region113: #{forward.1} parent=1 // pred_fallthru
      _
    // Predicated region
    $region114: #{forward.1} parent=1 // pred_check
      _
    $region115: #{forward.1} parent=1 // pred_check_branch
      %200 = sbr.rel (0) target = $region117
    $region116: #{forward.1} parent=1 // pred_region
      %201 = dma.done [#allocation11], 2048
    $region117: #{forward.1} parent=1 // pred_fallthru
      _
    // Predicated region
    $region118: #{forward.1} parent=1 // pred_check
      _
    $region119: #{forward.1} parent=1 // pred_check_branch
      %203 = sbr.rel (0) target = $region121
    $region120: #{forward.1} parent=1 // pred_region
      %204 = dma.done [#allocation14], 32
    $region121: #{forward.1} parent=1 // pred_fallthru
      _
    // Predicated region
    $region122: #{forward.1} parent=1 // pred_check
      _
    $region123: #{forward.1} parent=1 // pred_check_branch
      %206 = sbr.rel (0) target = $region125
    $region124: #{forward.1} parent=1 // pred_region
      %207 = dma.done [#allocation14], 2048
    $region125: #{forward.1} parent=1 // pred_fallthru
      _
    // Predicated region
    $region126: #{forward.1} parent=1 // pred_check
      _
    $region127: #{forward.1} parent=1 // pred_check_branch
      %209 = sbr.rel (0) target = $region129
    $region128: #{forward.1} parent=1 // pred_region
      %210 = dma.done [#allocation17], 16
    $region129: #{forward.1} parent=1 // pred_fallthru
      _
    // Predicated region
    $region130: #{forward.1} parent=1 // pred_check
      _
    $region131: #{forward.1} parent=1 // pred_check_branch
      %212 = sbr.rel (0) target = $region133
    $region132: #{forward.1} parent=1 // pred_region
      %213 = dma.done [#allocation17], 16
    $region133: #{forward.1} parent=1 // pred_fallthru
      _
    // Predicated region
    $region134: #{forward.1} parent=1 // pred_check
      _
    $region135: #{forward.1} parent=1 // pred_check_branch
      %215 = sbr.rel (0) target = $region137
    $region136: #{forward.1} parent=1 // pred_region
      %216 = dma.done [#allocation20], 1024
    $region137: #{forward.1} parent=1 // pred_fallthru
      _
    // Predicated region
    $region138: #{forward.1} parent=1 // pred_check
      _
    $region139: #{forward.1} parent=1 // pred_check_branch
      %218 = sbr.rel (0) target = $region141
    $region140: #{forward.1} parent=1 // pred_region
      %219 = dma.done [#allocation20], 16
    $region141: #{forward.1} parent=1 // pred_fallthru
      _
    %v220 = vld [vmem:[%s0] sm:$0xff]
    %v221 = vld [vmem:[%s0 + $0x8] sm:$0xff]
    %v222 = vld [vmem:[%s0 + $0x10] sm:$0xff]
    %v223 = vld [vmem:[%s0 + $0x18] sm:$0xff]
    %v224 = vld [vmem:[%s0 + $0x20] sm:$0xff]
    %v225 = vld [vmem:[%s0 + $0x28] sm:$0xff]
    %v226 = vld [vmem:[%s0 + $0x30] sm:$0xff]
    %v227 = vld [vmem:[%s0 + $0x38] sm:$0xff]
    %v228 = vld [vmem:[%s5] sm:$0xff]
    %v229 = vld [vmem:[%s5 + $0x8] sm:$0xff]
    %v230 = vld [vmem:[%s5 + $0x10] sm:$0xff]
    %v231 = vld [vmem:[%s5 + $0x18] sm:$0xff]
    %v232 = vld [vmem:[%s5 + $0x20] sm:$0xff]
    %v233 = vld [vmem:[%s5 + $0x28] sm:$0xff]
    %v234 = vld [vmem:[%s5 + $0x30] sm:$0xff]
    %v235 = vld [vmem:[%s5 + $0x38] sm:$0xff]
    %v236 = vld [vmem:[%s5 + $0x40] sm:$0xff]
    %v237 = vld [vmem:[%s5 + $0x48] sm:$0xff]
    %v238 = vld [vmem:[%s5 + $0x50] sm:$0xff]
    %v239 = vld [vmem:[%s5 + $0x58] sm:$0xff]
    %v240 = vld [vmem:[%s5 + $0x60] sm:$0xff]
    %v241 = vld [vmem:[%s5 + $0x68] sm:$0xff]
    %v242 = vld [vmem:[%s5 + $0x70] sm:$0xff]
    %v243 = vld [vmem:[%s5 + $0x78] sm:$0xff]
    %v244 = vld [vmem:[%s6] sm:$0xff]
    %v245 = vld [vmem:[%s6 + $0x8] sm:$0xff]
    %v246 = vld [vmem:[%s6 + $0x10] sm:$0xff]
    %v247 = vld [vmem:[%s6 + $0x18] sm:$0xff]
    %v248 = vld [vmem:[%s6 + $0x20] sm:$0xff]
    %v249 = vld [vmem:[%s6 + $0x28] sm:$0xff]
    %v250 = vld [vmem:[%s6 + $0x30] sm:$0xff]
    %v251 = vld [vmem:[%s6 + $0x38] sm:$0xff]
    %v252 = vld [vmem:[%s6 + $0x40] sm:$0xff]
    %v253 = vld [vmem:[%s6 + $0x48] sm:$0xff]
    %v254 = vld [vmem:[%s6 + $0x50] sm:$0xff]
    %v255 = vld [vmem:[%s6 + $0x58] sm:$0xff]
    %v256 = vld [vmem:[%s6 + $0x60] sm:$0xff]
    %v257 = vld [vmem:[%s6 + $0x68] sm:$0xff]
    %v258 = vld [vmem:[%s6 + $0x70] sm:$0xff]
    %v259 = vld [vmem:[%s6 + $0x78] sm:$0xff]
    %v260 = vld [vmem:[%s6 + $0x80] sm:$0xff]
    %v261 = vld [vmem:[%s6 + $0x88] sm:$0xff]
    %v262 = vld [vmem:[%s6 + $0x90] sm:$0xff]
    %v263 = vld [vmem:[%s6 + $0x98] sm:$0xff]
    %v264 = vld [vmem:[%s6 + $0xa0] sm:$0xff]
    %v265 = vld [vmem:[%s6 + $0xa8] sm:$0xff]
    %v266 = vld [vmem:[%s6 + $0xb0] sm:$0xff]
    %v267 = vld [vmem:[%s6 + $0xb8] sm:$0xff]
    %v268 = vld [vmem:[%s6 + $0xc0] sm:$0xff]
    %v269 = vld [vmem:[%s6 + $0xc8] sm:$0xff]
    %v270 = vld [vmem:[%s6 + $0xd0] sm:$0xff]
    %v271 = vld [vmem:[%s6 + $0xd8] sm:$0xff]
    %v272 = vld [vmem:[%s6 + $0xe0] sm:$0xff]
    %v273 = vld [vmem:[%s6 + $0xe8] sm:$0xff]
    %v274 = vld [vmem:[%s6 + $0xf0] sm:$0xff]
    %v275 = vld [vmem:[%s6 + $0xf8] sm:$0xff]
    %v276 = vld [vmem:[%s6 + $0x100] sm:$0xff]
    %v277 = vld [vmem:[%s6 + $0x108] sm:$0xff]
    %v278 = vld [vmem:[%s6 + $0x110] sm:$0xff]
    %v279 = vld [vmem:[%s6 + $0x118] sm:$0xff]
    %v280 = vld [vmem:[%s6 + $0x120] sm:$0xff]
    %v281 = vld [vmem:[%s6 + $0x128] sm:$0xff]
    %v282 = vld [vmem:[%s6 + $0x130] sm:$0xff]
    %v283 = vld [vmem:[%s6 + $0x138] sm:$0xff]
    %v284 = vld [vmem:[%s6 + $0x140] sm:$0xff]
    %v285 = vld [vmem:[%s6 + $0x148] sm:$0xff]
    %v286 = vld [vmem:[%s6 + $0x150] sm:$0xff]
    %v287 = vld [vmem:[%s6 + $0x158] sm:$0xff]
    %v288 = vld [vmem:[%s6 + $0x160] sm:$0xff]
    %v289 = vld [vmem:[%s6 + $0x168] sm:$0xff]
    %v290 = vld [vmem:[%s6 + $0x170] sm:$0xff]
    %v291 = vld [vmem:[%s6 + $0x178] sm:$0xff]
    %v292 = vld [vmem:[%s6 + $0x180] sm:$0xff]
    %v293 = vld [vmem:[%s6 + $0x188] sm:$0xff]
    %v294 = vld [vmem:[%s6 + $0x190] sm:$0xff]
    %v295 = vld [vmem:[%s6 + $0x198] sm:$0xff]
    %v296 = vld [vmem:[%s6 + $0x1a0] sm:$0xff]
    %v297 = vld [vmem:[%s6 + $0x1a8] sm:$0xff]
    %v298 = vld [vmem:[%s6 + $0x1b0] sm:$0xff]
    %v299 = vld [vmem:[%s6 + $0x1b8] sm:$0xff]
    %v300 = vld [vmem:[%s6 + $0x1c0] sm:$0xff]
    %v301 = vld [vmem:[%s6 + $0x1c8] sm:$0xff]
    %v302 = vld [vmem:[%s6 + $0x1d0] sm:$0xff]
    %v303 = vld [vmem:[%s6 + $0x1d8] sm:$0xff]
    %v304 = vld [vmem:[%s6 + $0x1e0] sm:$0xff]
    %v305 = vld [vmem:[%s6 + $0x1e8] sm:$0xff]
    %v306 = vld [vmem:[%s6 + $0x1f0] sm:$0xff]
    %v307 = vld [vmem:[%s6 + $0x1f8] sm:$0xff]
    %v308 = vld [vmem:[%s7] sm:$0xf]
    %v310 = vlaneseq
    %v311 = vshrl.u32 %v310, 7
    %v312 = vsub.s32 0, %v311
    %v313 = vrot.slane %v308, %v312
    %v314 = vlaneseq
    %v315 = vshrl.u32 %v314, 7
    %v316 = vsub.s32 1, %v315
    %v317 = vrot.slane %v308, %v316
    %v318 = vlaneseq
    %v319 = vshrl.u32 %v318, 7
    %v320 = vsub.s32 2, %v319
    %v321 = vrot.slane %v308, %v320
    %v322 = vlaneseq
    %v323 = vshrl.u32 %v322, 7
    %v324 = vsub.s32 3, %v323
    %v325 = vrot.slane %v308, %v324
    %vm330 = vcmask 261120
    %v332 = vsel %vm330, %v220, 0
    %v335 = vsel %vm330, %v221, 0
    %v338 = vsel %vm330, %v222, 0
    %v341 = vsel %vm330, %v223, 0
    %v344 = vsel %vm330, %v224, 0
    %v347 = vsel %vm330, %v225, 0
    %v350 = vsel %vm330, %v226, 0
    %v353 = vsel %vm330, %v227, 0
    %355 = vmatprep.subr.mxu0 0.0
    %356 = vmatpush1.msra.mxu0 0.0
    %357 = vmatprep.subr.mxu0 0.0
    %358 = vmatpush1.msra.mxu0 0.0
    %359 = vmatprep.subr.mxu0 0.0
    %360 = vmatpush1.msra.mxu0 0.0
    %361 = vmatprep.subr.mxu0 0.0
    %362 = vmatpush1.msra.mxu0 0.0
    %363 = vmatprep.subr.mxu0 0.0
    %364 = vmatpush1.msra.mxu0 0.0
    %365 = vmatprep.subr.mxu0 0.0
    %366 = vmatpush1.msra.mxu0 0.0
    %367 = vmatprep.subr.mxu0 0.0
    %368 = vmatpush1.msra.mxu0 0.0
    %369 = vmatprep.subr.mxu0 0.0
    %370 = vmatpush1.msra.mxu0 0.0
    %371 = vmatprep.subr.mxu0 0.0
    %372 = vmatpush1.msra.mxu0 0.0
    %373 = vmatprep.subr.mxu0 0.0
    %374 = vmatpush1.msra.mxu0 0.0
    %375 = vmatprep.subr.mxu0 0.0
    %376 = vmatpush1.msra.mxu0 0.0
    %377 = vmatprep.subr.mxu0 0.0
    %378 = vmatpush1.msra.mxu0 0.0
    %379 = vmatprep.subr.mxu0 %v241
    %380 = vmatpush1.msra.mxu0 %v240
    %381 = vmatprep.subr.mxu0 %v237
    %382 = vmatpush1.msra.mxu0 %v236
    %383 = vmatprep.subr.mxu0 %v233
    %384 = vmatpush1.msra.mxu0 %v232
    %385 = vmatprep.subr.mxu0 %v229
    %386 = vmatpush1.msra.mxu0 %v228
    %387 = vmatprep.subr.mxu0 0.0
    %388 = vmatpush2.msra.mxu0 0.0
    %389 = vmatprep.subr.mxu0 0.0
    %390 = vmatpush2.msra.mxu0 0.0
    %391 = vmatprep.subr.mxu0 0.0
    %392 = vmatpush2.msra.mxu0 0.0
    %393 = vmatprep.subr.mxu0 0.0
    %394 = vmatpush2.msra.mxu0 0.0
    %395 = vmatprep.subr.mxu0 0.0
    %396 = vmatpush2.msra.mxu0 0.0
    %397 = vmatprep.subr.mxu0 0.0
    %398 = vmatpush2.msra.mxu0 0.0
    %399 = vmatprep.subr.mxu0 0.0
    %400 = vmatpush2.msra.mxu0 0.0
    %401 = vmatprep.subr.mxu0 0.0
    %402 = vmatpush2.msra.mxu0 0.0
    %403 = vmatprep.subr.mxu0 0.0
    %404 = vmatpush2.msra.mxu0 0.0
    %405 = vmatprep.subr.mxu0 0.0
    %406 = vmatpush2.msra.mxu0 0.0
    %407 = vmatprep.subr.mxu0 0.0
    %408 = vmatpush2.msra.mxu0 0.0
    %409 = vmatprep.subr.mxu0 0.0
    %410 = vmatpush2.msra.mxu0 0.0
    %411 = vmatprep.subr.mxu0 0.0
    %412 = vmatpush2.msra.mxu0 0.0
    %413 = vmatprep.subr.mxu0 0.0
    %414 = vmatpush2.msra.mxu0 0.0
    %415 = vmatprep.subr.mxu0 0.0
    %416 = vmatpush2.msra.mxu0 0.0
    %417 = vmatprep.subr.mxu0 0.0
    %418 = vmatpush2.msra.mxu0 0.0
    %419 = vmatprep.mubr.f32.mxu0 0.0
    %420 = vmatmul.mubr.f32.gmra.mxu0 %v332
    %v421 = vpop.f32.mrf.mxu0
    %v422 = vadd.f32 %v313, %v421
    %v423 = vpop.f32.mrf.mxu0
    %v424 = vadd.f32 %v317, %v423
    %425 = vmatprep.mubr.f32.mxu0 0.0
    %426 = vmatmul.mubr.f32.gmra.mxu0 %v335
    %v427 = vpop.f32.mrf.mxu0
    %v428 = vadd.f32 %v313, %v427
    %v429 = vpop.f32.mrf.mxu0
    %v430 = vadd.f32 %v317, %v429
    %431 = vmatprep.mubr.f32.mxu0 0.0
    %432 = vmatmul.mubr.f32.gmra.mxu0 %v338
    %v433 = vpop.f32.mrf.mxu0
    %v434 = vadd.f32 %v313, %v433
    %v435 = vpop.f32.mrf.mxu0
    %v436 = vadd.f32 %v317, %v435
    %437 = vmatprep.mubr.f32.mxu0 0.0
    %438 = vmatmul.mubr.f32.gmra.mxu0 %v341
    %v439 = vpop.f32.mrf.mxu0
    %v440 = vadd.f32 %v313, %v439
    %v441 = vpop.f32.mrf.mxu0
    %v442 = vadd.f32 %v317, %v441
    %443 = vmatprep.mubr.f32.mxu0 0.0
    %444 = vmatmul.mubr.f32.gmra.mxu0 %v344
    %v445 = vpop.f32.mrf.mxu0
    %v446 = vadd.f32 %v313, %v445
    %v447 = vpop.f32.mrf.mxu0
    %v448 = vadd.f32 %v317, %v447
    %449 = vmatprep.mubr.f32.mxu0 0.0
    %450 = vmatmul.mubr.f32.gmra.mxu0 %v347
    %v451 = vpop.f32.mrf.mxu0
    %v452 = vadd.f32 %v313, %v451
    %v453 = vpop.f32.mrf.mxu0
    %v454 = vadd.f32 %v317, %v453
    %455 = vmatprep.mubr.f32.mxu0 0.0
    %456 = vmatmul.mubr.f32.gmra.mxu0 %v350
    %v457 = vpop.f32.mrf.mxu0
    %v458 = vadd.f32 %v313, %v457
    %v459 = vpop.f32.mrf.mxu0
    %v460 = vadd.f32 %v317, %v459
    %461 = vmatprep.mubr.f32.mxu0 0.0
    %462 = vmatmul.mubr.f32.gmra.mxu0 %v353
    %v463 = vpop.f32.mrf.mxu0
    %v464 = vadd.f32 %v313, %v463
    %v465 = vpop.f32.mrf.mxu0
    %v466 = vadd.f32 %v317, %v465
    %467 = vdwg.mxu0
    %468 = vmatprep.subr.mxu0 0.0
    %469 = vmatpush1.msra.mxu0 0.0
    %470 = vmatprep.subr.mxu0 0.0
    %471 = vmatpush1.msra.mxu0 0.0
    %472 = vmatprep.subr.mxu0 0.0
    %473 = vmatpush1.msra.mxu0 0.0
    %474 = vmatprep.subr.mxu0 0.0
    %475 = vmatpush1.msra.mxu0 0.0
    %476 = vmatprep.subr.mxu0 0.0
    %477 = vmatpush1.msra.mxu0 0.0
    %478 = vmatprep.subr.mxu0 0.0
    %479 = vmatpush1.msra.mxu0 0.0
    %480 = vmatprep.subr.mxu0 0.0
    %481 = vmatpush1.msra.mxu0 0.0
    %482 = vmatprep.subr.mxu0 0.0
    %483 = vmatpush1.msra.mxu0 0.0
    %484 = vmatprep.subr.mxu0 0.0
    %485 = vmatpush1.msra.mxu0 0.0
    %486 = vmatprep.subr.mxu0 0.0
    %487 = vmatpush1.msra.mxu0 0.0
    %488 = vmatprep.subr.mxu0 0.0
    %489 = vmatpush1.msra.mxu0 0.0
    %490 = vmatprep.subr.mxu0 0.0
    %491 = vmatpush1.msra.mxu0 0.0
    %492 = vmatprep.subr.mxu0 %v243
    %493 = vmatpush1.msra.mxu0 %v242
    %494 = vmatprep.subr.mxu0 %v239
    %495 = vmatpush1.msra.mxu0 %v238
    %496 = vmatprep.subr.mxu0 %v235
    %497 = vmatpush1.msra.mxu0 %v234
    %498 = vmatprep.subr.mxu0 %v231
    %499 = vmatpush1.msra.mxu0 %v230
    %500 = vmatprep.subr.mxu0 0.0
    %501 = vmatpush2.msra.mxu0 0.0
    %502 = vmatprep.subr.mxu0 0.0
    %503 = vmatpush2.msra.mxu0 0.0
    %504 = vmatprep.subr.mxu0 0.0
    %505 = vmatpush2.msra.mxu0 0.0
    %506 = vmatprep.subr.mxu0 0.0
    %507 = vmatpush2.msra.mxu0 0.0
    %508 = vmatprep.subr.mxu0 0.0
    %509 = vmatpush2.msra.mxu0 0.0
    %510 = vmatprep.subr.mxu0 0.0
    %511 = vmatpush2.msra.mxu0 0.0
    %512 = vmatprep.subr.mxu0 0.0
    %513 = vmatpush2.msra.mxu0 0.0
    %514 = vmatprep.subr.mxu0 0.0
    %515 = vmatpush2.msra.mxu0 0.0
    %516 = vmatprep.subr.mxu0 0.0
    %517 = vmatpush2.msra.mxu0 0.0
    %518 = vmatprep.subr.mxu0 0.0
    %519 = vmatpush2.msra.mxu0 0.0
    %520 = vmatprep.subr.mxu0 0.0
    %521 = vmatpush2.msra.mxu0 0.0
    %522 = vmatprep.subr.mxu0 0.0
    %523 = vmatpush2.msra.mxu0 0.0
    %524 = vmatprep.subr.mxu0 0.0
    %525 = vmatpush2.msra.mxu0 0.0
    %526 = vmatprep.subr.mxu0 0.0
    %527 = vmatpush2.msra.mxu0 0.0
    %528 = vmatprep.subr.mxu0 0.0
    %529 = vmatpush2.msra.mxu0 0.0
    %530 = vmatprep.subr.mxu0 0.0
    %531 = vmatpush2.msra.mxu0 0.0
    %532 = vmatprep.mubr.f32.mxu0 0.0
    %533 = vmatmul.mubr.f32.gmra.mxu0 %v332
    %v534 = vpop.f32.mrf.mxu0
    %v535 = vadd.f32 %v321, %v534
    %v536 = vpop.f32.mrf.mxu0
    %v537 = vadd.f32 %v325, %v536
    %538 = vmatprep.mubr.f32.mxu0 0.0
    %539 = vmatmul.mubr.f32.gmra.mxu0 %v335
    %v540 = vpop.f32.mrf.mxu0
    %v541 = vadd.f32 %v321, %v540
    %v542 = vpop.f32.mrf.mxu0
    %v543 = vadd.f32 %v325, %v542
    %544 = vmatprep.mubr.f32.mxu0 0.0
    %545 = vmatmul.mubr.f32.gmra.mxu0 %v338
    %v546 = vpop.f32.mrf.mxu0
    %v547 = vadd.f32 %v321, %v546
    %v548 = vpop.f32.mrf.mxu0
    %v549 = vadd.f32 %v325, %v548
    %550 = vmatprep.mubr.f32.mxu0 0.0
    %551 = vmatmul.mubr.f32.gmra.mxu0 %v341
    %v552 = vpop.f32.mrf.mxu0
    %v553 = vadd.f32 %v321, %v552
    %v554 = vpop.f32.mrf.mxu0
    %v555 = vadd.f32 %v325, %v554
    %556 = vmatprep.mubr.f32.mxu0 0.0
    %557 = vmatmul.mubr.f32.gmra.mxu0 %v344
    %v558 = vpop.f32.mrf.mxu0
    %v559 = vadd.f32 %v321, %v558
    %v560 = vpop.f32.mrf.mxu0
    %v561 = vadd.f32 %v325, %v560
    %562 = vmatprep.mubr.f32.mxu0 0.0
    %563 = vmatmul.mubr.f32.gmra.mxu0 %v347
    %v564 = vpop.f32.mrf.mxu0
    %v565 = vadd.f32 %v321, %v564
    %v566 = vpop.f32.mrf.mxu0
    %v567 = vadd.f32 %v325, %v566
    %568 = vmatprep.mubr.f32.mxu0 0.0
    %569 = vmatmul.mubr.f32.gmra.mxu0 %v350
    %v570 = vpop.f32.mrf.mxu0
    %v571 = vadd.f32 %v321, %v570
    %v572 = vpop.f32.mrf.mxu0
    %v573 = vadd.f32 %v325, %v572
    %574 = vmatprep.mubr.f32.mxu0 0.0
    %575 = vmatmul.mubr.f32.gmra.mxu0 %v353
    %v576 = vpop.f32.mrf.mxu0
    %v577 = vadd.f32 %v321, %v576
    %v578 = vpop.f32.mrf.mxu0
    %v579 = vadd.f32 %v325, %v578
    %580 = vdwg.mxu0
    %581 = vst [vmem:[#allocation2] sm:$0xff] %v422
    %582 = vst [vmem:[#allocation2 + $0x8] sm:$0xff] %v424
    %583 = vst [vmem:[#allocation2 + $0x10] sm:$0xff] %v535
    %584 = vst [vmem:[#allocation2 + $0x18] sm:$0xff] %v537
    %585 = vst [vmem:[#allocation2 + $0x20] sm:$0xff] %v428
    %586 = vst [vmem:[#allocation2 + $0x28] sm:$0xff] %v430
    %587 = vst [vmem:[#allocation2 + $0x30] sm:$0xff] %v541
    %588 = vst [vmem:[#allocation2 + $0x38] sm:$0xff] %v543
    %589 = vst [vmem:[#allocation2 + $0x40] sm:$0xff] %v434
    %590 = vst [vmem:[#allocation2 + $0x48] sm:$0xff] %v436
    %591 = vst [vmem:[#allocation2 + $0x50] sm:$0xff] %v547
    %592 = vst [vmem:[#allocation2 + $0x58] sm:$0xff] %v549
    %593 = vst [vmem:[#allocation2 + $0x60] sm:$0xff] %v440
    %594 = vst [vmem:[#allocation2 + $0x68] sm:$0xff] %v442
    %595 = vst [vmem:[#allocation2 + $0x70] sm:$0xff] %v553
    %596 = vst [vmem:[#allocation2 + $0x78] sm:$0xff] %v555
    %597 = vst [vmem:[#allocation2 + $0x80] sm:$0xff] %v446
    %598 = vst [vmem:[#allocation2 + $0x88] sm:$0xff] %v448
    %599 = vst [vmem:[#allocation2 + $0x90] sm:$0xff] %v559
    %600 = vst [vmem:[#allocation2 + $0x98] sm:$0xff] %v561
    %601 = vst [vmem:[#allocation2 + $0xa0] sm:$0xff] %v452
    %602 = vst [vmem:[#allocation2 + $0xa8] sm:$0xff] %v454
    %603 = vst [vmem:[#allocation2 + $0xb0] sm:$0xff] %v565
    %604 = vst [vmem:[#allocation2 + $0xb8] sm:$0xff] %v567
    %605 = vst [vmem:[#allocation2 + $0xc0] sm:$0xff] %v458
    %606 = vst [vmem:[#allocation2 + $0xc8] sm:$0xff] %v460
    %607 = vst [vmem:[#allocation2 + $0xd0] sm:$0xff] %v571
    %608 = vst [vmem:[#allocation2 + $0xd8] sm:$0xff] %v573
    %609 = vst [vmem:[#allocation2 + $0xe0] sm:$0xff] %v464
    %610 = vst [vmem:[#allocation2 + $0xe8] sm:$0xff] %v466
    %611 = vst [vmem:[#allocation2 + $0xf0] sm:$0xff] %v577
    %612 = vst [vmem:[#allocation2 + $0xf8] sm:$0xff] %v579
    %v613 = vlaneseq
    %v614 = vand.u32 %v613, 127
    %v615 = vadd.s32 %v614, 128
    %v616 = vadd.s32 %v614, 256
    %v617 = vadd.s32 %v614, 384
    %vm618 = vcmp.lt.s32.totalorder %v614, 0
    %v619 = vsub.s32 0, %v614
    %v620 = vsel %vm618, %v619, %v614
    %v621 = vshrl.u32 %v620, 7
    %v622 = vand.u32 %v620, 127
    %v623 = vsub.s32 0, %v622
    %v624 = vsel %vm618, %v623, %v622
    %vm625 = vcmp.lt.s32.totalorder %v615, 0
    %v626 = vsub.s32 0, %v615
    %v627 = vsel %vm625, %v626, %v615
    %v628 = vshrl.u32 %v627, 7
    %v629 = vand.u32 %v627, 127
    %v630 = vsub.s32 0, %v629
    %v631 = vsel %vm625, %v630, %v629
    %vm632 = vcmp.lt.s32.totalorder %v616, 0
    %v633 = vsub.s32 0, %v616
    %v634 = vsel %vm632, %v633, %v616
    %v635 = vshrl.u32 %v634, 7
    %v636 = vand.u32 %v634, 127
    %v637 = vsub.s32 0, %v636
    %v638 = vsel %vm632, %v637, %v636
    %vm639 = vcmp.lt.s32.totalorder %v617, 0
    %v640 = vsub.s32 0, %v617
    %v641 = vsel %vm639, %v640, %v617
    %v642 = vshrl.u32 %v641, 7
    %v643 = vand.u32 %v641, 127
    %v644 = vsub.s32 0, %v643
    %v645 = vsel %vm639, %v644, %v643
    %vm646 = vcmp.ne.s32.totalorder %v624, 0
    %vm647 = vcmp.ne.s32.totalorder %v631, 0
    %vm648 = vcmp.ne.s32.totalorder %v638, 0
    %vm649 = vcmp.ne.s32.totalorder %v645, 0
    %vm650 = vcmp.lt.s32.totalorder %v624, 0
    %vm651 = vcmp.lt.s32.totalorder %v631, 0
    %vm652 = vcmp.lt.s32.totalorder %v638, 0
    %vm653 = vcmp.lt.s32.totalorder %v645, 0
    %vm654 = vmand %vm650, %vm646
    %vm655 = vmand %vm651, %vm647
    %vm656 = vmand %vm652, %vm648
    %vm657 = vmand %vm653, %vm649
    %v658 = vadd.s32 %v624, 128
    %v659 = vadd.s32 %v631, 128
    %v660 = vadd.s32 %v638, 128
    %v661 = vadd.s32 %v645, 128
    %v662 = vsel %vm654, %v658, %v624
    %v663 = vsel %vm655, %v659, %v631
    %v664 = vsel %vm656, %v660, %v638
    %v665 = vsel %vm657, %v661, %v645
    %vm666 = vcmp.lt.s32.totalorder %v662, 64
    %vm667 = vcmp.lt.s32.totalorder %v663, 64
    %vm668 = vcmp.lt.s32.totalorder %v664, 64
    %vm669 = vcmp.lt.s32.totalorder %v665, 64
    %vm670 = vcmp.ge.s32.totalorder %v614, 384
    %vm671 = vcmp.ge.s32.totalorder %v615, 384
    %vm672 = vcmp.ge.s32.totalorder %v616, 384
    %vm673 = vcmp.ge.s32.totalorder %v617, 384
    %v674 = vld [vmem:[#allocation2] sm:$0xff]
    %v675 = vld [vmem:[#allocation2 + $0x8] sm:$0xff]
    %v676 = vld [vmem:[#allocation2 + $0x10] sm:$0xff]
    %v677 = vld [vmem:[#allocation2 + $0x18] sm:$0xff]
    %v678 = vld [vmem:[#allocation2 + $0xe0] sm:$0xff]
    %v679 = vld [vmem:[#allocation2 + $0xe8] sm:$0xff]
    %v680 = vld [vmem:[#allocation2 + $0xf0] sm:$0xff]
    %v681 = vld [vmem:[#allocation2 + $0xf8] sm:$0xff]
    %v682 = vsel %vm666, 1, 0
    %v683 = vsel %vm667, 1, 0
    %v684 = vsel %vm668, 1, 0
    %v685 = vsel %vm669, 1, 0
    %vm686 = vcmp.eq.s32.totalorder %v682, 1
    %vm687 = vcmp.eq.s32.totalorder %v683, 1
    %vm688 = vcmp.eq.s32.totalorder %v684, 1
    %vm689 = vcmp.eq.s32.totalorder %v685, 1
    %v690 = vsel %vm686, %v674, %v678
    %v691 = vsel %vm687, %v675, %v679
    %v692 = vsel %vm688, %v676, %v680
    %v693 = vsel %vm689, %v677, %v681
    %694 = vmatprep.subr.mxu0 %v305
    %695 = vmatpush1.msra.mxu0 %v304
    %696 = vmatprep.subr.mxu0 %v301
    %697 = vmatpush1.msra.mxu0 %v300
    %698 = vmatprep.subr.mxu0 %v297
    %699 = vmatpush1.msra.mxu0 %v296
    %700 = vmatprep.subr.mxu0 %v293
    %701 = vmatpush1.msra.mxu0 %v292
    %702 = vmatprep.subr.mxu0 %v289
    %703 = vmatpush1.msra.mxu0 %v288
    %704 = vmatprep.subr.mxu0 %v285
    %705 = vmatpush1.msra.mxu0 %v284
    %706 = vmatprep.subr.mxu0 %v281
    %707 = vmatpush1.msra.mxu0 %v280
    %708 = vmatprep.subr.mxu0 %v277
    %709 = vmatpush1.msra.mxu0 %v276
    %710 = vmatprep.subr.mxu0 %v273
    %711 = vmatpush1.msra.mxu0 %v272
    %712 = vmatprep.subr.mxu0 %v269
    %713 = vmatpush1.msra.mxu0 %v268
    %714 = vmatprep.subr.mxu0 %v265
    %715 = vmatpush1.msra.mxu0 %v264
    %716 = vmatprep.subr.mxu0 %v261
    %717 = vmatpush1.msra.mxu0 %v260
    %718 = vmatprep.subr.mxu0 %v257
    %719 = vmatpush1.msra.mxu0 %v256
    %720 = vmatprep.subr.mxu0 %v253
    %721 = vmatpush1.msra.mxu0 %v252
    %722 = vmatprep.subr.mxu0 %v249
    %723 = vmatpush1.msra.mxu0 %v248
    %724 = vmatprep.subr.mxu0 %v245
    %725 = vmatpush1.msra.mxu0 %v244
    %726 = vmatprep.subr.mxu0 0.0
    %727 = vmatpush2.msra.mxu0 0.0
    %728 = vmatprep.subr.mxu0 0.0
    %729 = vmatpush2.msra.mxu0 0.0
    %730 = vmatprep.subr.mxu0 0.0
    %731 = vmatpush2.msra.mxu0 0.0
    %732 = vmatprep.subr.mxu0 0.0
    %733 = vmatpush2.msra.mxu0 0.0
    %734 = vmatprep.subr.mxu0 0.0
    %735 = vmatpush2.msra.mxu0 0.0
    %736 = vmatprep.subr.mxu0 0.0
    %737 = vmatpush2.msra.mxu0 0.0
    %738 = vmatprep.subr.mxu0 0.0
    %739 = vmatpush2.msra.mxu0 0.0
    %740 = vmatprep.subr.mxu0 0.0
    %741 = vmatpush2.msra.mxu0 0.0
    %742 = vmatprep.subr.mxu0 0.0
    %743 = vmatpush2.msra.mxu0 0.0
    %744 = vmatprep.subr.mxu0 0.0
    %745 = vmatpush2.msra.mxu0 0.0
    %746 = vmatprep.subr.mxu0 0.0
    %747 = vmatpush2.msra.mxu0 0.0
    %748 = vmatprep.subr.mxu0 0.0
    %749 = vmatpush2.msra.mxu0 0.0
    %750 = vmatprep.subr.mxu0 0.0
    %751 = vmatpush2.msra.mxu0 0.0
    %752 = vmatprep.subr.mxu0 0.0
    %753 = vmatpush2.msra.mxu0 0.0
    %754 = vmatprep.subr.mxu0 0.0
    %755 = vmatpush2.msra.mxu0 0.0
    %756 = vmatprep.subr.mxu0 0.0
    %757 = vmatpush2.msra.mxu0 0.0
    %758 = vmatprep.mubr.f32.mxu0 0.0
    %759 = vmatmul.mubr.f32.gmra.mxu0 0.0
    %v760 = vpop.f32.mrf.mxu0
    %v761 = vadd.f32 0.0, %v760
    %v762 = vpop.f32.mrf.mxu0
    %v763 = vadd.f32 0.0, %v762
    %764 = vdwg.mxu0
    %765 = vmatprep.subr.mxu0 %v307
    %766 = vmatpush1.msra.mxu0 %v306
    %767 = vmatprep.subr.mxu0 %v303
    %768 = vmatpush1.msra.mxu0 %v302
    %769 = vmatprep.subr.mxu0 %v299
    %770 = vmatpush1.msra.mxu0 %v298
    %771 = vmatprep.subr.mxu0 %v295
    %772 = vmatpush1.msra.mxu0 %v294
    %773 = vmatprep.subr.mxu0 %v291
    %774 = vmatpush1.msra.mxu0 %v290
    %775 = vmatprep.subr.mxu0 %v287
    %776 = vmatpush1.msra.mxu0 %v286
    %777 = vmatprep.subr.mxu0 %v283
    %778 = vmatpush1.msra.mxu0 %v282
    %779 = vmatprep.subr.mxu0 %v279
    %780 = vmatpush1.msra.mxu0 %v278
    %781 = vmatprep.subr.mxu0 %v275
    %782 = vmatpush1.msra.mxu0 %v274
    %783 = vmatprep.subr.mxu0 %v271
    %784 = vmatpush1.msra.mxu0 %v270
    %785 = vmatprep.subr.mxu0 %v267
    %786 = vmatpush1.msra.mxu0 %v266
    %787 = vmatprep.subr.mxu0 %v263
    %788 = vmatpush1.msra.mxu0 %v262
    %789 = vmatprep.subr.mxu0 %v259
    %790 = vmatpush1.msra.mxu0 %v258
    %791 = vmatprep.subr.mxu0 %v255
    %792 = vmatpush1.msra.mxu0 %v254
    %793 = vmatprep.subr.mxu0 %v251
    %794 = vmatpush1.msra.mxu0 %v250
    %795 = vmatprep.subr.mxu0 %v247
    %796 = vmatpush1.msra.mxu0 %v246
    %797 = vmatprep.subr.mxu0 0.0
    %798 = vmatpush2.msra.mxu0 0.0
    %799 = vmatprep.subr.mxu0 0.0
    %800 = vmatpush2.msra.mxu0 0.0
    %801 = vmatprep.subr.mxu0 0.0
    %802 = vmatpush2.msra.mxu0 0.0
    %803 = vmatprep.subr.mxu0 0.0
    %804 = vmatpush2.msra.mxu0 0.0
    %805 = vmatprep.subr.mxu0 0.0
    %806 = vmatpush2.msra.mxu0 0.0
    %807 = vmatprep.subr.mxu0 0.0
    %808 = vmatpush2.msra.mxu0 0.0
    %809 = vmatprep.subr.mxu0 0.0
    %810 = vmatpush2.msra.mxu0 0.0
    %811 = vmatprep.subr.mxu0 0.0
    %812 = vmatpush2.msra.mxu0 0.0
    %813 = vmatprep.subr.mxu0 0.0
    %814 = vmatpush2.msra.mxu0 0.0
    %815 = vmatprep.subr.mxu0 0.0
    %816 = vmatpush2.msra.mxu0 0.0
    %817 = vmatprep.subr.mxu0 0.0
    %818 = vmatpush2.msra.mxu0 0.0
    %819 = vmatprep.subr.mxu0 0.0
    %820 = vmatpush2.msra.mxu0 0.0
    %821 = vmatprep.subr.mxu0 0.0
    %822 = vmatpush2.msra.mxu0 0.0
    %823 = vmatprep.subr.mxu0 0.0
    %824 = vmatpush2.msra.mxu0 0.0
    %825 = vmatprep.subr.mxu0 0.0
    %826 = vmatpush2.msra.mxu0 0.0
    %827 = vmatprep.subr.mxu0 0.0
    %828 = vmatpush2.msra.mxu0 0.0
    %829 = vmatprep.mubr.f32.mxu0 0.0
    %830 = vmatmul.mubr.f32.gmra.mxu0 0.0
    %v831 = vpop.f32.mrf.mxu0
    %v832 = vadd.f32 0.0, %v831
    %v833 = vpop.f32.mrf.mxu0
    %v834 = vadd.f32 0.0, %v833
    %835 = vdwg.mxu0
    %v836 = vadd.f32 %v690, %v761
    %v837 = vadd.f32 %v691, %v763
    %v838 = vadd.f32 %v692, %v832
    %v839 = vadd.f32 %v693, %v834
    %v840 = vmul.f32 %v836, 0.5
    %v841 = vmul.f32 %v837, 0.5
    %v842 = vmul.f32 %v838, 0.5
    %v843 = vmul.f32 %v839, 0.5
    %v844 = vsel %vm670, 1, 0
    %v845 = vsel %vm671, 1, 0
    %v846 = vsel %vm672, 1, 0
    %v847 = vsel %vm673, 1, 0
    %vm848 = vcmp.eq.s32.totalorder %v844, 1
    %vm849 = vcmp.eq.s32.totalorder %v845, 1
    %vm850 = vcmp.eq.s32.totalorder %v846, 1
    %vm851 = vcmp.eq.s32.totalorder %v847, 1
    %v852 = vsel %vm848, %v836, %v840
    %v853 = vsel %vm849, %v837, %v841
    %v854 = vsel %vm850, %v838, %v842
    %v855 = vsel %vm851, %v839, %v843
    %v856 = vtanh.pop %v852
    %v857 = vtanh.pop %v853
    %v858 = vtanh.pop %v854
    %v859 = vtanh.pop %v855
    %v860 = vmul.f32 %v856, 0.5
    %v861 = vmul.f32 %v857, 0.5
    %v862 = vmul.f32 %v858, 0.5
    %v863 = vmul.f32 %v859, 0.5
    %v864 = vadd.f32 %v860, 0.5
    %v865 = vadd.f32 %v861, 0.5
    %v866 = vadd.f32 %v862, 0.5
    %v867 = vadd.f32 %v863, 0.5
    %v868 = vsel %vm848, %v856, %v864
    %v869 = vsel %vm849, %v857, %v865
    %v870 = vsel %vm850, %v858, %v866
    %v871 = vsel %vm851, %v859, %v867
    %v872 = vmul.f32 %v869, 0.0
    %v873 = vmul.f32 %v868, %v871
    %v874 = vadd.f32 %v872, %v873
    %v875 = vtanh.pop %v874
    %v876 = vmul.f32 %v870, %v875
    %vm877 = vcmask 523264
    %878 = vst.msk [vmem:[#allocation3] sm:$0xff] %vm877, %v876
    %vm879 = vcmask 1048064
    %880 = vst.msk [vmem:[#allocation3 + $0x38] sm:$0xff] %vm879, %v876
    %v881 = vld [vmem:[#allocation2 + $0x20] sm:$0xff]
    %v882 = vld [vmem:[#allocation2 + $0x28] sm:$0xff]
    %v883 = vld [vmem:[#allocation2 + $0x30] sm:$0xff]
    %v884 = vld [vmem:[#allocation2 + $0x38] sm:$0xff]
    %v885 = vld [vmem:[#allocation2 + $0xc0] sm:$0xff]
    %v886 = vld [vmem:[#allocation2 + $0xc8] sm:$0xff]
    %v887 = vld [vmem:[#allocation2 + $0xd0] sm:$0xff]
    %v888 = vld [vmem:[#allocation2 + $0xd8] sm:$0xff]
    %v889 = vsel %vm686, %v881, %v885
    %v890 = vsel %vm687, %v882, %v886
    %v891 = vsel %vm688, %v883, %v887
    %v892 = vsel %vm689, %v884, %v888
    %893 = vmatprep.subr.mxu0 %v305
    %894 = vmatpush1.msra.mxu0 %v304
    %895 = vmatprep.subr.mxu0 %v301
    %896 = vmatpush1.msra.mxu0 %v300
    %897 = vmatprep.subr.mxu0 %v297
    %898 = vmatpush1.msra.mxu0 %v296
    %899 = vmatprep.subr.mxu0 %v293
    %900 = vmatpush1.msra.mxu0 %v292
    %901 = vmatprep.subr.mxu0 %v289
    %902 = vmatpush1.msra.mxu0 %v288
    %903 = vmatprep.subr.mxu0 %v285
    %904 = vmatpush1.msra.mxu0 %v284
    %905 = vmatprep.subr.mxu0 %v281
    %906 = vmatpush1.msra.mxu0 %v280
    %907 = vmatprep.subr.mxu0 %v277
    %908 = vmatpush1.msra.mxu0 %v276
    %909 = vmatprep.subr.mxu0 %v273
    %910 = vmatpush1.msra.mxu0 %v272
    %911 = vmatprep.subr.mxu0 %v269
    %912 = vmatpush1.msra.mxu0 %v268
    %913 = vmatprep.subr.mxu0 %v265
    %914 = vmatpush1.msra.mxu0 %v264
    %915 = vmatprep.subr.mxu0 %v261
    %916 = vmatpush1.msra.mxu0 %v260
    %917 = vmatprep.subr.mxu0 %v257
    %918 = vmatpush1.msra.mxu0 %v256
    %919 = vmatprep.subr.mxu0 %v253
    %920 = vmatpush1.msra.mxu0 %v252
    %921 = vmatprep.subr.mxu0 %v249
    %922 = vmatpush1.msra.mxu0 %v248
    %923 = vmatprep.subr.mxu0 %v245
    %924 = vmatpush1.msra.mxu0 %v244
    %925 = vmatprep.subr.mxu0 0.0
    %926 = vmatpush2.msra.mxu0 0.0
    %927 = vmatprep.subr.mxu0 0.0
    %928 = vmatpush2.msra.mxu0 0.0
    %929 = vmatprep.subr.mxu0 0.0
    %930 = vmatpush2.msra.mxu0 0.0
    %931 = vmatprep.subr.mxu0 0.0
    %932 = vmatpush2.msra.mxu0 0.0
    %933 = vmatprep.subr.mxu0 0.0
    %934 = vmatpush2.msra.mxu0 0.0
    %935 = vmatprep.subr.mxu0 0.0
    %936 = vmatpush2.msra.mxu0 0.0
    %937 = vmatprep.subr.mxu0 0.0
    %938 = vmatpush2.msra.mxu0 0.0
    %939 = vmatprep.subr.mxu0 0.0
    %940 = vmatpush2.msra.mxu0 0.0
    %941 = vmatprep.subr.mxu0 0.0
    %942 = vmatpush2.msra.mxu0 0.0
    %943 = vmatprep.subr.mxu0 0.0
    %944 = vmatpush2.msra.mxu0 0.0
    %945 = vmatprep.subr.mxu0 0.0
    %946 = vmatpush2.msra.mxu0 0.0
    %947 = vmatprep.subr.mxu0 0.0
    %948 = vmatpush2.msra.mxu0 0.0
    %949 = vmatprep.subr.mxu0 0.0
    %950 = vmatpush2.msra.mxu0 0.0
    %951 = vmatprep.subr.mxu0 0.0
    %952 = vmatpush2.msra.mxu0 0.0
    %953 = vmatprep.subr.mxu0 0.0
    %954 = vmatpush2.msra.mxu0 0.0
    %955 = vmatprep.subr.mxu0 0.0
    %956 = vmatpush2.msra.mxu0 0.0
    %957 = vmatprep.mubr.f32.mxu0 0.0
    %958 = vmatmul.mubr.f32.gmra.mxu0 %v876
    %v959 = vpop.f32.mrf.mxu0
    %v960 = vadd.f32 0.0, %v959
    %v961 = vpop.f32.mrf.mxu0
    %v962 = vadd.f32 0.0, %v961
    %963 = vdwg.mxu0
    %964 = vmatprep.subr.mxu0 %v307
    %965 = vmatpush1.msra.mxu0 %v306
    %966 = vmatprep.subr.mxu0 %v303
    %967 = vmatpush1.msra.mxu0 %v302
    %968 = vmatprep.subr.mxu0 %v299
    %969 = vmatpush1.msra.mxu0 %v298
    %970 = vmatprep.subr.mxu0 %v295
    %971 = vmatpush1.msra.mxu0 %v294
    %972 = vmatprep.subr.mxu0 %v291
    %973 = vmatpush1.msra.mxu0 %v290
    %974 = vmatprep.subr.mxu0 %v287
    %975 = vmatpush1.msra.mxu0 %v286
    %976 = vmatprep.subr.mxu0 %v283
    %977 = vmatpush1.msra.mxu0 %v282
    %978 = vmatprep.subr.mxu0 %v279
    %979 = vmatpush1.msra.mxu0 %v278
    %980 = vmatprep.subr.mxu0 %v275
    %981 = vmatpush1.msra.mxu0 %v274
    %982 = vmatprep.subr.mxu0 %v271
    %983 = vmatpush1.msra.mxu0 %v270
    %984 = vmatprep.subr.mxu0 %v267
    %985 = vmatpush1.msra.mxu0 %v266
    %986 = vmatprep.subr.mxu0 %v263
    %987 = vmatpush1.msra.mxu0 %v262
    %988 = vmatprep.subr.mxu0 %v259
    %989 = vmatpush1.msra.mxu0 %v258
    %990 = vmatprep.subr.mxu0 %v255
    %991 = vmatpush1.msra.mxu0 %v254
    %992 = vmatprep.subr.mxu0 %v251
    %993 = vmatpush1.msra.mxu0 %v250
    %994 = vmatprep.subr.mxu0 %v247
    %995 = vmatpush1.msra.mxu0 %v246
    %996 = vmatprep.subr.mxu0 0.0
    %997 = vmatpush2.msra.mxu0 0.0
    %998 = vmatprep.subr.mxu0 0.0
    %999 = vmatpush2.msra.mxu0 0.0
    %1000 = vmatprep.subr.mxu0 0.0
    %1001 = vmatpush2.msra.mxu0 0.0
    %1002 = vmatprep.subr.mxu0 0.0
    %1003 = vmatpush2.msra.mxu0 0.0
    %1004 = vmatprep.subr.mxu0 0.0
    %1005 = vmatpush2.msra.mxu0 0.0
    %1006 = vmatprep.subr.mxu0 0.0
    %1007 = vmatpush2.msra.mxu0 0.0
    %1008 = vmatprep.subr.mxu0 0.0
    %1009 = vmatpush2.msra.mxu0 0.0
    %1010 = vmatprep.subr.mxu0 0.0
    %1011 = vmatpush2.msra.mxu0 0.0
    %1012 = vmatprep.subr.mxu0 0.0
    %1013 = vmatpush2.msra.mxu0 0.0
    %1014 = vmatprep.subr.mxu0 0.0
    %1015 = vmatpush2.msra.mxu0 0.0
    %1016 = vmatprep.subr.mxu0 0.0
    %1017 = vmatpush2.msra.mxu0 0.0
    %1018 = vmatprep.subr.mxu0 0.0
    %1019 = vmatpush2.msra.mxu0 0.0
    %1020 = vmatprep.subr.mxu0 0.0
    %1021 = vmatpush2.msra.mxu0 0.0
    %1022 = vmatprep.subr.mxu0 0.0
    %1023 = vmatpush2.msra.mxu0 0.0
    %1024 = vmatprep.subr.mxu0 0.0
    %1025 = vmatpush2.msra.mxu0 0.0
    %1026 = vmatprep.subr.mxu0 0.0
    %1027 = vmatpush2.msra.mxu0 0.0
    %1028 = vmatprep.mubr.f32.mxu0 0.0
    %1029 = vmatmul.mubr.f32.gmra.mxu0 %v876
    %v1030 = vpop.f32.mrf.mxu0
    %v1031 = vadd.f32 0.0, %v1030
    %v1032 = vpop.f32.mrf.mxu0
    %v1033 = vadd.f32 0.0, %v1032
    %1034 = vdwg.mxu0
    %v1035 = vadd.f32 %v889, %v960
    %v1036 = vadd.f32 %v890, %v962
    %v1037 = vadd.f32 %v891, %v1031
    %v1038 = vadd.f32 %v892, %v1033
    %v1039 = vmul.f32 %v1035, 0.5
    %v1040 = vmul.f32 %v1036, 0.5
    %v1041 = vmul.f32 %v1037, 0.5
    %v1042 = vmul.f32 %v1038, 0.5
    %v1043 = vsel %vm848, %v1035, %v1039
    %v1044 = vsel %vm849, %v1036, %v1040
    %v1045 = vsel %vm850, %v1037, %v1041
    %v1046 = vsel %vm851, %v1038, %v1042
    %v1047 = vtanh.pop %v1043
    %v1048 = vtanh.pop %v1044
    %v1049 = vtanh.pop %v1045
    %v1050 = vtanh.pop %v1046
    %v1051 = vmul.f32 %v1047, 0.5
    %v1052 = vmul.f32 %v1048, 0.5
    %v1053 = vmul.f32 %v1049, 0.5
    %v1054 = vmul.f32 %v1050, 0.5
    %v1055 = vadd.f32 %v1051, 0.5
    %v1056 = vadd.f32 %v1052, 0.5
    %v1057 = vadd.f32 %v1053, 0.5
    %v1058 = vadd.f32 %v1054, 0.5
    %v1059 = vsel %vm848, %v1047, %v1055
    %v1060 = vsel %vm849, %v1048, %v1056
    %v1061 = vsel %vm850, %v1049, %v1057
    %v1062 = vsel %vm851, %v1050, %v1058
    %v1063 = vmul.f32 %v1060, %v874
    %v1064 = vmul.f32 %v1059, %v1062
    %v1065 = vadd.f32 %v1063, %v1064
    %v1066 = vtanh.pop %v1065
    %v1067 = vmul.f32 %v1061, %v1066
    %1068 = vst.msk [vmem:[#allocation3 + $0x8] sm:$0xff] %vm877, %v1067
    %1069 = vst.msk [vmem:[#allocation3 + $0x30] sm:$0xff] %vm879, %v1067
    %v1070 = vld [vmem:[#allocation2 + $0x40] sm:$0xff]
    %v1071 = vld [vmem:[#allocation2 + $0x48] sm:$0xff]
    %v1072 = vld [vmem:[#allocation2 + $0x50] sm:$0xff]
    %v1073 = vld [vmem:[#allocation2 + $0x58] sm:$0xff]
    %v1074 = vld [vmem:[#allocation2 + $0xa0] sm:$0xff]
    %v1075 = vld [vmem:[#allocation2 + $0xa8] sm:$0xff]
    %v1076 = vld [vmem:[#allocation2 + $0xb0] sm:$0xff]
    %v1077 = vld [vmem:[#allocation2 + $0xb8] sm:$0xff]
    %v1078 = vsel %vm686, %v1070, %v1074
    %v1079 = vsel %vm687, %v1071, %v1075
    %v1080 = vsel %vm688, %v1072, %v1076
    %v1081 = vsel %vm689, %v1073, %v1077
    %1082 = vmatprep.subr.mxu0 %v305
    %1083 = vmatpush1.msra.mxu0 %v304
    %1084 = vmatprep.subr.mxu0 %v301
    %1085 = vmatpush1.msra.mxu0 %v300
    %1086 = vmatprep.subr.mxu0 %v297
    %1087 = vmatpush1.msra.mxu0 %v296
    %1088 = vmatprep.subr.mxu0 %v293
    %1089 = vmatpush1.msra.mxu0 %v292
    %1090 = vmatprep.subr.mxu0 %v289
    %1091 = vmatpush1.msra.mxu0 %v288
    %1092 = vmatprep.subr.mxu0 %v285
    %1093 = vmatpush1.msra.mxu0 %v284
    %1094 = vmatprep.subr.mxu0 %v281
    %1095 = vmatpush1.msra.mxu0 %v280
    %1096 = vmatprep.subr.mxu0 %v277
    %1097 = vmatpush1.msra.mxu0 %v276
    %1098 = vmatprep.subr.mxu0 %v273
    %1099 = vmatpush1.msra.mxu0 %v272
    %1100 = vmatprep.subr.mxu0 %v269
    %1101 = vmatpush1.msra.mxu0 %v268
    %1102 = vmatprep.subr.mxu0 %v265
    %1103 = vmatpush1.msra.mxu0 %v264
    %1104 = vmatprep.subr.mxu0 %v261
    %1105 = vmatpush1.msra.mxu0 %v260
    %1106 = vmatprep.subr.mxu0 %v257
    %1107 = vmatpush1.msra.mxu0 %v256
    %1108 = vmatprep.subr.mxu0 %v253
    %1109 = vmatpush1.msra.mxu0 %v252
    %1110 = vmatprep.subr.mxu0 %v249
    %1111 = vmatpush1.msra.mxu0 %v248
    %1112 = vmatprep.subr.mxu0 %v245
    %1113 = vmatpush1.msra.mxu0 %v244
    %1114 = vmatprep.subr.mxu0 0.0
    %1115 = vmatpush2.msra.mxu0 0.0
    %1116 = vmatprep.subr.mxu0 0.0
    %1117 = vmatpush2.msra.mxu0 0.0
    %1118 = vmatprep.subr.mxu0 0.0
    %1119 = vmatpush2.msra.mxu0 0.0
    %1120 = vmatprep.subr.mxu0 0.0
    %1121 = vmatpush2.msra.mxu0 0.0
    %1122 = vmatprep.subr.mxu0 0.0
    %1123 = vmatpush2.msra.mxu0 0.0
    %1124 = vmatprep.subr.mxu0 0.0
    %1125 = vmatpush2.msra.mxu0 0.0
    %1126 = vmatprep.subr.mxu0 0.0
    %1127 = vmatpush2.msra.mxu0 0.0
    %1128 = vmatprep.subr.mxu0 0.0
    %1129 = vmatpush2.msra.mxu0 0.0
    %1130 = vmatprep.subr.mxu0 0.0
    %1131 = vmatpush2.msra.mxu0 0.0
    %1132 = vmatprep.subr.mxu0 0.0
    %1133 = vmatpush2.msra.mxu0 0.0
    %1134 = vmatprep.subr.mxu0 0.0
    %1135 = vmatpush2.msra.mxu0 0.0
    %1136 = vmatprep.subr.mxu0 0.0
    %1137 = vmatpush2.msra.mxu0 0.0
    %1138 = vmatprep.subr.mxu0 0.0
    %1139 = vmatpush2.msra.mxu0 0.0
    %1140 = vmatprep.subr.mxu0 0.0
    %1141 = vmatpush2.msra.mxu0 0.0
    %1142 = vmatprep.subr.mxu0 0.0
    %1143 = vmatpush2.msra.mxu0 0.0
    %1144 = vmatprep.subr.mxu0 0.0
    %1145 = vmatpush2.msra.mxu0 0.0
    %1146 = vmatprep.mubr.f32.mxu0 0.0
    %1147 = vmatmul.mubr.f32.gmra.mxu0 %v1067
    %v1148 = vpop.f32.mrf.mxu0
    %v1149 = vadd.f32 0.0, %v1148
    %v1150 = vpop.f32.mrf.mxu0
    %v1151 = vadd.f32 0.0, %v1150
    %1152 = vdwg.mxu0
    %1153 = vmatprep.subr.mxu0 %v307
    %1154 = vmatpush1.msra.mxu0 %v306
    %1155 = vmatprep.subr.mxu0 %v303
    %1156 = vmatpush1.msra.mxu0 %v302
    %1157 = vmatprep.subr.mxu0 %v299
    %1158 = vmatpush1.msra.mxu0 %v298
    %1159 = vmatprep.subr.mxu0 %v295
    %1160 = vmatpush1.msra.mxu0 %v294
    %1161 = vmatprep.subr.mxu0 %v291
    %1162 = vmatpush1.msra.mxu0 %v290
    %1163 = vmatprep.subr.mxu0 %v287
    %1164 = vmatpush1.msra.mxu0 %v286
    %1165 = vmatprep.subr.mxu0 %v283
    %1166 = vmatpush1.msra.mxu0 %v282
    %1167 = vmatprep.subr.mxu0 %v279
    %1168 = vmatpush1.msra.mxu0 %v278
    %1169 = vmatprep.subr.mxu0 %v275
    %1170 = vmatpush1.msra.mxu0 %v274
    %1171 = vmatprep.subr.mxu0 %v271
    %1172 = vmatpush1.msra.mxu0 %v270
    %1173 = vmatprep.subr.mxu0 %v267
    %1174 = vmatpush1.msra.mxu0 %v266
    %1175 = vmatprep.subr.mxu0 %v263
    %1176 = vmatpush1.msra.mxu0 %v262
    %1177 = vmatprep.subr.mxu0 %v259
    %1178 = vmatpush1.msra.mxu0 %v258
    %1179 = vmatprep.subr.mxu0 %v255
    %1180 = vmatpush1.msra.mxu0 %v254
    %1181 = vmatprep.subr.mxu0 %v251
    %1182 = vmatpush1.msra.mxu0 %v250
    %1183 = vmatprep.subr.mxu0 %v247
    %1184 = vmatpush1.msra.mxu0 %v246
    %1185 = vmatprep.subr.mxu0 0.0
    %1186 = vmatpush2.msra.mxu0 0.0
    %1187 = vmatprep.subr.mxu0 0.0
    %1188 = vmatpush2.msra.mxu0 0.0
    %1189 = vmatprep.subr.mxu0 0.0
    %1190 = vmatpush2.msra.mxu0 0.0
    %1191 = vmatprep.subr.mxu0 0.0
    %1192 = vmatpush2.msra.mxu0 0.0
    %1193 = vmatprep.subr.mxu0 0.0
    %1194 = vmatpush2.msra.mxu0 0.0
    %1195 = vmatprep.subr.mxu0 0.0
    %1196 = vmatpush2.msra.mxu0 0.0
    %1197 = vmatprep.subr.mxu0 0.0
    %1198 = vmatpush2.msra.mxu0 0.0
    %1199 = vmatprep.subr.mxu0 0.0
    %1200 = vmatpush2.msra.mxu0 0.0
    %1201 = vmatprep.subr.mxu0 0.0
    %1202 = vmatpush2.msra.mxu0 0.0
    %1203 = vmatprep.subr.mxu0 0.0
    %1204 = vmatpush2.msra.mxu0 0.0
    %1205 = vmatprep.subr.mxu0 0.0
    %1206 = vmatpush2.msra.mxu0 0.0
    %1207 = vmatprep.subr.mxu0 0.0
    %1208 = vmatpush2.msra.mxu0 0.0
    %1209 = vmatprep.subr.mxu0 0.0
    %1210 = vmatpush2.msra.mxu0 0.0
    %1211 = vmatprep.subr.mxu0 0.0
    %1212 = vmatpush2.msra.mxu0 0.0
    %1213 = vmatprep.subr.mxu0 0.0
    %1214 = vmatpush2.msra.mxu0 0.0
    %1215 = vmatprep.subr.mxu0 0.0
    %1216 = vmatpush2.msra.mxu0 0.0
    %1217 = vmatprep.mubr.f32.mxu0 0.0
    %1218 = vmatmul.mubr.f32.gmra.mxu0 %v1067
    %v1219 = vpop.f32.mrf.mxu0
    %v1220 = vadd.f32 0.0, %v1219
    %v1221 = vpop.f32.mrf.mxu0
    %v1222 = vadd.f32 0.0, %v1221
    %1223 = vdwg.mxu0
    %v1224 = vadd.f32 %v1078, %v1149
    %v1225 = vadd.f32 %v1079, %v1151
    %v1226 = vadd.f32 %v1080, %v1220
    %v1227 = vadd.f32 %v1081, %v1222
    %v1228 = vmul.f32 %v1224, 0.5
    %v1229 = vmul.f32 %v1225, 0.5
    %v1230 = vmul.f32 %v1226, 0.5
    %v1231 = vmul.f32 %v1227, 0.5
    %v1232 = vsel %vm848, %v1224, %v1228
    %v1233 = vsel %vm849, %v1225, %v1229
    %v1234 = vsel %vm850, %v1226, %v1230
    %v1235 = vsel %vm851, %v1227, %v1231
    %v1236 = vtanh.pop %v1232
    %v1237 = vtanh.pop %v1233
    %v1238 = vtanh.pop %v1234
    %v1239 = vtanh.pop %v1235
    %v1240 = vmul.f32 %v1236, 0.5
    %v1241 = vmul.f32 %v1237, 0.5
    %v1242 = vmul.f32 %v1238, 0.5
    %v1243 = vmul.f32 %v1239, 0.5
    %v1244 = vadd.f32 %v1240, 0.5
    %v1245 = vadd.f32 %v1241, 0.5
    %v1246 = vadd.f32 %v1242, 0.5
    %v1247 = vadd.f32 %v1243, 0.5
    %v1248 = vsel %vm848, %v1236, %v1244
    %v1249 = vsel %vm849, %v1237, %v1245
    %v1250 = vsel %vm850, %v1238, %v1246
    %v1251 = vsel %vm851, %v1239, %v1247
    %v1252 = vmul.f32 %v1249, %v1065
    %v1253 = vmul.f32 %v1248, %v1251
    %v1254 = vadd.f32 %v1252, %v1253
    %v1255 = vtanh.pop %v1254
    %v1256 = vmul.f32 %v1250, %v1255
    %1257 = vst.msk [vmem:[#allocation3 + $0x10] sm:$0xff] %vm877, %v1256
    %1258 = vst.msk [vmem:[#allocation3 + $0x28] sm:$0xff] %vm879, %v1256
    %v1259 = vld [vmem:[#allocation2 + $0x60] sm:$0xff]
    %v1260 = vld [vmem:[#allocation2 + $0x68] sm:$0xff]
    %v1261 = vld [vmem:[#allocation2 + $0x70] sm:$0xff]
    %v1262 = vld [vmem:[#allocation2 + $0x78] sm:$0xff]
    %v1263 = vld [vmem:[#allocation2 + $0x80] sm:$0xff]
    %v1264 = vld [vmem:[#allocation2 + $0x88] sm:$0xff]
    %v1265 = vld [vmem:[#allocation2 + $0x90] sm:$0xff]
    %v1266 = vld [vmem:[#allocation2 + $0x98] sm:$0xff]
    %v1267 = vsel %vm686, %v1259, %v1263
    %v1268 = vsel %vm687, %v1260, %v1264
    %v1269 = vsel %vm688, %v1261, %v1265
    %v1270 = vsel %vm689, %v1262, %v1266
    %1271 = vmatprep.subr.mxu0 %v305
    %1272 = vmatpush1.msra.mxu0 %v304
    %1273 = vmatprep.subr.mxu0 %v301
    %1274 = vmatpush1.msra.mxu0 %v300
    %1275 = vmatprep.subr.mxu0 %v297
    %1276 = vmatpush1.msra.mxu0 %v296
    %1277 = vmatprep.subr.mxu0 %v293
    %1278 = vmatpush1.msra.mxu0 %v292
    %1279 = vmatprep.subr.mxu0 %v289
    %1280 = vmatpush1.msra.mxu0 %v288
    %1281 = vmatprep.subr.mxu0 %v285
    %1282 = vmatpush1.msra.mxu0 %v284
    %1283 = vmatprep.subr.mxu0 %v281
    %1284 = vmatpush1.msra.mxu0 %v280
    %1285 = vmatprep.subr.mxu0 %v277
    %1286 = vmatpush1.msra.mxu0 %v276
    %1287 = vmatprep.subr.mxu0 %v273
    %1288 = vmatpush1.msra.mxu0 %v272
    %1289 = vmatprep.subr.mxu0 %v269
    %1290 = vmatpush1.msra.mxu0 %v268
    %1291 = vmatprep.subr.mxu0 %v265
    %1292 = vmatpush1.msra.mxu0 %v264
    %1293 = vmatprep.subr.mxu0 %v261
    %1294 = vmatpush1.msra.mxu0 %v260
    %1295 = vmatprep.subr.mxu0 %v257
    %1296 = vmatpush1.msra.mxu0 %v256
    %1297 = vmatprep.subr.mxu0 %v253
    %1298 = vmatpush1.msra.mxu0 %v252
    %1299 = vmatprep.subr.mxu0 %v249
    %1300 = vmatpush1.msra.mxu0 %v248
    %1301 = vmatprep.subr.mxu0 %v245
    %1302 = vmatpush1.msra.mxu0 %v244
    %1303 = vmatprep.subr.mxu0 0.0
    %1304 = vmatpush2.msra.mxu0 0.0
    %1305 = vmatprep.subr.mxu0 0.0
    %1306 = vmatpush2.msra.mxu0 0.0
    %1307 = vmatprep.subr.mxu0 0.0
    %1308 = vmatpush2.msra.mxu0 0.0
    %1309 = vmatprep.subr.mxu0 0.0
    %1310 = vmatpush2.msra.mxu0 0.0
    %1311 = vmatprep.subr.mxu0 0.0
    %1312 = vmatpush2.msra.mxu0 0.0
    %1313 = vmatprep.subr.mxu0 0.0
    %1314 = vmatpush2.msra.mxu0 0.0
    %1315 = vmatprep.subr.mxu0 0.0
    %1316 = vmatpush2.msra.mxu0 0.0
    %1317 = vmatprep.subr.mxu0 0.0
    %1318 = vmatpush2.msra.mxu0 0.0
    %1319 = vmatprep.subr.mxu0 0.0
    %1320 = vmatpush2.msra.mxu0 0.0
    %1321 = vmatprep.subr.mxu0 0.0
    %1322 = vmatpush2.msra.mxu0 0.0
    %1323 = vmatprep.subr.mxu0 0.0
    %1324 = vmatpush2.msra.mxu0 0.0
    %1325 = vmatprep.subr.mxu0 0.0
    %1326 = vmatpush2.msra.mxu0 0.0
    %1327 = vmatprep.subr.mxu0 0.0
    %1328 = vmatpush2.msra.mxu0 0.0
    %1329 = vmatprep.subr.mxu0 0.0
    %1330 = vmatpush2.msra.mxu0 0.0
    %1331 = vmatprep.subr.mxu0 0.0
    %1332 = vmatpush2.msra.mxu0 0.0
    %1333 = vmatprep.subr.mxu0 0.0
    %1334 = vmatpush2.msra.mxu0 0.0
    %1335 = vmatprep.mubr.f32.mxu0 0.0
    %1336 = vmatmul.mubr.f32.gmra.mxu0 %v1256
    %v1337 = vpop.f32.mrf.mxu0
    %v1338 = vadd.f32 0.0, %v1337
    %v1339 = vpop.f32.mrf.mxu0
    %v1340 = vadd.f32 0.0, %v1339
    %1341 = vdwg.mxu0
    %1342 = vmatprep.subr.mxu0 %v307
    %1343 = vmatpush1.msra.mxu0 %v306
    %1344 = vmatprep.subr.mxu0 %v303
    %1345 = vmatpush1.msra.mxu0 %v302
    %1346 = vmatprep.subr.mxu0 %v299
    %1347 = vmatpush1.msra.mxu0 %v298
    %1348 = vmatprep.subr.mxu0 %v295
    %1349 = vmatpush1.msra.mxu0 %v294
    %1350 = vmatprep.subr.mxu0 %v291
    %1351 = vmatpush1.msra.mxu0 %v290
    %1352 = vmatprep.subr.mxu0 %v287
    %1353 = vmatpush1.msra.mxu0 %v286
    %1354 = vmatprep.subr.mxu0 %v283
    %1355 = vmatpush1.msra.mxu0 %v282
    %1356 = vmatprep.subr.mxu0 %v279
    %1357 = vmatpush1.msra.mxu0 %v278
    %1358 = vmatprep.subr.mxu0 %v275
    %1359 = vmatpush1.msra.mxu0 %v274
    %1360 = vmatprep.subr.mxu0 %v271
    %1361 = vmatpush1.msra.mxu0 %v270
    %1362 = vmatprep.subr.mxu0 %v267
    %1363 = vmatpush1.msra.mxu0 %v266
    %1364 = vmatprep.subr.mxu0 %v263
    %1365 = vmatpush1.msra.mxu0 %v262
    %1366 = vmatprep.subr.mxu0 %v259
    %1367 = vmatpush1.msra.mxu0 %v258
    %1368 = vmatprep.subr.mxu0 %v255
    %1369 = vmatpush1.msra.mxu0 %v254
    %1370 = vmatprep.subr.mxu0 %v251
    %1371 = vmatpush1.msra.mxu0 %v250
    %1372 = vmatprep.subr.mxu0 %v247
    %1373 = vmatpush1.msra.mxu0 %v246
    %1374 = vmatprep.subr.mxu0 0.0
    %1375 = vmatpush2.msra.mxu0 0.0
    %1376 = vmatprep.subr.mxu0 0.0
    %1377 = vmatpush2.msra.mxu0 0.0
    %1378 = vmatprep.subr.mxu0 0.0
    %1379 = vmatpush2.msra.mxu0 0.0
    %1380 = vmatprep.subr.mxu0 0.0
    %1381 = vmatpush2.msra.mxu0 0.0
    %1382 = vmatprep.subr.mxu0 0.0
    %1383 = vmatpush2.msra.mxu0 0.0
    %1384 = vmatprep.subr.mxu0 0.0
    %1385 = vmatpush2.msra.mxu0 0.0
    %1386 = vmatprep.subr.mxu0 0.0
    %1387 = vmatpush2.msra.mxu0 0.0
    %1388 = vmatprep.subr.mxu0 0.0
    %1389 = vmatpush2.msra.mxu0 0.0
    %1390 = vmatprep.subr.mxu0 0.0
    %1391 = vmatpush2.msra.mxu0 0.0
    %1392 = vmatprep.subr.mxu0 0.0
    %1393 = vmatpush2.msra.mxu0 0.0
    %1394 = vmatprep.subr.mxu0 0.0
    %1395 = vmatpush2.msra.mxu0 0.0
    %1396 = vmatprep.subr.mxu0 0.0
    %1397 = vmatpush2.msra.mxu0 0.0
    %1398 = vmatprep.subr.mxu0 0.0
    %1399 = vmatpush2.msra.mxu0 0.0
    %1400 = vmatprep.subr.mxu0 0.0
    %1401 = vmatpush2.msra.mxu0 0.0
    %1402 = vmatprep.subr.mxu0 0.0
    %1403 = vmatpush2.msra.mxu0 0.0
    %1404 = vmatprep.subr.mxu0 0.0
    %1405 = vmatpush2.msra.mxu0 0.0
    %1406 = vmatprep.mubr.f32.mxu0 0.0
    %1407 = vmatmul.mubr.f32.gmra.mxu0 %v1256
    %v1408 = vpop.f32.mrf.mxu0
    %v1409 = vadd.f32 0.0, %v1408
    %v1410 = vpop.f32.mrf.mxu0
    %v1411 = vadd.f32 0.0, %v1410
    %1412 = vdwg.mxu0
    %v1413 = vadd.f32 %v1267, %v1338
    %v1414 = vadd.f32 %v1268, %v1340
    %v1415 = vadd.f32 %v1269, %v1409
    %v1416 = vadd.f32 %v1270, %v1411
    %v1417 = vmul.f32 %v1413, 0.5
    %v1418 = vmul.f32 %v1414, 0.5
    %v1419 = vmul.f32 %v1415, 0.5
    %v1420 = vmul.f32 %v1416, 0.5
    %v1421 = vsel %vm848, %v1413, %v1417
    %v1422 = vsel %vm849, %v1414, %v1418
    %v1423 = vsel %vm850, %v1415, %v1419
    %v1424 = vsel %vm851, %v1416, %v1420
    %v1425 = vtanh.pop %v1421
    %v1426 = vtanh.pop %v1422
    %v1427 = vtanh.pop %v1423
    %v1428 = vtanh.pop %v1424
    %v1429 = vmul.f32 %v1425, 0.5
    %v1430 = vmul.f32 %v1426, 0.5
    %v1431 = vmul.f32 %v1427, 0.5
    %v1432 = vmul.f32 %v1428, 0.5
    %v1433 = vadd.f32 %v1429, 0.5
    %v1434 = vadd.f32 %v1430, 0.5
    %v1435 = vadd.f32 %v1431, 0.5
    %v1436 = vadd.f32 %v1432, 0.5
    %v1437 = vsel %vm848, %v1425, %v1433
    %v1438 = vsel %vm849, %v1426, %v1434
    %v1439 = vsel %vm850, %v1427, %v1435
    %v1440 = vsel %vm851, %v1428, %v1436
    %v1441 = vmul.f32 %v1438, %v1254
    %v1442 = vmul.f32 %v1437, %v1440
    %v1443 = vadd.f32 %v1441, %v1442
    %v1444 = vtanh.pop %v1443
    %v1445 = vmul.f32 %v1439, %v1444
    %1446 = vst.msk [vmem:[#allocation3 + $0x18] sm:$0xff] %vm877, %v1445
    %1447 = vst.msk [vmem:[#allocation3 + $0x20] sm:$0xff] %vm879, %v1445
    %v1448 = vld [vmem:[#allocation2 + $0x80] sm:$0xff]
    %v1449 = vld [vmem:[#allocation2 + $0x88] sm:$0xff]
    %v1450 = vld [vmem:[#allocation2 + $0x90] sm:$0xff]
    %v1451 = vld [vmem:[#allocation2 + $0x98] sm:$0xff]
    %v1452 = vld [vmem:[#allocation2 + $0x60] sm:$0xff]
    %v1453 = vld [vmem:[#allocation2 + $0x68] sm:$0xff]
    %v1454 = vld [vmem:[#allocation2 + $0x70] sm:$0xff]
    %v1455 = vld [vmem:[#allocation2 + $0x78] sm:$0xff]
    %v1456 = vsel %vm686, %v1448, %v1452
    %v1457 = vsel %vm687, %v1449, %v1453
    %v1458 = vsel %vm688, %v1450, %v1454
    %v1459 = vsel %vm689, %v1451, %v1455
    %1460 = vmatprep.subr.mxu0 %v305
    %1461 = vmatpush1.msra.mxu0 %v304
    %1462 = vmatprep.subr.mxu0 %v301
    %1463 = vmatpush1.msra.mxu0 %v300
    %1464 = vmatprep.subr.mxu0 %v297
    %1465 = vmatpush1.msra.mxu0 %v296
    %1466 = vmatprep.subr.mxu0 %v293
    %1467 = vmatpush1.msra.mxu0 %v292
    %1468 = vmatprep.subr.mxu0 %v289
    %1469 = vmatpush1.msra.mxu0 %v288
    %1470 = vmatprep.subr.mxu0 %v285
    %1471 = vmatpush1.msra.mxu0 %v284
    %1472 = vmatprep.subr.mxu0 %v281
    %1473 = vmatpush1.msra.mxu0 %v280
    %1474 = vmatprep.subr.mxu0 %v277
    %1475 = vmatpush1.msra.mxu0 %v276
    %1476 = vmatprep.subr.mxu0 %v273
    %1477 = vmatpush1.msra.mxu0 %v272
    %1478 = vmatprep.subr.mxu0 %v269
    %1479 = vmatpush1.msra.mxu0 %v268
    %1480 = vmatprep.subr.mxu0 %v265
    %1481 = vmatpush1.msra.mxu0 %v264
    %1482 = vmatprep.subr.mxu0 %v261
    %1483 = vmatpush1.msra.mxu0 %v260
    %1484 = vmatprep.subr.mxu0 %v257
    %1485 = vmatpush1.msra.mxu0 %v256
    %1486 = vmatprep.subr.mxu0 %v253
    %1487 = vmatpush1.msra.mxu0 %v252
    %1488 = vmatprep.subr.mxu0 %v249
    %1489 = vmatpush1.msra.mxu0 %v248
    %1490 = vmatprep.subr.mxu0 %v245
    %1491 = vmatpush1.msra.mxu0 %v244
    %1492 = vmatprep.subr.mxu0 0.0
    %1493 = vmatpush2.msra.mxu0 0.0
    %1494 = vmatprep.subr.mxu0 0.0
    %1495 = vmatpush2.msra.mxu0 0.0
    %1496 = vmatprep.subr.mxu0 0.0
    %1497 = vmatpush2.msra.mxu0 0.0
    %1498 = vmatprep.subr.mxu0 0.0
    %1499 = vmatpush2.msra.mxu0 0.0
    %1500 = vmatprep.subr.mxu0 0.0
    %1501 = vmatpush2.msra.mxu0 0.0
    %1502 = vmatprep.subr.mxu0 0.0
    %1503 = vmatpush2.msra.mxu0 0.0
    %1504 = vmatprep.subr.mxu0 0.0
    %1505 = vmatpush2.msra.mxu0 0.0
    %1506 = vmatprep.subr.mxu0 0.0
    %1507 = vmatpush2.msra.mxu0 0.0
    %1508 = vmatprep.subr.mxu0 0.0
    %1509 = vmatpush2.msra.mxu0 0.0
    %1510 = vmatprep.subr.mxu0 0.0
    %1511 = vmatpush2.msra.mxu0 0.0
    %1512 = vmatprep.subr.mxu0 0.0
    %1513 = vmatpush2.msra.mxu0 0.0
    %1514 = vmatprep.subr.mxu0 0.0
    %1515 = vmatpush2.msra.mxu0 0.0
    %1516 = vmatprep.subr.mxu0 0.0
    %1517 = vmatpush2.msra.mxu0 0.0
    %1518 = vmatprep.subr.mxu0 0.0
    %1519 = vmatpush2.msra.mxu0 0.0
    %1520 = vmatprep.subr.mxu0 0.0
    %1521 = vmatpush2.msra.mxu0 0.0
    %1522 = vmatprep.subr.mxu0 0.0
    %1523 = vmatpush2.msra.mxu0 0.0
    %1524 = vmatprep.mubr.f32.mxu0 0.0
    %1525 = vmatmul.mubr.f32.gmra.mxu0 %v1445
    %v1526 = vpop.f32.mrf.mxu0
    %v1527 = vadd.f32 0.0, %v1526
    %v1528 = vpop.f32.mrf.mxu0
    %v1529 = vadd.f32 0.0, %v1528
    %1530 = vdwg.mxu0
    %1531 = vmatprep.subr.mxu0 %v307
    %1532 = vmatpush1.msra.mxu0 %v306
    %1533 = vmatprep.subr.mxu0 %v303
    %1534 = vmatpush1.msra.mxu0 %v302
    %1535 = vmatprep.subr.mxu0 %v299
    %1536 = vmatpush1.msra.mxu0 %v298
    %1537 = vmatprep.subr.mxu0 %v295
    %1538 = vmatpush1.msra.mxu0 %v294
    %1539 = vmatprep.subr.mxu0 %v291
    %1540 = vmatpush1.msra.mxu0 %v290
    %1541 = vmatprep.subr.mxu0 %v287
    %1542 = vmatpush1.msra.mxu0 %v286
    %1543 = vmatprep.subr.mxu0 %v283
    %1544 = vmatpush1.msra.mxu0 %v282
    %1545 = vmatprep.subr.mxu0 %v279
    %1546 = vmatpush1.msra.mxu0 %v278
    %1547 = vmatprep.subr.mxu0 %v275
    %1548 = vmatpush1.msra.mxu0 %v274
    %1549 = vmatprep.subr.mxu0 %v271
    %1550 = vmatpush1.msra.mxu0 %v270
    %1551 = vmatprep.subr.mxu0 %v267
    %1552 = vmatpush1.msra.mxu0 %v266
    %1553 = vmatprep.subr.mxu0 %v263
    %1554 = vmatpush1.msra.mxu0 %v262
    %1555 = vmatprep.subr.mxu0 %v259
    %1556 = vmatpush1.msra.mxu0 %v258
    %1557 = vmatprep.subr.mxu0 %v255
    %1558 = vmatpush1.msra.mxu0 %v254
    %1559 = vmatprep.subr.mxu0 %v251
    %1560 = vmatpush1.msra.mxu0 %v250
    %1561 = vmatprep.subr.mxu0 %v247
    %1562 = vmatpush1.msra.mxu0 %v246
    %1563 = vmatprep.subr.mxu0 0.0
    %1564 = vmatpush2.msra.mxu0 0.0
    %1565 = vmatprep.subr.mxu0 0.0
    %1566 = vmatpush2.msra.mxu0 0.0
    %1567 = vmatprep.subr.mxu0 0.0
    %1568 = vmatpush2.msra.mxu0 0.0
    %1569 = vmatprep.subr.mxu0 0.0
    %1570 = vmatpush2.msra.mxu0 0.0
    %1571 = vmatprep.subr.mxu0 0.0
    %1572 = vmatpush2.msra.mxu0 0.0
    %1573 = vmatprep.subr.mxu0 0.0
    %1574 = vmatpush2.msra.mxu0 0.0
    %1575 = vmatprep.subr.mxu0 0.0
    %1576 = vmatpush2.msra.mxu0 0.0
    %1577 = vmatprep.subr.mxu0 0.0
    %1578 = vmatpush2.msra.mxu0 0.0
    %1579 = vmatprep.subr.mxu0 0.0
    %1580 = vmatpush2.msra.mxu0 0.0
    %1581 = vmatprep.subr.mxu0 0.0
    %1582 = vmatpush2.msra.mxu0 0.0
    %1583 = vmatprep.subr.mxu0 0.0
    %1584 = vmatpush2.msra.mxu0 0.0
    %1585 = vmatprep.subr.mxu0 0.0
    %1586 = vmatpush2.msra.mxu0 0.0
    %1587 = vmatprep.subr.mxu0 0.0
    %1588 = vmatpush2.msra.mxu0 0.0
    %1589 = vmatprep.subr.mxu0 0.0
    %1590 = vmatpush2.msra.mxu0 0.0
    %1591 = vmatprep.subr.mxu0 0.0
    %1592 = vmatpush2.msra.mxu0 0.0
    %1593 = vmatprep.subr.mxu0 0.0
    %1594 = vmatpush2.msra.mxu0 0.0
    %1595 = vmatprep.mubr.f32.mxu0 0.0
    %1596 = vmatmul.mubr.f32.gmra.mxu0 %v1445
    %v1597 = vpop.f32.mrf.mxu0
    %v1598 = vadd.f32 0.0, %v1597
    %v1599 = vpop.f32.mrf.mxu0
    %v1600 = vadd.f32 0.0, %v1599
    %1601 = vdwg.mxu0
    %v1602 = vadd.f32 %v1456, %v1527
    %v1603 = vadd.f32 %v1457, %v1529
    %v1604 = vadd.f32 %v1458, %v1598
    %v1605 = vadd.f32 %v1459, %v1600
    %v1606 = vmul.f32 %v1602, 0.5
    %v1607 = vmul.f32 %v1603, 0.5
    %v1608 = vmul.f32 %v1604, 0.5
    %v1609 = vmul.f32 %v1605, 0.5
    %v1610 = vsel %vm848, %v1602, %v1606
    %v1611 = vsel %vm849, %v1603, %v1607
    %v1612 = vsel %vm850, %v1604, %v1608
    %v1613 = vsel %vm851, %v1605, %v1609
    %v1614 = vtanh.pop %v1610
    %v1615 = vtanh.pop %v1611
    %v1616 = vtanh.pop %v1612
    %v1617 = vtanh.pop %v1613
    %v1618 = vmul.f32 %v1614, 0.5
    %v1619 = vmul.f32 %v1615, 0.5
    %v1620 = vmul.f32 %v1616, 0.5
    %v1621 = vmul.f32 %v1617, 0.5
    %v1622 = vadd.f32 %v1618, 0.5
    %v1623 = vadd.f32 %v1619, 0.5
    %v1624 = vadd.f32 %v1620, 0.5
    %v1625 = vadd.f32 %v1621, 0.5
    %v1626 = vsel %vm848, %v1614, %v1622
    %v1627 = vsel %vm849, %v1615, %v1623
    %v1628 = vsel %vm850, %v1616, %v1624
    %v1629 = vsel %vm851, %v1617, %v1625
    %v1630 = vmul.f32 %v1627, %v1443
    %v1631 = vmul.f32 %v1626, %v1629
    %v1632 = vadd.f32 %v1630, %v1631
    %v1633 = vtanh.pop %v1632
    %v1634 = vmul.f32 %v1628, %v1633
    %1635 = vst.msk [vmem:[#allocation3 + $0x20] sm:$0xff] %vm877, %v1634
    %1636 = vst.msk [vmem:[#allocation3 + $0x18] sm:$0xff] %vm879, %v1634
    %v1637 = vld [vmem:[#allocation2 + $0xa0] sm:$0xff]
    %v1638 = vld [vmem:[#allocation2 + $0xa8] sm:$0xff]
    %v1639 = vld [vmem:[#allocation2 + $0xb0] sm:$0xff]
    %v1640 = vld [vmem:[#allocation2 + $0xb8] sm:$0xff]
    %v1641 = vld [vmem:[#allocation2 + $0x40] sm:$0xff]
    %v1642 = vld [vmem:[#allocation2 + $0x48] sm:$0xff]
    %v1643 = vld [vmem:[#allocation2 + $0x50] sm:$0xff]
    %v1644 = vld [vmem:[#allocation2 + $0x58] sm:$0xff]
    %v1645 = vsel %vm686, %v1637, %v1641
    %v1646 = vsel %vm687, %v1638, %v1642
    %v1647 = vsel %vm688, %v1639, %v1643
    %v1648 = vsel %vm689, %v1640, %v1644
    %1649 = vmatprep.subr.mxu0 %v305
    %1650 = vmatpush1.msra.mxu0 %v304
    %1651 = vmatprep.subr.mxu0 %v301
    %1652 = vmatpush1.msra.mxu0 %v300
    %1653 = vmatprep.subr.mxu0 %v297
    %1654 = vmatpush1.msra.mxu0 %v296
    %1655 = vmatprep.subr.mxu0 %v293
    %1656 = vmatpush1.msra.mxu0 %v292
    %1657 = vmatprep.subr.mxu0 %v289
    %1658 = vmatpush1.msra.mxu0 %v288
    %1659 = vmatprep.subr.mxu0 %v285
    %1660 = vmatpush1.msra.mxu0 %v284
    %1661 = vmatprep.subr.mxu0 %v281
    %1662 = vmatpush1.msra.mxu0 %v280
    %1663 = vmatprep.subr.mxu0 %v277
    %1664 = vmatpush1.msra.mxu0 %v276
    %1665 = vmatprep.subr.mxu0 %v273
    %1666 = vmatpush1.msra.mxu0 %v272
    %1667 = vmatprep.subr.mxu0 %v269
    %1668 = vmatpush1.msra.mxu0 %v268
    %1669 = vmatprep.subr.mxu0 %v265
    %1670 = vmatpush1.msra.mxu0 %v264
    %1671 = vmatprep.subr.mxu0 %v261
    %1672 = vmatpush1.msra.mxu0 %v260
    %1673 = vmatprep.subr.mxu0 %v257
    %1674 = vmatpush1.msra.mxu0 %v256
    %1675 = vmatprep.subr.mxu0 %v253
    %1676 = vmatpush1.msra.mxu0 %v252
    %1677 = vmatprep.subr.mxu0 %v249
    %1678 = vmatpush1.msra.mxu0 %v248
    %1679 = vmatprep.subr.mxu0 %v245
    %1680 = vmatpush1.msra.mxu0 %v244
    %1681 = vmatprep.subr.mxu0 0.0
    %1682 = vmatpush2.msra.mxu0 0.0
    %1683 = vmatprep.subr.mxu0 0.0
    %1684 = vmatpush2.msra.mxu0 0.0
    %1685 = vmatprep.subr.mxu0 0.0
    %1686 = vmatpush2.msra.mxu0 0.0
    %1687 = vmatprep.subr.mxu0 0.0
    %1688 = vmatpush2.msra.mxu0 0.0
    %1689 = vmatprep.subr.mxu0 0.0
    %1690 = vmatpush2.msra.mxu0 0.0
    %1691 = vmatprep.subr.mxu0 0.0
    %1692 = vmatpush2.msra.mxu0 0.0
    %1693 = vmatprep.subr.mxu0 0.0
    %1694 = vmatpush2.msra.mxu0 0.0
    %1695 = vmatprep.subr.mxu0 0.0
    %1696 = vmatpush2.msra.mxu0 0.0
    %1697 = vmatprep.subr.mxu0 0.0
    %1698 = vmatpush2.msra.mxu0 0.0
    %1699 = vmatprep.subr.mxu0 0.0
    %1700 = vmatpush2.msra.mxu0 0.0
    %1701 = vmatprep.subr.mxu0 0.0
    %1702 = vmatpush2.msra.mxu0 0.0
    %1703 = vmatprep.subr.mxu0 0.0
    %1704 = vmatpush2.msra.mxu0 0.0
    %1705 = vmatprep.subr.mxu0 0.0
    %1706 = vmatpush2.msra.mxu0 0.0
    %1707 = vmatprep.subr.mxu0 0.0
    %1708 = vmatpush2.msra.mxu0 0.0
    %1709 = vmatprep.subr.mxu0 0.0
    %1710 = vmatpush2.msra.mxu0 0.0
    %1711 = vmatprep.subr.mxu0 0.0
    %1712 = vmatpush2.msra.mxu0 0.0
    %1713 = vmatprep.mubr.f32.mxu0 0.0
    %1714 = vmatmul.mubr.f32.gmra.mxu0 %v1634
    %v1715 = vpop.f32.mrf.mxu0
    %v1716 = vadd.f32 0.0, %v1715
    %v1717 = vpop.f32.mrf.mxu0
    %v1718 = vadd.f32 0.0, %v1717
    %1719 = vdwg.mxu0
    %1720 = vmatprep.subr.mxu0 %v307
    %1721 = vmatpush1.msra.mxu0 %v306
    %1722 = vmatprep.subr.mxu0 %v303
    %1723 = vmatpush1.msra.mxu0 %v302
    %1724 = vmatprep.subr.mxu0 %v299
    %1725 = vmatpush1.msra.mxu0 %v298
    %1726 = vmatprep.subr.mxu0 %v295
    %1727 = vmatpush1.msra.mxu0 %v294
    %1728 = vmatprep.subr.mxu0 %v291
    %1729 = vmatpush1.msra.mxu0 %v290
    %1730 = vmatprep.subr.mxu0 %v287
    %1731 = vmatpush1.msra.mxu0 %v286
    %1732 = vmatprep.subr.mxu0 %v283
    %1733 = vmatpush1.msra.mxu0 %v282
    %1734 = vmatprep.subr.mxu0 %v279
    %1735 = vmatpush1.msra.mxu0 %v278
    %1736 = vmatprep.subr.mxu0 %v275
    %1737 = vmatpush1.msra.mxu0 %v274
    %1738 = vmatprep.subr.mxu0 %v271
    %1739 = vmatpush1.msra.mxu0 %v270
    %1740 = vmatprep.subr.mxu0 %v267
    %1741 = vmatpush1.msra.mxu0 %v266
    %1742 = vmatprep.subr.mxu0 %v263
    %1743 = vmatpush1.msra.mxu0 %v262
    %1744 = vmatprep.subr.mxu0 %v259
    %1745 = vmatpush1.msra.mxu0 %v258
    %1746 = vmatprep.subr.mxu0 %v255
    %1747 = vmatpush1.msra.mxu0 %v254
    %1748 = vmatprep.subr.mxu0 %v251
    %1749 = vmatpush1.msra.mxu0 %v250
    %1750 = vmatprep.subr.mxu0 %v247
    %1751 = vmatpush1.msra.mxu0 %v246
    %1752 = vmatprep.subr.mxu0 0.0
    %1753 = vmatpush2.msra.mxu0 0.0
    %1754 = vmatprep.subr.mxu0 0.0
    %1755 = vmatpush2.msra.mxu0 0.0
    %1756 = vmatprep.subr.mxu0 0.0
    %1757 = vmatpush2.msra.mxu0 0.0
    %1758 = vmatprep.subr.mxu0 0.0
    %1759 = vmatpush2.msra.mxu0 0.0
    %1760 = vmatprep.subr.mxu0 0.0
    %1761 = vmatpush2.msra.mxu0 0.0
    %1762 = vmatprep.subr.mxu0 0.0
    %1763 = vmatpush2.msra.mxu0 0.0
    %1764 = vmatprep.subr.mxu0 0.0
    %1765 = vmatpush2.msra.mxu0 0.0
    %1766 = vmatprep.subr.mxu0 0.0
    %1767 = vmatpush2.msra.mxu0 0.0
    %1768 = vmatprep.subr.mxu0 0.0
    %1769 = vmatpush2.msra.mxu0 0.0
    %1770 = vmatprep.subr.mxu0 0.0
    %1771 = vmatpush2.msra.mxu0 0.0
    %1772 = vmatprep.subr.mxu0 0.0
    %1773 = vmatpush2.msra.mxu0 0.0
    %1774 = vmatprep.subr.mxu0 0.0
    %1775 = vmatpush2.msra.mxu0 0.0
    %1776 = vmatprep.subr.mxu0 0.0
    %1777 = vmatpush2.msra.mxu0 0.0
    %1778 = vmatprep.subr.mxu0 0.0
    %1779 = vmatpush2.msra.mxu0 0.0
    %1780 = vmatprep.subr.mxu0 0.0
    %1781 = vmatpush2.msra.mxu0 0.0
    %1782 = vmatprep.subr.mxu0 0.0
    %1783 = vmatpush2.msra.mxu0 0.0
    %1784 = vmatprep.mubr.f32.mxu0 0.0
    %1785 = vmatmul.mubr.f32.gmra.mxu0 %v1634
    %v1786 = vpop.f32.mrf.mxu0
    %v1787 = vadd.f32 0.0, %v1786
    %v1788 = vpop.f32.mrf.mxu0
    %v1789 = vadd.f32 0.0, %v1788
    %1790 = vdwg.mxu0
    %v1791 = vadd.f32 %v1645, %v1716
    %v1792 = vadd.f32 %v1646, %v1718
    %v1793 = vadd.f32 %v1647, %v1787
    %v1794 = vadd.f32 %v1648, %v1789
    %v1795 = vmul.f32 %v1791, 0.5
    %v1796 = vmul.f32 %v1792, 0.5
    %v1797 = vmul.f32 %v1793, 0.5
    %v1798 = vmul.f32 %v1794, 0.5
    %v1799 = vsel %vm848, %v1791, %v1795
    %v1800 = vsel %vm849, %v1792, %v1796
    %v1801 = vsel %vm850, %v1793, %v1797
    %v1802 = vsel %vm851, %v1794, %v1798
    %v1803 = vtanh.pop %v1799
    %v1804 = vtanh.pop %v1800
    %v1805 = vtanh.pop %v1801
    %v1806 = vtanh.pop %v1802
    %v1807 = vmul.f32 %v1803, 0.5
    %v1808 = vmul.f32 %v1804, 0.5
    %v1809 = vmul.f32 %v1805, 0.5
    %v1810 = vmul.f32 %v1806, 0.5
    %v1811 = vadd.f32 %v1807, 0.5
    %v1812 = vadd.f32 %v1808, 0.5
    %v1813 = vadd.f32 %v1809, 0.5
    %v1814 = vadd.f32 %v1810, 0.5
    %v1815 = vsel %vm848, %v1803, %v1811
    %v1816 = vsel %vm849, %v1804, %v1812
    %v1817 = vsel %vm850, %v1805, %v1813
    %v1818 = vsel %vm851, %v1806, %v1814
    %v1819 = vmul.f32 %v1816, %v1632
    %v1820 = vmul.f32 %v1815, %v1818
    %v1821 = vadd.f32 %v1819, %v1820
    %v1822 = vtanh.pop %v1821
    %v1823 = vmul.f32 %v1817, %v1822
    %1824 = vst.msk [vmem:[#allocation3 + $0x28] sm:$0xff] %vm877, %v1823
    %1825 = vst.msk [vmem:[#allocation3 + $0x10] sm:$0xff] %vm879, %v1823
    %v1826 = vld [vmem:[#allocation2 + $0xc0] sm:$0xff]
    %v1827 = vld [vmem:[#allocation2 + $0xc8] sm:$0xff]
    %v1828 = vld [vmem:[#allocation2 + $0xd0] sm:$0xff]
    %v1829 = vld [vmem:[#allocation2 + $0xd8] sm:$0xff]
    %v1830 = vld [vmem:[#allocation2 + $0x20] sm:$0xff]
    %v1831 = vld [vmem:[#allocation2 + $0x28] sm:$0xff]
    %v1832 = vld [vmem:[#allocation2 + $0x30] sm:$0xff]
    %v1833 = vld [vmem:[#allocation2 + $0x38] sm:$0xff]
    %v1834 = vsel %vm686, %v1826, %v1830
    %v1835 = vsel %vm687, %v1827, %v1831
    %v1836 = vsel %vm688, %v1828, %v1832
    %v1837 = vsel %vm689, %v1829, %v1833
    %1838 = vmatprep.subr.mxu0 %v305
    %1839 = vmatpush1.msra.mxu0 %v304
    %1840 = vmatprep.subr.mxu0 %v301
    %1841 = vmatpush1.msra.mxu0 %v300
    %1842 = vmatprep.subr.mxu0 %v297
    %1843 = vmatpush1.msra.mxu0 %v296
    %1844 = vmatprep.subr.mxu0 %v293
    %1845 = vmatpush1.msra.mxu0 %v292
    %1846 = vmatprep.subr.mxu0 %v289
    %1847 = vmatpush1.msra.mxu0 %v288
    %1848 = vmatprep.subr.mxu0 %v285
    %1849 = vmatpush1.msra.mxu0 %v284
    %1850 = vmatprep.subr.mxu0 %v281
    %1851 = vmatpush1.msra.mxu0 %v280
    %1852 = vmatprep.subr.mxu0 %v277
    %1853 = vmatpush1.msra.mxu0 %v276
    %1854 = vmatprep.subr.mxu0 %v273
    %1855 = vmatpush1.msra.mxu0 %v272
    %1856 = vmatprep.subr.mxu0 %v269
    %1857 = vmatpush1.msra.mxu0 %v268
    %1858 = vmatprep.subr.mxu0 %v265
    %1859 = vmatpush1.msra.mxu0 %v264
    %1860 = vmatprep.subr.mxu0 %v261
    %1861 = vmatpush1.msra.mxu0 %v260
    %1862 = vmatprep.subr.mxu0 %v257
    %1863 = vmatpush1.msra.mxu0 %v256
    %1864 = vmatprep.subr.mxu0 %v253
    %1865 = vmatpush1.msra.mxu0 %v252
    %1866 = vmatprep.subr.mxu0 %v249
    %1867 = vmatpush1.msra.mxu0 %v248
    %1868 = vmatprep.subr.mxu0 %v245
    %1869 = vmatpush1.msra.mxu0 %v244
    %1870 = vmatprep.subr.mxu0 0.0
    %1871 = vmatpush2.msra.mxu0 0.0
    %1872 = vmatprep.subr.mxu0 0.0
    %1873 = vmatpush2.msra.mxu0 0.0
    %1874 = vmatprep.subr.mxu0 0.0
    %1875 = vmatpush2.msra.mxu0 0.0
    %1876 = vmatprep.subr.mxu0 0.0
    %1877 = vmatpush2.msra.mxu0 0.0
    %1878 = vmatprep.subr.mxu0 0.0
    %1879 = vmatpush2.msra.mxu0 0.0
    %1880 = vmatprep.subr.mxu0 0.0
    %1881 = vmatpush2.msra.mxu0 0.0
    %1882 = vmatprep.subr.mxu0 0.0
    %1883 = vmatpush2.msra.mxu0 0.0
    %1884 = vmatprep.subr.mxu0 0.0
    %1885 = vmatpush2.msra.mxu0 0.0
    %1886 = vmatprep.subr.mxu0 0.0
    %1887 = vmatpush2.msra.mxu0 0.0
    %1888 = vmatprep.subr.mxu0 0.0
    %1889 = vmatpush2.msra.mxu0 0.0
    %1890 = vmatprep.subr.mxu0 0.0
    %1891 = vmatpush2.msra.mxu0 0.0
    %1892 = vmatprep.subr.mxu0 0.0
    %1893 = vmatpush2.msra.mxu0 0.0
    %1894 = vmatprep.subr.mxu0 0.0
    %1895 = vmatpush2.msra.mxu0 0.0
    %1896 = vmatprep.subr.mxu0 0.0
    %1897 = vmatpush2.msra.mxu0 0.0
    %1898 = vmatprep.subr.mxu0 0.0
    %1899 = vmatpush2.msra.mxu0 0.0
    %1900 = vmatprep.subr.mxu0 0.0
    %1901 = vmatpush2.msra.mxu0 0.0
    %1902 = vmatprep.mubr.f32.mxu0 0.0
    %1903 = vmatmul.mubr.f32.gmra.mxu0 %v1823
    %v1904 = vpop.f32.mrf.mxu0
    %v1905 = vadd.f32 0.0, %v1904
    %v1906 = vpop.f32.mrf.mxu0
    %v1907 = vadd.f32 0.0, %v1906
    %1908 = vdwg.mxu0
    %1909 = vmatprep.subr.mxu0 %v307
    %1910 = vmatpush1.msra.mxu0 %v306
    %1911 = vmatprep.subr.mxu0 %v303
    %1912 = vmatpush1.msra.mxu0 %v302
    %1913 = vmatprep.subr.mxu0 %v299
    %1914 = vmatpush1.msra.mxu0 %v298
    %1915 = vmatprep.subr.mxu0 %v295
    %1916 = vmatpush1.msra.mxu0 %v294
    %1917 = vmatprep.subr.mxu0 %v291
    %1918 = vmatpush1.msra.mxu0 %v290
    %1919 = vmatprep.subr.mxu0 %v287
    %1920 = vmatpush1.msra.mxu0 %v286
    %1921 = vmatprep.subr.mxu0 %v283
    %1922 = vmatpush1.msra.mxu0 %v282
    %1923 = vmatprep.subr.mxu0 %v279
    %1924 = vmatpush1.msra.mxu0 %v278
    %1925 = vmatprep.subr.mxu0 %v275
    %1926 = vmatpush1.msra.mxu0 %v274
    %1927 = vmatprep.subr.mxu0 %v271
    %1928 = vmatpush1.msra.mxu0 %v270
    %1929 = vmatprep.subr.mxu0 %v267
    %1930 = vmatpush1.msra.mxu0 %v266
    %1931 = vmatprep.subr.mxu0 %v263
    %1932 = vmatpush1.msra.mxu0 %v262
    %1933 = vmatprep.subr.mxu0 %v259
    %1934 = vmatpush1.msra.mxu0 %v258
    %1935 = vmatprep.subr.mxu0 %v255
    %1936 = vmatpush1.msra.mxu0 %v254
    %1937 = vmatprep.subr.mxu0 %v251
    %1938 = vmatpush1.msra.mxu0 %v250
    %1939 = vmatprep.subr.mxu0 %v247
    %1940 = vmatpush1.msra.mxu0 %v246
    %1941 = vmatprep.subr.mxu0 0.0
    %1942 = vmatpush2.msra.mxu0 0.0
    %1943 = vmatprep.subr.mxu0 0.0
    %1944 = vmatpush2.msra.mxu0 0.0
    %1945 = vmatprep.subr.mxu0 0.0
    %1946 = vmatpush2.msra.mxu0 0.0
    %1947 = vmatprep.subr.mxu0 0.0
    %1948 = vmatpush2.msra.mxu0 0.0
    %1949 = vmatprep.subr.mxu0 0.0
    %1950 = vmatpush2.msra.mxu0 0.0
    %1951 = vmatprep.subr.mxu0 0.0
    %1952 = vmatpush2.msra.mxu0 0.0
    %1953 = vmatprep.subr.mxu0 0.0
    %1954 = vmatpush2.msra.mxu0 0.0
    %1955 = vmatprep.subr.mxu0 0.0
    %1956 = vmatpush2.msra.mxu0 0.0
    %1957 = vmatprep.subr.mxu0 0.0
    %1958 = vmatpush2.msra.mxu0 0.0
    %1959 = vmatprep.subr.mxu0 0.0
    %1960 = vmatpush2.msra.mxu0 0.0
    %1961 = vmatprep.subr.mxu0 0.0
    %1962 = vmatpush2.msra.mxu0 0.0
    %1963 = vmatprep.subr.mxu0 0.0
    %1964 = vmatpush2.msra.mxu0 0.0
    %1965 = vmatprep.subr.mxu0 0.0
    %1966 = vmatpush2.msra.mxu0 0.0
    %1967 = vmatprep.subr.mxu0 0.0
    %1968 = vmatpush2.msra.mxu0 0.0
    %1969 = vmatprep.subr.mxu0 0.0
    %1970 = vmatpush2.msra.mxu0 0.0
    %1971 = vmatprep.subr.mxu0 0.0
    %1972 = vmatpush2.msra.mxu0 0.0
    %1973 = vmatprep.mubr.f32.mxu0 0.0
    %1974 = vmatmul.mubr.f32.gmra.mxu0 %v1823
    %v1975 = vpop.f32.mrf.mxu0
    %v1976 = vadd.f32 0.0, %v1975
    %v1977 = vpop.f32.mrf.mxu0
    %v1978 = vadd.f32 0.0, %v1977
    %1979 = vdwg.mxu0
    %v1980 = vadd.f32 %v1834, %v1905
    %v1981 = vadd.f32 %v1835, %v1907
    %v1982 = vadd.f32 %v1836, %v1976
    %v1983 = vadd.f32 %v1837, %v1978
    %v1984 = vmul.f32 %v1980, 0.5
    %v1985 = vmul.f32 %v1981, 0.5
    %v1986 = vmul.f32 %v1982, 0.5
    %v1987 = vmul.f32 %v1983, 0.5
    %v1988 = vsel %vm848, %v1980, %v1984
    %v1989 = vsel %vm849, %v1981, %v1985
    %v1990 = vsel %vm850, %v1982, %v1986
    %v1991 = vsel %vm851, %v1983, %v1987
    %v1992 = vtanh.pop %v1988
    %v1993 = vtanh.pop %v1989
    %v1994 = vtanh.pop %v1990
    %v1995 = vtanh.pop %v1991
    %v1996 = vmul.f32 %v1992, 0.5
    %v1997 = vmul.f32 %v1993, 0.5
    %v1998 = vmul.f32 %v1994, 0.5
    %v1999 = vmul.f32 %v1995, 0.5
    %v2000 = vadd.f32 %v1996, 0.5
    %v2001 = vadd.f32 %v1997, 0.5
    %v2002 = vadd.f32 %v1998, 0.5
    %v2003 = vadd.f32 %v1999, 0.5
    %v2004 = vsel %vm848, %v1992, %v2000
    %v2005 = vsel %vm849, %v1993, %v2001
    %v2006 = vsel %vm850, %v1994, %v2002
    %v2007 = vsel %vm851, %v1995, %v2003
    %v2008 = vmul.f32 %v2005, %v1821
    %v2009 = vmul.f32 %v2004, %v2007
    %v2010 = vadd.f32 %v2008, %v2009
    %v2011 = vtanh.pop %v2010
    %v2012 = vmul.f32 %v2006, %v2011
    %2013 = vst.msk [vmem:[#allocation3 + $0x30] sm:$0xff] %vm877, %v2012
    %2014 = vst.msk [vmem:[#allocation3 + $0x8] sm:$0xff] %vm879, %v2012
    %v2015 = vld [vmem:[#allocation2 + $0xe0] sm:$0xff]
    %v2016 = vld [vmem:[#allocation2 + $0xe8] sm:$0xff]
    %v2017 = vld [vmem:[#allocation2 + $0xf0] sm:$0xff]
    %v2018 = vld [vmem:[#allocation2 + $0xf8] sm:$0xff]
    %v2019 = vld [vmem:[#allocation2] sm:$0xff]
    %v2020 = vld [vmem:[#allocation2 + $0x8] sm:$0xff]
    %v2021 = vld [vmem:[#allocation2 + $0x10] sm:$0xff]
    %v2022 = vld [vmem:[#allocation2 + $0x18] sm:$0xff]
    %v2023 = vsel %vm686, %v2015, %v2019
    %v2024 = vsel %vm687, %v2016, %v2020
    %v2025 = vsel %vm688, %v2017, %v2021
    %v2026 = vsel %vm689, %v2018, %v2022
    %2027 = vmatprep.subr.mxu0 %v305
    %2028 = vmatpush1.msra.mxu0 %v304
    %2029 = vmatprep.subr.mxu0 %v301
    %2030 = vmatpush1.msra.mxu0 %v300
    %2031 = vmatprep.subr.mxu0 %v297
    %2032 = vmatpush1.msra.mxu0 %v296
    %2033 = vmatprep.subr.mxu0 %v293
    %2034 = vmatpush1.msra.mxu0 %v292
    %2035 = vmatprep.subr.mxu0 %v289
    %2036 = vmatpush1.msra.mxu0 %v288
    %2037 = vmatprep.subr.mxu0 %v285
    %2038 = vmatpush1.msra.mxu0 %v284
    %2039 = vmatprep.subr.mxu0 %v281
    %2040 = vmatpush1.msra.mxu0 %v280
    %2041 = vmatprep.subr.mxu0 %v277
    %2042 = vmatpush1.msra.mxu0 %v276
    %2043 = vmatprep.subr.mxu0 %v273
    %2044 = vmatpush1.msra.mxu0 %v272
    %2045 = vmatprep.subr.mxu0 %v269
    %2046 = vmatpush1.msra.mxu0 %v268
    %2047 = vmatprep.subr.mxu0 %v265
    %2048 = vmatpush1.msra.mxu0 %v264
    %2049 = vmatprep.subr.mxu0 %v261
    %2050 = vmatpush1.msra.mxu0 %v260
    %2051 = vmatprep.subr.mxu0 %v257
    %2052 = vmatpush1.msra.mxu0 %v256
    %2053 = vmatprep.subr.mxu0 %v253
    %2054 = vmatpush1.msra.mxu0 %v252
    %2055 = vmatprep.subr.mxu0 %v249
    %2056 = vmatpush1.msra.mxu0 %v248
    %2057 = vmatprep.subr.mxu0 %v245
    %2058 = vmatpush1.msra.mxu0 %v244
    %2059 = vmatprep.subr.mxu0 0.0
    %2060 = vmatpush2.msra.mxu0 0.0
    %2061 = vmatprep.subr.mxu0 0.0
    %2062 = vmatpush2.msra.mxu0 0.0
    %2063 = vmatprep.subr.mxu0 0.0
    %2064 = vmatpush2.msra.mxu0 0.0
    %2065 = vmatprep.subr.mxu0 0.0
    %2066 = vmatpush2.msra.mxu0 0.0
    %2067 = vmatprep.subr.mxu0 0.0
    %2068 = vmatpush2.msra.mxu0 0.0
    %2069 = vmatprep.subr.mxu0 0.0
    %2070 = vmatpush2.msra.mxu0 0.0
    %2071 = vmatprep.subr.mxu0 0.0
    %2072 = vmatpush2.msra.mxu0 0.0
    %2073 = vmatprep.subr.mxu0 0.0
    %2074 = vmatpush2.msra.mxu0 0.0
    %2075 = vmatprep.subr.mxu0 0.0
    %2076 = vmatpush2.msra.mxu0 0.0
    %2077 = vmatprep.subr.mxu0 0.0
    %2078 = vmatpush2.msra.mxu0 0.0
    %2079 = vmatprep.subr.mxu0 0.0
    %2080 = vmatpush2.msra.mxu0 0.0
    %2081 = vmatprep.subr.mxu0 0.0
    %2082 = vmatpush2.msra.mxu0 0.0
    %2083 = vmatprep.subr.mxu0 0.0
    %2084 = vmatpush2.msra.mxu0 0.0
    %2085 = vmatprep.subr.mxu0 0.0
    %2086 = vmatpush2.msra.mxu0 0.0
    %2087 = vmatprep.subr.mxu0 0.0
    %2088 = vmatpush2.msra.mxu0 0.0
    %2089 = vmatprep.subr.mxu0 0.0
    %2090 = vmatpush2.msra.mxu0 0.0
    %2091 = vmatprep.mubr.f32.mxu0 0.0
    %2092 = vmatmul.mubr.f32.gmra.mxu0 %v2012
    %v2093 = vpop.f32.mrf.mxu0
    %v2094 = vadd.f32 0.0, %v2093
    %v2095 = vpop.f32.mrf.mxu0
    %v2096 = vadd.f32 0.0, %v2095
    %2097 = vdwg.mxu0
    %2098 = vmatprep.subr.mxu0 %v307
    %2099 = vmatpush1.msra.mxu0 %v306
    %2100 = vmatprep.subr.mxu0 %v303
    %2101 = vmatpush1.msra.mxu0 %v302
    %2102 = vmatprep.subr.mxu0 %v299
    %2103 = vmatpush1.msra.mxu0 %v298
    %2104 = vmatprep.subr.mxu0 %v295
    %2105 = vmatpush1.msra.mxu0 %v294
    %2106 = vmatprep.subr.mxu0 %v291
    %2107 = vmatpush1.msra.mxu0 %v290
    %2108 = vmatprep.subr.mxu0 %v287
    %2109 = vmatpush1.msra.mxu0 %v286
    %2110 = vmatprep.subr.mxu0 %v283
    %2111 = vmatpush1.msra.mxu0 %v282
    %2112 = vmatprep.subr.mxu0 %v279
    %2113 = vmatpush1.msra.mxu0 %v278
    %2114 = vmatprep.subr.mxu0 %v275
    %2115 = vmatpush1.msra.mxu0 %v274
    %2116 = vmatprep.subr.mxu0 %v271
    %2117 = vmatpush1.msra.mxu0 %v270
    %2118 = vmatprep.subr.mxu0 %v267
    %2119 = vmatpush1.msra.mxu0 %v266
    %2120 = vmatprep.subr.mxu0 %v263
    %2121 = vmatpush1.msra.mxu0 %v262
    %2122 = vmatprep.subr.mxu0 %v259
    %2123 = vmatpush1.msra.mxu0 %v258
    %2124 = vmatprep.subr.mxu0 %v255
    %2125 = vmatpush1.msra.mxu0 %v254
    %2126 = vmatprep.subr.mxu0 %v251
    %2127 = vmatpush1.msra.mxu0 %v250
    %2128 = vmatprep.subr.mxu0 %v247
    %2129 = vmatpush1.msra.mxu0 %v246
    %2130 = vmatprep.subr.mxu0 0.0
    %2131 = vmatpush2.msra.mxu0 0.0
    %2132 = vmatprep.subr.mxu0 0.0
    %2133 = vmatpush2.msra.mxu0 0.0
    %2134 = vmatprep.subr.mxu0 0.0
    %2135 = vmatpush2.msra.mxu0 0.0
    %2136 = vmatprep.subr.mxu0 0.0
    %2137 = vmatpush2.msra.mxu0 0.0
    %2138 = vmatprep.subr.mxu0 0.0
    %2139 = vmatpush2.msra.mxu0 0.0
    %2140 = vmatprep.subr.mxu0 0.0
    %2141 = vmatpush2.msra.mxu0 0.0
    %2142 = vmatprep.subr.mxu0 0.0
    %2143 = vmatpush2.msra.mxu0 0.0
    %2144 = vmatprep.subr.mxu0 0.0
    %2145 = vmatpush2.msra.mxu0 0.0
    %2146 = vmatprep.subr.mxu0 0.0
    %2147 = vmatpush2.msra.mxu0 0.0
    %2148 = vmatprep.subr.mxu0 0.0
    %2149 = vmatpush2.msra.mxu0 0.0
    %2150 = vmatprep.subr.mxu0 0.0
    %2151 = vmatpush2.msra.mxu0 0.0
    %2152 = vmatprep.subr.mxu0 0.0
    %2153 = vmatpush2.msra.mxu0 0.0
    %2154 = vmatprep.subr.mxu0 0.0
    %2155 = vmatpush2.msra.mxu0 0.0
    %2156 = vmatprep.subr.mxu0 0.0
    %2157 = vmatpush2.msra.mxu0 0.0
    %2158 = vmatprep.subr.mxu0 0.0
    %2159 = vmatpush2.msra.mxu0 0.0
    %2160 = vmatprep.subr.mxu0 0.0
    %2161 = vmatpush2.msra.mxu0 0.0
    %2162 = vmatprep.mubr.f32.mxu0 0.0
    %2163 = vmatmul.mubr.f32.gmra.mxu0 %v2012
    %v2164 = vpop.f32.mrf.mxu0
    %v2165 = vadd.f32 0.0, %v2164
    %v2166 = vpop.f32.mrf.mxu0
    %v2167 = vadd.f32 0.0, %v2166
    %2168 = vdwg.mxu0
    %v2169 = vadd.f32 %v2023, %v2094
    %v2170 = vadd.f32 %v2024, %v2096
    %v2171 = vadd.f32 %v2025, %v2165
    %v2172 = vadd.f32 %v2026, %v2167
    %v2173 = vmul.f32 %v2169, 0.5
    %v2174 = vmul.f32 %v2170, 0.5
    %v2175 = vmul.f32 %v2171, 0.5
    %v2176 = vmul.f32 %v2172, 0.5
    %v2177 = vsel %vm848, %v2169, %v2173
    %v2178 = vsel %vm849, %v2170, %v2174
    %v2179 = vsel %vm850, %v2171, %v2175
    %v2180 = vsel %vm851, %v2172, %v2176
    %v2181 = vtanh.pop %v2177
    %v2182 = vtanh.pop %v2178
    %v2183 = vtanh.pop %v2179
    %v2184 = vtanh.pop %v2180
    %v2185 = vmul.f32 %v2181, 0.5
    %v2186 = vmul.f32 %v2182, 0.5
    %v2187 = vmul.f32 %v2183, 0.5
    %v2188 = vmul.f32 %v2184, 0.5
    %v2189 = vadd.f32 %v2185, 0.5
    %v2190 = vadd.f32 %v2186, 0.5
    %v2191 = vadd.f32 %v2187, 0.5
    %v2192 = vadd.f32 %v2188, 0.5
    %v2193 = vsel %vm848, %v2181, %v2189
    %v2194 = vsel %vm849, %v2182, %v2190
    %v2195 = vsel %vm850, %v2183, %v2191
    %v2196 = vsel %vm851, %v2184, %v2192
    %v2197 = vmul.f32 %v2194, %v2010
    %v2198 = vmul.f32 %v2193, %v2196
    %v2199 = vadd.f32 %v2197, %v2198
    %v2200 = vtanh.pop %v2199
    %v2201 = vmul.f32 %v2195, %v2200
    %2202 = vst.msk [vmem:[#allocation3 + $0x38] sm:$0xff] %vm877, %v2201
    %2203 = vst.msk [vmem:[#allocation3] sm:$0xff] %vm879, %v2201
    %v2204 = vld [vmem:[#allocation3] sm:$0xff]
    %v2205 = vld [vmem:[#allocation3 + $0x8] sm:$0xff]
    %v2206 = vld [vmem:[#allocation3 + $0x10] sm:$0xff]
    %v2207 = vld [vmem:[#allocation3 + $0x18] sm:$0xff]
    %v2208 = vld [vmem:[#allocation3 + $0x20] sm:$0xff]
    %v2209 = vld [vmem:[#allocation3 + $0x28] sm:$0xff]
    %v2210 = vld [vmem:[#allocation3 + $0x30] sm:$0xff]
    %v2211 = vld [vmem:[#allocation3 + $0x38] sm:$0xff]
    %v2212 = vld [vmem:[#allocation5] sm:$0xff]
    %v2213 = vld [vmem:[#allocation5 + $0x8] sm:$0xff]
    %v2214 = vld [vmem:[#allocation5 + $0x10] sm:$0xff]
    %v2215 = vld [vmem:[#allocation5 + $0x18] sm:$0xff]
    %v2216 = vld [vmem:[#allocation5 + $0x20] sm:$0xff]
    %v2217 = vld [vmem:[#allocation5 + $0x28] sm:$0xff]
    %v2218 = vld [vmem:[#allocation5 + $0x30] sm:$0xff]
    %v2219 = vld [vmem:[#allocation5 + $0x38] sm:$0xff]
    %v2220 = vld [vmem:[#allocation5 + $0x40] sm:$0xff]
    %v2221 = vld [vmem:[#allocation5 + $0x48] sm:$0xff]
    %v2222 = vld [vmem:[#allocation5 + $0x50] sm:$0xff]
    %v2223 = vld [vmem:[#allocation5 + $0x58] sm:$0xff]
    %v2224 = vld [vmem:[#allocation5 + $0x60] sm:$0xff]
    %v2225 = vld [vmem:[#allocation5 + $0x68] sm:$0xff]
    %v2226 = vld [vmem:[#allocation5 + $0x70] sm:$0xff]
    %v2227 = vld [vmem:[#allocation5 + $0x78] sm:$0xff]
    %v2228 = vld [vmem:[#allocation5 + $0x80] sm:$0xff]
    %v2229 = vld [vmem:[#allocation5 + $0x88] sm:$0xff]
    %v2230 = vld [vmem:[#allocation5 + $0x90] sm:$0xff]
    %v2231 = vld [vmem:[#allocation5 + $0x98] sm:$0xff]
    %v2232 = vld [vmem:[#allocation5 + $0xa0] sm:$0xff]
    %v2233 = vld [vmem:[#allocation5 + $0xa8] sm:$0xff]
    %v2234 = vld [vmem:[#allocation5 + $0xb0] sm:$0xff]
    %v2235 = vld [vmem:[#allocation5 + $0xb8] sm:$0xff]
    %v2236 = vld [vmem:[#allocation5 + $0xc0] sm:$0xff]
    %v2237 = vld [vmem:[#allocation5 + $0xc8] sm:$0xff]
    %v2238 = vld [vmem:[#allocation5 + $0xd0] sm:$0xff]
    %v2239 = vld [vmem:[#allocation5 + $0xd8] sm:$0xff]
    %v2240 = vld [vmem:[#allocation5 + $0xe0] sm:$0xff]
    %v2241 = vld [vmem:[#allocation5 + $0xe8] sm:$0xff]
    %v2242 = vld [vmem:[#allocation5 + $0xf0] sm:$0xff]
    %v2243 = vld [vmem:[#allocation5 + $0xf8] sm:$0xff]
    %v2244 = vld [vmem:[#allocation5 + $0x100] sm:$0xff]
    %v2245 = vld [vmem:[#allocation5 + $0x108] sm:$0xff]
    %v2246 = vld [vmem:[#allocation5 + $0x110] sm:$0xff]
    %v2247 = vld [vmem:[#allocation5 + $0x118] sm:$0xff]
    %v2248 = vld [vmem:[#allocation5 + $0x120] sm:$0xff]
    %v2249 = vld [vmem:[#allocation5 + $0x128] sm:$0xff]
    %v2250 = vld [vmem:[#allocation5 + $0x130] sm:$0xff]
    %v2251 = vld [vmem:[#allocation5 + $0x138] sm:$0xff]
    %v2252 = vld [vmem:[#allocation5 + $0x140] sm:$0xff]
    %v2253 = vld [vmem:[#allocation5 + $0x148] sm:$0xff]
    %v2254 = vld [vmem:[#allocation5 + $0x150] sm:$0xff]
    %v2255 = vld [vmem:[#allocation5 + $0x158] sm:$0xff]
    %v2256 = vld [vmem:[#allocation5 + $0x160] sm:$0xff]
    %v2257 = vld [vmem:[#allocation5 + $0x168] sm:$0xff]
    %v2258 = vld [vmem:[#allocation5 + $0x170] sm:$0xff]
    %v2259 = vld [vmem:[#allocation5 + $0x178] sm:$0xff]
    %v2260 = vld [vmem:[#allocation5 + $0x180] sm:$0xff]
    %v2261 = vld [vmem:[#allocation5 + $0x188] sm:$0xff]
    %v2262 = vld [vmem:[#allocation5 + $0x190] sm:$0xff]
    %v2263 = vld [vmem:[#allocation5 + $0x198] sm:$0xff]
    %v2264 = vld [vmem:[#allocation5 + $0x1a0] sm:$0xff]
    %v2265 = vld [vmem:[#allocation5 + $0x1a8] sm:$0xff]
    %v2266 = vld [vmem:[#allocation5 + $0x1b0] sm:$0xff]
    %v2267 = vld [vmem:[#allocation5 + $0x1b8] sm:$0xff]
    %v2268 = vld [vmem:[#allocation5 + $0x1c0] sm:$0xff]
    %v2269 = vld [vmem:[#allocation5 + $0x1c8] sm:$0xff]
    %v2270 = vld [vmem:[#allocation5 + $0x1d0] sm:$0xff]
    %v2271 = vld [vmem:[#allocation5 + $0x1d8] sm:$0xff]
    %v2272 = vld [vmem:[#allocation5 + $0x1e0] sm:$0xff]
    %v2273 = vld [vmem:[#allocation5 + $0x1e8] sm:$0xff]
    %v2274 = vld [vmem:[#allocation5 + $0x1f0] sm:$0xff]
    %v2275 = vld [vmem:[#allocation5 + $0x1f8] sm:$0xff]
    %v2276 = vld [vmem:[#allocation7] sm:$0xff]
    %v2277 = vld [vmem:[#allocation7 + $0x8] sm:$0xff]
    %v2278 = vld [vmem:[#allocation7 + $0x10] sm:$0xff]
    %v2279 = vld [vmem:[#allocation7 + $0x18] sm:$0xff]
    %v2280 = vld [vmem:[#allocation7 + $0x20] sm:$0xff]
    %v2281 = vld [vmem:[#allocation7 + $0x28] sm:$0xff]
    %v2282 = vld [vmem:[#allocation7 + $0x30] sm:$0xff]
    %v2283 = vld [vmem:[#allocation7 + $0x38] sm:$0xff]
    %v2284 = vld [vmem:[#allocation7 + $0x40] sm:$0xff]
    %v2285 = vld [vmem:[#allocation7 + $0x48] sm:$0xff]
    %v2286 = vld [vmem:[#allocation7 + $0x50] sm:$0xff]
    %v2287 = vld [vmem:[#allocation7 + $0x58] sm:$0xff]
    %v2288 = vld [vmem:[#allocation7 + $0x60] sm:$0xff]
    %v2289 = vld [vmem:[#allocation7 + $0x68] sm:$0xff]
    %v2290 = vld [vmem:[#allocation7 + $0x70] sm:$0xff]
    %v2291 = vld [vmem:[#allocation7 + $0x78] sm:$0xff]
    %v2292 = vld [vmem:[#allocation7 + $0x80] sm:$0xff]
    %v2293 = vld [vmem:[#allocation7 + $0x88] sm:$0xff]
    %v2294 = vld [vmem:[#allocation7 + $0x90] sm:$0xff]
    %v2295 = vld [vmem:[#allocation7 + $0x98] sm:$0xff]
    %v2296 = vld [vmem:[#allocation7 + $0xa0] sm:$0xff]
    %v2297 = vld [vmem:[#allocation7 + $0xa8] sm:$0xff]
    %v2298 = vld [vmem:[#allocation7 + $0xb0] sm:$0xff]
    %v2299 = vld [vmem:[#allocation7 + $0xb8] sm:$0xff]
    %v2300 = vld [vmem:[#allocation7 + $0xc0] sm:$0xff]
    %v2301 = vld [vmem:[#allocation7 + $0xc8] sm:$0xff]
    %v2302 = vld [vmem:[#allocation7 + $0xd0] sm:$0xff]
    %v2303 = vld [vmem:[#allocation7 + $0xd8] sm:$0xff]
    %v2304 = vld [vmem:[#allocation7 + $0xe0] sm:$0xff]
    %v2305 = vld [vmem:[#allocation7 + $0xe8] sm:$0xff]
    %v2306 = vld [vmem:[#allocation7 + $0xf0] sm:$0xff]
    %v2307 = vld [vmem:[#allocation7 + $0xf8] sm:$0xff]
    %v2308 = vld [vmem:[#allocation7 + $0x100] sm:$0xff]
    %v2309 = vld [vmem:[#allocation7 + $0x108] sm:$0xff]
    %v2310 = vld [vmem:[#allocation7 + $0x110] sm:$0xff]
    %v2311 = vld [vmem:[#allocation7 + $0x118] sm:$0xff]
    %v2312 = vld [vmem:[#allocation7 + $0x120] sm:$0xff]
    %v2313 = vld [vmem:[#allocation7 + $0x128] sm:$0xff]
    %v2314 = vld [vmem:[#allocation7 + $0x130] sm:$0xff]
    %v2315 = vld [vmem:[#allocation7 + $0x138] sm:$0xff]
    %v2316 = vld [vmem:[#allocation7 + $0x140] sm:$0xff]
    %v2317 = vld [vmem:[#allocation7 + $0x148] sm:$0xff]
    %v2318 = vld [vmem:[#allocation7 + $0x150] sm:$0xff]
    %v2319 = vld [vmem:[#allocation7 + $0x158] sm:$0xff]
    %v2320 = vld [vmem:[#allocation7 + $0x160] sm:$0xff]
    %v2321 = vld [vmem:[#allocation7 + $0x168] sm:$0xff]
    %v2322 = vld [vmem:[#allocation7 + $0x170] sm:$0xff]
    %v2323 = vld [vmem:[#allocation7 + $0x178] sm:$0xff]
    %v2324 = vld [vmem:[#allocation7 + $0x180] sm:$0xff]
    %v2325 = vld [vmem:[#allocation7 + $0x188] sm:$0xff]
    %v2326 = vld [vmem:[#allocation7 + $0x190] sm:$0xff]
    %v2327 = vld [vmem:[#allocation7 + $0x198] sm:$0xff]
    %v2328 = vld [vmem:[#allocation7 + $0x1a0] sm:$0xff]
    %v2329 = vld [vmem:[#allocation7 + $0x1a8] sm:$0xff]
    %v2330 = vld [vmem:[#allocation7 + $0x1b0] sm:$0xff]
    %v2331 = vld [vmem:[#allocation7 + $0x1b8] sm:$0xff]
    %v2332 = vld [vmem:[#allocation7 + $0x1c0] sm:$0xff]
    %v2333 = vld [vmem:[#allocation7 + $0x1c8] sm:$0xff]
    %v2334 = vld [vmem:[#allocation7 + $0x1d0] sm:$0xff]
    %v2335 = vld [vmem:[#allocation7 + $0x1d8] sm:$0xff]
    %v2336 = vld [vmem:[#allocation7 + $0x1e0] sm:$0xff]
    %v2337 = vld [vmem:[#allocation7 + $0x1e8] sm:$0xff]
    %v2338 = vld [vmem:[#allocation7 + $0x1f0] sm:$0xff]
    %v2339 = vld [vmem:[#allocation7 + $0x1f8] sm:$0xff]
    %v2340 = vld [vmem:[%s10] sm:$0xf]
    %v2342 = vlaneseq
    %v2343 = vshrl.u32 %v2342, 7
    %v2344 = vsub.s32 0, %v2343
    %v2345 = vrot.slane %v2340, %v2344
    %v2346 = vlaneseq
    %v2347 = vshrl.u32 %v2346, 7
    %v2348 = vsub.s32 1, %v2347
    %v2349 = vrot.slane %v2340, %v2348
    %v2350 = vlaneseq
    %v2351 = vshrl.u32 %v2350, 7
    %v2352 = vsub.s32 2, %v2351
    %v2353 = vrot.slane %v2340, %v2352
    %v2354 = vlaneseq
    %v2355 = vshrl.u32 %v2354, 7
    %v2356 = vsub.s32 3, %v2355
    %v2357 = vrot.slane %v2340, %v2356
    %2362 = vmatprep.subr.mxu0 %v2273
    %2363 = vmatpush1.msra.mxu0 %v2272
    %2364 = vmatprep.subr.mxu0 %v2269
    %2365 = vmatpush1.msra.mxu0 %v2268
    %2366 = vmatprep.subr.mxu0 %v2265
    %2367 = vmatpush1.msra.mxu0 %v2264
    %2368 = vmatprep.subr.mxu0 %v2261
    %2369 = vmatpush1.msra.mxu0 %v2260
    %2370 = vmatprep.subr.mxu0 %v2257
    %2371 = vmatpush1.msra.mxu0 %v2256
    %2372 = vmatprep.subr.mxu0 %v2253
    %2373 = vmatpush1.msra.mxu0 %v2252
    %2374 = vmatprep.subr.mxu0 %v2249
    %2375 = vmatpush1.msra.mxu0 %v2248
    %2376 = vmatprep.subr.mxu0 %v2245
    %2377 = vmatpush1.msra.mxu0 %v2244
    %2378 = vmatprep.subr.mxu0 %v2241
    %2379 = vmatpush1.msra.mxu0 %v2240
    %2380 = vmatprep.subr.mxu0 %v2237
    %2381 = vmatpush1.msra.mxu0 %v2236
    %2382 = vmatprep.subr.mxu0 %v2233
    %2383 = vmatpush1.msra.mxu0 %v2232
    %2384 = vmatprep.subr.mxu0 %v2229
    %2385 = vmatpush1.msra.mxu0 %v2228
    %2386 = vmatprep.subr.mxu0 %v2225
    %2387 = vmatpush1.msra.mxu0 %v2224
    %2388 = vmatprep.subr.mxu0 %v2221
    %2389 = vmatpush1.msra.mxu0 %v2220
    %2390 = vmatprep.subr.mxu0 %v2217
    %2391 = vmatpush1.msra.mxu0 %v2216
    %2392 = vmatprep.subr.mxu0 %v2213
    %2393 = vmatpush1.msra.mxu0 %v2212
    %2394 = vmatprep.subr.mxu0 0.0
    %2395 = vmatpush2.msra.mxu0 0.0
    %2396 = vmatprep.subr.mxu0 0.0
    %2397 = vmatpush2.msra.mxu0 0.0
    %2398 = vmatprep.subr.mxu0 0.0
    %2399 = vmatpush2.msra.mxu0 0.0
    %2400 = vmatprep.subr.mxu0 0.0
    %2401 = vmatpush2.msra.mxu0 0.0
    %2402 = vmatprep.subr.mxu0 0.0
    %2403 = vmatpush2.msra.mxu0 0.0
    %2404 = vmatprep.subr.mxu0 0.0
    %2405 = vmatpush2.msra.mxu0 0.0
    %2406 = vmatprep.subr.mxu0 0.0
    %2407 = vmatpush2.msra.mxu0 0.0
    %2408 = vmatprep.subr.mxu0 0.0
    %2409 = vmatpush2.msra.mxu0 0.0
    %2410 = vmatprep.subr.mxu0 0.0
    %2411 = vmatpush2.msra.mxu0 0.0
    %2412 = vmatprep.subr.mxu0 0.0
    %2413 = vmatpush2.msra.mxu0 0.0
    %2414 = vmatprep.subr.mxu0 0.0
    %2415 = vmatpush2.msra.mxu0 0.0
    %2416 = vmatprep.subr.mxu0 0.0
    %2417 = vmatpush2.msra.mxu0 0.0
    %2418 = vmatprep.subr.mxu0 0.0
    %2419 = vmatpush2.msra.mxu0 0.0
    %2420 = vmatprep.subr.mxu0 0.0
    %2421 = vmatpush2.msra.mxu0 0.0
    %2422 = vmatprep.subr.mxu0 0.0
    %2423 = vmatpush2.msra.mxu0 0.0
    %2424 = vmatprep.subr.mxu0 0.0
    %2425 = vmatpush2.msra.mxu0 0.0
    %2426 = vmatprep.mubr.f32.mxu0 0.0
    %2427 = vmatmul.mubr.f32.gmra.mxu0 %v2204
    %v2428 = vpop.f32.mrf.mxu0
    %v2429 = vadd.f32 %v2345, %v2428
    %v2430 = vpop.f32.mrf.mxu0
    %v2431 = vadd.f32 %v2349, %v2430
    %2432 = vmatprep.mubr.f32.mxu0 0.0
    %2433 = vmatmul.mubr.f32.gmra.mxu0 %v2205
    %v2434 = vpop.f32.mrf.mxu0
    %v2435 = vadd.f32 %v2345, %v2434
    %v2436 = vpop.f32.mrf.mxu0
    %v2437 = vadd.f32 %v2349, %v2436
    %2438 = vmatprep.mubr.f32.mxu0 0.0
    %2439 = vmatmul.mubr.f32.gmra.mxu0 %v2206
    %v2440 = vpop.f32.mrf.mxu0
    %v2441 = vadd.f32 %v2345, %v2440
    %v2442 = vpop.f32.mrf.mxu0
    %v2443 = vadd.f32 %v2349, %v2442
    %2444 = vmatprep.mubr.f32.mxu0 0.0
    %2445 = vmatmul.mubr.f32.gmra.mxu0 %v2207
    %v2446 = vpop.f32.mrf.mxu0
    %v2447 = vadd.f32 %v2345, %v2446
    %v2448 = vpop.f32.mrf.mxu0
    %v2449 = vadd.f32 %v2349, %v2448
    %2450 = vmatprep.mubr.f32.mxu0 0.0
    %2451 = vmatmul.mubr.f32.gmra.mxu0 %v2208
    %v2452 = vpop.f32.mrf.mxu0
    %v2453 = vadd.f32 %v2345, %v2452
    %v2454 = vpop.f32.mrf.mxu0
    %v2455 = vadd.f32 %v2349, %v2454
    %2456 = vmatprep.mubr.f32.mxu0 0.0
    %2457 = vmatmul.mubr.f32.gmra.mxu0 %v2209
    %v2458 = vpop.f32.mrf.mxu0
    %v2459 = vadd.f32 %v2345, %v2458
    %v2460 = vpop.f32.mrf.mxu0
    %v2461 = vadd.f32 %v2349, %v2460
    %2462 = vmatprep.mubr.f32.mxu0 0.0
    %2463 = vmatmul.mubr.f32.gmra.mxu0 %v2210
    %v2464 = vpop.f32.mrf.mxu0
    %v2465 = vadd.f32 %v2345, %v2464
    %v2466 = vpop.f32.mrf.mxu0
    %v2467 = vadd.f32 %v2349, %v2466
    %2468 = vmatprep.mubr.f32.mxu0 0.0
    %2469 = vmatmul.mubr.f32.gmra.mxu0 %v2211
    %v2470 = vpop.f32.mrf.mxu0
    %v2471 = vadd.f32 %v2345, %v2470
    %v2472 = vpop.f32.mrf.mxu0
    %v2473 = vadd.f32 %v2349, %v2472
    %2474 = vdwg.mxu0
    %2475 = vmatprep.subr.mxu0 %v2275
    %2476 = vmatpush1.msra.mxu0 %v2274
    %2477 = vmatprep.subr.mxu0 %v2271
    %2478 = vmatpush1.msra.mxu0 %v2270
    %2479 = vmatprep.subr.mxu0 %v2267
    %2480 = vmatpush1.msra.mxu0 %v2266
    %2481 = vmatprep.subr.mxu0 %v2263
    %2482 = vmatpush1.msra.mxu0 %v2262
    %2483 = vmatprep.subr.mxu0 %v2259
    %2484 = vmatpush1.msra.mxu0 %v2258
    %2485 = vmatprep.subr.mxu0 %v2255
    %2486 = vmatpush1.msra.mxu0 %v2254
    %2487 = vmatprep.subr.mxu0 %v2251
    %2488 = vmatpush1.msra.mxu0 %v2250
    %2489 = vmatprep.subr.mxu0 %v2247
    %2490 = vmatpush1.msra.mxu0 %v2246
    %2491 = vmatprep.subr.mxu0 %v2243
    %2492 = vmatpush1.msra.mxu0 %v2242
    %2493 = vmatprep.subr.mxu0 %v2239
    %2494 = vmatpush1.msra.mxu0 %v2238
    %2495 = vmatprep.subr.mxu0 %v2235
    %2496 = vmatpush1.msra.mxu0 %v2234
    %2497 = vmatprep.subr.mxu0 %v2231
    %2498 = vmatpush1.msra.mxu0 %v2230
    %2499 = vmatprep.subr.mxu0 %v2227
    %2500 = vmatpush1.msra.mxu0 %v2226
    %2501 = vmatprep.subr.mxu0 %v2223
    %2502 = vmatpush1.msra.mxu0 %v2222
    %2503 = vmatprep.subr.mxu0 %v2219
    %2504 = vmatpush1.msra.mxu0 %v2218
    %2505 = vmatprep.subr.mxu0 %v2215
    %2506 = vmatpush1.msra.mxu0 %v2214
    %2507 = vmatprep.subr.mxu0 0.0
    %2508 = vmatpush2.msra.mxu0 0.0
    %2509 = vmatprep.subr.mxu0 0.0
    %2510 = vmatpush2.msra.mxu0 0.0
    %2511 = vmatprep.subr.mxu0 0.0
    %2512 = vmatpush2.msra.mxu0 0.0
    %2513 = vmatprep.subr.mxu0 0.0
    %2514 = vmatpush2.msra.mxu0 0.0
    %2515 = vmatprep.subr.mxu0 0.0
    %2516 = vmatpush2.msra.mxu0 0.0
    %2517 = vmatprep.subr.mxu0 0.0
    %2518 = vmatpush2.msra.mxu0 0.0
    %2519 = vmatprep.subr.mxu0 0.0
    %2520 = vmatpush2.msra.mxu0 0.0
    %2521 = vmatprep.subr.mxu0 0.0
    %2522 = vmatpush2.msra.mxu0 0.0
    %2523 = vmatprep.subr.mxu0 0.0
    %2524 = vmatpush2.msra.mxu0 0.0
    %2525 = vmatprep.subr.mxu0 0.0
    %2526 = vmatpush2.msra.mxu0 0.0
    %2527 = vmatprep.subr.mxu0 0.0
    %2528 = vmatpush2.msra.mxu0 0.0
    %2529 = vmatprep.subr.mxu0 0.0
    %2530 = vmatpush2.msra.mxu0 0.0
    %2531 = vmatprep.subr.mxu0 0.0
    %2532 = vmatpush2.msra.mxu0 0.0
    %2533 = vmatprep.subr.mxu0 0.0
    %2534 = vmatpush2.msra.mxu0 0.0
    %2535 = vmatprep.subr.mxu0 0.0
    %2536 = vmatpush2.msra.mxu0 0.0
    %2537 = vmatprep.subr.mxu0 0.0
    %2538 = vmatpush2.msra.mxu0 0.0
    %2539 = vmatprep.mubr.f32.mxu0 0.0
    %2540 = vmatmul.mubr.f32.gmra.mxu0 %v2204
    %v2541 = vpop.f32.mrf.mxu0
    %v2542 = vadd.f32 %v2353, %v2541
    %v2543 = vpop.f32.mrf.mxu0
    %v2544 = vadd.f32 %v2357, %v2543
    %2545 = vmatprep.mubr.f32.mxu0 0.0
    %2546 = vmatmul.mubr.f32.gmra.mxu0 %v2205
    %v2547 = vpop.f32.mrf.mxu0
    %v2548 = vadd.f32 %v2353, %v2547
    %v2549 = vpop.f32.mrf.mxu0
    %v2550 = vadd.f32 %v2357, %v2549
    %2551 = vmatprep.mubr.f32.mxu0 0.0
    %2552 = vmatmul.mubr.f32.gmra.mxu0 %v2206
    %v2553 = vpop.f32.mrf.mxu0
    %v2554 = vadd.f32 %v2353, %v2553
    %v2555 = vpop.f32.mrf.mxu0
    %v2556 = vadd.f32 %v2357, %v2555
    %2557 = vmatprep.mubr.f32.mxu0 0.0
    %2558 = vmatmul.mubr.f32.gmra.mxu0 %v2207
    %v2559 = vpop.f32.mrf.mxu0
    %v2560 = vadd.f32 %v2353, %v2559
    %v2561 = vpop.f32.mrf.mxu0
    %v2562 = vadd.f32 %v2357, %v2561
    %2563 = vmatprep.mubr.f32.mxu0 0.0
    %2564 = vmatmul.mubr.f32.gmra.mxu0 %v2208
    %v2565 = vpop.f32.mrf.mxu0
    %v2566 = vadd.f32 %v2353, %v2565
    %v2567 = vpop.f32.mrf.mxu0
    %v2568 = vadd.f32 %v2357, %v2567
    %2569 = vmatprep.mubr.f32.mxu0 0.0
    %2570 = vmatmul.mubr.f32.gmra.mxu0 %v2209
    %v2571 = vpop.f32.mrf.mxu0
    %v2572 = vadd.f32 %v2353, %v2571
    %v2573 = vpop.f32.mrf.mxu0
    %v2574 = vadd.f32 %v2357, %v2573
    %2575 = vmatprep.mubr.f32.mxu0 0.0
    %2576 = vmatmul.mubr.f32.gmra.mxu0 %v2210
    %v2577 = vpop.f32.mrf.mxu0
    %v2578 = vadd.f32 %v2353, %v2577
    %v2579 = vpop.f32.mrf.mxu0
    %v2580 = vadd.f32 %v2357, %v2579
    %2581 = vmatprep.mubr.f32.mxu0 0.0
    %2582 = vmatmul.mubr.f32.gmra.mxu0 %v2211
    %v2583 = vpop.f32.mrf.mxu0
    %v2584 = vadd.f32 %v2353, %v2583
    %v2585 = vpop.f32.mrf.mxu0
    %v2586 = vadd.f32 %v2357, %v2585
    %2587 = vdwg.mxu0
    %2588 = vst [vmem:[#allocation2] sm:$0xff] %v2429
    %2589 = vst [vmem:[#allocation2 + $0x8] sm:$0xff] %v2431
    %2590 = vst [vmem:[#allocation2 + $0x10] sm:$0xff] %v2542
    %2591 = vst [vmem:[#allocation2 + $0x18] sm:$0xff] %v2544
    %2592 = vst [vmem:[#allocation2 + $0x20] sm:$0xff] %v2435
    %2593 = vst [vmem:[#allocation2 + $0x28] sm:$0xff] %v2437
    %2594 = vst [vmem:[#allocation2 + $0x30] sm:$0xff] %v2548
    %2595 = vst [vmem:[#allocation2 + $0x38] sm:$0xff] %v2550
    %2596 = vst [vmem:[#allocation2 + $0x40] sm:$0xff] %v2441
    %2597 = vst [vmem:[#allocation2 + $0x48] sm:$0xff] %v2443
    %2598 = vst [vmem:[#allocation2 + $0x50] sm:$0xff] %v2554
    %2599 = vst [vmem:[#allocation2 + $0x58] sm:$0xff] %v2556
    %2600 = vst [vmem:[#allocation2 + $0x60] sm:$0xff] %v2447
    %2601 = vst [vmem:[#allocation2 + $0x68] sm:$0xff] %v2449
    %2602 = vst [vmem:[#allocation2 + $0x70] sm:$0xff] %v2560
    %2603 = vst [vmem:[#allocation2 + $0x78] sm:$0xff] %v2562
    %2604 = vst [vmem:[#allocation2 + $0x80] sm:$0xff] %v2453
    %2605 = vst [vmem:[#allocation2 + $0x88] sm:$0xff] %v2455
    %2606 = vst [vmem:[#allocation2 + $0x90] sm:$0xff] %v2566
    %2607 = vst [vmem:[#allocation2 + $0x98] sm:$0xff] %v2568
    %2608 = vst [vmem:[#allocation2 + $0xa0] sm:$0xff] %v2459
    %2609 = vst [vmem:[#allocation2 + $0xa8] sm:$0xff] %v2461
    %2610 = vst [vmem:[#allocation2 + $0xb0] sm:$0xff] %v2572
    %2611 = vst [vmem:[#allocation2 + $0xb8] sm:$0xff] %v2574
    %2612 = vst [vmem:[#allocation2 + $0xc0] sm:$0xff] %v2465
    %2613 = vst [vmem:[#allocation2 + $0xc8] sm:$0xff] %v2467
    %2614 = vst [vmem:[#allocation2 + $0xd0] sm:$0xff] %v2578
    %2615 = vst [vmem:[#allocation2 + $0xd8] sm:$0xff] %v2580
    %2616 = vst [vmem:[#allocation2 + $0xe0] sm:$0xff] %v2471
    %2617 = vst [vmem:[#allocation2 + $0xe8] sm:$0xff] %v2473
    %2618 = vst [vmem:[#allocation2 + $0xf0] sm:$0xff] %v2584
    %2619 = vst [vmem:[#allocation2 + $0xf8] sm:$0xff] %v2586
    %v2620 = vld [vmem:[#allocation2] sm:$0xff]
    %v2621 = vld [vmem:[#allocation2 + $0x8] sm:$0xff]
    %v2622 = vld [vmem:[#allocation2 + $0x10] sm:$0xff]
    %v2623 = vld [vmem:[#allocation2 + $0x18] sm:$0xff]
    %v2624 = vld [vmem:[#allocation2 + $0xe0] sm:$0xff]
    %v2625 = vld [vmem:[#allocation2 + $0xe8] sm:$0xff]
    %v2626 = vld [vmem:[#allocation2 + $0xf0] sm:$0xff]
    %v2627 = vld [vmem:[#allocation2 + $0xf8] sm:$0xff]
    %v2628 = vsel %vm686, %v2620, %v2624
    %v2629 = vsel %vm687, %v2621, %v2625
    %v2630 = vsel %vm688, %v2622, %v2626
    %v2631 = vsel %vm689, %v2623, %v2627
    %2632 = vmatprep.subr.mxu0 %v2337
    %2633 = vmatpush1.msra.mxu0 %v2336
    %2634 = vmatprep.subr.mxu0 %v2333
    %2635 = vmatpush1.msra.mxu0 %v2332
    %2636 = vmatprep.subr.mxu0 %v2329
    %2637 = vmatpush1.msra.mxu0 %v2328
    %2638 = vmatprep.subr.mxu0 %v2325
    %2639 = vmatpush1.msra.mxu0 %v2324
    %2640 = vmatprep.subr.mxu0 %v2321
    %2641 = vmatpush1.msra.mxu0 %v2320
    %2642 = vmatprep.subr.mxu0 %v2317
    %2643 = vmatpush1.msra.mxu0 %v2316
    %2644 = vmatprep.subr.mxu0 %v2313
    %2645 = vmatpush1.msra.mxu0 %v2312
    %2646 = vmatprep.subr.mxu0 %v2309
    %2647 = vmatpush1.msra.mxu0 %v2308
    %2648 = vmatprep.subr.mxu0 %v2305
    %2649 = vmatpush1.msra.mxu0 %v2304
    %2650 = vmatprep.subr.mxu0 %v2301
    %2651 = vmatpush1.msra.mxu0 %v2300
    %2652 = vmatprep.subr.mxu0 %v2297
    %2653 = vmatpush1.msra.mxu0 %v2296
    %2654 = vmatprep.subr.mxu0 %v2293
    %2655 = vmatpush1.msra.mxu0 %v2292
    %2656 = vmatprep.subr.mxu0 %v2289
    %2657 = vmatpush1.msra.mxu0 %v2288
    %2658 = vmatprep.subr.mxu0 %v2285
    %2659 = vmatpush1.msra.mxu0 %v2284
    %2660 = vmatprep.subr.mxu0 %v2281
    %2661 = vmatpush1.msra.mxu0 %v2280
    %2662 = vmatprep.subr.mxu0 %v2277
    %2663 = vmatpush1.msra.mxu0 %v2276
    %2664 = vmatprep.subr.mxu0 0.0
    %2665 = vmatpush2.msra.mxu0 0.0
    %2666 = vmatprep.subr.mxu0 0.0
    %2667 = vmatpush2.msra.mxu0 0.0
    %2668 = vmatprep.subr.mxu0 0.0
    %2669 = vmatpush2.msra.mxu0 0.0
    %2670 = vmatprep.subr.mxu0 0.0
    %2671 = vmatpush2.msra.mxu0 0.0
    %2672 = vmatprep.subr.mxu0 0.0
    %2673 = vmatpush2.msra.mxu0 0.0
    %2674 = vmatprep.subr.mxu0 0.0
    %2675 = vmatpush2.msra.mxu0 0.0
    %2676 = vmatprep.subr.mxu0 0.0
    %2677 = vmatpush2.msra.mxu0 0.0
    %2678 = vmatprep.subr.mxu0 0.0
    %2679 = vmatpush2.msra.mxu0 0.0
    %2680 = vmatprep.subr.mxu0 0.0
    %2681 = vmatpush2.msra.mxu0 0.0
    %2682 = vmatprep.subr.mxu0 0.0
    %2683 = vmatpush2.msra.mxu0 0.0
    %2684 = vmatprep.subr.mxu0 0.0
    %2685 = vmatpush2.msra.mxu0 0.0
    %2686 = vmatprep.subr.mxu0 0.0
    %2687 = vmatpush2.msra.mxu0 0.0
    %2688 = vmatprep.subr.mxu0 0.0
    %2689 = vmatpush2.msra.mxu0 0.0
    %2690 = vmatprep.subr.mxu0 0.0
    %2691 = vmatpush2.msra.mxu0 0.0
    %2692 = vmatprep.subr.mxu0 0.0
    %2693 = vmatpush2.msra.mxu0 0.0
    %2694 = vmatprep.subr.mxu0 0.0
    %2695 = vmatpush2.msra.mxu0 0.0
    %2696 = vmatprep.mubr.f32.mxu0 0.0
    %2697 = vmatmul.mubr.f32.gmra.mxu0 0.0
    %v2698 = vpop.f32.mrf.mxu0
    %v2699 = vadd.f32 0.0, %v2698
    %v2700 = vpop.f32.mrf.mxu0
    %v2701 = vadd.f32 0.0, %v2700
    %2702 = vdwg.mxu0
    %2703 = vmatprep.subr.mxu0 %v2339
    %2704 = vmatpush1.msra.mxu0 %v2338
    %2705 = vmatprep.subr.mxu0 %v2335
    %2706 = vmatpush1.msra.mxu0 %v2334
    %2707 = vmatprep.subr.mxu0 %v2331
    %2708 = vmatpush1.msra.mxu0 %v2330
    %2709 = vmatprep.subr.mxu0 %v2327
    %2710 = vmatpush1.msra.mxu0 %v2326
    %2711 = vmatprep.subr.mxu0 %v2323
    %2712 = vmatpush1.msra.mxu0 %v2322
    %2713 = vmatprep.subr.mxu0 %v2319
    %2714 = vmatpush1.msra.mxu0 %v2318
    %2715 = vmatprep.subr.mxu0 %v2315
    %2716 = vmatpush1.msra.mxu0 %v2314
    %2717 = vmatprep.subr.mxu0 %v2311
    %2718 = vmatpush1.msra.mxu0 %v2310
    %2719 = vmatprep.subr.mxu0 %v2307
    %2720 = vmatpush1.msra.mxu0 %v2306
    %2721 = vmatprep.subr.mxu0 %v2303
    %2722 = vmatpush1.msra.mxu0 %v2302
    %2723 = vmatprep.subr.mxu0 %v2299
    %2724 = vmatpush1.msra.mxu0 %v2298
    %2725 = vmatprep.subr.mxu0 %v2295
    %2726 = vmatpush1.msra.mxu0 %v2294
    %2727 = vmatprep.subr.mxu0 %v2291
    %2728 = vmatpush1.msra.mxu0 %v2290
    %2729 = vmatprep.subr.mxu0 %v2287
    %2730 = vmatpush1.msra.mxu0 %v2286
    %2731 = vmatprep.subr.mxu0 %v2283
    %2732 = vmatpush1.msra.mxu0 %v2282
    %2733 = vmatprep.subr.mxu0 %v2279
    %2734 = vmatpush1.msra.mxu0 %v2278
    %2735 = vmatprep.subr.mxu0 0.0
    %2736 = vmatpush2.msra.mxu0 0.0
    %2737 = vmatprep.subr.mxu0 0.0
    %2738 = vmatpush2.msra.mxu0 0.0
    %2739 = vmatprep.subr.mxu0 0.0
    %2740 = vmatpush2.msra.mxu0 0.0
    %2741 = vmatprep.subr.mxu0 0.0
    %2742 = vmatpush2.msra.mxu0 0.0
    %2743 = vmatprep.subr.mxu0 0.0
    %2744 = vmatpush2.msra.mxu0 0.0
    %2745 = vmatprep.subr.mxu0 0.0
    %2746 = vmatpush2.msra.mxu0 0.0
    %2747 = vmatprep.subr.mxu0 0.0
    %2748 = vmatpush2.msra.mxu0 0.0
    %2749 = vmatprep.subr.mxu0 0.0
    %2750 = vmatpush2.msra.mxu0 0.0
    %2751 = vmatprep.subr.mxu0 0.0
    %2752 = vmatpush2.msra.mxu0 0.0
    %2753 = vmatprep.subr.mxu0 0.0
    %2754 = vmatpush2.msra.mxu0 0.0
    %2755 = vmatprep.subr.mxu0 0.0
    %2756 = vmatpush2.msra.mxu0 0.0
    %2757 = vmatprep.subr.mxu0 0.0
    %2758 = vmatpush2.msra.mxu0 0.0
    %2759 = vmatprep.subr.mxu0 0.0
    %2760 = vmatpush2.msra.mxu0 0.0
    %2761 = vmatprep.subr.mxu0 0.0
    %2762 = vmatpush2.msra.mxu0 0.0
    %2763 = vmatprep.subr.mxu0 0.0
    %2764 = vmatpush2.msra.mxu0 0.0
    %2765 = vmatprep.subr.mxu0 0.0
    %2766 = vmatpush2.msra.mxu0 0.0
    %2767 = vmatprep.mubr.f32.mxu0 0.0
    %2768 = vmatmul.mubr.f32.gmra.mxu0 0.0
    %v2769 = vpop.f32.mrf.mxu0
    %v2770 = vadd.f32 0.0, %v2769
    %v2771 = vpop.f32.mrf.mxu0
    %v2772 = vadd.f32 0.0, %v2771
    %2773 = vdwg.mxu0
    %v2774 = vadd.f32 %v2628, %v2699
    %v2775 = vadd.f32 %v2629, %v2701
    %v2776 = vadd.f32 %v2630, %v2770
    %v2777 = vadd.f32 %v2631, %v2772
    %v2778 = vmul.f32 %v2774, 0.5
    %v2779 = vmul.f32 %v2775, 0.5
    %v2780 = vmul.f32 %v2776, 0.5
    %v2781 = vmul.f32 %v2777, 0.5
    %v2782 = vsel %vm848, %v2774, %v2778
    %v2783 = vsel %vm849, %v2775, %v2779
    %v2784 = vsel %vm850, %v2776, %v2780
    %v2785 = vsel %vm851, %v2777, %v2781
    %v2786 = vtanh.pop %v2782
    %v2787 = vtanh.pop %v2783
    %v2788 = vtanh.pop %v2784
    %v2789 = vtanh.pop %v2785
    %v2790 = vmul.f32 %v2786, 0.5
    %v2791 = vmul.f32 %v2787, 0.5
    %v2792 = vmul.f32 %v2788, 0.5
    %v2793 = vmul.f32 %v2789, 0.5
    %v2794 = vadd.f32 %v2790, 0.5
    %v2795 = vadd.f32 %v2791, 0.5
    %v2796 = vadd.f32 %v2792, 0.5
    %v2797 = vadd.f32 %v2793, 0.5
    %v2798 = vsel %vm848, %v2786, %v2794
    %v2799 = vsel %vm849, %v2787, %v2795
    %v2800 = vsel %vm850, %v2788, %v2796
    %v2801 = vsel %vm851, %v2789, %v2797
    %v2802 = vmul.f32 %v2799, 0.0
    %v2803 = vmul.f32 %v2798, %v2801
    %v2804 = vadd.f32 %v2802, %v2803
    %v2805 = vtanh.pop %v2804
    %v2806 = vmul.f32 %v2800, %v2805
    %2807 = vst.msk [vmem:[#allocation4] sm:$0xff] %vm877, %v2806
    %2808 = vst.msk [vmem:[#allocation4 + $0x38] sm:$0xff] %vm879, %v2806
    %v2809 = vld [vmem:[#allocation2 + $0x20] sm:$0xff]
    %v2810 = vld [vmem:[#allocation2 + $0x28] sm:$0xff]
    %v2811 = vld [vmem:[#allocation2 + $0x30] sm:$0xff]
    %v2812 = vld [vmem:[#allocation2 + $0x38] sm:$0xff]
    %v2813 = vld [vmem:[#allocation2 + $0xc0] sm:$0xff]
    %v2814 = vld [vmem:[#allocation2 + $0xc8] sm:$0xff]
    %v2815 = vld [vmem:[#allocation2 + $0xd0] sm:$0xff]
    %v2816 = vld [vmem:[#allocation2 + $0xd8] sm:$0xff]
    %v2817 = vsel %vm686, %v2809, %v2813
    %v2818 = vsel %vm687, %v2810, %v2814
    %v2819 = vsel %vm688, %v2811, %v2815
    %v2820 = vsel %vm689, %v2812, %v2816
    %2821 = vmatprep.subr.mxu0 %v2337
    %2822 = vmatpush1.msra.mxu0 %v2336
    %2823 = vmatprep.subr.mxu0 %v2333
    %2824 = vmatpush1.msra.mxu0 %v2332
    %2825 = vmatprep.subr.mxu0 %v2329
    %2826 = vmatpush1.msra.mxu0 %v2328
    %2827 = vmatprep.subr.mxu0 %v2325
    %2828 = vmatpush1.msra.mxu0 %v2324
    %2829 = vmatprep.subr.mxu0 %v2321
    %2830 = vmatpush1.msra.mxu0 %v2320
    %2831 = vmatprep.subr.mxu0 %v2317
    %2832 = vmatpush1.msra.mxu0 %v2316
    %2833 = vmatprep.subr.mxu0 %v2313
    %2834 = vmatpush1.msra.mxu0 %v2312
    %2835 = vmatprep.subr.mxu0 %v2309
    %2836 = vmatpush1.msra.mxu0 %v2308
    %2837 = vmatprep.subr.mxu0 %v2305
    %2838 = vmatpush1.msra.mxu0 %v2304
    %2839 = vmatprep.subr.mxu0 %v2301
    %2840 = vmatpush1.msra.mxu0 %v2300
    %2841 = vmatprep.subr.mxu0 %v2297
    %2842 = vmatpush1.msra.mxu0 %v2296
    %2843 = vmatprep.subr.mxu0 %v2293
    %2844 = vmatpush1.msra.mxu0 %v2292
    %2845 = vmatprep.subr.mxu0 %v2289
    %2846 = vmatpush1.msra.mxu0 %v2288
    %2847 = vmatprep.subr.mxu0 %v2285
    %2848 = vmatpush1.msra.mxu0 %v2284
    %2849 = vmatprep.subr.mxu0 %v2281
    %2850 = vmatpush1.msra.mxu0 %v2280
    %2851 = vmatprep.subr.mxu0 %v2277
    %2852 = vmatpush1.msra.mxu0 %v2276
    %2853 = vmatprep.subr.mxu0 0.0
    %2854 = vmatpush2.msra.mxu0 0.0
    %2855 = vmatprep.subr.mxu0 0.0
    %2856 = vmatpush2.msra.mxu0 0.0
    %2857 = vmatprep.subr.mxu0 0.0
    %2858 = vmatpush2.msra.mxu0 0.0
    %2859 = vmatprep.subr.mxu0 0.0
    %2860 = vmatpush2.msra.mxu0 0.0
    %2861 = vmatprep.subr.mxu0 0.0
    %2862 = vmatpush2.msra.mxu0 0.0
    %2863 = vmatprep.subr.mxu0 0.0
    %2864 = vmatpush2.msra.mxu0 0.0
    %2865 = vmatprep.subr.mxu0 0.0
    %2866 = vmatpush2.msra.mxu0 0.0
    %2867 = vmatprep.subr.mxu0 0.0
    %2868 = vmatpush2.msra.mxu0 0.0
    %2869 = vmatprep.subr.mxu0 0.0
    %2870 = vmatpush2.msra.mxu0 0.0
    %2871 = vmatprep.subr.mxu0 0.0
    %2872 = vmatpush2.msra.mxu0 0.0
    %2873 = vmatprep.subr.mxu0 0.0
    %2874 = vmatpush2.msra.mxu0 0.0
    %2875 = vmatprep.subr.mxu0 0.0
    %2876 = vmatpush2.msra.mxu0 0.0
    %2877 = vmatprep.subr.mxu0 0.0
    %2878 = vmatpush2.msra.mxu0 0.0
    %2879 = vmatprep.subr.mxu0 0.0
    %2880 = vmatpush2.msra.mxu0 0.0
    %2881 = vmatprep.subr.mxu0 0.0
    %2882 = vmatpush2.msra.mxu0 0.0
    %2883 = vmatprep.subr.mxu0 0.0
    %2884 = vmatpush2.msra.mxu0 0.0
    %2885 = vmatprep.mubr.f32.mxu0 0.0
    %2886 = vmatmul.mubr.f32.gmra.mxu0 %v2806
    %v2887 = vpop.f32.mrf.mxu0
    %v2888 = vadd.f32 0.0, %v2887
    %v2889 = vpop.f32.mrf.mxu0
    %v2890 = vadd.f32 0.0, %v2889
    %2891 = vdwg.mxu0
    %2892 = vmatprep.subr.mxu0 %v2339
    %2893 = vmatpush1.msra.mxu0 %v2338
    %2894 = vmatprep.subr.mxu0 %v2335
    %2895 = vmatpush1.msra.mxu0 %v2334
    %2896 = vmatprep.subr.mxu0 %v2331
    %2897 = vmatpush1.msra.mxu0 %v2330
    %2898 = vmatprep.subr.mxu0 %v2327
    %2899 = vmatpush1.msra.mxu0 %v2326
    %2900 = vmatprep.subr.mxu0 %v2323
    %2901 = vmatpush1.msra.mxu0 %v2322
    %2902 = vmatprep.subr.mxu0 %v2319
    %2903 = vmatpush1.msra.mxu0 %v2318
    %2904 = vmatprep.subr.mxu0 %v2315
    %2905 = vmatpush1.msra.mxu0 %v2314
    %2906 = vmatprep.subr.mxu0 %v2311
    %2907 = vmatpush1.msra.mxu0 %v2310
    %2908 = vmatprep.subr.mxu0 %v2307
    %2909 = vmatpush1.msra.mxu0 %v2306
    %2910 = vmatprep.subr.mxu0 %v2303
    %2911 = vmatpush1.msra.mxu0 %v2302
    %2912 = vmatprep.subr.mxu0 %v2299
    %2913 = vmatpush1.msra.mxu0 %v2298
    %2914 = vmatprep.subr.mxu0 %v2295
    %2915 = vmatpush1.msra.mxu0 %v2294
    %2916 = vmatprep.subr.mxu0 %v2291
    %2917 = vmatpush1.msra.mxu0 %v2290
    %2918 = vmatprep.subr.mxu0 %v2287
    %2919 = vmatpush1.msra.mxu0 %v2286
    %2920 = vmatprep.subr.mxu0 %v2283
    %2921 = vmatpush1.msra.mxu0 %v2282
    %2922 = vmatprep.subr.mxu0 %v2279
    %2923 = vmatpush1.msra.mxu0 %v2278
    %2924 = vmatprep.subr.mxu0 0.0
    %2925 = vmatpush2.msra.mxu0 0.0
    %2926 = vmatprep.subr.mxu0 0.0
    %2927 = vmatpush2.msra.mxu0 0.0
    %2928 = vmatprep.subr.mxu0 0.0
    %2929 = vmatpush2.msra.mxu0 0.0
    %2930 = vmatprep.subr.mxu0 0.0
    %2931 = vmatpush2.msra.mxu0 0.0
    %2932 = vmatprep.subr.mxu0 0.0
    %2933 = vmatpush2.msra.mxu0 0.0
    %2934 = vmatprep.subr.mxu0 0.0
    %2935 = vmatpush2.msra.mxu0 0.0
    %2936 = vmatprep.subr.mxu0 0.0
    %2937 = vmatpush2.msra.mxu0 0.0
    %2938 = vmatprep.subr.mxu0 0.0
    %2939 = vmatpush2.msra.mxu0 0.0
    %2940 = vmatprep.subr.mxu0 0.0
    %2941 = vmatpush2.msra.mxu0 0.0
    %2942 = vmatprep.subr.mxu0 0.0
    %2943 = vmatpush2.msra.mxu0 0.0
    %2944 = vmatprep.subr.mxu0 0.0
    %2945 = vmatpush2.msra.mxu0 0.0
    %2946 = vmatprep.subr.mxu0 0.0
    %2947 = vmatpush2.msra.mxu0 0.0
    %2948 = vmatprep.subr.mxu0 0.0
    %2949 = vmatpush2.msra.mxu0 0.0
    %2950 = vmatprep.subr.mxu0 0.0
    %2951 = vmatpush2.msra.mxu0 0.0
    %2952 = vmatprep.subr.mxu0 0.0
    %2953 = vmatpush2.msra.mxu0 0.0
    %2954 = vmatprep.subr.mxu0 0.0
    %2955 = vmatpush2.msra.mxu0 0.0
    %2956 = vmatprep.mubr.f32.mxu0 0.0
    %2957 = vmatmul.mubr.f32.gmra.mxu0 %v2806
    %v2958 = vpop.f32.mrf.mxu0
    %v2959 = vadd.f32 0.0, %v2958
    %v2960 = vpop.f32.mrf.mxu0
    %v2961 = vadd.f32 0.0, %v2960
    %2962 = vdwg.mxu0
    %v2963 = vadd.f32 %v2817, %v2888
    %v2964 = vadd.f32 %v2818, %v2890
    %v2965 = vadd.f32 %v2819, %v2959
    %v2966 = vadd.f32 %v2820, %v2961
    %v2967 = vmul.f32 %v2963, 0.5
    %v2968 = vmul.f32 %v2964, 0.5
    %v2969 = vmul.f32 %v2965, 0.5
    %v2970 = vmul.f32 %v2966, 0.5
    %v2971 = vsel %vm848, %v2963, %v2967
    %v2972 = vsel %vm849, %v2964, %v2968
    %v2973 = vsel %vm850, %v2965, %v2969
    %v2974 = vsel %vm851, %v2966, %v2970
    %v2975 = vtanh.pop %v2971
    %v2976 = vtanh.pop %v2972
    %v2977 = vtanh.pop %v2973
    %v2978 = vtanh.pop %v2974
    %v2979 = vmul.f32 %v2975, 0.5
    %v2980 = vmul.f32 %v2976, 0.5
    %v2981 = vmul.f32 %v2977, 0.5
    %v2982 = vmul.f32 %v2978, 0.5
    %v2983 = vadd.f32 %v2979, 0.5
    %v2984 = vadd.f32 %v2980, 0.5
    %v2985 = vadd.f32 %v2981, 0.5
    %v2986 = vadd.f32 %v2982, 0.5
    %v2987 = vsel %vm848, %v2975, %v2983
    %v2988 = vsel %vm849, %v2976, %v2984
    %v2989 = vsel %vm850, %v2977, %v2985
    %v2990 = vsel %vm851, %v2978, %v2986
    %v2991 = vmul.f32 %v2988, %v2804
    %v2992 = vmul.f32 %v2987, %v2990
    %v2993 = vadd.f32 %v2991, %v2992
    %v2994 = vtanh.pop %v2993
    %v2995 = vmul.f32 %v2989, %v2994
    %2996 = vst.msk [vmem:[#allocation4 + $0x8] sm:$0xff] %vm877, %v2995
    %2997 = vst.msk [vmem:[#allocation4 + $0x30] sm:$0xff] %vm879, %v2995
    %v2998 = vld [vmem:[#allocation2 + $0x40] sm:$0xff]
    %v2999 = vld [vmem:[#allocation2 + $0x48] sm:$0xff]
    %v3000 = vld [vmem:[#allocation2 + $0x50] sm:$0xff]
    %v3001 = vld [vmem:[#allocation2 + $0x58] sm:$0xff]
    %v3002 = vld [vmem:[#allocation2 + $0xa0] sm:$0xff]
    %v3003 = vld [vmem:[#allocation2 + $0xa8] sm:$0xff]
    %v3004 = vld [vmem:[#allocation2 + $0xb0] sm:$0xff]
    %v3005 = vld [vmem:[#allocation2 + $0xb8] sm:$0xff]
    %v3006 = vsel %vm686, %v2998, %v3002
    %v3007 = vsel %vm687, %v2999, %v3003
    %v3008 = vsel %vm688, %v3000, %v3004
    %v3009 = vsel %vm689, %v3001, %v3005
    %3010 = vmatprep.subr.mxu0 %v2337
    %3011 = vmatpush1.msra.mxu0 %v2336
    %3012 = vmatprep.subr.mxu0 %v2333
    %3013 = vmatpush1.msra.mxu0 %v2332
    %3014 = vmatprep.subr.mxu0 %v2329
    %3015 = vmatpush1.msra.mxu0 %v2328
    %3016 = vmatprep.subr.mxu0 %v2325
    %3017 = vmatpush1.msra.mxu0 %v2324
    %3018 = vmatprep.subr.mxu0 %v2321
    %3019 = vmatpush1.msra.mxu0 %v2320
    %3020 = vmatprep.subr.mxu0 %v2317
    %3021 = vmatpush1.msra.mxu0 %v2316
    %3022 = vmatprep.subr.mxu0 %v2313
    %3023 = vmatpush1.msra.mxu0 %v2312
    %3024 = vmatprep.subr.mxu0 %v2309
    %3025 = vmatpush1.msra.mxu0 %v2308
    %3026 = vmatprep.subr.mxu0 %v2305
    %3027 = vmatpush1.msra.mxu0 %v2304
    %3028 = vmatprep.subr.mxu0 %v2301
    %3029 = vmatpush1.msra.mxu0 %v2300
    %3030 = vmatprep.subr.mxu0 %v2297
    %3031 = vmatpush1.msra.mxu0 %v2296
    %3032 = vmatprep.subr.mxu0 %v2293
    %3033 = vmatpush1.msra.mxu0 %v2292
    %3034 = vmatprep.subr.mxu0 %v2289
    %3035 = vmatpush1.msra.mxu0 %v2288
    %3036 = vmatprep.subr.mxu0 %v2285
    %3037 = vmatpush1.msra.mxu0 %v2284
    %3038 = vmatprep.subr.mxu0 %v2281
    %3039 = vmatpush1.msra.mxu0 %v2280
    %3040 = vmatprep.subr.mxu0 %v2277
    %3041 = vmatpush1.msra.mxu0 %v2276
    %3042 = vmatprep.subr.mxu0 0.0
    %3043 = vmatpush2.msra.mxu0 0.0
    %3044 = vmatprep.subr.mxu0 0.0
    %3045 = vmatpush2.msra.mxu0 0.0
    %3046 = vmatprep.subr.mxu0 0.0
    %3047 = vmatpush2.msra.mxu0 0.0
    %3048 = vmatprep.subr.mxu0 0.0
    %3049 = vmatpush2.msra.mxu0 0.0
    %3050 = vmatprep.subr.mxu0 0.0
    %3051 = vmatpush2.msra.mxu0 0.0
    %3052 = vmatprep.subr.mxu0 0.0
    %3053 = vmatpush2.msra.mxu0 0.0
    %3054 = vmatprep.subr.mxu0 0.0
    %3055 = vmatpush2.msra.mxu0 0.0
    %3056 = vmatprep.subr.mxu0 0.0
    %3057 = vmatpush2.msra.mxu0 0.0
    %3058 = vmatprep.subr.mxu0 0.0
    %3059 = vmatpush2.msra.mxu0 0.0
    %3060 = vmatprep.subr.mxu0 0.0
    %3061 = vmatpush2.msra.mxu0 0.0
    %3062 = vmatprep.subr.mxu0 0.0
    %3063 = vmatpush2.msra.mxu0 0.0
    %3064 = vmatprep.subr.mxu0 0.0
    %3065 = vmatpush2.msra.mxu0 0.0
    %3066 = vmatprep.subr.mxu0 0.0
    %3067 = vmatpush2.msra.mxu0 0.0
    %3068 = vmatprep.subr.mxu0 0.0
    %3069 = vmatpush2.msra.mxu0 0.0
    %3070 = vmatprep.subr.mxu0 0.0
    %3071 = vmatpush2.msra.mxu0 0.0
    %3072 = vmatprep.subr.mxu0 0.0
    %3073 = vmatpush2.msra.mxu0 0.0
    %3074 = vmatprep.mubr.f32.mxu0 0.0
    %3075 = vmatmul.mubr.f32.gmra.mxu0 %v2995
    %v3076 = vpop.f32.mrf.mxu0
    %v3077 = vadd.f32 0.0, %v3076
    %v3078 = vpop.f32.mrf.mxu0
    %v3079 = vadd.f32 0.0, %v3078
    %3080 = vdwg.mxu0
    %3081 = vmatprep.subr.mxu0 %v2339
    %3082 = vmatpush1.msra.mxu0 %v2338
    %3083 = vmatprep.subr.mxu0 %v2335
    %3084 = vmatpush1.msra.mxu0 %v2334
    %3085 = vmatprep.subr.mxu0 %v2331
    %3086 = vmatpush1.msra.mxu0 %v2330
    %3087 = vmatprep.subr.mxu0 %v2327
    %3088 = vmatpush1.msra.mxu0 %v2326
    %3089 = vmatprep.subr.mxu0 %v2323
    %3090 = vmatpush1.msra.mxu0 %v2322
    %3091 = vmatprep.subr.mxu0 %v2319
    %3092 = vmatpush1.msra.mxu0 %v2318
    %3093 = vmatprep.subr.mxu0 %v2315
    %3094 = vmatpush1.msra.mxu0 %v2314
    %3095 = vmatprep.subr.mxu0 %v2311
    %3096 = vmatpush1.msra.mxu0 %v2310
    %3097 = vmatprep.subr.mxu0 %v2307
    %3098 = vmatpush1.msra.mxu0 %v2306
    %3099 = vmatprep.subr.mxu0 %v2303
    %3100 = vmatpush1.msra.mxu0 %v2302
    %3101 = vmatprep.subr.mxu0 %v2299
    %3102 = vmatpush1.msra.mxu0 %v2298
    %3103 = vmatprep.subr.mxu0 %v2295
    %3104 = vmatpush1.msra.mxu0 %v2294
    %3105 = vmatprep.subr.mxu0 %v2291
    %3106 = vmatpush1.msra.mxu0 %v2290
    %3107 = vmatprep.subr.mxu0 %v2287
    %3108 = vmatpush1.msra.mxu0 %v2286
    %3109 = vmatprep.subr.mxu0 %v2283
    %3110 = vmatpush1.msra.mxu0 %v2282
    %3111 = vmatprep.subr.mxu0 %v2279
    %3112 = vmatpush1.msra.mxu0 %v2278
    %3113 = vmatprep.subr.mxu0 0.0
    %3114 = vmatpush2.msra.mxu0 0.0
    %3115 = vmatprep.subr.mxu0 0.0
    %3116 = vmatpush2.msra.mxu0 0.0
    %3117 = vmatprep.subr.mxu0 0.0
    %3118 = vmatpush2.msra.mxu0 0.0
    %3119 = vmatprep.subr.mxu0 0.0
    %3120 = vmatpush2.msra.mxu0 0.0
    %3121 = vmatprep.subr.mxu0 0.0
    %3122 = vmatpush2.msra.mxu0 0.0
    %3123 = vmatprep.subr.mxu0 0.0
    %3124 = vmatpush2.msra.mxu0 0.0
    %3125 = vmatprep.subr.mxu0 0.0
    %3126 = vmatpush2.msra.mxu0 0.0
    %3127 = vmatprep.subr.mxu0 0.0
    %3128 = vmatpush2.msra.mxu0 0.0
    %3129 = vmatprep.subr.mxu0 0.0
    %3130 = vmatpush2.msra.mxu0 0.0
    %3131 = vmatprep.subr.mxu0 0.0
    %3132 = vmatpush2.msra.mxu0 0.0
    %3133 = vmatprep.subr.mxu0 0.0
    %3134 = vmatpush2.msra.mxu0 0.0
    %3135 = vmatprep.subr.mxu0 0.0
    %3136 = vmatpush2.msra.mxu0 0.0
    %3137 = vmatprep.subr.mxu0 0.0
    %3138 = vmatpush2.msra.mxu0 0.0
    %3139 = vmatprep.subr.mxu0 0.0
    %3140 = vmatpush2.msra.mxu0 0.0
    %3141 = vmatprep.subr.mxu0 0.0
    %3142 = vmatpush2.msra.mxu0 0.0
    %3143 = vmatprep.subr.mxu0 0.0
    %3144 = vmatpush2.msra.mxu0 0.0
    %3145 = vmatprep.mubr.f32.mxu0 0.0
    %3146 = vmatmul.mubr.f32.gmra.mxu0 %v2995
    %v3147 = vpop.f32.mrf.mxu0
    %v3148 = vadd.f32 0.0, %v3147
    %v3149 = vpop.f32.mrf.mxu0
    %v3150 = vadd.f32 0.0, %v3149
    %3151 = vdwg.mxu0
    %v3152 = vadd.f32 %v3006, %v3077
    %v3153 = vadd.f32 %v3007, %v3079
    %v3154 = vadd.f32 %v3008, %v3148
    %v3155 = vadd.f32 %v3009, %v3150
    %v3156 = vmul.f32 %v3152, 0.5
    %v3157 = vmul.f32 %v3153, 0.5
    %v3158 = vmul.f32 %v3154, 0.5
    %v3159 = vmul.f32 %v3155, 0.5
    %v3160 = vsel %vm848, %v3152, %v3156
    %v3161 = vsel %vm849, %v3153, %v3157
    %v3162 = vsel %vm850, %v3154, %v3158
    %v3163 = vsel %vm851, %v3155, %v3159
    %v3164 = vtanh.pop %v3160
    %v3165 = vtanh.pop %v3161
    %v3166 = vtanh.pop %v3162
    %v3167 = vtanh.pop %v3163
    %v3168 = vmul.f32 %v3164, 0.5
    %v3169 = vmul.f32 %v3165, 0.5
    %v3170 = vmul.f32 %v3166, 0.5
    %v3171 = vmul.f32 %v3167, 0.5
    %v3172 = vadd.f32 %v3168, 0.5
    %v3173 = vadd.f32 %v3169, 0.5
    %v3174 = vadd.f32 %v3170, 0.5
    %v3175 = vadd.f32 %v3171, 0.5
    %v3176 = vsel %vm848, %v3164, %v3172
    %v3177 = vsel %vm849, %v3165, %v3173
    %v3178 = vsel %vm850, %v3166, %v3174
    %v3179 = vsel %vm851, %v3167, %v3175
    %v3180 = vmul.f32 %v3177, %v2993
    %v3181 = vmul.f32 %v3176, %v3179
    %v3182 = vadd.f32 %v3180, %v3181
    %v3183 = vtanh.pop %v3182
    %v3184 = vmul.f32 %v3178, %v3183
    %3185 = vst.msk [vmem:[#allocation4 + $0x10] sm:$0xff] %vm877, %v3184
    %3186 = vst.msk [vmem:[#allocation4 + $0x28] sm:$0xff] %vm879, %v3184
    %v3187 = vld [vmem:[#allocation2 + $0x60] sm:$0xff]
    %v3188 = vld [vmem:[#allocation2 + $0x68] sm:$0xff]
    %v3189 = vld [vmem:[#allocation2 + $0x70] sm:$0xff]
    %v3190 = vld [vmem:[#allocation2 + $0x78] sm:$0xff]
    %v3191 = vld [vmem:[#allocation2 + $0x80] sm:$0xff]
    %v3192 = vld [vmem:[#allocation2 + $0x88] sm:$0xff]
    %v3193 = vld [vmem:[#allocation2 + $0x90] sm:$0xff]
    %v3194 = vld [vmem:[#allocation2 + $0x98] sm:$0xff]
    %v3195 = vsel %vm686, %v3187, %v3191
    %v3196 = vsel %vm687, %v3188, %v3192
    %v3197 = vsel %vm688, %v3189, %v3193
    %v3198 = vsel %vm689, %v3190, %v3194
    %3199 = vmatprep.subr.mxu0 %v2337
    %3200 = vmatpush1.msra.mxu0 %v2336
    %3201 = vmatprep.subr.mxu0 %v2333
    %3202 = vmatpush1.msra.mxu0 %v2332
    %3203 = vmatprep.subr.mxu0 %v2329
    %3204 = vmatpush1.msra.mxu0 %v2328
    %3205 = vmatprep.subr.mxu0 %v2325
    %3206 = vmatpush1.msra.mxu0 %v2324
    %3207 = vmatprep.subr.mxu0 %v2321
    %3208 = vmatpush1.msra.mxu0 %v2320
    %3209 = vmatprep.subr.mxu0 %v2317
    %3210 = vmatpush1.msra.mxu0 %v2316
    %3211 = vmatprep.subr.mxu0 %v2313
    %3212 = vmatpush1.msra.mxu0 %v2312
    %3213 = vmatprep.subr.mxu0 %v2309
    %3214 = vmatpush1.msra.mxu0 %v2308
    %3215 = vmatprep.subr.mxu0 %v2305
    %3216 = vmatpush1.msra.mxu0 %v2304
    %3217 = vmatprep.subr.mxu0 %v2301
    %3218 = vmatpush1.msra.mxu0 %v2300
    %3219 = vmatprep.subr.mxu0 %v2297
    %3220 = vmatpush1.msra.mxu0 %v2296
    %3221 = vmatprep.subr.mxu0 %v2293
    %3222 = vmatpush1.msra.mxu0 %v2292
    %3223 = vmatprep.subr.mxu0 %v2289
    %3224 = vmatpush1.msra.mxu0 %v2288
    %3225 = vmatprep.subr.mxu0 %v2285
    %3226 = vmatpush1.msra.mxu0 %v2284
    %3227 = vmatprep.subr.mxu0 %v2281
    %3228 = vmatpush1.msra.mxu0 %v2280
    %3229 = vmatprep.subr.mxu0 %v2277
    %3230 = vmatpush1.msra.mxu0 %v2276
    %3231 = vmatprep.subr.mxu0 0.0
    %3232 = vmatpush2.msra.mxu0 0.0
    %3233 = vmatprep.subr.mxu0 0.0
    %3234 = vmatpush2.msra.mxu0 0.0
    %3235 = vmatprep.subr.mxu0 0.0
    %3236 = vmatpush2.msra.mxu0 0.0
    %3237 = vmatprep.subr.mxu0 0.0
    %3238 = vmatpush2.msra.mxu0 0.0
    %3239 = vmatprep.subr.mxu0 0.0
    %3240 = vmatpush2.msra.mxu0 0.0
    %3241 = vmatprep.subr.mxu0 0.0
    %3242 = vmatpush2.msra.mxu0 0.0
    %3243 = vmatprep.subr.mxu0 0.0
    %3244 = vmatpush2.msra.mxu0 0.0
    %3245 = vmatprep.subr.mxu0 0.0
    %3246 = vmatpush2.msra.mxu0 0.0
    %3247 = vmatprep.subr.mxu0 0.0
    %3248 = vmatpush2.msra.mxu0 0.0
    %3249 = vmatprep.subr.mxu0 0.0
    %3250 = vmatpush2.msra.mxu0 0.0
    %3251 = vmatprep.subr.mxu0 0.0
    %3252 = vmatpush2.msra.mxu0 0.0
    %3253 = vmatprep.subr.mxu0 0.0
    %3254 = vmatpush2.msra.mxu0 0.0
    %3255 = vmatprep.subr.mxu0 0.0
    %3256 = vmatpush2.msra.mxu0 0.0
    %3257 = vmatprep.subr.mxu0 0.0
    %3258 = vmatpush2.msra.mxu0 0.0
    %3259 = vmatprep.subr.mxu0 0.0
    %3260 = vmatpush2.msra.mxu0 0.0
    %3261 = vmatprep.subr.mxu0 0.0
    %3262 = vmatpush2.msra.mxu0 0.0
    %3263 = vmatprep.mubr.f32.mxu0 0.0
    %3264 = vmatmul.mubr.f32.gmra.mxu0 %v3184
    %v3265 = vpop.f32.mrf.mxu0
    %v3266 = vadd.f32 0.0, %v3265
    %v3267 = vpop.f32.mrf.mxu0
    %v3268 = vadd.f32 0.0, %v3267
    %3269 = vdwg.mxu0
    %3270 = vmatprep.subr.mxu0 %v2339
    %3271 = vmatpush1.msra.mxu0 %v2338
    %3272 = vmatprep.subr.mxu0 %v2335
    %3273 = vmatpush1.msra.mxu0 %v2334
    %3274 = vmatprep.subr.mxu0 %v2331
    %3275 = vmatpush1.msra.mxu0 %v2330
    %3276 = vmatprep.subr.mxu0 %v2327
    %3277 = vmatpush1.msra.mxu0 %v2326
    %3278 = vmatprep.subr.mxu0 %v2323
    %3279 = vmatpush1.msra.mxu0 %v2322
    %3280 = vmatprep.subr.mxu0 %v2319
    %3281 = vmatpush1.msra.mxu0 %v2318
    %3282 = vmatprep.subr.mxu0 %v2315
    %3283 = vmatpush1.msra.mxu0 %v2314
    %3284 = vmatprep.subr.mxu0 %v2311
    %3285 = vmatpush1.msra.mxu0 %v2310
    %3286 = vmatprep.subr.mxu0 %v2307
    %3287 = vmatpush1.msra.mxu0 %v2306
    %3288 = vmatprep.subr.mxu0 %v2303
    %3289 = vmatpush1.msra.mxu0 %v2302
    %3290 = vmatprep.subr.mxu0 %v2299
    %3291 = vmatpush1.msra.mxu0 %v2298
    %3292 = vmatprep.subr.mxu0 %v2295
    %3293 = vmatpush1.msra.mxu0 %v2294
    %3294 = vmatprep.subr.mxu0 %v2291
    %3295 = vmatpush1.msra.mxu0 %v2290
    %3296 = vmatprep.subr.mxu0 %v2287
    %3297 = vmatpush1.msra.mxu0 %v2286
    %3298 = vmatprep.subr.mxu0 %v2283
    %3299 = vmatpush1.msra.mxu0 %v2282
    %3300 = vmatprep.subr.mxu0 %v2279
    %3301 = vmatpush1.msra.mxu0 %v2278
    %3302 = vmatprep.subr.mxu0 0.0
    %3303 = vmatpush2.msra.mxu0 0.0
    %3304 = vmatprep.subr.mxu0 0.0
    %3305 = vmatpush2.msra.mxu0 0.0
    %3306 = vmatprep.subr.mxu0 0.0
    %3307 = vmatpush2.msra.mxu0 0.0
    %3308 = vmatprep.subr.mxu0 0.0
    %3309 = vmatpush2.msra.mxu0 0.0
    %3310 = vmatprep.subr.mxu0 0.0
    %3311 = vmatpush2.msra.mxu0 0.0
    %3312 = vmatprep.subr.mxu0 0.0
    %3313 = vmatpush2.msra.mxu0 0.0
    %3314 = vmatprep.subr.mxu0 0.0
    %3315 = vmatpush2.msra.mxu0 0.0
    %3316 = vmatprep.subr.mxu0 0.0
    %3317 = vmatpush2.msra.mxu0 0.0
    %3318 = vmatprep.subr.mxu0 0.0
    %3319 = vmatpush2.msra.mxu0 0.0
    %3320 = vmatprep.subr.mxu0 0.0
    %3321 = vmatpush2.msra.mxu0 0.0
    %3322 = vmatprep.subr.mxu0 0.0
    %3323 = vmatpush2.msra.mxu0 0.0
    %3324 = vmatprep.subr.mxu0 0.0
    %3325 = vmatpush2.msra.mxu0 0.0
    %3326 = vmatprep.subr.mxu0 0.0
    %3327 = vmatpush2.msra.mxu0 0.0
    %3328 = vmatprep.subr.mxu0 0.0
    %3329 = vmatpush2.msra.mxu0 0.0
    %3330 = vmatprep.subr.mxu0 0.0
    %3331 = vmatpush2.msra.mxu0 0.0
    %3332 = vmatprep.subr.mxu0 0.0
    %3333 = vmatpush2.msra.mxu0 0.0
    %3334 = vmatprep.mubr.f32.mxu0 0.0
    %3335 = vmatmul.mubr.f32.gmra.mxu0 %v3184
    %v3336 = vpop.f32.mrf.mxu0
    %v3337 = vadd.f32 0.0, %v3336
    %v3338 = vpop.f32.mrf.mxu0
    %v3339 = vadd.f32 0.0, %v3338
    %3340 = vdwg.mxu0
    %v3341 = vadd.f32 %v3195, %v3266
    %v3342 = vadd.f32 %v3196, %v3268
    %v3343 = vadd.f32 %v3197, %v3337
    %v3344 = vadd.f32 %v3198, %v3339
    %v3345 = vmul.f32 %v3341, 0.5
    %v3346 = vmul.f32 %v3342, 0.5
    %v3347 = vmul.f32 %v3343, 0.5
    %v3348 = vmul.f32 %v3344, 0.5
    %v3349 = vsel %vm848, %v3341, %v3345
    %v3350 = vsel %vm849, %v3342, %v3346
    %v3351 = vsel %vm850, %v3343, %v3347
    %v3352 = vsel %vm851, %v3344, %v3348
    %v3353 = vtanh.pop %v3349
    %v3354 = vtanh.pop %v3350
    %v3355 = vtanh.pop %v3351
    %v3356 = vtanh.pop %v3352
    %v3357 = vmul.f32 %v3353, 0.5
    %v3358 = vmul.f32 %v3354, 0.5
    %v3359 = vmul.f32 %v3355, 0.5
    %v3360 = vmul.f32 %v3356, 0.5
    %v3361 = vadd.f32 %v3357, 0.5
    %v3362 = vadd.f32 %v3358, 0.5
    %v3363 = vadd.f32 %v3359, 0.5
    %v3364 = vadd.f32 %v3360, 0.5
    %v3365 = vsel %vm848, %v3353, %v3361
    %v3366 = vsel %vm849, %v3354, %v3362
    %v3367 = vsel %vm850, %v3355, %v3363
    %v3368 = vsel %vm851, %v3356, %v3364
    %v3369 = vmul.f32 %v3366, %v3182
    %v3370 = vmul.f32 %v3365, %v3368
    %v3371 = vadd.f32 %v3369, %v3370
    %v3372 = vtanh.pop %v3371
    %v3373 = vmul.f32 %v3367, %v3372
    %3374 = vst.msk [vmem:[#allocation4 + $0x18] sm:$0xff] %vm877, %v3373
    %3375 = vst.msk [vmem:[#allocation4 + $0x20] sm:$0xff] %vm879, %v3373
    %v3376 = vld [vmem:[#allocation2 + $0x80] sm:$0xff]
    %v3377 = vld [vmem:[#allocation2 + $0x88] sm:$0xff]
    %v3378 = vld [vmem:[#allocation2 + $0x90] sm:$0xff]
    %v3379 = vld [vmem:[#allocation2 + $0x98] sm:$0xff]
    %v3380 = vld [vmem:[#allocation2 + $0x60] sm:$0xff]
    %v3381 = vld [vmem:[#allocation2 + $0x68] sm:$0xff]
    %v3382 = vld [vmem:[#allocation2 + $0x70] sm:$0xff]
    %v3383 = vld [vmem:[#allocation2 + $0x78] sm:$0xff]
    %v3384 = vsel %vm686, %v3376, %v3380
    %v3385 = vsel %vm687, %v3377, %v3381
    %v3386 = vsel %vm688, %v3378, %v3382
    %v3387 = vsel %vm689, %v3379, %v3383
    %3388 = vmatprep.subr.mxu0 %v2337
    %3389 = vmatpush1.msra.mxu0 %v2336
    %3390 = vmatprep.subr.mxu0 %v2333
    %3391 = vmatpush1.msra.mxu0 %v2332
    %3392 = vmatprep.subr.mxu0 %v2329
    %3393 = vmatpush1.msra.mxu0 %v2328
    %3394 = vmatprep.subr.mxu0 %v2325
    %3395 = vmatpush1.msra.mxu0 %v2324
    %3396 = vmatprep.subr.mxu0 %v2321
    %3397 = vmatpush1.msra.mxu0 %v2320
    %3398 = vmatprep.subr.mxu0 %v2317
    %3399 = vmatpush1.msra.mxu0 %v2316
    %3400 = vmatprep.subr.mxu0 %v2313
    %3401 = vmatpush1.msra.mxu0 %v2312
    %3402 = vmatprep.subr.mxu0 %v2309
    %3403 = vmatpush1.msra.mxu0 %v2308
    %3404 = vmatprep.subr.mxu0 %v2305
    %3405 = vmatpush1.msra.mxu0 %v2304
    %3406 = vmatprep.subr.mxu0 %v2301
    %3407 = vmatpush1.msra.mxu0 %v2300
    %3408 = vmatprep.subr.mxu0 %v2297
    %3409 = vmatpush1.msra.mxu0 %v2296
    %3410 = vmatprep.subr.mxu0 %v2293
    %3411 = vmatpush1.msra.mxu0 %v2292
    %3412 = vmatprep.subr.mxu0 %v2289
    %3413 = vmatpush1.msra.mxu0 %v2288
    %3414 = vmatprep.subr.mxu0 %v2285
    %3415 = vmatpush1.msra.mxu0 %v2284
    %3416 = vmatprep.subr.mxu0 %v2281
    %3417 = vmatpush1.msra.mxu0 %v2280
    %3418 = vmatprep.subr.mxu0 %v2277
    %3419 = vmatpush1.msra.mxu0 %v2276
    %3420 = vmatprep.subr.mxu0 0.0
    %3421 = vmatpush2.msra.mxu0 0.0
    %3422 = vmatprep.subr.mxu0 0.0
    %3423 = vmatpush2.msra.mxu0 0.0
    %3424 = vmatprep.subr.mxu0 0.0
    %3425 = vmatpush2.msra.mxu0 0.0
    %3426 = vmatprep.subr.mxu0 0.0
    %3427 = vmatpush2.msra.mxu0 0.0
    %3428 = vmatprep.subr.mxu0 0.0
    %3429 = vmatpush2.msra.mxu0 0.0
    %3430 = vmatprep.subr.mxu0 0.0
    %3431 = vmatpush2.msra.mxu0 0.0
    %3432 = vmatprep.subr.mxu0 0.0
    %3433 = vmatpush2.msra.mxu0 0.0
    %3434 = vmatprep.subr.mxu0 0.0
    %3435 = vmatpush2.msra.mxu0 0.0
    %3436 = vmatprep.subr.mxu0 0.0
    %3437 = vmatpush2.msra.mxu0 0.0
    %3438 = vmatprep.subr.mxu0 0.0
    %3439 = vmatpush2.msra.mxu0 0.0
    %3440 = vmatprep.subr.mxu0 0.0
    %3441 = vmatpush2.msra.mxu0 0.0
    %3442 = vmatprep.subr.mxu0 0.0
    %3443 = vmatpush2.msra.mxu0 0.0
    %3444 = vmatprep.subr.mxu0 0.0
    %3445 = vmatpush2.msra.mxu0 0.0
    %3446 = vmatprep.subr.mxu0 0.0
    %3447 = vmatpush2.msra.mxu0 0.0
    %3448 = vmatprep.subr.mxu0 0.0
    %3449 = vmatpush2.msra.mxu0 0.0
    %3450 = vmatprep.subr.mxu0 0.0
    %3451 = vmatpush2.msra.mxu0 0.0
    %3452 = vmatprep.mubr.f32.mxu0 0.0
    %3453 = vmatmul.mubr.f32.gmra.mxu0 %v3373
    %v3454 = vpop.f32.mrf.mxu0
    %v3455 = vadd.f32 0.0, %v3454
    %v3456 = vpop.f32.mrf.mxu0
    %v3457 = vadd.f32 0.0, %v3456
    %3458 = vdwg.mxu0
    %3459 = vmatprep.subr.mxu0 %v2339
    %3460 = vmatpush1.msra.mxu0 %v2338
    %3461 = vmatprep.subr.mxu0 %v2335
    %3462 = vmatpush1.msra.mxu0 %v2334
    %3463 = vmatprep.subr.mxu0 %v2331
    %3464 = vmatpush1.msra.mxu0 %v2330
    %3465 = vmatprep.subr.mxu0 %v2327
    %3466 = vmatpush1.msra.mxu0 %v2326
    %3467 = vmatprep.subr.mxu0 %v2323
    %3468 = vmatpush1.msra.mxu0 %v2322
    %3469 = vmatprep.subr.mxu0 %v2319
    %3470 = vmatpush1.msra.mxu0 %v2318
    %3471 = vmatprep.subr.mxu0 %v2315
    %3472 = vmatpush1.msra.mxu0 %v2314
    %3473 = vmatprep.subr.mxu0 %v2311
    %3474 = vmatpush1.msra.mxu0 %v2310
    %3475 = vmatprep.subr.mxu0 %v2307
    %3476 = vmatpush1.msra.mxu0 %v2306
    %3477 = vmatprep.subr.mxu0 %v2303
    %3478 = vmatpush1.msra.mxu0 %v2302
    %3479 = vmatprep.subr.mxu0 %v2299
    %3480 = vmatpush1.msra.mxu0 %v2298
    %3481 = vmatprep.subr.mxu0 %v2295
    %3482 = vmatpush1.msra.mxu0 %v2294
    %3483 = vmatprep.subr.mxu0 %v2291
    %3484 = vmatpush1.msra.mxu0 %v2290
    %3485 = vmatprep.subr.mxu0 %v2287
    %3486 = vmatpush1.msra.mxu0 %v2286
    %3487 = vmatprep.subr.mxu0 %v2283
    %3488 = vmatpush1.msra.mxu0 %v2282
    %3489 = vmatprep.subr.mxu0 %v2279
    %3490 = vmatpush1.msra.mxu0 %v2278
    %3491 = vmatprep.subr.mxu0 0.0
    %3492 = vmatpush2.msra.mxu0 0.0
    %3493 = vmatprep.subr.mxu0 0.0
    %3494 = vmatpush2.msra.mxu0 0.0
    %3495 = vmatprep.subr.mxu0 0.0
    %3496 = vmatpush2.msra.mxu0 0.0
    %3497 = vmatprep.subr.mxu0 0.0
    %3498 = vmatpush2.msra.mxu0 0.0
    %3499 = vmatprep.subr.mxu0 0.0
    %3500 = vmatpush2.msra.mxu0 0.0
    %3501 = vmatprep.subr.mxu0 0.0
    %3502 = vmatpush2.msra.mxu0 0.0
    %3503 = vmatprep.subr.mxu0 0.0
    %3504 = vmatpush2.msra.mxu0 0.0
    %3505 = vmatprep.subr.mxu0 0.0
    %3506 = vmatpush2.msra.mxu0 0.0
    %3507 = vmatprep.subr.mxu0 0.0
    %3508 = vmatpush2.msra.mxu0 0.0
    %3509 = vmatprep.subr.mxu0 0.0
    %3510 = vmatpush2.msra.mxu0 0.0
    %3511 = vmatprep.subr.mxu0 0.0
    %3512 = vmatpush2.msra.mxu0 0.0
    %3513 = vmatprep.subr.mxu0 0.0
    %3514 = vmatpush2.msra.mxu0 0.0
    %3515 = vmatprep.subr.mxu0 0.0
    %3516 = vmatpush2.msra.mxu0 0.0
    %3517 = vmatprep.subr.mxu0 0.0
    %3518 = vmatpush2.msra.mxu0 0.0
    %3519 = vmatprep.subr.mxu0 0.0
    %3520 = vmatpush2.msra.mxu0 0.0
    %3521 = vmatprep.subr.mxu0 0.0
    %3522 = vmatpush2.msra.mxu0 0.0
    %3523 = vmatprep.mubr.f32.mxu0 0.0
    %3524 = vmatmul.mubr.f32.gmra.mxu0 %v3373
    %v3525 = vpop.f32.mrf.mxu0
    %v3526 = vadd.f32 0.0, %v3525
    %v3527 = vpop.f32.mrf.mxu0
    %v3528 = vadd.f32 0.0, %v3527
    %3529 = vdwg.mxu0
    %v3530 = vadd.f32 %v3384, %v3455
    %v3531 = vadd.f32 %v3385, %v3457
    %v3532 = vadd.f32 %v3386, %v3526
    %v3533 = vadd.f32 %v3387, %v3528
    %v3534 = vmul.f32 %v3530, 0.5
    %v3535 = vmul.f32 %v3531, 0.5
    %v3536 = vmul.f32 %v3532, 0.5
    %v3537 = vmul.f32 %v3533, 0.5
    %v3538 = vsel %vm848, %v3530, %v3534
    %v3539 = vsel %vm849, %v3531, %v3535
    %v3540 = vsel %vm850, %v3532, %v3536
    %v3541 = vsel %vm851, %v3533, %v3537
    %v3542 = vtanh.pop %v3538
    %v3543 = vtanh.pop %v3539
    %v3544 = vtanh.pop %v3540
    %v3545 = vtanh.pop %v3541
    %v3546 = vmul.f32 %v3542, 0.5
    %v3547 = vmul.f32 %v3543, 0.5
    %v3548 = vmul.f32 %v3544, 0.5
    %v3549 = vmul.f32 %v3545, 0.5
    %v3550 = vadd.f32 %v3546, 0.5
    %v3551 = vadd.f32 %v3547, 0.5
    %v3552 = vadd.f32 %v3548, 0.5
    %v3553 = vadd.f32 %v3549, 0.5
    %v3554 = vsel %vm848, %v3542, %v3550
    %v3555 = vsel %vm849, %v3543, %v3551
    %v3556 = vsel %vm850, %v3544, %v3552
    %v3557 = vsel %vm851, %v3545, %v3553
    %v3558 = vmul.f32 %v3555, %v3371
    %v3559 = vmul.f32 %v3554, %v3557
    %v3560 = vadd.f32 %v3558, %v3559
    %v3561 = vtanh.pop %v3560
    %v3562 = vmul.f32 %v3556, %v3561
    %3563 = vst.msk [vmem:[#allocation4 + $0x20] sm:$0xff] %vm877, %v3562
    %3564 = vst.msk [vmem:[#allocation4 + $0x18] sm:$0xff] %vm879, %v3562
    %v3565 = vld [vmem:[#allocation2 + $0xa0] sm:$0xff]
    %v3566 = vld [vmem:[#allocation2 + $0xa8] sm:$0xff]
    %v3567 = vld [vmem:[#allocation2 + $0xb0] sm:$0xff]
    %v3568 = vld [vmem:[#allocation2 + $0xb8] sm:$0xff]
    %v3569 = vld [vmem:[#allocation2 + $0x40] sm:$0xff]
    %v3570 = vld [vmem:[#allocation2 + $0x48] sm:$0xff]
    %v3571 = vld [vmem:[#allocation2 + $0x50] sm:$0xff]
    %v3572 = vld [vmem:[#allocation2 + $0x58] sm:$0xff]
    %v3573 = vsel %vm686, %v3565, %v3569
    %v3574 = vsel %vm687, %v3566, %v3570
    %v3575 = vsel %vm688, %v3567, %v3571
    %v3576 = vsel %vm689, %v3568, %v3572
    %3577 = vmatprep.subr.mxu0 %v2337
    %3578 = vmatpush1.msra.mxu0 %v2336
    %3579 = vmatprep.subr.mxu0 %v2333
    %3580 = vmatpush1.msra.mxu0 %v2332
    %3581 = vmatprep.subr.mxu0 %v2329
    %3582 = vmatpush1.msra.mxu0 %v2328
    %3583 = vmatprep.subr.mxu0 %v2325
    %3584 = vmatpush1.msra.mxu0 %v2324
    %3585 = vmatprep.subr.mxu0 %v2321
    %3586 = vmatpush1.msra.mxu0 %v2320
    %3587 = vmatprep.subr.mxu0 %v2317
    %3588 = vmatpush1.msra.mxu0 %v2316
    %3589 = vmatprep.subr.mxu0 %v2313
    %3590 = vmatpush1.msra.mxu0 %v2312
    %3591 = vmatprep.subr.mxu0 %v2309
    %3592 = vmatpush1.msra.mxu0 %v2308
    %3593 = vmatprep.subr.mxu0 %v2305
    %3594 = vmatpush1.msra.mxu0 %v2304
    %3595 = vmatprep.subr.mxu0 %v2301
    %3596 = vmatpush1.msra.mxu0 %v2300
    %3597 = vmatprep.subr.mxu0 %v2297
    %3598 = vmatpush1.msra.mxu0 %v2296
    %3599 = vmatprep.subr.mxu0 %v2293
    %3600 = vmatpush1.msra.mxu0 %v2292
    %3601 = vmatprep.subr.mxu0 %v2289
    %3602 = vmatpush1.msra.mxu0 %v2288
    %3603 = vmatprep.subr.mxu0 %v2285
    %3604 = vmatpush1.msra.mxu0 %v2284
    %3605 = vmatprep.subr.mxu0 %v2281
    %3606 = vmatpush1.msra.mxu0 %v2280
    %3607 = vmatprep.subr.mxu0 %v2277
    %3608 = vmatpush1.msra.mxu0 %v2276
    %3609 = vmatprep.subr.mxu0 0.0
    %3610 = vmatpush2.msra.mxu0 0.0
    %3611 = vmatprep.subr.mxu0 0.0
    %3612 = vmatpush2.msra.mxu0 0.0
    %3613 = vmatprep.subr.mxu0 0.0
    %3614 = vmatpush2.msra.mxu0 0.0
    %3615 = vmatprep.subr.mxu0 0.0
    %3616 = vmatpush2.msra.mxu0 0.0
    %3617 = vmatprep.subr.mxu0 0.0
    %3618 = vmatpush2.msra.mxu0 0.0
    %3619 = vmatprep.subr.mxu0 0.0
    %3620 = vmatpush2.msra.mxu0 0.0
    %3621 = vmatprep.subr.mxu0 0.0
    %3622 = vmatpush2.msra.mxu0 0.0
    %3623 = vmatprep.subr.mxu0 0.0
    %3624 = vmatpush2.msra.mxu0 0.0
    %3625 = vmatprep.subr.mxu0 0.0
    %3626 = vmatpush2.msra.mxu0 0.0
    %3627 = vmatprep.subr.mxu0 0.0
    %3628 = vmatpush2.msra.mxu0 0.0
    %3629 = vmatprep.subr.mxu0 0.0
    %3630 = vmatpush2.msra.mxu0 0.0
    %3631 = vmatprep.subr.mxu0 0.0
    %3632 = vmatpush2.msra.mxu0 0.0
    %3633 = vmatprep.subr.mxu0 0.0
    %3634 = vmatpush2.msra.mxu0 0.0
    %3635 = vmatprep.subr.mxu0 0.0
    %3636 = vmatpush2.msra.mxu0 0.0
    %3637 = vmatprep.subr.mxu0 0.0
    %3638 = vmatpush2.msra.mxu0 0.0
    %3639 = vmatprep.subr.mxu0 0.0
    %3640 = vmatpush2.msra.mxu0 0.0
    %3641 = vmatprep.mubr.f32.mxu0 0.0
    %3642 = vmatmul.mubr.f32.gmra.mxu0 %v3562
    %v3643 = vpop.f32.mrf.mxu0
    %v3644 = vadd.f32 0.0, %v3643
    %v3645 = vpop.f32.mrf.mxu0
    %v3646 = vadd.f32 0.0, %v3645
    %3647 = vdwg.mxu0
    %3648 = vmatprep.subr.mxu0 %v2339
    %3649 = vmatpush1.msra.mxu0 %v2338
    %3650 = vmatprep.subr.mxu0 %v2335
    %3651 = vmatpush1.msra.mxu0 %v2334
    %3652 = vmatprep.subr.mxu0 %v2331
    %3653 = vmatpush1.msra.mxu0 %v2330
    %3654 = vmatprep.subr.mxu0 %v2327
    %3655 = vmatpush1.msra.mxu0 %v2326
    %3656 = vmatprep.subr.mxu0 %v2323
    %3657 = vmatpush1.msra.mxu0 %v2322
    %3658 = vmatprep.subr.mxu0 %v2319
    %3659 = vmatpush1.msra.mxu0 %v2318
    %3660 = vmatprep.subr.mxu0 %v2315
    %3661 = vmatpush1.msra.mxu0 %v2314
    %3662 = vmatprep.subr.mxu0 %v2311
    %3663 = vmatpush1.msra.mxu0 %v2310
    %3664 = vmatprep.subr.mxu0 %v2307
    %3665 = vmatpush1.msra.mxu0 %v2306
    %3666 = vmatprep.subr.mxu0 %v2303
    %3667 = vmatpush1.msra.mxu0 %v2302
    %3668 = vmatprep.subr.mxu0 %v2299
    %3669 = vmatpush1.msra.mxu0 %v2298
    %3670 = vmatprep.subr.mxu0 %v2295
    %3671 = vmatpush1.msra.mxu0 %v2294
    %3672 = vmatprep.subr.mxu0 %v2291
    %3673 = vmatpush1.msra.mxu0 %v2290
    %3674 = vmatprep.subr.mxu0 %v2287
    %3675 = vmatpush1.msra.mxu0 %v2286
    %3676 = vmatprep.subr.mxu0 %v2283
    %3677 = vmatpush1.msra.mxu0 %v2282
    %3678 = vmatprep.subr.mxu0 %v2279
    %3679 = vmatpush1.msra.mxu0 %v2278
    %3680 = vmatprep.subr.mxu0 0.0
    %3681 = vmatpush2.msra.mxu0 0.0
    %3682 = vmatprep.subr.mxu0 0.0
    %3683 = vmatpush2.msra.mxu0 0.0
    %3684 = vmatprep.subr.mxu0 0.0
    %3685 = vmatpush2.msra.mxu0 0.0
    %3686 = vmatprep.subr.mxu0 0.0
    %3687 = vmatpush2.msra.mxu0 0.0
    %3688 = vmatprep.subr.mxu0 0.0
    %3689 = vmatpush2.msra.mxu0 0.0
    %3690 = vmatprep.subr.mxu0 0.0
    %3691 = vmatpush2.msra.mxu0 0.0
    %3692 = vmatprep.subr.mxu0 0.0
    %3693 = vmatpush2.msra.mxu0 0.0
    %3694 = vmatprep.subr.mxu0 0.0
    %3695 = vmatpush2.msra.mxu0 0.0
    %3696 = vmatprep.subr.mxu0 0.0
    %3697 = vmatpush2.msra.mxu0 0.0
    %3698 = vmatprep.subr.mxu0 0.0
    %3699 = vmatpush2.msra.mxu0 0.0
    %3700 = vmatprep.subr.mxu0 0.0
    %3701 = vmatpush2.msra.mxu0 0.0
    %3702 = vmatprep.subr.mxu0 0.0
    %3703 = vmatpush2.msra.mxu0 0.0
    %3704 = vmatprep.subr.mxu0 0.0
    %3705 = vmatpush2.msra.mxu0 0.0
    %3706 = vmatprep.subr.mxu0 0.0
    %3707 = vmatpush2.msra.mxu0 0.0
    %3708 = vmatprep.subr.mxu0 0.0
    %3709 = vmatpush2.msra.mxu0 0.0
    %3710 = vmatprep.subr.mxu0 0.0
    %3711 = vmatpush2.msra.mxu0 0.0
    %3712 = vmatprep.mubr.f32.mxu0 0.0
    %3713 = vmatmul.mubr.f32.gmra.mxu0 %v3562
    %v3714 = vpop.f32.mrf.mxu0
    %v3715 = vadd.f32 0.0, %v3714
    %v3716 = vpop.f32.mrf.mxu0
    %v3717 = vadd.f32 0.0, %v3716
    %3718 = vdwg.mxu0
    %v3719 = vadd.f32 %v3573, %v3644
    %v3720 = vadd.f32 %v3574, %v3646
    %v3721 = vadd.f32 %v3575, %v3715
    %v3722 = vadd.f32 %v3576, %v3717
    %v3723 = vmul.f32 %v3719, 0.5
    %v3724 = vmul.f32 %v3720, 0.5
    %v3725 = vmul.f32 %v3721, 0.5
    %v3726 = vmul.f32 %v3722, 0.5
    %v3727 = vsel %vm848, %v3719, %v3723
    %v3728 = vsel %vm849, %v3720, %v3724
    %v3729 = vsel %vm850, %v3721, %v3725
    %v3730 = vsel %vm851, %v3722, %v3726
    %v3731 = vtanh.pop %v3727
    %v3732 = vtanh.pop %v3728
    %v3733 = vtanh.pop %v3729
    %v3734 = vtanh.pop %v3730
    %v3735 = vmul.f32 %v3731, 0.5
    %v3736 = vmul.f32 %v3732, 0.5
    %v3737 = vmul.f32 %v3733, 0.5
    %v3738 = vmul.f32 %v3734, 0.5
    %v3739 = vadd.f32 %v3735, 0.5
    %v3740 = vadd.f32 %v3736, 0.5
    %v3741 = vadd.f32 %v3737, 0.5
    %v3742 = vadd.f32 %v3738, 0.5
    %v3743 = vsel %vm848, %v3731, %v3739
    %v3744 = vsel %vm849, %v3732, %v3740
    %v3745 = vsel %vm850, %v3733, %v3741
    %v3746 = vsel %vm851, %v3734, %v3742
    %v3747 = vmul.f32 %v3744, %v3560
    %v3748 = vmul.f32 %v3743, %v3746
    %v3749 = vadd.f32 %v3747, %v3748
    %v3750 = vtanh.pop %v3749
    %v3751 = vmul.f32 %v3745, %v3750
    %3752 = vst.msk [vmem:[#allocation4 + $0x28] sm:$0xff] %vm877, %v3751
    %3753 = vst.msk [vmem:[#allocation4 + $0x10] sm:$0xff] %vm879, %v3751
    %v3754 = vld [vmem:[#allocation2 + $0xc0] sm:$0xff]
    %v3755 = vld [vmem:[#allocation2 + $0xc8] sm:$0xff]
    %v3756 = vld [vmem:[#allocation2 + $0xd0] sm:$0xff]
    %v3757 = vld [vmem:[#allocation2 + $0xd8] sm:$0xff]
    %v3758 = vld [vmem:[#allocation2 + $0x20] sm:$0xff]
    %v3759 = vld [vmem:[#allocation2 + $0x28] sm:$0xff]
    %v3760 = vld [vmem:[#allocation2 + $0x30] sm:$0xff]
    %v3761 = vld [vmem:[#allocation2 + $0x38] sm:$0xff]
    %v3762 = vsel %vm686, %v3754, %v3758
    %v3763 = vsel %vm687, %v3755, %v3759
    %v3764 = vsel %vm688, %v3756, %v3760
    %v3765 = vsel %vm689, %v3757, %v3761
    %3766 = vmatprep.subr.mxu0 %v2337
    %3767 = vmatpush1.msra.mxu0 %v2336
    %3768 = vmatprep.subr.mxu0 %v2333
    %3769 = vmatpush1.msra.mxu0 %v2332
    %3770 = vmatprep.subr.mxu0 %v2329
    %3771 = vmatpush1.msra.mxu0 %v2328
    %3772 = vmatprep.subr.mxu0 %v2325
    %3773 = vmatpush1.msra.mxu0 %v2324
    %3774 = vmatprep.subr.mxu0 %v2321
    %3775 = vmatpush1.msra.mxu0 %v2320
    %3776 = vmatprep.subr.mxu0 %v2317
    %3777 = vmatpush1.msra.mxu0 %v2316
    %3778 = vmatprep.subr.mxu0 %v2313
    %3779 = vmatpush1.msra.mxu0 %v2312
    %3780 = vmatprep.subr.mxu0 %v2309
    %3781 = vmatpush1.msra.mxu0 %v2308
    %3782 = vmatprep.subr.mxu0 %v2305
    %3783 = vmatpush1.msra.mxu0 %v2304
    %3784 = vmatprep.subr.mxu0 %v2301
    %3785 = vmatpush1.msra.mxu0 %v2300
    %3786 = vmatprep.subr.mxu0 %v2297
    %3787 = vmatpush1.msra.mxu0 %v2296
    %3788 = vmatprep.subr.mxu0 %v2293
    %3789 = vmatpush1.msra.mxu0 %v2292
    %3790 = vmatprep.subr.mxu0 %v2289
    %3791 = vmatpush1.msra.mxu0 %v2288
    %3792 = vmatprep.subr.mxu0 %v2285
    %3793 = vmatpush1.msra.mxu0 %v2284
    %3794 = vmatprep.subr.mxu0 %v2281
    %3795 = vmatpush1.msra.mxu0 %v2280
    %3796 = vmatprep.subr.mxu0 %v2277
    %3797 = vmatpush1.msra.mxu0 %v2276
    %3798 = vmatprep.subr.mxu0 0.0
    %3799 = vmatpush2.msra.mxu0 0.0
    %3800 = vmatprep.subr.mxu0 0.0
    %3801 = vmatpush2.msra.mxu0 0.0
    %3802 = vmatprep.subr.mxu0 0.0
    %3803 = vmatpush2.msra.mxu0 0.0
    %3804 = vmatprep.subr.mxu0 0.0
    %3805 = vmatpush2.msra.mxu0 0.0
    %3806 = vmatprep.subr.mxu0 0.0
    %3807 = vmatpush2.msra.mxu0 0.0
    %3808 = vmatprep.subr.mxu0 0.0
    %3809 = vmatpush2.msra.mxu0 0.0
    %3810 = vmatprep.subr.mxu0 0.0
    %3811 = vmatpush2.msra.mxu0 0.0
    %3812 = vmatprep.subr.mxu0 0.0
    %3813 = vmatpush2.msra.mxu0 0.0
    %3814 = vmatprep.subr.mxu0 0.0
    %3815 = vmatpush2.msra.mxu0 0.0
    %3816 = vmatprep.subr.mxu0 0.0
    %3817 = vmatpush2.msra.mxu0 0.0
    %3818 = vmatprep.subr.mxu0 0.0
    %3819 = vmatpush2.msra.mxu0 0.0
    %3820 = vmatprep.subr.mxu0 0.0
    %3821 = vmatpush2.msra.mxu0 0.0
    %3822 = vmatprep.subr.mxu0 0.0
    %3823 = vmatpush2.msra.mxu0 0.0
    %3824 = vmatprep.subr.mxu0 0.0
    %3825 = vmatpush2.msra.mxu0 0.0
    %3826 = vmatprep.subr.mxu0 0.0
    %3827 = vmatpush2.msra.mxu0 0.0
    %3828 = vmatprep.subr.mxu0 0.0
    %3829 = vmatpush2.msra.mxu0 0.0
    %3830 = vmatprep.mubr.f32.mxu0 0.0
    %3831 = vmatmul.mubr.f32.gmra.mxu0 %v3751
    %v3832 = vpop.f32.mrf.mxu0
    %v3833 = vadd.f32 0.0, %v3832
    %v3834 = vpop.f32.mrf.mxu0
    %v3835 = vadd.f32 0.0, %v3834
    %3836 = vdwg.mxu0
    %3837 = vmatprep.subr.mxu0 %v2339
    %3838 = vmatpush1.msra.mxu0 %v2338
    %3839 = vmatprep.subr.mxu0 %v2335
    %3840 = vmatpush1.msra.mxu0 %v2334
    %3841 = vmatprep.subr.mxu0 %v2331
    %3842 = vmatpush1.msra.mxu0 %v2330
    %3843 = vmatprep.subr.mxu0 %v2327
    %3844 = vmatpush1.msra.mxu0 %v2326
    %3845 = vmatprep.subr.mxu0 %v2323
    %3846 = vmatpush1.msra.mxu0 %v2322
    %3847 = vmatprep.subr.mxu0 %v2319
    %3848 = vmatpush1.msra.mxu0 %v2318
    %3849 = vmatprep.subr.mxu0 %v2315
    %3850 = vmatpush1.msra.mxu0 %v2314
    %3851 = vmatprep.subr.mxu0 %v2311
    %3852 = vmatpush1.msra.mxu0 %v2310
    %3853 = vmatprep.subr.mxu0 %v2307
    %3854 = vmatpush1.msra.mxu0 %v2306
    %3855 = vmatprep.subr.mxu0 %v2303
    %3856 = vmatpush1.msra.mxu0 %v2302
    %3857 = vmatprep.subr.mxu0 %v2299
    %3858 = vmatpush1.msra.mxu0 %v2298
    %3859 = vmatprep.subr.mxu0 %v2295
    %3860 = vmatpush1.msra.mxu0 %v2294
    %3861 = vmatprep.subr.mxu0 %v2291
    %3862 = vmatpush1.msra.mxu0 %v2290
    %3863 = vmatprep.subr.mxu0 %v2287
    %3864 = vmatpush1.msra.mxu0 %v2286
    %3865 = vmatprep.subr.mxu0 %v2283
    %3866 = vmatpush1.msra.mxu0 %v2282
    %3867 = vmatprep.subr.mxu0 %v2279
    %3868 = vmatpush1.msra.mxu0 %v2278
    %3869 = vmatprep.subr.mxu0 0.0
    %3870 = vmatpush2.msra.mxu0 0.0
    %3871 = vmatprep.subr.mxu0 0.0
    %3872 = vmatpush2.msra.mxu0 0.0
    %3873 = vmatprep.subr.mxu0 0.0
    %3874 = vmatpush2.msra.mxu0 0.0
    %3875 = vmatprep.subr.mxu0 0.0
    %3876 = vmatpush2.msra.mxu0 0.0
    %3877 = vmatprep.subr.mxu0 0.0
    %3878 = vmatpush2.msra.mxu0 0.0
    %3879 = vmatprep.subr.mxu0 0.0
    %3880 = vmatpush2.msra.mxu0 0.0
    %3881 = vmatprep.subr.mxu0 0.0
    %3882 = vmatpush2.msra.mxu0 0.0
    %3883 = vmatprep.subr.mxu0 0.0
    %3884 = vmatpush2.msra.mxu0 0.0
    %3885 = vmatprep.subr.mxu0 0.0
    %3886 = vmatpush2.msra.mxu0 0.0
    %3887 = vmatprep.subr.mxu0 0.0
    %3888 = vmatpush2.msra.mxu0 0.0
    %3889 = vmatprep.subr.mxu0 0.0
    %3890 = vmatpush2.msra.mxu0 0.0
    %3891 = vmatprep.subr.mxu0 0.0
    %3892 = vmatpush2.msra.mxu0 0.0
    %3893 = vmatprep.subr.mxu0 0.0
    %3894 = vmatpush2.msra.mxu0 0.0
    %3895 = vmatprep.subr.mxu0 0.0
    %3896 = vmatpush2.msra.mxu0 0.0
    %3897 = vmatprep.subr.mxu0 0.0
    %3898 = vmatpush2.msra.mxu0 0.0
    %3899 = vmatprep.subr.mxu0 0.0
    %3900 = vmatpush2.msra.mxu0 0.0
    %3901 = vmatprep.mubr.f32.mxu0 0.0
    %3902 = vmatmul.mubr.f32.gmra.mxu0 %v3751
    %v3903 = vpop.f32.mrf.mxu0
    %v3904 = vadd.f32 0.0, %v3903
    %v3905 = vpop.f32.mrf.mxu0
    %v3906 = vadd.f32 0.0, %v3905
    %3907 = vdwg.mxu0
    %v3908 = vadd.f32 %v3762, %v3833
    %v3909 = vadd.f32 %v3763, %v3835
    %v3910 = vadd.f32 %v3764, %v3904
    %v3911 = vadd.f32 %v3765, %v3906
    %v3912 = vmul.f32 %v3908, 0.5
    %v3913 = vmul.f32 %v3909, 0.5
    %v3914 = vmul.f32 %v3910, 0.5
    %v3915 = vmul.f32 %v3911, 0.5
    %v3916 = vsel %vm848, %v3908, %v3912
    %v3917 = vsel %vm849, %v3909, %v3913
    %v3918 = vsel %vm850, %v3910, %v3914
    %v3919 = vsel %vm851, %v3911, %v3915
    %v3920 = vtanh.pop %v3916
    %v3921 = vtanh.pop %v3917
    %v3922 = vtanh.pop %v3918
    %v3923 = vtanh.pop %v3919
    %v3924 = vmul.f32 %v3920, 0.5
    %v3925 = vmul.f32 %v3921, 0.5
    %v3926 = vmul.f32 %v3922, 0.5
    %v3927 = vmul.f32 %v3923, 0.5
    %v3928 = vadd.f32 %v3924, 0.5
    %v3929 = vadd.f32 %v3925, 0.5
    %v3930 = vadd.f32 %v3926, 0.5
    %v3931 = vadd.f32 %v3927, 0.5
    %v3932 = vsel %vm848, %v3920, %v3928
    %v3933 = vsel %vm849, %v3921, %v3929
    %v3934 = vsel %vm850, %v3922, %v3930
    %v3935 = vsel %vm851, %v3923, %v3931
    %v3936 = vmul.f32 %v3933, %v3749
    %v3937 = vmul.f32 %v3932, %v3935
    %v3938 = vadd.f32 %v3936, %v3937
    %v3939 = vtanh.pop %v3938
    %v3940 = vmul.f32 %v3934, %v3939
    %3941 = vst.msk [vmem:[#allocation4 + $0x30] sm:$0xff] %vm877, %v3940
    %3942 = vst.msk [vmem:[#allocation4 + $0x8] sm:$0xff] %vm879, %v3940
    %v3943 = vld [vmem:[#allocation2 + $0xe0] sm:$0xff]
    %v3944 = vld [vmem:[#allocation2 + $0xe8] sm:$0xff]
    %v3945 = vld [vmem:[#allocation2 + $0xf0] sm:$0xff]
    %v3946 = vld [vmem:[#allocation2 + $0xf8] sm:$0xff]
    %v3947 = vld [vmem:[#allocation2] sm:$0xff]
    %v3948 = vld [vmem:[#allocation2 + $0x8] sm:$0xff]
    %v3949 = vld [vmem:[#allocation2 + $0x10] sm:$0xff]
    %v3950 = vld [vmem:[#allocation2 + $0x18] sm:$0xff]
    %v3951 = vsel %vm686, %v3943, %v3947
    %v3952 = vsel %vm687, %v3944, %v3948
    %v3953 = vsel %vm688, %v3945, %v3949
    %v3954 = vsel %vm689, %v3946, %v3950
    %3955 = vmatprep.subr.mxu0 %v2337
    %3956 = vmatpush1.msra.mxu0 %v2336
    %3957 = vmatprep.subr.mxu0 %v2333
    %3958 = vmatpush1.msra.mxu0 %v2332
    %3959 = vmatprep.subr.mxu0 %v2329
    %3960 = vmatpush1.msra.mxu0 %v2328
    %3961 = vmatprep.subr.mxu0 %v2325
    %3962 = vmatpush1.msra.mxu0 %v2324
    %3963 = vmatprep.subr.mxu0 %v2321
    %3964 = vmatpush1.msra.mxu0 %v2320
    %3965 = vmatprep.subr.mxu0 %v2317
    %3966 = vmatpush1.msra.mxu0 %v2316
    %3967 = vmatprep.subr.mxu0 %v2313
    %3968 = vmatpush1.msra.mxu0 %v2312
    %3969 = vmatprep.subr.mxu0 %v2309
    %3970 = vmatpush1.msra.mxu0 %v2308
    %3971 = vmatprep.subr.mxu0 %v2305
    %3972 = vmatpush1.msra.mxu0 %v2304
    %3973 = vmatprep.subr.mxu0 %v2301
    %3974 = vmatpush1.msra.mxu0 %v2300
    %3975 = vmatprep.subr.mxu0 %v2297
    %3976 = vmatpush1.msra.mxu0 %v2296
    %3977 = vmatprep.subr.mxu0 %v2293
    %3978 = vmatpush1.msra.mxu0 %v2292
    %3979 = vmatprep.subr.mxu0 %v2289
    %3980 = vmatpush1.msra.mxu0 %v2288
    %3981 = vmatprep.subr.mxu0 %v2285
    %3982 = vmatpush1.msra.mxu0 %v2284
    %3983 = vmatprep.subr.mxu0 %v2281
    %3984 = vmatpush1.msra.mxu0 %v2280
    %3985 = vmatprep.subr.mxu0 %v2277
    %3986 = vmatpush1.msra.mxu0 %v2276
    %3987 = vmatprep.subr.mxu0 0.0
    %3988 = vmatpush2.msra.mxu0 0.0
    %3989 = vmatprep.subr.mxu0 0.0
    %3990 = vmatpush2.msra.mxu0 0.0
    %3991 = vmatprep.subr.mxu0 0.0
    %3992 = vmatpush2.msra.mxu0 0.0
    %3993 = vmatprep.subr.mxu0 0.0
    %3994 = vmatpush2.msra.mxu0 0.0
    %3995 = vmatprep.subr.mxu0 0.0
    %3996 = vmatpush2.msra.mxu0 0.0
    %3997 = vmatprep.subr.mxu0 0.0
    %3998 = vmatpush2.msra.mxu0 0.0
    %3999 = vmatprep.subr.mxu0 0.0
    %4000 = vmatpush2.msra.mxu0 0.0
    %4001 = vmatprep.subr.mxu0 0.0
    %4002 = vmatpush2.msra.mxu0 0.0
    %4003 = vmatprep.subr.mxu0 0.0
    %4004 = vmatpush2.msra.mxu0 0.0
    %4005 = vmatprep.subr.mxu0 0.0
    %4006 = vmatpush2.msra.mxu0 0.0
    %4007 = vmatprep.subr.mxu0 0.0
    %4008 = vmatpush2.msra.mxu0 0.0
    %4009 = vmatprep.subr.mxu0 0.0
    %4010 = vmatpush2.msra.mxu0 0.0
    %4011 = vmatprep.subr.mxu0 0.0
    %4012 = vmatpush2.msra.mxu0 0.0
    %4013 = vmatprep.subr.mxu0 0.0
    %4014 = vmatpush2.msra.mxu0 0.0
    %4015 = vmatprep.subr.mxu0 0.0
    %4016 = vmatpush2.msra.mxu0 0.0
    %4017 = vmatprep.subr.mxu0 0.0
    %4018 = vmatpush2.msra.mxu0 0.0
    %4019 = vmatprep.mubr.f32.mxu0 0.0
    %4020 = vmatmul.mubr.f32.gmra.mxu0 %v3940
    %v4021 = vpop.f32.mrf.mxu0
    %v4022 = vadd.f32 0.0, %v4021
    %v4023 = vpop.f32.mrf.mxu0
    %v4024 = vadd.f32 0.0, %v4023
    %4025 = vdwg.mxu0
    %4026 = vmatprep.subr.mxu0 %v2339
    %4027 = vmatpush1.msra.mxu0 %v2338
    %4028 = vmatprep.subr.mxu0 %v2335
    %4029 = vmatpush1.msra.mxu0 %v2334
    %4030 = vmatprep.subr.mxu0 %v2331
    %4031 = vmatpush1.msra.mxu0 %v2330
    %4032 = vmatprep.subr.mxu0 %v2327
    %4033 = vmatpush1.msra.mxu0 %v2326
    %4034 = vmatprep.subr.mxu0 %v2323
    %4035 = vmatpush1.msra.mxu0 %v2322
    %4036 = vmatprep.subr.mxu0 %v2319
    %4037 = vmatpush1.msra.mxu0 %v2318
    %4038 = vmatprep.subr.mxu0 %v2315
    %4039 = vmatpush1.msra.mxu0 %v2314
    %4040 = vmatprep.subr.mxu0 %v2311
    %4041 = vmatpush1.msra.mxu0 %v2310
    %4042 = vmatprep.subr.mxu0 %v2307
    %4043 = vmatpush1.msra.mxu0 %v2306
    %4044 = vmatprep.subr.mxu0 %v2303
    %4045 = vmatpush1.msra.mxu0 %v2302
    %4046 = vmatprep.subr.mxu0 %v2299
    %4047 = vmatpush1.msra.mxu0 %v2298
    %4048 = vmatprep.subr.mxu0 %v2295
    %4049 = vmatpush1.msra.mxu0 %v2294
    %4050 = vmatprep.subr.mxu0 %v2291
    %4051 = vmatpush1.msra.mxu0 %v2290
    %4052 = vmatprep.subr.mxu0 %v2287
    %4053 = vmatpush1.msra.mxu0 %v2286
    %4054 = vmatprep.subr.mxu0 %v2283
    %4055 = vmatpush1.msra.mxu0 %v2282
    %4056 = vmatprep.subr.mxu0 %v2279
    %4057 = vmatpush1.msra.mxu0 %v2278
    %4058 = vmatprep.subr.mxu0 0.0
    %4059 = vmatpush2.msra.mxu0 0.0
    %4060 = vmatprep.subr.mxu0 0.0
    %4061 = vmatpush2.msra.mxu0 0.0
    %4062 = vmatprep.subr.mxu0 0.0
    %4063 = vmatpush2.msra.mxu0 0.0
    %4064 = vmatprep.subr.mxu0 0.0
    %4065 = vmatpush2.msra.mxu0 0.0
    %4066 = vmatprep.subr.mxu0 0.0
    %4067 = vmatpush2.msra.mxu0 0.0
    %4068 = vmatprep.subr.mxu0 0.0
    %4069 = vmatpush2.msra.mxu0 0.0
    %4070 = vmatprep.subr.mxu0 0.0
    %4071 = vmatpush2.msra.mxu0 0.0
    %4072 = vmatprep.subr.mxu0 0.0
    %4073 = vmatpush2.msra.mxu0 0.0
    %4074 = vmatprep.subr.mxu0 0.0
    %4075 = vmatpush2.msra.mxu0 0.0
    %4076 = vmatprep.subr.mxu0 0.0
    %4077 = vmatpush2.msra.mxu0 0.0
    %4078 = vmatprep.subr.mxu0 0.0
    %4079 = vmatpush2.msra.mxu0 0.0
    %4080 = vmatprep.subr.mxu0 0.0
    %4081 = vmatpush2.msra.mxu0 0.0
    %4082 = vmatprep.subr.mxu0 0.0
    %4083 = vmatpush2.msra.mxu0 0.0
    %4084 = vmatprep.subr.mxu0 0.0
    %4085 = vmatpush2.msra.mxu0 0.0
    %4086 = vmatprep.subr.mxu0 0.0
    %4087 = vmatpush2.msra.mxu0 0.0
    %4088 = vmatprep.subr.mxu0 0.0
    %4089 = vmatpush2.msra.mxu0 0.0
    %4090 = vmatprep.mubr.f32.mxu0 0.0
    %4091 = vmatmul.mubr.f32.gmra.mxu0 %v3940
    %v4092 = vpop.f32.mrf.mxu0
    %v4093 = vadd.f32 0.0, %v4092
    %v4094 = vpop.f32.mrf.mxu0
    %v4095 = vadd.f32 0.0, %v4094
    %4096 = vdwg.mxu0
    %v4097 = vadd.f32 %v3951, %v4022
    %v4098 = vadd.f32 %v3952, %v4024
    %v4099 = vadd.f32 %v3953, %v4093
    %v4100 = vadd.f32 %v3954, %v4095
    %v4101 = vmul.f32 %v4097, 0.5
    %v4102 = vmul.f32 %v4098, 0.5
    %v4103 = vmul.f32 %v4099, 0.5
    %v4104 = vmul.f32 %v4100, 0.5
    %v4105 = vsel %vm848, %v4097, %v4101
    %v4106 = vsel %vm849, %v4098, %v4102
    %v4107 = vsel %vm850, %v4099, %v4103
    %v4108 = vsel %vm851, %v4100, %v4104
    %v4109 = vtanh.pop %v4105
    %v4110 = vtanh.pop %v4106
    %v4111 = vtanh.pop %v4107
    %v4112 = vtanh.pop %v4108
    %v4113 = vmul.f32 %v4109, 0.5
    %v4114 = vmul.f32 %v4110, 0.5
    %v4115 = vmul.f32 %v4111, 0.5
    %v4116 = vmul.f32 %v4112, 0.5
    %v4117 = vadd.f32 %v4113, 0.5
    %v4118 = vadd.f32 %v4114, 0.5
    %v4119 = vadd.f32 %v4115, 0.5
    %v4120 = vadd.f32 %v4116, 0.5
    %v4121 = vsel %vm848, %v4109, %v4117
    %v4122 = vsel %vm849, %v4110, %v4118
    %v4123 = vsel %vm850, %v4111, %v4119
    %v4124 = vsel %vm851, %v4112, %v4120
    %v4125 = vmul.f32 %v4122, %v3938
    %v4126 = vmul.f32 %v4121, %v4124
    %v4127 = vadd.f32 %v4125, %v4126
    %v4128 = vtanh.pop %v4127
    %v4129 = vmul.f32 %v4123, %v4128
    %4130 = vst.msk [vmem:[#allocation4 + $0x38] sm:$0xff] %vm877, %v4129
    %4131 = vst.msk [vmem:[#allocation4] sm:$0xff] %vm879, %v4129
    %v4132 = vld [vmem:[#allocation4] sm:$0xff]
    %v4133 = vld [vmem:[#allocation4 + $0x8] sm:$0xff]
    %v4134 = vld [vmem:[#allocation4 + $0x10] sm:$0xff]
    %v4135 = vld [vmem:[#allocation4 + $0x18] sm:$0xff]
    %v4136 = vld [vmem:[#allocation4 + $0x20] sm:$0xff]
    %v4137 = vld [vmem:[#allocation4 + $0x28] sm:$0xff]
    %v4138 = vld [vmem:[#allocation4 + $0x30] sm:$0xff]
    %v4139 = vld [vmem:[#allocation4 + $0x38] sm:$0xff]
    %4141 = vrot.lane.b32.xlu0 %v2201, 96
    %v4142 = vpop.permute.xlu0 %4141
    %4145 = vrot.lane.b32.xlu0 %v4129, 64
    %v4146 = vpop.permute.xlu0 %4145
    %4148 = vrot.lane.b32.xlu0 %v4129, 32
    %v4149 = vpop.permute.xlu0 %4148
    %v4151 = vsel %vm330, %v2201, %v4142
    %v4152 = vsel %vm877, %v4151, %v4146
    %vm4153 = vcmask 785408
    %v4154 = vsel %vm4153, %v4152, %v4149
    %v4155 = vld [vmem:[#allocation15] sm:$0xff]
    %v4156 = vld [vmem:[#allocation15 + $0x8] sm:$0xff]
    %v4157 = vld [vmem:[#allocation15 + $0x10] sm:$0xff]
    %v4158 = vld [vmem:[#allocation15 + $0x18] sm:$0xff]
    %v4159 = vld [vmem:[#allocation15 + $0x20] sm:$0xff]
    %v4160 = vld [vmem:[#allocation15 + $0x28] sm:$0xff]
    %v4161 = vld [vmem:[#allocation15 + $0x30] sm:$0xff]
    %v4162 = vld [vmem:[#allocation15 + $0x38] sm:$0xff]
    %v4163 = vld [vmem:[#allocation15 + $0x40] sm:$0xff]
    %v4164 = vld [vmem:[#allocation15 + $0x48] sm:$0xff]
    %v4165 = vld [vmem:[#allocation15 + $0x50] sm:$0xff]
    %v4166 = vld [vmem:[#allocation15 + $0x58] sm:$0xff]
    %v4167 = vld [vmem:[#allocation15 + $0x60] sm:$0xff]
    %v4168 = vld [vmem:[#allocation15 + $0x68] sm:$0xff]
    %v4169 = vld [vmem:[#allocation15 + $0x70] sm:$0xff]
    %v4170 = vld [vmem:[#allocation15 + $0x78] sm:$0xff]
    %4171 = vmatprep.subr.mxu0 0.0
    %4172 = vmatpush1.msra.mxu0 %v4170
    %4173 = vmatprep.subr.mxu0 0.0
    %4174 = vmatpush1.msra.mxu0 %v4169
    %4175 = vmatprep.subr.mxu0 0.0
    %4176 = vmatpush1.msra.mxu0 %v4168
    %4177 = vmatprep.subr.mxu0 0.0
    %4178 = vmatpush1.msra.mxu0 %v4167
    %4179 = vmatprep.subr.mxu0 0.0
    %4180 = vmatpush1.msra.mxu0 %v4166
    %4181 = vmatprep.subr.mxu0 0.0
    %4182 = vmatpush1.msra.mxu0 %v4165
    %4183 = vmatprep.subr.mxu0 0.0
    %4184 = vmatpush1.msra.mxu0 %v4164
    %4185 = vmatprep.subr.mxu0 0.0
    %4186 = vmatpush1.msra.mxu0 %v4163
    %4187 = vmatprep.subr.mxu0 0.0
    %4188 = vmatpush1.msra.mxu0 %v4162
    %4189 = vmatprep.subr.mxu0 0.0
    %4190 = vmatpush1.msra.mxu0 %v4161
    %4191 = vmatprep.subr.mxu0 0.0
    %4192 = vmatpush1.msra.mxu0 %v4160
    %4193 = vmatprep.subr.mxu0 0.0
    %4194 = vmatpush1.msra.mxu0 %v4159
    %4195 = vmatprep.subr.mxu0 0.0
    %4196 = vmatpush1.msra.mxu0 %v4158
    %4197 = vmatprep.subr.mxu0 0.0
    %4198 = vmatpush1.msra.mxu0 %v4157
    %4199 = vmatprep.subr.mxu0 0.0
    %4200 = vmatpush1.msra.mxu0 %v4156
    %4201 = vmatprep.subr.mxu0 0.0
    %4202 = vmatpush1.msra.mxu0 %v4155
    %4203 = vmatprep.subr.mxu0 0.0
    %4204 = vmatpush2.msra.mxu0 0.0
    %4205 = vmatprep.subr.mxu0 0.0
    %4206 = vmatpush2.msra.mxu0 0.0
    %4207 = vmatprep.subr.mxu0 0.0
    %4208 = vmatpush2.msra.mxu0 0.0
    %4209 = vmatprep.subr.mxu0 0.0
    %4210 = vmatpush2.msra.mxu0 0.0
    %4211 = vmatprep.subr.mxu0 0.0
    %4212 = vmatpush2.msra.mxu0 0.0
    %4213 = vmatprep.subr.mxu0 0.0
    %4214 = vmatpush2.msra.mxu0 0.0
    %4215 = vmatprep.subr.mxu0 0.0
    %4216 = vmatpush2.msra.mxu0 0.0
    %4217 = vmatprep.subr.mxu0 0.0
    %4218 = vmatpush2.msra.mxu0 0.0
    %4219 = vmatprep.subr.mxu0 0.0
    %4220 = vmatpush2.msra.mxu0 0.0
    %4221 = vmatprep.subr.mxu0 0.0
    %4222 = vmatpush2.msra.mxu0 0.0
    %4223 = vmatprep.subr.mxu0 0.0
    %4224 = vmatpush2.msra.mxu0 0.0
    %4225 = vmatprep.subr.mxu0 0.0
    %4226 = vmatpush2.msra.mxu0 0.0
    %4227 = vmatprep.subr.mxu0 0.0
    %4228 = vmatpush2.msra.mxu0 0.0
    %4229 = vmatprep.subr.mxu0 0.0
    %4230 = vmatpush2.msra.mxu0 0.0
    %4231 = vmatprep.subr.mxu0 0.0
    %4232 = vmatpush2.msra.mxu0 0.0
    %4233 = vmatprep.subr.mxu0 0.0
    %4234 = vmatpush2.msra.mxu0 0.0
    %4235 = vmatprep.mubr.f32.mxu0 0.0
    %4236 = vmatmul.mubr.f32.gmra.mxu0 %v4132
    %v4237 = vpop.f32.mrf.mxu0
    %v4238 = vadd.f32 0.0, %v4237
    %v4239 = vpop.f32.mrf.mxu0
    %4240 = vmatprep.mubr.f32.mxu0 0.0
    %4241 = vmatmul.mubr.f32.gmra.mxu0 %v4133
    %v4242 = vpop.f32.mrf.mxu0
    %v4243 = vadd.f32 0.0, %v4242
    %v4244 = vpop.f32.mrf.mxu0
    %4245 = vmatprep.mubr.f32.mxu0 0.0
    %4246 = vmatmul.mubr.f32.gmra.mxu0 %v4134
    %v4247 = vpop.f32.mrf.mxu0
    %v4248 = vadd.f32 0.0, %v4247
    %v4249 = vpop.f32.mrf.mxu0
    %4250 = vmatprep.mubr.f32.mxu0 0.0
    %4251 = vmatmul.mubr.f32.gmra.mxu0 %v4135
    %v4252 = vpop.f32.mrf.mxu0
    %v4253 = vadd.f32 0.0, %v4252
    %v4254 = vpop.f32.mrf.mxu0
    %4255 = vmatprep.mubr.f32.mxu0 0.0
    %4256 = vmatmul.mubr.f32.gmra.mxu0 %v4136
    %v4257 = vpop.f32.mrf.mxu0
    %v4258 = vadd.f32 0.0, %v4257
    %v4259 = vpop.f32.mrf.mxu0
    %4260 = vmatprep.mubr.f32.mxu0 0.0
    %4261 = vmatmul.mubr.f32.gmra.mxu0 %v4137
    %v4262 = vpop.f32.mrf.mxu0
    %v4263 = vadd.f32 0.0, %v4262
    %v4264 = vpop.f32.mrf.mxu0
    %4265 = vmatprep.mubr.f32.mxu0 0.0
    %4266 = vmatmul.mubr.f32.gmra.mxu0 %v4138
    %v4267 = vpop.f32.mrf.mxu0
    %v4268 = vadd.f32 0.0, %v4267
    %v4269 = vpop.f32.mrf.mxu0
    %4270 = vmatprep.mubr.f32.mxu0 0.0
    %4271 = vmatmul.mubr.f32.gmra.mxu0 %v4139
    %v4272 = vpop.f32.mrf.mxu0
    %v4273 = vadd.f32 0.0, %v4272
    %v4274 = vpop.f32.mrf.mxu0
    %4275 = vdwg.mxu0
    %v4276 = vmul.f32 %v4238, %v4154
    %4277 = vadd.xlane.f32.xlu0 %v4276
    %v4278 = vpop.xlane.xlu0 %4277
    %v4279 = vmul.f32 %v4243, %v4154
    %4280 = vadd.xlane.f32.xlu0 %v4279
    %v4281 = vpop.xlane.xlu0 %4280
    %v4282 = vmul.f32 %v4248, %v4154
    %4283 = vadd.xlane.f32.xlu0 %v4282
    %v4284 = vpop.xlane.xlu0 %4283
    %v4285 = vmul.f32 %v4253, %v4154
    %4286 = vadd.xlane.f32.xlu0 %v4285
    %v4287 = vpop.xlane.xlu0 %4286
    %v4288 = vmul.f32 %v4258, %v4154
    %4289 = vadd.xlane.f32.xlu0 %v4288
    %v4290 = vpop.xlane.xlu0 %4289
    %v4291 = vmul.f32 %v4263, %v4154
    %4292 = vadd.xlane.f32.xlu0 %v4291
    %v4293 = vpop.xlane.xlu0 %4292
    %v4294 = vmul.f32 %v4268, %v4154
    %4295 = vadd.xlane.f32.xlu0 %v4294
    %v4296 = vpop.xlane.xlu0 %4295
    %v4297 = vmul.f32 %v4273, %v4154
    %4298 = vadd.xlane.f32.xlu0 %v4297
    %v4299 = vpop.xlane.xlu0 %4298
    %vm4300 = vcmask 7168
    %v4301 = vsel %vm4300, %v4278, %v4281
    %vm4302 = vcmask 15360
    %v4303 = vsel %vm4302, %v4301, %v4284
    %vm4304 = vcmask 23552
    %v4305 = vsel %vm4304, %v4303, %v4287
    %vm4306 = vcmask 31744
    %v4307 = vsel %vm4306, %v4305, %v4290
    %vm4308 = vcmask 39936
    %v4309 = vsel %vm4308, %v4307, %v4293
    %vm4310 = vcmask 48128
    %v4311 = vsel %vm4310, %v4309, %v4296
    %vm4312 = vcmask 56320
    %v4313 = vsel %vm4312, %v4311, %v4299
    %vm4314 = vcmask 64512
    %v4315 = vsel %vm4314, %v4313, -inf
    %4316 = vmax.xlane.f32.xlu0 %v4315
    %v4317 = vpop.xlane.xlu0 %4316
    %v4318 = vsub.f32 %v4313, %v4317
    %v4319 = vmul.f32 %v4318, 1.442695
    %v4320 = vpow.pop %v4319
    %v4321 = vsel %vm4314, %v4320, 0.0
    %4322 = vadd.xlane.f32.xlu0 %v4321
    %v4323 = vpop.xlane.xlu0 %4322
    %v4324 = vrcp.pop %v4323
    %v4325 = vmul.f32 %v4320, %v4324
    %4327 = vset.pattern.permute.xlu0 0
    %4328 = vperm.xlu0 %4327, %v4325
    %v4329 = vpop.permute.xlu0 %4328
    %v4331 = vmul.f32 %v4329, %v4132
    %v4332 = vadd.f32 %v4331, 0.0
    %4333 = vset.pattern.permute.xlu0 1
    %4334 = vperm.xlu0 %4333, %v4325
    %v4335 = vpop.permute.xlu0 %4334
    %v4337 = vmul.f32 %v4335, %v4133
    %v4338 = vadd.f32 %v4332, %v4337
    %4339 = vset.pattern.permute.xlu0 2
    %4340 = vperm.xlu0 %4339, %v4325
    %v4341 = vpop.permute.xlu0 %4340
    %v4343 = vmul.f32 %v4341, %v4134
    %v4344 = vadd.f32 %v4338, %v4343
    %4345 = vset.pattern.permute.xlu0 3
    %4346 = vperm.xlu0 %4345, %v4325
    %v4347 = vpop.permute.xlu0 %4346
    %v4349 = vmul.f32 %v4347, %v4135
    %v4350 = vadd.f32 %v4344, %v4349
    %4351 = vset.pattern.permute.xlu0 4
    %4352 = vperm.xlu0 %4351, %v4325
    %v4353 = vpop.permute.xlu0 %4352
    %v4355 = vmul.f32 %v4353, %v4136
    %v4356 = vadd.f32 %v4350, %v4355
    %4357 = vset.pattern.permute.xlu0 5
    %4358 = vperm.xlu0 %4357, %v4325
    %v4359 = vpop.permute.xlu0 %4358
    %v4361 = vmul.f32 %v4359, %v4137
    %v4362 = vadd.f32 %v4356, %v4361
    %4363 = vset.pattern.permute.xlu0 6
    %4364 = vperm.xlu0 %4363, %v4325
    %v4365 = vpop.permute.xlu0 %4364
    %v4367 = vmul.f32 %v4365, %v4138
    %v4368 = vadd.f32 %v4362, %v4367
    %4369 = vset.pattern.permute.xlu0 7
    %4370 = vperm.xlu0 %4369, %v4325
    %v4371 = vpop.permute.xlu0 %4370
    %v4373 = vmul.f32 %v4371, %v4139
    %v4374 = vadd.f32 %v4368, %v4373
    %4376 = vrot.lane.b32.xlu0 %v4374, 96
    %v4377 = vpop.permute.xlu0 %4376
    %v4379 = vsel %vm330, %v4374, %v4377
    %4380 = vst.msk [vmem:[%s24] sm:$0xff] %vm877, %v4379
    %v4381 = vld [vmem:[%s18] sm:$0xff]
    %v4382 = vld [vmem:[%s18 + $0x8] sm:$0xff]
    %v4383 = vld [vmem:[%s18 + $0x10] sm:$0xff]
    %v4384 = vld [vmem:[%s18 + $0x18] sm:$0xff]
    %v4385 = vld [vmem:[%s18 + $0x20] sm:$0xff]
    %v4386 = vld [vmem:[%s18 + $0x28] sm:$0xff]
    %v4387 = vld [vmem:[%s18 + $0x30] sm:$0xff]
    %v4388 = vld [vmem:[%s18 + $0x38] sm:$0xff]
    %v4389 = vld [vmem:[#allocation16] sm:$0x1]
    %v4390 = vld [vmem:[%s3] sm:$0xff]
    %v4392 = vlaneseq
    %v4393 = vshrl.u32 %v4392, 7
    %v4394 = vsub.s32 0, %v4393
    %v4395 = vrot.slane %v4389, %v4394
    %v4398 = vsel %vm877, %v4379, 0
    %4400 = vmatprep.subr.mxu0 0.0
    %4401 = vmatpush1.msra.mxu0 0.0
    %4402 = vmatprep.subr.mxu0 0.0
    %4403 = vmatpush1.msra.mxu0 0.0
    %4404 = vmatprep.subr.mxu0 0.0
    %4405 = vmatpush1.msra.mxu0 0.0
    %4406 = vmatprep.subr.mxu0 0.0
    %4407 = vmatpush1.msra.mxu0 0.0
    %4408 = vmatprep.subr.mxu0 0.0
    %4409 = vmatpush1.msra.mxu0 0.0
    %4410 = vmatprep.subr.mxu0 0.0
    %4411 = vmatpush1.msra.mxu0 0.0
    %4412 = vmatprep.subr.mxu0 0.0
    %4413 = vmatpush1.msra.mxu0 0.0
    %4414 = vmatprep.subr.mxu0 0.0
    %4415 = vmatpush1.msra.mxu0 0.0
    %4416 = vmatprep.subr.mxu0 0.0
    %4417 = vmatpush1.msra.mxu0 %v4388
    %4418 = vmatprep.subr.mxu0 0.0
    %4419 = vmatpush1.msra.mxu0 %v4387
    %4420 = vmatprep.subr.mxu0 0.0
    %4421 = vmatpush1.msra.mxu0 %v4386
    %4422 = vmatprep.subr.mxu0 0.0
    %4423 = vmatpush1.msra.mxu0 %v4385
    %4424 = vmatprep.subr.mxu0 0.0
    %4425 = vmatpush1.msra.mxu0 %v4384
    %4426 = vmatprep.subr.mxu0 0.0
    %4427 = vmatpush1.msra.mxu0 %v4383
    %4428 = vmatprep.subr.mxu0 0.0
    %4429 = vmatpush1.msra.mxu0 %v4382
    %4430 = vmatprep.subr.mxu0 0.0
    %4431 = vmatpush1.msra.mxu0 %v4381
    %4432 = vmatprep.subr.mxu0 0.0
    %4433 = vmatpush2.msra.mxu0 0.0
    %4434 = vmatprep.subr.mxu0 0.0
    %4435 = vmatpush2.msra.mxu0 0.0
    %4436 = vmatprep.subr.mxu0 0.0
    %4437 = vmatpush2.msra.mxu0 0.0
    %4438 = vmatprep.subr.mxu0 0.0
    %4439 = vmatpush2.msra.mxu0 0.0
    %4440 = vmatprep.subr.mxu0 0.0
    %4441 = vmatpush2.msra.mxu0 0.0
    %4442 = vmatprep.subr.mxu0 0.0
    %4443 = vmatpush2.msra.mxu0 0.0
    %4444 = vmatprep.subr.mxu0 0.0
    %4445 = vmatpush2.msra.mxu0 0.0
    %4446 = vmatprep.subr.mxu0 0.0
    %4447 = vmatpush2.msra.mxu0 0.0
    %4448 = vmatprep.subr.mxu0 0.0
    %4449 = vmatpush2.msra.mxu0 0.0
    %4450 = vmatprep.subr.mxu0 0.0
    %4451 = vmatpush2.msra.mxu0 0.0
    %4452 = vmatprep.subr.mxu0 0.0
    %4453 = vmatpush2.msra.mxu0 0.0
    %4454 = vmatprep.subr.mxu0 0.0
    %4455 = vmatpush2.msra.mxu0 0.0
    %4456 = vmatprep.subr.mxu0 0.0
    %4457 = vmatpush2.msra.mxu0 0.0
    %4458 = vmatprep.subr.mxu0 0.0
    %4459 = vmatpush2.msra.mxu0 0.0
    %4460 = vmatprep.subr.mxu0 0.0
    %4461 = vmatpush2.msra.mxu0 0.0
    %4462 = vmatprep.subr.mxu0 0.0
    %4463 = vmatpush2.msra.mxu0 0.0
    %4464 = vmatprep.mubr.f32.mxu0 0.0
    %4465 = vmatmul.mubr.f32.gmra.mxu0 %v4398
    %v4466 = vpop.f32.mrf.mxu0
    %v4467 = vadd.f32 %v4395, %v4466
    %v4468 = vpop.f32.mrf.mxu0
    %4469 = vdwg.mxu0
    %v4470 = vsel %vm4308, %v4467, -inf
    %4471 = vmax.xlane.f32.xlu0 %v4470
    %v4472 = vpop.xlane.xlu0 %4471
    %v4473 = vsub.f32 %v4467, %v4472
    %v4474 = vmul.f32 %v4473, 1.442695
    %v4475 = vpow.pop %v4474
    %v4476 = vsel %vm4308, %v4475, 0.0
    %4477 = vadd.xlane.f32.xlu0 %v4476
    %v4478 = vpop.xlane.xlu0 %4477
    %v4479 = vlog2.pop %v4478
    %v4480 = vmul.f32 %v4479, 0.6931472
    %v4481 = vadd.f32 %v4480, %v4472
    %v4482 = vsub.f32 %v4467, %v4481
    %4483 = vset.pattern.permute.xlu0 0
    %4484 = vperm.xlu0 %4483, %v4390
    %v4485 = vpop.permute.xlu0 %4484
    %vm4486 = vcmp.eq.s32.totalorder %v614, %v4485
    %v4487 = vsel %vm4486, 1, 0
    %v4488 = vcvt.s32.f32 %v4487
    %v4489 = vmul.f32 %v4482, %v4488
    %v4490 = vsel %vm4308, %v4489, 0.0
    %4491 = vadd.xlane.f32.xlu0 %v4490
    %v4492 = vpop.xlane.xlu0 %4491
    %v4493 = vsub.f32 0.0, %v4492
    %v4494 = vld [vmem:[%s20] sm:$0xff]
    %v4495 = vld [vmem:[%s20 + $0x8] sm:$0xff]
    %v4496 = vld [vmem:[%s20 + $0x10] sm:$0xff]
    %v4497 = vld [vmem:[%s20 + $0x18] sm:$0xff]
    %v4498 = vld [vmem:[%s20 + $0x20] sm:$0xff]
    %v4499 = vld [vmem:[%s20 + $0x28] sm:$0xff]
    %v4500 = vld [vmem:[%s20 + $0x30] sm:$0xff]
    %v4501 = vld [vmem:[%s20 + $0x38] sm:$0xff]
    %v4502 = vld [vmem:[%s20 + $0x40] sm:$0xff]
    %v4503 = vld [vmem:[%s20 + $0x48] sm:$0xff]
    %v4504 = vld [vmem:[%s20 + $0x50] sm:$0xff]
    %v4505 = vld [vmem:[%s20 + $0x58] sm:$0xff]
    %v4506 = vld [vmem:[%s20 + $0x60] sm:$0xff]
    %v4507 = vld [vmem:[%s20 + $0x68] sm:$0xff]
    %v4508 = vld [vmem:[%s20 + $0x70] sm:$0xff]
    %v4509 = vld [vmem:[%s20 + $0x78] sm:$0xff]
    %v4510 = vld [vmem:[#allocation18] sm:$0x1]
    %v4512 = vlaneseq
    %v4513 = vshrl.u32 %v4512, 7
    %v4514 = vsub.s32 0, %v4513
    %v4515 = vrot.slane %v4510, %v4514
    %4517 = vmatprep.subr.mxu0 0.0
    %4518 = vmatpush1.msra.mxu0 %v4509
    %4519 = vmatprep.subr.mxu0 0.0
    %4520 = vmatpush1.msra.mxu0 %v4508
    %4521 = vmatprep.subr.mxu0 0.0
    %4522 = vmatpush1.msra.mxu0 %v4507
    %4523 = vmatprep.subr.mxu0 0.0
    %4524 = vmatpush1.msra.mxu0 %v4506
    %4525 = vmatprep.subr.mxu0 0.0
    %4526 = vmatpush1.msra.mxu0 %v4505
    %4527 = vmatprep.subr.mxu0 0.0
    %4528 = vmatpush1.msra.mxu0 %v4504
    %4529 = vmatprep.subr.mxu0 0.0
    %4530 = vmatpush1.msra.mxu0 %v4503
    %4531 = vmatprep.subr.mxu0 0.0
    %4532 = vmatpush1.msra.mxu0 %v4502
    %4533 = vmatprep.subr.mxu0 0.0
    %4534 = vmatpush1.msra.mxu0 %v4501
    %4535 = vmatprep.subr.mxu0 0.0
    %4536 = vmatpush1.msra.mxu0 %v4500
    %4537 = vmatprep.subr.mxu0 0.0
    %4538 = vmatpush1.msra.mxu0 %v4499
    %4539 = vmatprep.subr.mxu0 0.0
    %4540 = vmatpush1.msra.mxu0 %v4498
    %4541 = vmatprep.subr.mxu0 0.0
    %4542 = vmatpush1.msra.mxu0 %v4497
    %4543 = vmatprep.subr.mxu0 0.0
    %4544 = vmatpush1.msra.mxu0 %v4496
    %4545 = vmatprep.subr.mxu0 0.0
    %4546 = vmatpush1.msra.mxu0 %v4495
    %4547 = vmatprep.subr.mxu0 0.0
    %4548 = vmatpush1.msra.mxu0 %v4494
    %4549 = vmatprep.subr.mxu0 0.0
    %4550 = vmatpush2.msra.mxu0 0.0
    %4551 = vmatprep.subr.mxu0 0.0
    %4552 = vmatpush2.msra.mxu0 0.0
    %4553 = vmatprep.subr.mxu0 0.0
    %4554 = vmatpush2.msra.mxu0 0.0
    %4555 = vmatprep.subr.mxu0 0.0
    %4556 = vmatpush2.msra.mxu0 0.0
    %4557 = vmatprep.subr.mxu0 0.0
    %4558 = vmatpush2.msra.mxu0 0.0
    %4559 = vmatprep.subr.mxu0 0.0
    %4560 = vmatpush2.msra.mxu0 0.0
    %4561 = vmatprep.subr.mxu0 0.0
    %4562 = vmatpush2.msra.mxu0 0.0
    %4563 = vmatprep.subr.mxu0 0.0
    %4564 = vmatpush2.msra.mxu0 0.0
    %4565 = vmatprep.subr.mxu0 0.0
    %4566 = vmatpush2.msra.mxu0 0.0
    %4567 = vmatprep.subr.mxu0 0.0
    %4568 = vmatpush2.msra.mxu0 0.0
    %4569 = vmatprep.subr.mxu0 0.0
    %4570 = vmatpush2.msra.mxu0 0.0
    %4571 = vmatprep.subr.mxu0 0.0
    %4572 = vmatpush2.msra.mxu0 0.0
    %4573 = vmatprep.subr.mxu0 0.0
    %4574 = vmatpush2.msra.mxu0 0.0
    %4575 = vmatprep.subr.mxu0 0.0
    %4576 = vmatpush2.msra.mxu0 0.0
    %4577 = vmatprep.subr.mxu0 0.0
    %4578 = vmatpush2.msra.mxu0 0.0
    %4579 = vmatprep.subr.mxu0 0.0
    %4580 = vmatpush2.msra.mxu0 0.0
    %4581 = vmatprep.mubr.f32.mxu0 0.0
    %4582 = vmatmul.mubr.f32.gmra.mxu0 %v4132
    %v4583 = vpop.f32.mrf.mxu0
    %v4584 = vadd.f32 %v4515, %v4583
    %v4585 = vpop.f32.mrf.mxu0
    %4586 = vmatprep.mubr.f32.mxu0 0.0
    %4587 = vmatmul.mubr.f32.gmra.mxu0 %v4133
    %v4588 = vpop.f32.mrf.mxu0
    %v4589 = vadd.f32 %v4515, %v4588
    %v4590 = vpop.f32.mrf.mxu0
    %4591 = vmatprep.mubr.f32.mxu0 0.0
    %4592 = vmatmul.mubr.f32.gmra.mxu0 %v4134
    %v4593 = vpop.f32.mrf.mxu0
    %v4594 = vadd.f32 %v4515, %v4593
    %v4595 = vpop.f32.mrf.mxu0
    %4596 = vmatprep.mubr.f32.mxu0 0.0
    %4597 = vmatmul.mubr.f32.gmra.mxu0 %v4135
    %v4598 = vpop.f32.mrf.mxu0
    %v4599 = vadd.f32 %v4515, %v4598
    %v4600 = vpop.f32.mrf.mxu0
    %4601 = vmatprep.mubr.f32.mxu0 0.0
    %4602 = vmatmul.mubr.f32.gmra.mxu0 %v4136
    %v4603 = vpop.f32.mrf.mxu0
    %v4604 = vadd.f32 %v4515, %v4603
    %v4605 = vpop.f32.mrf.mxu0
    %4606 = vmatprep.mubr.f32.mxu0 0.0
    %4607 = vmatmul.mubr.f32.gmra.mxu0 %v4137
    %v4608 = vpop.f32.mrf.mxu0
    %v4609 = vadd.f32 %v4515, %v4608
    %v4610 = vpop.f32.mrf.mxu0
    %4611 = vmatprep.mubr.f32.mxu0 0.0
    %4612 = vmatmul.mubr.f32.gmra.mxu0 %v4138
    %v4613 = vpop.f32.mrf.mxu0
    %v4614 = vadd.f32 %v4515, %v4613
    %v4615 = vpop.f32.mrf.mxu0
    %4616 = vmatprep.mubr.f32.mxu0 0.0
    %4617 = vmatmul.mubr.f32.gmra.mxu0 %v4139
    %v4618 = vpop.f32.mrf.mxu0
    %v4619 = vadd.f32 %v4515, %v4618
    %v4620 = vpop.f32.mrf.mxu0
    %4621 = vdwg.mxu0
    %v4622 = vsel %vm4302, %v4584, -inf
    %4623 = vmax.xlane.f32.xlu0 %v4622
    %v4624 = vpop.xlane.xlu0 %4623
    %v4625 = vsel %vm4302, %v4589, -inf
    %4626 = vmax.xlane.f32.xlu0 %v4625
    %v4627 = vpop.xlane.xlu0 %4626
    %v4628 = vsel %vm4302, %v4594, -inf
    %4629 = vmax.xlane.f32.xlu0 %v4628
    %v4630 = vpop.xlane.xlu0 %4629
    %v4631 = vsel %vm4302, %v4599, -inf
    %4632 = vmax.xlane.f32.xlu0 %v4631
    %v4633 = vpop.xlane.xlu0 %4632
    %v4634 = vsel %vm4302, %v4604, -inf
    %4635 = vmax.xlane.f32.xlu0 %v4634
    %v4636 = vpop.xlane.xlu0 %4635
    %v4637 = vsel %vm4302, %v4609, -inf
    %4638 = vmax.xlane.f32.xlu0 %v4637
    %v4639 = vpop.xlane.xlu0 %4638
    %v4640 = vsel %vm4302, %v4614, -inf
    %4641 = vmax.xlane.f32.xlu0 %v4640
    %v4642 = vpop.xlane.xlu0 %4641
    %v4643 = vsel %vm4302, %v4619, -inf
    %4644 = vmax.xlane.f32.xlu0 %v4643
    %v4645 = vpop.xlane.xlu0 %4644
    %v4646 = vsub.f32 %v4584, %v4624
    %v4647 = vsub.f32 %v4589, %v4627
    %v4648 = vsub.f32 %v4594, %v4630
    %v4649 = vsub.f32 %v4599, %v4633
    %v4650 = vsub.f32 %v4604, %v4636
    %v4651 = vsub.f32 %v4609, %v4639
    %v4652 = vsub.f32 %v4614, %v4642
    %v4653 = vsub.f32 %v4619, %v4645
    %v4654 = vmul.f32 %v4646, 1.442695
    %v4655 = vpow.pop %v4654
    %v4656 = vmul.f32 %v4647, 1.442695
    %v4657 = vpow.pop %v4656
    %v4658 = vmul.f32 %v4648, 1.442695
    %v4659 = vpow.pop %v4658
    %v4660 = vmul.f32 %v4649, 1.442695
    %v4661 = vpow.pop %v4660
    %v4662 = vmul.f32 %v4650, 1.442695
    %v4663 = vpow.pop %v4662
    %v4664 = vmul.f32 %v4651, 1.442695
    %v4665 = vpow.pop %v4664
    %v4666 = vmul.f32 %v4652, 1.442695
    %v4667 = vpow.pop %v4666
    %v4668 = vmul.f32 %v4653, 1.442695
    %v4669 = vpow.pop %v4668
    %v4670 = vsel %vm4302, %v4655, 0.0
    %4671 = vadd.xlane.f32.xlu0 %v4670
    %v4672 = vpop.xlane.xlu0 %4671
    %v4673 = vsel %vm4302, %v4657, 0.0
    %4674 = vadd.xlane.f32.xlu0 %v4673
    %v4675 = vpop.xlane.xlu0 %4674
    %v4676 = vsel %vm4302, %v4659, 0.0
    %4677 = vadd.xlane.f32.xlu0 %v4676
    %v4678 = vpop.xlane.xlu0 %4677
    %v4679 = vsel %vm4302, %v4661, 0.0
    %4680 = vadd.xlane.f32.xlu0 %v4679
    %v4681 = vpop.xlane.xlu0 %4680
    %v4682 = vsel %vm4302, %v4663, 0.0
    %4683 = vadd.xlane.f32.xlu0 %v4682
    %v4684 = vpop.xlane.xlu0 %4683
    %v4685 = vsel %vm4302, %v4665, 0.0
    %4686 = vadd.xlane.f32.xlu0 %v4685
    %v4687 = vpop.xlane.xlu0 %4686
    %v4688 = vsel %vm4302, %v4667, 0.0
    %4689 = vadd.xlane.f32.xlu0 %v4688
    %v4690 = vpop.xlane.xlu0 %4689
    %v4691 = vsel %vm4302, %v4669, 0.0
    %4692 = vadd.xlane.f32.xlu0 %v4691
    %v4693 = vpop.xlane.xlu0 %4692
    %v4694 = vlog2.pop %v4672
    %v4695 = vmul.f32 %v4694, 0.6931472
    %v4696 = vlog2.pop %v4675
    %v4697 = vmul.f32 %v4696, 0.6931472
    %v4698 = vlog2.pop %v4678
    %v4699 = vmul.f32 %v4698, 0.6931472
    %v4700 = vlog2.pop %v4681
    %v4701 = vmul.f32 %v4700, 0.6931472
    %v4702 = vlog2.pop %v4684
    %v4703 = vmul.f32 %v4702, 0.6931472
    %v4704 = vlog2.pop %v4687
    %v4705 = vmul.f32 %v4704, 0.6931472
    %v4706 = vlog2.pop %v4690
    %v4707 = vmul.f32 %v4706, 0.6931472
    %v4708 = vlog2.pop %v4693
    %v4709 = vmul.f32 %v4708, 0.6931472
    %v4710 = vadd.f32 %v4695, %v4624
    %v4711 = vadd.f32 %v4697, %v4627
    %v4712 = vadd.f32 %v4699, %v4630
    %v4713 = vadd.f32 %v4701, %v4633
    %v4714 = vadd.f32 %v4703, %v4636
    %v4715 = vadd.f32 %v4705, %v4639
    %v4716 = vadd.f32 %v4707, %v4642
    %v4717 = vadd.f32 %v4709, %v4645
    %v4718 = vsub.f32 %v4584, %v4710
    %v4719 = vsub.f32 %v4589, %v4711
    %v4720 = vsub.f32 %v4594, %v4712
    %v4721 = vsub.f32 %v4599, %v4713
    %v4722 = vsub.f32 %v4604, %v4714
    %v4723 = vsub.f32 %v4609, %v4715
    %v4724 = vsub.f32 %v4614, %v4716
    %v4725 = vsub.f32 %v4619, %v4717
    %v4726 = vmul.f32 %v4718, 1.442695
    %v4727 = vpow.pop %v4726
    %v4728 = vmul.f32 %v4719, 1.442695
    %v4729 = vpow.pop %v4728
    %v4730 = vmul.f32 %v4720, 1.442695
    %v4731 = vpow.pop %v4730
    %v4732 = vmul.f32 %v4721, 1.442695
    %v4733 = vpow.pop %v4732
    %v4734 = vmul.f32 %v4722, 1.442695
    %v4735 = vpow.pop %v4734
    %v4736 = vmul.f32 %v4723, 1.442695
    %v4737 = vpow.pop %v4736
    %v4738 = vmul.f32 %v4724, 1.442695
    %v4739 = vpow.pop %v4738
    %v4740 = vmul.f32 %v4725, 1.442695
    %v4741 = vpow.pop %v4740
    %v4742 = vld [vmem:[%s4] sm:$0x1]
    %v4744 = vlaneseq
    %v4745 = vshrl.u32 %v4744, 7
    %v4746 = vsub.s32 0, %v4745
    %v4747 = vrot.slane %v4742, %v4746
    %v4749 = vsub.f32 %v4718, %v4747
    %v4750 = vsub.f32 %v4719, %v4747
    %v4751 = vsub.f32 %v4720, %v4747
    %v4752 = vsub.f32 %v4721, %v4747
    %v4753 = vsub.f32 %v4722, %v4747
    %v4754 = vsub.f32 %v4723, %v4747
    %v4755 = vsub.f32 %v4724, %v4747
    %v4756 = vsub.f32 %v4725, %v4747
    %v4757 = vmul.f32 %v4727, %v4749
    %v4758 = vmul.f32 %v4729, %v4750
    %v4759 = vmul.f32 %v4731, %v4751
    %v4760 = vmul.f32 %v4733, %v4752
    %v4761 = vmul.f32 %v4735, %v4753
    %v4762 = vmul.f32 %v4737, %v4754
    %v4763 = vmul.f32 %v4739, %v4755
    %v4764 = vmul.f32 %v4741, %v4756
    %v4765 = vadd.f32 %v4757, 1e-06
    %v4766 = vadd.f32 %v4758, 1e-06
    %v4767 = vadd.f32 %v4759, 1e-06
    %v4768 = vadd.f32 %v4760, 1e-06
    %v4769 = vadd.f32 %v4761, 1e-06
    %v4770 = vadd.f32 %v4762, 1e-06
    %v4771 = vadd.f32 %v4763, 1e-06
    %v4772 = vadd.f32 %v4764, 1e-06
    %v4773 = vsel %vm4302, %v4765, 0.0
    %4774 = vadd.xlane.f32.xlu0 %v4773
    %v4775 = vpop.xlane.xlu0 %4774
    %v4776 = vsel %vm4302, %v4766, 0.0
    %4777 = vadd.xlane.f32.xlu0 %v4776
    %v4778 = vpop.xlane.xlu0 %4777
    %v4779 = vsel %vm4302, %v4767, 0.0
    %4780 = vadd.xlane.f32.xlu0 %v4779
    %v4781 = vpop.xlane.xlu0 %4780
    %v4782 = vsel %vm4302, %v4768, 0.0
    %4783 = vadd.xlane.f32.xlu0 %v4782
    %v4784 = vpop.xlane.xlu0 %4783
    %v4785 = vsel %vm4302, %v4769, 0.0
    %4786 = vadd.xlane.f32.xlu0 %v4785
    %v4787 = vpop.xlane.xlu0 %4786
    %v4788 = vsel %vm4302, %v4770, 0.0
    %4789 = vadd.xlane.f32.xlu0 %v4788
    %v4790 = vpop.xlane.xlu0 %4789
    %v4791 = vsel %vm4302, %v4771, 0.0
    %4792 = vadd.xlane.f32.xlu0 %v4791
    %v4793 = vpop.xlane.xlu0 %4792
    %v4794 = vsel %vm4302, %v4772, 0.0
    %4795 = vadd.xlane.f32.xlu0 %v4794
    %v4796 = vpop.xlane.xlu0 %4795
    %v4797 = vadd.f32 %v4775, %v4778
    %v4798 = vadd.f32 %v4797, %v4781
    %v4799 = vadd.f32 %v4798, %v4784
    %v4800 = vadd.f32 %v4799, %v4787
    %v4801 = vadd.f32 %v4800, %v4790
    %v4802 = vadd.f32 %v4801, %v4793
    %v4803 = vadd.f32 %v4802, %v4796
    %v4804 = vmul.f32 %v4803, 0.01
    %v4805 = vld [vmem:[%s1] sm:$0xff]
    %v4806 = vld [vmem:[%s1 + $0x8] sm:$0xff]
    %v4807 = vld [vmem:[%s1 + $0x10] sm:$0xff]
    %v4808 = vld [vmem:[%s1 + $0x18] sm:$0xff]
    %v4809 = vld [vmem:[%s1 + $0x20] sm:$0xff]
    %v4810 = vld [vmem:[%s1 + $0x28] sm:$0xff]
    %v4811 = vld [vmem:[%s1 + $0x30] sm:$0xff]
    %v4812 = vld [vmem:[%s1 + $0x38] sm:$0xff]
    %v4813 = vld [vmem:[%s2] sm:$0xff]
    %v4814 = vld [vmem:[%s2 + $0x8] sm:$0xff]
    %v4815 = vld [vmem:[%s2 + $0x10] sm:$0xff]
    %v4816 = vld [vmem:[%s2 + $0x18] sm:$0xff]
    %v4817 = vld [vmem:[%s2 + $0x20] sm:$0xff]
    %v4818 = vld [vmem:[%s2 + $0x28] sm:$0xff]
    %v4819 = vld [vmem:[%s2 + $0x30] sm:$0xff]
    %v4820 = vld [vmem:[%s2 + $0x38] sm:$0xff]
    %v4821 = vadd.f32 %v4584, %v4813
    %v4822 = vadd.f32 %v4589, %v4814
    %v4823 = vadd.f32 %v4594, %v4815
    %v4824 = vadd.f32 %v4599, %v4816
    %v4825 = vadd.f32 %v4604, %v4817
    %v4826 = vadd.f32 %v4609, %v4818
    %v4827 = vadd.f32 %v4614, %v4819
    %v4828 = vadd.f32 %v4619, %v4820
    %4837 = vrot.lane.b32.xlu0 %v4821, 1
    %v4838 = vpop.permute.xlu0 %4837
    %4839 = vrot.lane.b32.xlu0 %v4822, 1
    %v4840 = vpop.permute.xlu0 %4839
    %4841 = vrot.lane.b32.xlu0 %v4823, 1
    %v4842 = vpop.permute.xlu0 %4841
    %4843 = vrot.lane.b32.xlu0 %v4824, 1
    %v4844 = vpop.permute.xlu0 %4843
    %4845 = vrot.lane.b32.xlu0 %v4825, 1
    %v4846 = vpop.permute.xlu0 %4845
    %4847 = vrot.lane.b32.xlu0 %v4826, 1
    %v4848 = vpop.permute.xlu0 %4847
    %4849 = vrot.lane.b32.xlu0 %v4827, 1
    %v4850 = vpop.permute.xlu0 %4849
    %4851 = vrot.lane.b32.xlu0 %v4828, 1
    %v4852 = vpop.permute.xlu0 %4851
    %vm4861 = vcmp.gt.f32.partialorder %v4821, %v4838
    %vm4862 = vcmp.gt.f32.partialorder %v4822, %v4840
    %vm4863 = vcmp.gt.f32.partialorder %v4823, %v4842
    %vm4864 = vcmp.gt.f32.partialorder %v4824, %v4844
    %vm4865 = vcmp.gt.f32.partialorder %v4825, %v4846
    %vm4866 = vcmp.gt.f32.partialorder %v4826, %v4848
    %vm4867 = vcmp.gt.f32.partialorder %v4827, %v4850
    %vm4868 = vcmp.gt.f32.partialorder %v4828, %v4852
    %v4869 = vsel %vm4861, 1.0, 0.0
    %v4870 = vsel %vm4862, 1.0, 0.0
    %v4871 = vsel %vm4863, 1.0, 0.0
    %v4872 = vsel %vm4864, 1.0, 0.0
    %v4873 = vsel %vm4865, 1.0, 0.0
    %v4874 = vsel %vm4866, 1.0, 0.0
    %v4875 = vsel %vm4867, 1.0, 0.0
    %v4876 = vsel %vm4868, 1.0, 0.0
    %4885 = vrot.lane.b32.xlu0 %v4805, 1
    %v4886 = vpop.permute.xlu0 %4885
    %4887 = vrot.lane.b32.xlu0 %v4806, 1
    %v4888 = vpop.permute.xlu0 %4887
    %4889 = vrot.lane.b32.xlu0 %v4807, 1
    %v4890 = vpop.permute.xlu0 %4889
    %4891 = vrot.lane.b32.xlu0 %v4808, 1
    %v4892 = vpop.permute.xlu0 %4891
    %4893 = vrot.lane.b32.xlu0 %v4809, 1
    %v4894 = vpop.permute.xlu0 %4893
    %4895 = vrot.lane.b32.xlu0 %v4810, 1
    %v4896 = vpop.permute.xlu0 %4895
    %4897 = vrot.lane.b32.xlu0 %v4811, 1
    %v4898 = vpop.permute.xlu0 %4897
    %4899 = vrot.lane.b32.xlu0 %v4812, 1
    %v4900 = vpop.permute.xlu0 %4899
    %v4909 = vmul.f32 %v4869, %v4886
    %v4910 = vmul.f32 %v4870, %v4888
    %v4911 = vmul.f32 %v4871, %v4890
    %v4912 = vmul.f32 %v4872, %v4892
    %v4913 = vmul.f32 %v4873, %v4894
    %v4914 = vmul.f32 %v4874, %v4896
    %v4915 = vmul.f32 %v4875, %v4898
    %v4916 = vmul.f32 %v4876, %v4900
    %vm4917 = vcmp.eq.f32.partialorder %v4909, 0.0
    %vm4918 = vcmp.eq.f32.partialorder %v4910, 0.0
    %vm4919 = vcmp.eq.f32.partialorder %v4911, 0.0
    %vm4920 = vcmp.eq.f32.partialorder %v4912, 0.0
    %vm4921 = vcmp.eq.f32.partialorder %v4913, 0.0
    %vm4922 = vcmp.eq.f32.partialorder %v4914, 0.0
    %vm4923 = vcmp.eq.f32.partialorder %v4915, 0.0
    %vm4924 = vcmp.eq.f32.partialorder %v4916, 0.0
    %4933 = vrot.lane.b32.xlu0 %v4718, 1
    %v4934 = vpop.permute.xlu0 %4933
    %4935 = vrot.lane.b32.xlu0 %v4719, 1
    %v4936 = vpop.permute.xlu0 %4935
    %4937 = vrot.lane.b32.xlu0 %v4720, 1
    %v4938 = vpop.permute.xlu0 %4937
    %4939 = vrot.lane.b32.xlu0 %v4721, 1
    %v4940 = vpop.permute.xlu0 %4939
    %4941 = vrot.lane.b32.xlu0 %v4722, 1
    %v4942 = vpop.permute.xlu0 %4941
    %4943 = vrot.lane.b32.xlu0 %v4723, 1
    %v4944 = vpop.permute.xlu0 %4943
    %4945 = vrot.lane.b32.xlu0 %v4724, 1
    %v4946 = vpop.permute.xlu0 %4945
    %4947 = vrot.lane.b32.xlu0 %v4725, 1
    %v4948 = vpop.permute.xlu0 %4947
    %v4957 = vsel %vm4917, %v4934, %v4718
    %v4958 = vsel %vm4918, %v4936, %v4719
    %v4959 = vsel %vm4919, %v4938, %v4720
    %v4960 = vsel %vm4920, %v4940, %v4721
    %v4961 = vsel %vm4921, %v4942, %v4722
    %v4962 = vsel %vm4922, %v4944, %v4723
    %v4963 = vsel %vm4923, %v4946, %v4724
    %v4964 = vsel %vm4924, %v4948, %v4725
    %v4965 = vmul.f32 %v4957, %v4886
    %v4966 = vmul.f32 %v4958, %v4888
    %v4967 = vmul.f32 %v4959, %v4890
    %v4968 = vmul.f32 %v4960, %v4892
    %v4969 = vmul.f32 %v4961, %v4894
    %v4970 = vmul.f32 %v4962, %v4896
    %v4971 = vmul.f32 %v4963, %v4898
    %v4972 = vmul.f32 %v4964, %v4900
    %4974 = vrot.lane.b32.xlu0 %v4965, 127
    %v4975 = vpop.permute.xlu0 %4974
    %4978 = vrot.lane.b32.xlu0 %v4967, 1
    %v4979 = vpop.permute.xlu0 %4978
    %4982 = vrot.lane.b32.xlu0 %v4968, 2
    %v4983 = vpop.permute.xlu0 %4982
    %4986 = vrot.lane.b32.xlu0 %v4969, 3
    %v4987 = vpop.permute.xlu0 %4986
    %4990 = vrot.lane.b32.xlu0 %v4970, 4
    %v4991 = vpop.permute.xlu0 %4990
    %4994 = vrot.lane.b32.xlu0 %v4971, 5
    %v4995 = vpop.permute.xlu0 %4994
    %4998 = vrot.lane.b32.xlu0 %v4972, 6
    %v4999 = vpop.permute.xlu0 %4998
    %v5001 = vsel %vm4300, %v4975, %v4966
    %v5002 = vsel %vm4302, %v5001, %v4979
    %v5003 = vsel %vm4304, %v5002, %v4983
    %v5004 = vsel %vm4306, %v5003, %v4987
    %v5005 = vsel %vm4308, %v5004, %v4991
    %v5006 = vsel %vm4310, %v5005, %v4995
    %v5007 = vsel %vm4312, %v5006, %v4999
    %5008 = vst.msk [vmem:[%s27] sm:$0xff] %vm4314, %v5007
    %5010 = vset.pattern.permute.xlu0 1
    %5011 = vperm.xlu0 %5010, %v4909
    %v5012 = vpop.permute.xlu0 %5011
    %5015 = vset.pattern.permute.xlu0 1
    %5016 = vperm.xlu0 %5015, %v4910
    %v5017 = vpop.permute.xlu0 %5016
    %5020 = vset.pattern.permute.xlu0 1
    %5021 = vperm.xlu0 %5020, %v4911
    %v5022 = vpop.permute.xlu0 %5021
    %5025 = vset.pattern.permute.xlu0 1
    %5026 = vperm.xlu0 %5025, %v4912
    %v5027 = vpop.permute.xlu0 %5026
    %5030 = vset.pattern.permute.xlu0 1
    %5031 = vperm.xlu0 %5030, %v4913
    %v5032 = vpop.permute.xlu0 %5031
    %5035 = vset.pattern.permute.xlu0 1
    %5036 = vperm.xlu0 %5035, %v4914
    %v5037 = vpop.permute.xlu0 %5036
    %5040 = vset.pattern.permute.xlu0 1
    %5041 = vperm.xlu0 %5040, %v4915
    %v5042 = vpop.permute.xlu0 %5041
    %5045 = vset.pattern.permute.xlu0 1
    %5046 = vperm.xlu0 %5045, %v4916
    %v5047 = vpop.permute.xlu0 %5046
    %v5049 = vmul.f32 %v220, %v5012
    %v5050 = vmul.f32 %v221, %v5017
    %v5051 = vmul.f32 %v222, %v5022
    %v5052 = vmul.f32 %v223, %v5027
    %v5053 = vmul.f32 %v224, %v5032
    %v5054 = vmul.f32 %v225, %v5037
    %v5055 = vmul.f32 %v226, %v5042
    %v5056 = vmul.f32 %v227, %v5047
    %v5057 = vld [vmem:[%s11] sm:$0xff]
    %v5058 = vld [vmem:[%s11 + $0x8] sm:$0xff]
    %v5059 = vld [vmem:[%s11 + $0x10] sm:$0xff]
    %v5060 = vld [vmem:[%s11 + $0x18] sm:$0xff]
    %v5061 = vld [vmem:[%s11 + $0x20] sm:$0xff]
    %v5062 = vld [vmem:[%s11 + $0x28] sm:$0xff]
    %v5063 = vld [vmem:[%s11 + $0x30] sm:$0xff]
    %v5064 = vld [vmem:[%s11 + $0x38] sm:$0xff]
    %v5065 = vld [vmem:[%s12] sm:$0xff]
    %v5066 = vld [vmem:[%s12 + $0x8] sm:$0xff]
    %v5067 = vld [vmem:[%s12 + $0x10] sm:$0xff]
    %v5068 = vld [vmem:[%s12 + $0x18] sm:$0xff]
    %v5069 = vld [vmem:[%s12 + $0x20] sm:$0xff]
    %v5070 = vld [vmem:[%s12 + $0x28] sm:$0xff]
    %v5071 = vld [vmem:[%s12 + $0x30] sm:$0xff]
    %v5072 = vld [vmem:[%s12 + $0x38] sm:$0xff]
    %v5073 = vld [vmem:[%s12 + $0x40] sm:$0xff]
    %v5074 = vld [vmem:[%s12 + $0x48] sm:$0xff]
    %v5075 = vld [vmem:[%s12 + $0x50] sm:$0xff]
    %v5076 = vld [vmem:[%s12 + $0x58] sm:$0xff]
    %v5077 = vld [vmem:[%s12 + $0x60] sm:$0xff]
    %v5078 = vld [vmem:[%s12 + $0x68] sm:$0xff]
    %v5079 = vld [vmem:[%s12 + $0x70] sm:$0xff]
    %v5080 = vld [vmem:[%s12 + $0x78] sm:$0xff]
    %v5081 = vld [vmem:[#allocation9] sm:$0x3]
    %v5083 = vlaneseq
    %v5084 = vshrl.u32 %v5083, 7
    %v5085 = vsub.s32 0, %v5084
    %v5086 = vrot.slane %v5081, %v5085
    %v5087 = vlaneseq
    %v5088 = vshrl.u32 %v5087, 7
    %v5089 = vsub.s32 1, %v5088
    %v5090 = vrot.slane %v5081, %v5089
    %v5094 = vsel %vm330, %v5049, 0
    %v5097 = vsel %vm330, %v5050, 0
    %v5100 = vsel %vm330, %v5051, 0
    %v5103 = vsel %vm330, %v5052, 0
    %v5106 = vsel %vm330, %v5053, 0
    %v5109 = vsel %vm330, %v5054, 0
    %v5112 = vsel %vm330, %v5055, 0
    %v5115 = vsel %vm330, %v5056, 0
    %5117 = vmatprep.subr.mxu0 0.0
    %5118 = vmatpush1.msra.mxu0 0.0
    %5119 = vmatprep.subr.mxu0 0.0
    %5120 = vmatpush1.msra.mxu0 0.0
    %5121 = vmatprep.subr.mxu0 0.0
    %5122 = vmatpush1.msra.mxu0 0.0
    %5123 = vmatprep.subr.mxu0 0.0
    %5124 = vmatpush1.msra.mxu0 0.0
    %5125 = vmatprep.subr.mxu0 0.0
    %5126 = vmatpush1.msra.mxu0 0.0
    %5127 = vmatprep.subr.mxu0 0.0
    %5128 = vmatpush1.msra.mxu0 0.0
    %5129 = vmatprep.subr.mxu0 0.0
    %5130 = vmatpush1.msra.mxu0 0.0
    %5131 = vmatprep.subr.mxu0 0.0
    %5132 = vmatpush1.msra.mxu0 0.0
    %5133 = vmatprep.subr.mxu0 0.0
    %5134 = vmatpush1.msra.mxu0 0.0
    %5135 = vmatprep.subr.mxu0 0.0
    %5136 = vmatpush1.msra.mxu0 0.0
    %5137 = vmatprep.subr.mxu0 0.0
    %5138 = vmatpush1.msra.mxu0 0.0
    %5139 = vmatprep.subr.mxu0 0.0
    %5140 = vmatpush1.msra.mxu0 0.0
    %5141 = vmatprep.subr.mxu0 %v5064
    %5142 = vmatpush1.msra.mxu0 %v5063
    %5143 = vmatprep.subr.mxu0 %v5062
    %5144 = vmatpush1.msra.mxu0 %v5061
    %5145 = vmatprep.subr.mxu0 %v5060
    %5146 = vmatpush1.msra.mxu0 %v5059
    %5147 = vmatprep.subr.mxu0 %v5058
    %5148 = vmatpush1.msra.mxu0 %v5057
    %5149 = vmatprep.subr.mxu0 0.0
    %5150 = vmatpush2.msra.mxu0 0.0
    %5151 = vmatprep.subr.mxu0 0.0
    %5152 = vmatpush2.msra.mxu0 0.0
    %5153 = vmatprep.subr.mxu0 0.0
    %5154 = vmatpush2.msra.mxu0 0.0
    %5155 = vmatprep.subr.mxu0 0.0
    %5156 = vmatpush2.msra.mxu0 0.0
    %5157 = vmatprep.subr.mxu0 0.0
    %5158 = vmatpush2.msra.mxu0 0.0
    %5159 = vmatprep.subr.mxu0 0.0
    %5160 = vmatpush2.msra.mxu0 0.0
    %5161 = vmatprep.subr.mxu0 0.0
    %5162 = vmatpush2.msra.mxu0 0.0
    %5163 = vmatprep.subr.mxu0 0.0
    %5164 = vmatpush2.msra.mxu0 0.0
    %5165 = vmatprep.subr.mxu0 0.0
    %5166 = vmatpush2.msra.mxu0 0.0
    %5167 = vmatprep.subr.mxu0 0.0
    %5168 = vmatpush2.msra.mxu0 0.0
    %5169 = vmatprep.subr.mxu0 0.0
    %5170 = vmatpush2.msra.mxu0 0.0
    %5171 = vmatprep.subr.mxu0 0.0
    %5172 = vmatpush2.msra.mxu0 0.0
    %5173 = vmatprep.subr.mxu0 0.0
    %5174 = vmatpush2.msra.mxu0 0.0
    %5175 = vmatprep.subr.mxu0 0.0
    %5176 = vmatpush2.msra.mxu0 0.0
    %5177 = vmatprep.subr.mxu0 0.0
    %5178 = vmatpush2.msra.mxu0 0.0
    %5179 = vmatprep.subr.mxu0 0.0
    %5180 = vmatpush2.msra.mxu0 0.0
    %5181 = vmatprep.mubr.f32.mxu0 0.0
    %5182 = vmatmul.mubr.f32.gmra.mxu0 %v5094
    %v5183 = vpop.f32.mrf.mxu0
    %v5184 = vadd.f32 %v5086, %v5183
    %v5185 = vpop.f32.mrf.mxu0
    %v5186 = vadd.f32 %v5090, %v5185
    %5187 = vmatprep.mubr.f32.mxu0 0.0
    %5188 = vmatmul.mubr.f32.gmra.mxu0 %v5097
    %v5189 = vpop.f32.mrf.mxu0
    %v5190 = vadd.f32 %v5086, %v5189
    %v5191 = vpop.f32.mrf.mxu0
    %v5192 = vadd.f32 %v5090, %v5191
    %5193 = vmatprep.mubr.f32.mxu0 0.0
    %5194 = vmatmul.mubr.f32.gmra.mxu0 %v5100
    %v5195 = vpop.f32.mrf.mxu0
    %v5196 = vadd.f32 %v5086, %v5195
    %v5197 = vpop.f32.mrf.mxu0
    %v5198 = vadd.f32 %v5090, %v5197
    %5199 = vmatprep.mubr.f32.mxu0 0.0
    %5200 = vmatmul.mubr.f32.gmra.mxu0 %v5103
    %v5201 = vpop.f32.mrf.mxu0
    %v5202 = vadd.f32 %v5086, %v5201
    %v5203 = vpop.f32.mrf.mxu0
    %v5204 = vadd.f32 %v5090, %v5203
    %5205 = vmatprep.mubr.f32.mxu0 0.0
    %5206 = vmatmul.mubr.f32.gmra.mxu0 %v5106
    %v5207 = vpop.f32.mrf.mxu0
    %v5208 = vadd.f32 %v5086, %v5207
    %v5209 = vpop.f32.mrf.mxu0
    %v5210 = vadd.f32 %v5090, %v5209
    %5211 = vmatprep.mubr.f32.mxu0 0.0
    %5212 = vmatmul.mubr.f32.gmra.mxu0 %v5109
    %v5213 = vpop.f32.mrf.mxu0
    %v5214 = vadd.f32 %v5086, %v5213
    %v5215 = vpop.f32.mrf.mxu0
    %v5216 = vadd.f32 %v5090, %v5215
    %5217 = vmatprep.mubr.f32.mxu0 0.0
    %5218 = vmatmul.mubr.f32.gmra.mxu0 %v5112
    %v5219 = vpop.f32.mrf.mxu0
    %v5220 = vadd.f32 %v5086, %v5219
    %v5221 = vpop.f32.mrf.mxu0
    %v5222 = vadd.f32 %v5090, %v5221
    %5223 = vmatprep.mubr.f32.mxu0 0.0
    %5224 = vmatmul.mubr.f32.gmra.mxu0 %v5115
    %v5225 = vpop.f32.mrf.mxu0
    %v5226 = vadd.f32 %v5086, %v5225
    %v5227 = vpop.f32.mrf.mxu0
    %v5228 = vadd.f32 %v5090, %v5227
    %5229 = vdwg.mxu0
    %5230 = vst [vmem:[#allocation2] sm:$0xff] %v5184
    %5231 = vst [vmem:[#allocation2 + $0x8] sm:$0xff] %v5186
    %5232 = vst [vmem:[#allocation2 + $0x20] sm:$0xff] %v5190
    %5233 = vst [vmem:[#allocation2 + $0x28] sm:$0xff] %v5192
    %5234 = vst [vmem:[#allocation2 + $0x40] sm:$0xff] %v5196
    %5235 = vst [vmem:[#allocation2 + $0x48] sm:$0xff] %v5198
    %5236 = vst [vmem:[#allocation2 + $0x60] sm:$0xff] %v5202
    %5237 = vst [vmem:[#allocation2 + $0x68] sm:$0xff] %v5204
    %5238 = vst [vmem:[#allocation2 + $0x80] sm:$0xff] %v5208
    %5239 = vst [vmem:[#allocation2 + $0x88] sm:$0xff] %v5210
    %5240 = vst [vmem:[#allocation2 + $0xa0] sm:$0xff] %v5214
    %5241 = vst [vmem:[#allocation2 + $0xa8] sm:$0xff] %v5216
    %5242 = vst [vmem:[#allocation2 + $0xc0] sm:$0xff] %v5220
    %5243 = vst [vmem:[#allocation2 + $0xc8] sm:$0xff] %v5222
    %5244 = vst [vmem:[#allocation2 + $0xe0] sm:$0xff] %v5226
    %5245 = vst [vmem:[#allocation2 + $0xe8] sm:$0xff] %v5228
    %vm5246 = vcmp.lt.s32.totalorder %v614, 0
    %v5247 = vsub.s32 0, %v614
    %v5248 = vsel %vm5246, %v5247, %v614
    %v5249 = vshrl.u32 %v5248, 6
    %v5250 = vand.u32 %v5248, 63
    %v5251 = vsub.s32 0, %v5250
    %v5252 = vsel %vm5246, %v5251, %v5250
    %vm5253 = vcmp.lt.s32.totalorder %v615, 0
    %v5254 = vsub.s32 0, %v615
    %v5255 = vsel %vm5253, %v5254, %v615
    %v5256 = vshrl.u32 %v5255, 6
    %v5257 = vand.u32 %v5255, 63
    %v5258 = vsub.s32 0, %v5257
    %v5259 = vsel %vm5253, %v5258, %v5257
    %vm5260 = vcmp.ne.s32.totalorder %v5252, 0
    %vm5261 = vcmp.ne.s32.totalorder %v5259, 0
    %vm5262 = vcmp.lt.s32.totalorder %v5252, 0
    %vm5263 = vcmp.lt.s32.totalorder %v5259, 0
    %vm5264 = vmand %vm5262, %vm5260
    %vm5265 = vmand %vm5263, %vm5261
    %v5266 = vadd.s32 %v5252, 64
    %v5267 = vadd.s32 %v5259, 64
    %v5268 = vsel %vm5264, %v5266, %v5252
    %v5269 = vsel %vm5265, %v5267, %v5259
    %vm5270 = vcmp.lt.s32.totalorder %v5268, 32
    %vm5271 = vcmp.lt.s32.totalorder %v5269, 32
    %vm5272 = vcmp.ge.s32.totalorder %v614, 192
    %vm5273 = vcmp.ge.s32.totalorder %v615, 192
    %v5274 = vld [vmem:[#allocation2] sm:$0xff]
    %v5275 = vld [vmem:[#allocation2 + $0x8] sm:$0xff]
    %v5276 = vld [vmem:[#allocation2 + $0xe0] sm:$0xff]
    %v5277 = vld [vmem:[#allocation2 + $0xe8] sm:$0xff]
    %v5278 = vsel %vm5270, 1, 0
    %v5279 = vsel %vm5271, 1, 0
    %vm5280 = vcmp.eq.s32.totalorder %v5278, 1
    %vm5281 = vcmp.eq.s32.totalorder %v5279, 1
    %v5282 = vsel %vm5280, %v5274, %v5276
    %v5283 = vsel %vm5281, %v5275, %v5277
    %v5285 = vsel %vm877, 0.0, 0
    %5287 = vmatprep.subr.mxu0 0.0
    %5288 = vmatpush1.msra.mxu0 0.0
    %5289 = vmatprep.subr.mxu0 0.0
    %5290 = vmatpush1.msra.mxu0 0.0
    %5291 = vmatprep.subr.mxu0 0.0
    %5292 = vmatpush1.msra.mxu0 0.0
    %5293 = vmatprep.subr.mxu0 0.0
    %5294 = vmatpush1.msra.mxu0 0.0
    %5295 = vmatprep.subr.mxu0 0.0
    %5296 = vmatpush1.msra.mxu0 0.0
    %5297 = vmatprep.subr.mxu0 0.0
    %5298 = vmatpush1.msra.mxu0 0.0
    %5299 = vmatprep.subr.mxu0 0.0
    %5300 = vmatpush1.msra.mxu0 0.0
    %5301 = vmatprep.subr.mxu0 0.0
    %5302 = vmatpush1.msra.mxu0 0.0
    %5303 = vmatprep.subr.mxu0 %v5080
    %5304 = vmatpush1.msra.mxu0 %v5079
    %5305 = vmatprep.subr.mxu0 %v5078
    %5306 = vmatpush1.msra.mxu0 %v5077
    %5307 = vmatprep.subr.mxu0 %v5076
    %5308 = vmatpush1.msra.mxu0 %v5075
    %5309 = vmatprep.subr.mxu0 %v5074
    %5310 = vmatpush1.msra.mxu0 %v5073
    %5311 = vmatprep.subr.mxu0 %v5072
    %5312 = vmatpush1.msra.mxu0 %v5071
    %5313 = vmatprep.subr.mxu0 %v5070
    %5314 = vmatpush1.msra.mxu0 %v5069
    %5315 = vmatprep.subr.mxu0 %v5068
    %5316 = vmatpush1.msra.mxu0 %v5067
    %5317 = vmatprep.subr.mxu0 %v5066
    %5318 = vmatpush1.msra.mxu0 %v5065
    %5319 = vmatprep.subr.mxu0 0.0
    %5320 = vmatpush2.msra.mxu0 0.0
    %5321 = vmatprep.subr.mxu0 0.0
    %5322 = vmatpush2.msra.mxu0 0.0
    %5323 = vmatprep.subr.mxu0 0.0
    %5324 = vmatpush2.msra.mxu0 0.0
    %5325 = vmatprep.subr.mxu0 0.0
    %5326 = vmatpush2.msra.mxu0 0.0
    %5327 = vmatprep.subr.mxu0 0.0
    %5328 = vmatpush2.msra.mxu0 0.0
    %5329 = vmatprep.subr.mxu0 0.0
    %5330 = vmatpush2.msra.mxu0 0.0
    %5331 = vmatprep.subr.mxu0 0.0
    %5332 = vmatpush2.msra.mxu0 0.0
    %5333 = vmatprep.subr.mxu0 0.0
    %5334 = vmatpush2.msra.mxu0 0.0
    %5335 = vmatprep.subr.mxu0 0.0
    %5336 = vmatpush2.msra.mxu0 0.0
    %5337 = vmatprep.subr.mxu0 0.0
    %5338 = vmatpush2.msra.mxu0 0.0
    %5339 = vmatprep.subr.mxu0 0.0
    %5340 = vmatpush2.msra.mxu0 0.0
    %5341 = vmatprep.subr.mxu0 0.0
    %5342 = vmatpush2.msra.mxu0 0.0
    %5343 = vmatprep.subr.mxu0 0.0
    %5344 = vmatpush2.msra.mxu0 0.0
    %5345 = vmatprep.subr.mxu0 0.0
    %5346 = vmatpush2.msra.mxu0 0.0
    %5347 = vmatprep.subr.mxu0 0.0
    %5348 = vmatpush2.msra.mxu0 0.0
    %5349 = vmatprep.subr.mxu0 0.0
    %5350 = vmatpush2.msra.mxu0 0.0
    %5351 = vmatprep.mubr.f32.mxu0 0.0
    %5352 = vmatmul.mubr.f32.gmra.mxu0 %v5285
    %v5353 = vpop.f32.mrf.mxu0
    %v5354 = vadd.f32 0.0, %v5353
    %v5355 = vpop.f32.mrf.mxu0
    %v5356 = vadd.f32 0.0, %v5355
    %5357 = vdwg.mxu0
    %v5358 = vadd.f32 %v5282, %v5354
    %v5359 = vadd.f32 %v5283, %v5356
    %v5360 = vmul.f32 %v5358, 0.5
    %v5361 = vmul.f32 %v5359, 0.5
    %v5362 = vsel %vm5272, 1, 0
    %v5363 = vsel %vm5273, 1, 0
    %vm5364 = vcmp.eq.s32.totalorder %v5362, 1
    %vm5365 = vcmp.eq.s32.totalorder %v5363, 1
    %v5366 = vsel %vm5364, %v5358, %v5360
    %v5367 = vsel %vm5365, %v5359, %v5361
    %v5368 = vtanh.pop %v5366
    %v5369 = vtanh.pop %v5367
    %v5370 = vmul.f32 %v5368, 0.5
    %v5371 = vmul.f32 %v5369, 0.5
    %v5372 = vadd.f32 %v5370, 0.5
    %v5373 = vadd.f32 %v5371, 0.5
    %v5374 = vsel %vm5364, %v5368, %v5372
    %v5375 = vsel %vm5365, %v5369, %v5373
    %v5376 = vmul.f32 %v5374, 0.0
    %5378 = vrot.lane.b32.xlu0 %v5375, 64
    %v5379 = vpop.permute.xlu0 %5378
    %v5381 = vmul.f32 %v5374, %v5379
    %5383 = vrot.lane.b32.xlu0 %v5381, 64
    %v5384 = vpop.permute.xlu0 %5383
    %v5386 = vadd.f32 %v5376, %v5384
    %v5387 = vtanh.pop %v5386
    %5389 = vrot.lane.b32.xlu0 %v5387, 64
    %v5390 = vpop.permute.xlu0 %5389
    %v5392 = vmul.f32 %v5375, %v5390
    %5393 = vst.msk [vmem:[#allocation3] sm:$0xff] %vm330, %v5392
    %vm5394 = vcmask 523520
    %5395 = vst.msk [vmem:[#allocation3 + $0x38] sm:$0xff] %vm5394, %v5392
    %v5396 = vld [vmem:[#allocation2 + $0x20] sm:$0xff]
    %v5397 = vld [vmem:[#allocation2 + $0x28] sm:$0xff]
    %v5398 = vld [vmem:[#allocation2 + $0xc0] sm:$0xff]
    %v5399 = vld [vmem:[#allocation2 + $0xc8] sm:$0xff]
    %v5400 = vsel %vm5280, %v5396, %v5398
    %v5401 = vsel %vm5281, %v5397, %v5399
    %v5403 = vsel %vm877, %v5392, 0
    %5405 = vmatprep.subr.mxu0 0.0
    %5406 = vmatpush1.msra.mxu0 0.0
    %5407 = vmatprep.subr.mxu0 0.0
    %5408 = vmatpush1.msra.mxu0 0.0
    %5409 = vmatprep.subr.mxu0 0.0
    %5410 = vmatpush1.msra.mxu0 0.0
    %5411 = vmatprep.subr.mxu0 0.0
    %5412 = vmatpush1.msra.mxu0 0.0
    %5413 = vmatprep.subr.mxu0 0.0
    %5414 = vmatpush1.msra.mxu0 0.0
    %5415 = vmatprep.subr.mxu0 0.0
    %5416 = vmatpush1.msra.mxu0 0.0
    %5417 = vmatprep.subr.mxu0 0.0
    %5418 = vmatpush1.msra.mxu0 0.0
    %5419 = vmatprep.subr.mxu0 0.0
    %5420 = vmatpush1.msra.mxu0 0.0
    %5421 = vmatprep.subr.mxu0 %v5080
    %5422 = vmatpush1.msra.mxu0 %v5079
    %5423 = vmatprep.subr.mxu0 %v5078
    %5424 = vmatpush1.msra.mxu0 %v5077
    %5425 = vmatprep.subr.mxu0 %v5076
    %5426 = vmatpush1.msra.mxu0 %v5075
    %5427 = vmatprep.subr.mxu0 %v5074
    %5428 = vmatpush1.msra.mxu0 %v5073
    %5429 = vmatprep.subr.mxu0 %v5072
    %5430 = vmatpush1.msra.mxu0 %v5071
    %5431 = vmatprep.subr.mxu0 %v5070
    %5432 = vmatpush1.msra.mxu0 %v5069
    %5433 = vmatprep.subr.mxu0 %v5068
    %5434 = vmatpush1.msra.mxu0 %v5067
    %5435 = vmatprep.subr.mxu0 %v5066
    %5436 = vmatpush1.msra.mxu0 %v5065
    %5437 = vmatprep.subr.mxu0 0.0
    %5438 = vmatpush2.msra.mxu0 0.0
    %5439 = vmatprep.subr.mxu0 0.0
    %5440 = vmatpush2.msra.mxu0 0.0
    %5441 = vmatprep.subr.mxu0 0.0
    %5442 = vmatpush2.msra.mxu0 0.0
    %5443 = vmatprep.subr.mxu0 0.0
    %5444 = vmatpush2.msra.mxu0 0.0
    %5445 = vmatprep.subr.mxu0 0.0
    %5446 = vmatpush2.msra.mxu0 0.0
    %5447 = vmatprep.subr.mxu0 0.0
    %5448 = vmatpush2.msra.mxu0 0.0
    %5449 = vmatprep.subr.mxu0 0.0
    %5450 = vmatpush2.msra.mxu0 0.0
    %5451 = vmatprep.subr.mxu0 0.0
    %5452 = vmatpush2.msra.mxu0 0.0
    %5453 = vmatprep.subr.mxu0 0.0
    %5454 = vmatpush2.msra.mxu0 0.0
    %5455 = vmatprep.subr.mxu0 0.0
    %5456 = vmatpush2.msra.mxu0 0.0
    %5457 = vmatprep.subr.mxu0 0.0
    %5458 = vmatpush2.msra.mxu0 0.0
    %5459 = vmatprep.subr.mxu0 0.0
    %5460 = vmatpush2.msra.mxu0 0.0
    %5461 = vmatprep.subr.mxu0 0.0
    %5462 = vmatpush2.msra.mxu0 0.0
    %5463 = vmatprep.subr.mxu0 0.0
    %5464 = vmatpush2.msra.mxu0 0.0
    %5465 = vmatprep.subr.mxu0 0.0
    %5466 = vmatpush2.msra.mxu0 0.0
    %5467 = vmatprep.subr.mxu0 0.0
    %5468 = vmatpush2.msra.mxu0 0.0
    %5469 = vmatprep.mubr.f32.mxu0 0.0
    %5470 = vmatmul.mubr.f32.gmra.mxu0 %v5403
    %v5471 = vpop.f32.mrf.mxu0
    %v5472 = vadd.f32 0.0, %v5471
    %v5473 = vpop.f32.mrf.mxu0
    %v5474 = vadd.f32 0.0, %v5473
    %5475 = vdwg.mxu0
    %v5476 = vadd.f32 %v5400, %v5472
    %v5477 = vadd.f32 %v5401, %v5474
    %v5478 = vmul.f32 %v5476, 0.5
    %v5479 = vmul.f32 %v5477, 0.5
    %v5480 = vsel %vm5364, %v5476, %v5478
    %v5481 = vsel %vm5365, %v5477, %v5479
    %v5482 = vtanh.pop %v5480
    %v5483 = vtanh.pop %v5481
    %v5484 = vmul.f32 %v5482, 0.5
    %v5485 = vmul.f32 %v5483, 0.5
    %v5486 = vadd.f32 %v5484, 0.5
    %v5487 = vadd.f32 %v5485, 0.5
    %v5488 = vsel %vm5364, %v5482, %v5486
    %v5489 = vsel %vm5365, %v5483, %v5487
    %v5490 = vmul.f32 %v5488, %v5386
    %5492 = vrot.lane.b32.xlu0 %v5489, 64
    %v5493 = vpop.permute.xlu0 %5492
    %v5495 = vmul.f32 %v5488, %v5493
    %5497 = vrot.lane.b32.xlu0 %v5495, 64
    %v5498 = vpop.permute.xlu0 %5497
    %v5500 = vadd.f32 %v5490, %v5498
    %v5501 = vtanh.pop %v5500
    %5503 = vrot.lane.b32.xlu0 %v5501, 64
    %v5504 = vpop.permute.xlu0 %5503
    %v5506 = vmul.f32 %v5489, %v5504
    %5507 = vst.msk [vmem:[#allocation3 + $0x8] sm:$0xff] %vm330, %v5506
    %5508 = vst.msk [vmem:[#allocation3 + $0x30] sm:$0xff] %vm5394, %v5506
    %v5509 = vld [vmem:[#allocation2 + $0x40] sm:$0xff]
    %v5510 = vld [vmem:[#allocation2 + $0x48] sm:$0xff]
    %v5511 = vld [vmem:[#allocation2 + $0xa0] sm:$0xff]
    %v5512 = vld [vmem:[#allocation2 + $0xa8] sm:$0xff]
    %v5513 = vsel %vm5280, %v5509, %v5511
    %v5514 = vsel %vm5281, %v5510, %v5512
    %v5516 = vsel %vm877, %v5506, 0
    %5518 = vmatprep.subr.mxu0 0.0
    %5519 = vmatpush1.msra.mxu0 0.0
    %5520 = vmatprep.subr.mxu0 0.0
    %5521 = vmatpush1.msra.mxu0 0.0
    %5522 = vmatprep.subr.mxu0 0.0
    %5523 = vmatpush1.msra.mxu0 0.0
    %5524 = vmatprep.subr.mxu0 0.0
    %5525 = vmatpush1.msra.mxu0 0.0
    %5526 = vmatprep.subr.mxu0 0.0
    %5527 = vmatpush1.msra.mxu0 0.0
    %5528 = vmatprep.subr.mxu0 0.0
    %5529 = vmatpush1.msra.mxu0 0.0
    %5530 = vmatprep.subr.mxu0 0.0
    %5531 = vmatpush1.msra.mxu0 0.0
    %5532 = vmatprep.subr.mxu0 0.0
    %5533 = vmatpush1.msra.mxu0 0.0
    %5534 = vmatprep.subr.mxu0 %v5080
    %5535 = vmatpush1.msra.mxu0 %v5079
    %5536 = vmatprep.subr.mxu0 %v5078
    %5537 = vmatpush1.msra.mxu0 %v5077
    %5538 = vmatprep.subr.mxu0 %v5076
    %5539 = vmatpush1.msra.mxu0 %v5075
    %5540 = vmatprep.subr.mxu0 %v5074
    %5541 = vmatpush1.msra.mxu0 %v5073
    %5542 = vmatprep.subr.mxu0 %v5072
    %5543 = vmatpush1.msra.mxu0 %v5071
    %5544 = vmatprep.subr.mxu0 %v5070
    %5545 = vmatpush1.msra.mxu0 %v5069
    %5546 = vmatprep.subr.mxu0 %v5068
    %5547 = vmatpush1.msra.mxu0 %v5067
    %5548 = vmatprep.subr.mxu0 %v5066
    %5549 = vmatpush1.msra.mxu0 %v5065
    %5550 = vmatprep.subr.mxu0 0.0
    %5551 = vmatpush2.msra.mxu0 0.0
    %5552 = vmatprep.subr.mxu0 0.0
    %5553 = vmatpush2.msra.mxu0 0.0
    %5554 = vmatprep.subr.mxu0 0.0
    %5555 = vmatpush2.msra.mxu0 0.0
    %5556 = vmatprep.subr.mxu0 0.0
    %5557 = vmatpush2.msra.mxu0 0.0
    %5558 = vmatprep.subr.mxu0 0.0
    %5559 = vmatpush2.msra.mxu0 0.0
    %5560 = vmatprep.subr.mxu0 0.0
    %5561 = vmatpush2.msra.mxu0 0.0
    %5562 = vmatprep.subr.mxu0 0.0
    %5563 = vmatpush2.msra.mxu0 0.0
    %5564 = vmatprep.subr.mxu0 0.0
    %5565 = vmatpush2.msra.mxu0 0.0
    %5566 = vmatprep.subr.mxu0 0.0
    %5567 = vmatpush2.msra.mxu0 0.0
    %5568 = vmatprep.subr.mxu0 0.0
    %5569 = vmatpush2.msra.mxu0 0.0
    %5570 = vmatprep.subr.mxu0 0.0
    %5571 = vmatpush2.msra.mxu0 0.0
    %5572 = vmatprep.subr.mxu0 0.0
    %5573 = vmatpush2.msra.mxu0 0.0
    %5574 = vmatprep.subr.mxu0 0.0
    %5575 = vmatpush2.msra.mxu0 0.0
    %5576 = vmatprep.subr.mxu0 0.0
    %5577 = vmatpush2.msra.mxu0 0.0
    %5578 = vmatprep.subr.mxu0 0.0
    %5579 = vmatpush2.msra.mxu0 0.0
    %5580 = vmatprep.subr.mxu0 0.0
    %5581 = vmatpush2.msra.mxu0 0.0
    %5582 = vmatprep.mubr.f32.mxu0 0.0
    %5583 = vmatmul.mubr.f32.gmra.mxu0 %v5516
    %v5584 = vpop.f32.mrf.mxu0
    %v5585 = vadd.f32 0.0, %v5584
    %v5586 = vpop.f32.mrf.mxu0
    %v5587 = vadd.f32 0.0, %v5586
    %5588 = vdwg.mxu0
    %v5589 = vadd.f32 %v5513, %v5585
    %v5590 = vadd.f32 %v5514, %v5587
    %v5591 = vmul.f32 %v5589, 0.5
    %v5592 = vmul.f32 %v5590, 0.5
    %v5593 = vsel %vm5364, %v5589, %v5591
    %v5594 = vsel %vm5365, %v5590, %v5592
    %v5595 = vtanh.pop %v5593
    %v5596 = vtanh.pop %v5594
    %v5597 = vmul.f32 %v5595, 0.5
    %v5598 = vmul.f32 %v5596, 0.5
    %v5599 = vadd.f32 %v5597, 0.5
    %v5600 = vadd.f32 %v5598, 0.5
    %v5601 = vsel %vm5364, %v5595, %v5599
    %v5602 = vsel %vm5365, %v5596, %v5600
    %v5603 = vmul.f32 %v5601, %v5500
    %5605 = vrot.lane.b32.xlu0 %v5602, 64
    %v5606 = vpop.permute.xlu0 %5605
    %v5608 = vmul.f32 %v5601, %v5606
    %5610 = vrot.lane.b32.xlu0 %v5608, 64
    %v5611 = vpop.permute.xlu0 %5610
    %v5613 = vadd.f32 %v5603, %v5611
    %v5614 = vtanh.pop %v5613
    %5616 = vrot.lane.b32.xlu0 %v5614, 64
    %v5617 = vpop.permute.xlu0 %5616
    %v5619 = vmul.f32 %v5602, %v5617
    %5620 = vst.msk [vmem:[#allocation3 + $0x10] sm:$0xff] %vm330, %v5619
    %5621 = vst.msk [vmem:[#allocation3 + $0x28] sm:$0xff] %vm5394, %v5619
    %v5622 = vld [vmem:[#allocation2 + $0x60] sm:$0xff]
    %v5623 = vld [vmem:[#allocation2 + $0x68] sm:$0xff]
    %v5624 = vld [vmem:[#allocation2 + $0x80] sm:$0xff]
    %v5625 = vld [vmem:[#allocation2 + $0x88] sm:$0xff]
    %v5626 = vsel %vm5280, %v5622, %v5624
    %v5627 = vsel %vm5281, %v5623, %v5625
    %v5629 = vsel %vm877, %v5619, 0
    %5631 = vmatprep.subr.mxu0 0.0
    %5632 = vmatpush1.msra.mxu0 0.0
    %5633 = vmatprep.subr.mxu0 0.0
    %5634 = vmatpush1.msra.mxu0 0.0
    %5635 = vmatprep.subr.mxu0 0.0
    %5636 = vmatpush1.msra.mxu0 0.0
    %5637 = vmatprep.subr.mxu0 0.0
    %5638 = vmatpush1.msra.mxu0 0.0
    %5639 = vmatprep.subr.mxu0 0.0
    %5640 = vmatpush1.msra.mxu0 0.0
    %5641 = vmatprep.subr.mxu0 0.0
    %5642 = vmatpush1.msra.mxu0 0.0
    %5643 = vmatprep.subr.mxu0 0.0
    %5644 = vmatpush1.msra.mxu0 0.0
    %5645 = vmatprep.subr.mxu0 0.0
    %5646 = vmatpush1.msra.mxu0 0.0
    %5647 = vmatprep.subr.mxu0 %v5080
    %5648 = vmatpush1.msra.mxu0 %v5079
    %5649 = vmatprep.subr.mxu0 %v5078
    %5650 = vmatpush1.msra.mxu0 %v5077
    %5651 = vmatprep.subr.mxu0 %v5076
    %5652 = vmatpush1.msra.mxu0 %v5075
    %5653 = vmatprep.subr.mxu0 %v5074
    %5654 = vmatpush1.msra.mxu0 %v5073
    %5655 = vmatprep.subr.mxu0 %v5072
    %5656 = vmatpush1.msra.mxu0 %v5071
    %5657 = vmatprep.subr.mxu0 %v5070
    %5658 = vmatpush1.msra.mxu0 %v5069
    %5659 = vmatprep.subr.mxu0 %v5068
    %5660 = vmatpush1.msra.mxu0 %v5067
    %5661 = vmatprep.subr.mxu0 %v5066
    %5662 = vmatpush1.msra.mxu0 %v5065
    %5663 = vmatprep.subr.mxu0 0.0
    %5664 = vmatpush2.msra.mxu0 0.0
    %5665 = vmatprep.subr.mxu0 0.0
    %5666 = vmatpush2.msra.mxu0 0.0
    %5667 = vmatprep.subr.mxu0 0.0
    %5668 = vmatpush2.msra.mxu0 0.0
    %5669 = vmatprep.subr.mxu0 0.0
    %5670 = vmatpush2.msra.mxu0 0.0
    %5671 = vmatprep.subr.mxu0 0.0
    %5672 = vmatpush2.msra.mxu0 0.0
    %5673 = vmatprep.subr.mxu0 0.0
    %5674 = vmatpush2.msra.mxu0 0.0
    %5675 = vmatprep.subr.mxu0 0.0
    %5676 = vmatpush2.msra.mxu0 0.0
    %5677 = vmatprep.subr.mxu0 0.0
    %5678 = vmatpush2.msra.mxu0 0.0
    %5679 = vmatprep.subr.mxu0 0.0
    %5680 = vmatpush2.msra.mxu0 0.0
    %5681 = vmatprep.subr.mxu0 0.0
    %5682 = vmatpush2.msra.mxu0 0.0
    %5683 = vmatprep.subr.mxu0 0.0
    %5684 = vmatpush2.msra.mxu0 0.0
    %5685 = vmatprep.subr.mxu0 0.0
    %5686 = vmatpush2.msra.mxu0 0.0
    %5687 = vmatprep.subr.mxu0 0.0
    %5688 = vmatpush2.msra.mxu0 0.0
    %5689 = vmatprep.subr.mxu0 0.0
    %5690 = vmatpush2.msra.mxu0 0.0
    %5691 = vmatprep.subr.mxu0 0.0
    %5692 = vmatpush2.msra.mxu0 0.0
    %5693 = vmatprep.subr.mxu0 0.0
    %5694 = vmatpush2.msra.mxu0 0.0
    %5695 = vmatprep.mubr.f32.mxu0 0.0
    %5696 = vmatmul.mubr.f32.gmra.mxu0 %v5629
    %v5697 = vpop.f32.mrf.mxu0
    %v5698 = vadd.f32 0.0, %v5697
    %v5699 = vpop.f32.mrf.mxu0
    %v5700 = vadd.f32 0.0, %v5699
    %5701 = vdwg.mxu0
    %v5702 = vadd.f32 %v5626, %v5698
    %v5703 = vadd.f32 %v5627, %v5700
    %v5704 = vmul.f32 %v5702, 0.5
    %v5705 = vmul.f32 %v5703, 0.5
    %v5706 = vsel %vm5364, %v5702, %v5704
    %v5707 = vsel %vm5365, %v5703, %v5705
    %v5708 = vtanh.pop %v5706
    %v5709 = vtanh.pop %v5707
    %v5710 = vmul.f32 %v5708, 0.5
    %v5711 = vmul.f32 %v5709, 0.5
    %v5712 = vadd.f32 %v5710, 0.5
    %v5713 = vadd.f32 %v5711, 0.5
    %v5714 = vsel %vm5364, %v5708, %v5712
    %v5715 = vsel %vm5365, %v5709, %v5713
    %v5716 = vmul.f32 %v5714, %v5613
    %5718 = vrot.lane.b32.xlu0 %v5715, 64
    %v5719 = vpop.permute.xlu0 %5718
    %v5721 = vmul.f32 %v5714, %v5719
    %5723 = vrot.lane.b32.xlu0 %v5721, 64
    %v5724 = vpop.permute.xlu0 %5723
    %v5726 = vadd.f32 %v5716, %v5724
    %v5727 = vtanh.pop %v5726
    %5729 = vrot.lane.b32.xlu0 %v5727, 64
    %v5730 = vpop.permute.xlu0 %5729
    %v5732 = vmul.f32 %v5715, %v5730
    %5733 = vst.msk [vmem:[#allocation3 + $0x18] sm:$0xff] %vm330, %v5732
    %5734 = vst.msk [vmem:[#allocation3 + $0x20] sm:$0xff] %vm5394, %v5732
    %v5735 = vld [vmem:[#allocation2 + $0x80] sm:$0xff]
    %v5736 = vld [vmem:[#allocation2 + $0x88] sm:$0xff]
    %v5737 = vld [vmem:[#allocation2 + $0x60] sm:$0xff]
    %v5738 = vld [vmem:[#allocation2 + $0x68] sm:$0xff]
    %v5739 = vsel %vm5280, %v5735, %v5737
    %v5740 = vsel %vm5281, %v5736, %v5738
    %v5742 = vsel %vm877, %v5732, 0
    %5744 = vmatprep.subr.mxu0 0.0
    %5745 = vmatpush1.msra.mxu0 0.0
    %5746 = vmatprep.subr.mxu0 0.0
    %5747 = vmatpush1.msra.mxu0 0.0
    %5748 = vmatprep.subr.mxu0 0.0
    %5749 = vmatpush1.msra.mxu0 0.0
    %5750 = vmatprep.subr.mxu0 0.0
    %5751 = vmatpush1.msra.mxu0 0.0
    %5752 = vmatprep.subr.mxu0 0.0
    %5753 = vmatpush1.msra.mxu0 0.0
    %5754 = vmatprep.subr.mxu0 0.0
    %5755 = vmatpush1.msra.mxu0 0.0
    %5756 = vmatprep.subr.mxu0 0.0
    %5757 = vmatpush1.msra.mxu0 0.0
    %5758 = vmatprep.subr.mxu0 0.0
    %5759 = vmatpush1.msra.mxu0 0.0
    %5760 = vmatprep.subr.mxu0 %v5080
    %5761 = vmatpush1.msra.mxu0 %v5079
    %5762 = vmatprep.subr.mxu0 %v5078
    %5763 = vmatpush1.msra.mxu0 %v5077
    %5764 = vmatprep.subr.mxu0 %v5076
    %5765 = vmatpush1.msra.mxu0 %v5075
    %5766 = vmatprep.subr.mxu0 %v5074
    %5767 = vmatpush1.msra.mxu0 %v5073
    %5768 = vmatprep.subr.mxu0 %v5072
    %5769 = vmatpush1.msra.mxu0 %v5071
    %5770 = vmatprep.subr.mxu0 %v5070
    %5771 = vmatpush1.msra.mxu0 %v5069
    %5772 = vmatprep.subr.mxu0 %v5068
    %5773 = vmatpush1.msra.mxu0 %v5067
    %5774 = vmatprep.subr.mxu0 %v5066
    %5775 = vmatpush1.msra.mxu0 %v5065
    %5776 = vmatprep.subr.mxu0 0.0
    %5777 = vmatpush2.msra.mxu0 0.0
    %5778 = vmatprep.subr.mxu0 0.0
    %5779 = vmatpush2.msra.mxu0 0.0
    %5780 = vmatprep.subr.mxu0 0.0
    %5781 = vmatpush2.msra.mxu0 0.0
    %5782 = vmatprep.subr.mxu0 0.0
    %5783 = vmatpush2.msra.mxu0 0.0
    %5784 = vmatprep.subr.mxu0 0.0
    %5785 = vmatpush2.msra.mxu0 0.0
    %5786 = vmatprep.subr.mxu0 0.0
    %5787 = vmatpush2.msra.mxu0 0.0
    %5788 = vmatprep.subr.mxu0 0.0
    %5789 = vmatpush2.msra.mxu0 0.0
    %5790 = vmatprep.subr.mxu0 0.0
    %5791 = vmatpush2.msra.mxu0 0.0
    %5792 = vmatprep.subr.mxu0 0.0
    %5793 = vmatpush2.msra.mxu0 0.0
    %5794 = vmatprep.subr.mxu0 0.0
    %5795 = vmatpush2.msra.mxu0 0.0
    %5796 = vmatprep.subr.mxu0 0.0
    %5797 = vmatpush2.msra.mxu0 0.0
    %5798 = vmatprep.subr.mxu0 0.0
    %5799 = vmatpush2.msra.mxu0 0.0
    %5800 = vmatprep.subr.mxu0 0.0
    %5801 = vmatpush2.msra.mxu0 0.0
    %5802 = vmatprep.subr.mxu0 0.0
    %5803 = vmatpush2.msra.mxu0 0.0
    %5804 = vmatprep.subr.mxu0 0.0
    %5805 = vmatpush2.msra.mxu0 0.0
    %5806 = vmatprep.subr.mxu0 0.0
    %5807 = vmatpush2.msra.mxu0 0.0
    %5808 = vmatprep.mubr.f32.mxu0 0.0
    %5809 = vmatmul.mubr.f32.gmra.mxu0 %v5742
    %v5810 = vpop.f32.mrf.mxu0
    %v5811 = vadd.f32 0.0, %v5810
    %v5812 = vpop.f32.mrf.mxu0
    %v5813 = vadd.f32 0.0, %v5812
    %5814 = vdwg.mxu0
    %v5815 = vadd.f32 %v5739, %v5811
    %v5816 = vadd.f32 %v5740, %v5813
    %v5817 = vmul.f32 %v5815, 0.5
    %v5818 = vmul.f32 %v5816, 0.5
    %v5819 = vsel %vm5364, %v5815, %v5817
    %v5820 = vsel %vm5365, %v5816, %v5818
    %v5821 = vtanh.pop %v5819
    %v5822 = vtanh.pop %v5820
    %v5823 = vmul.f32 %v5821, 0.5
    %v5824 = vmul.f32 %v5822, 0.5
    %v5825 = vadd.f32 %v5823, 0.5
    %v5826 = vadd.f32 %v5824, 0.5
    %v5827 = vsel %vm5364, %v5821, %v5825
    %v5828 = vsel %vm5365, %v5822, %v5826
    %v5829 = vmul.f32 %v5827, %v5726
    %5831 = vrot.lane.b32.xlu0 %v5828, 64
    %v5832 = vpop.permute.xlu0 %5831
    %v5834 = vmul.f32 %v5827, %v5832
    %5836 = vrot.lane.b32.xlu0 %v5834, 64
    %v5837 = vpop.permute.xlu0 %5836
    %v5839 = vadd.f32 %v5829, %v5837
    %v5840 = vtanh.pop %v5839
    %5842 = vrot.lane.b32.xlu0 %v5840, 64
    %v5843 = vpop.permute.xlu0 %5842
    %v5845 = vmul.f32 %v5828, %v5843
    %5846 = vst.msk [vmem:[#allocation3 + $0x20] sm:$0xff] %vm330, %v5845
    %5847 = vst.msk [vmem:[#allocation3 + $0x18] sm:$0xff] %vm5394, %v5845
    %v5848 = vld [vmem:[#allocation2 + $0xa0] sm:$0xff]
    %v5849 = vld [vmem:[#allocation2 + $0xa8] sm:$0xff]
    %v5850 = vld [vmem:[#allocation2 + $0x40] sm:$0xff]
    %v5851 = vld [vmem:[#allocation2 + $0x48] sm:$0xff]
    %v5852 = vsel %vm5280, %v5848, %v5850
    %v5853 = vsel %vm5281, %v5849, %v5851
    %v5855 = vsel %vm877, %v5845, 0
    %5857 = vmatprep.subr.mxu0 0.0
    %5858 = vmatpush1.msra.mxu0 0.0
    %5859 = vmatprep.subr.mxu0 0.0
    %5860 = vmatpush1.msra.mxu0 0.0
    %5861 = vmatprep.subr.mxu0 0.0
    %5862 = vmatpush1.msra.mxu0 0.0
    %5863 = vmatprep.subr.mxu0 0.0
    %5864 = vmatpush1.msra.mxu0 0.0
    %5865 = vmatprep.subr.mxu0 0.0
    %5866 = vmatpush1.msra.mxu0 0.0
    %5867 = vmatprep.subr.mxu0 0.0
    %5868 = vmatpush1.msra.mxu0 0.0
    %5869 = vmatprep.subr.mxu0 0.0
    %5870 = vmatpush1.msra.mxu0 0.0
    %5871 = vmatprep.subr.mxu0 0.0
    %5872 = vmatpush1.msra.mxu0 0.0
    %5873 = vmatprep.subr.mxu0 %v5080
    %5874 = vmatpush1.msra.mxu0 %v5079
    %5875 = vmatprep.subr.mxu0 %v5078
    %5876 = vmatpush1.msra.mxu0 %v5077
    %5877 = vmatprep.subr.mxu0 %v5076
    %5878 = vmatpush1.msra.mxu0 %v5075
    %5879 = vmatprep.subr.mxu0 %v5074
    %5880 = vmatpush1.msra.mxu0 %v5073
    %5881 = vmatprep.subr.mxu0 %v5072
    %5882 = vmatpush1.msra.mxu0 %v5071
    %5883 = vmatprep.subr.mxu0 %v5070
    %5884 = vmatpush1.msra.mxu0 %v5069
    %5885 = vmatprep.subr.mxu0 %v5068
    %5886 = vmatpush1.msra.mxu0 %v5067
    %5887 = vmatprep.subr.mxu0 %v5066
    %5888 = vmatpush1.msra.mxu0 %v5065
    %5889 = vmatprep.subr.mxu0 0.0
    %5890 = vmatpush2.msra.mxu0 0.0
    %5891 = vmatprep.subr.mxu0 0.0
    %5892 = vmatpush2.msra.mxu0 0.0
    %5893 = vmatprep.subr.mxu0 0.0
    %5894 = vmatpush2.msra.mxu0 0.0
    %5895 = vmatprep.subr.mxu0 0.0
    %5896 = vmatpush2.msra.mxu0 0.0
    %5897 = vmatprep.subr.mxu0 0.0
    %5898 = vmatpush2.msra.mxu0 0.0
    %5899 = vmatprep.subr.mxu0 0.0
    %5900 = vmatpush2.msra.mxu0 0.0
    %5901 = vmatprep.subr.mxu0 0.0
    %5902 = vmatpush2.msra.mxu0 0.0
    %5903 = vmatprep.subr.mxu0 0.0
    %5904 = vmatpush2.msra.mxu0 0.0
    %5905 = vmatprep.subr.mxu0 0.0
    %5906 = vmatpush2.msra.mxu0 0.0
    %5907 = vmatprep.subr.mxu0 0.0
    %5908 = vmatpush2.msra.mxu0 0.0
    %5909 = vmatprep.subr.mxu0 0.0
    %5910 = vmatpush2.msra.mxu0 0.0
    %5911 = vmatprep.subr.mxu0 0.0
    %5912 = vmatpush2.msra.mxu0 0.0
    %5913 = vmatprep.subr.mxu0 0.0
    %5914 = vmatpush2.msra.mxu0 0.0
    %5915 = vmatprep.subr.mxu0 0.0
    %5916 = vmatpush2.msra.mxu0 0.0
    %5917 = vmatprep.subr.mxu0 0.0
    %5918 = vmatpush2.msra.mxu0 0.0
    %5919 = vmatprep.subr.mxu0 0.0
    %5920 = vmatpush2.msra.mxu0 0.0
    %5921 = vmatprep.mubr.f32.mxu0 0.0
    %5922 = vmatmul.mubr.f32.gmra.mxu0 %v5855
    %v5923 = vpop.f32.mrf.mxu0
    %v5924 = vadd.f32 0.0, %v5923
    %v5925 = vpop.f32.mrf.mxu0
    %v5926 = vadd.f32 0.0, %v5925
    %5927 = vdwg.mxu0
    %v5928 = vadd.f32 %v5852, %v5924
    %v5929 = vadd.f32 %v5853, %v5926
    %v5930 = vmul.f32 %v5928, 0.5
    %v5931 = vmul.f32 %v5929, 0.5
    %v5932 = vsel %vm5364, %v5928, %v5930
    %v5933 = vsel %vm5365, %v5929, %v5931
    %v5934 = vtanh.pop %v5932
    %v5935 = vtanh.pop %v5933
    %v5936 = vmul.f32 %v5934, 0.5
    %v5937 = vmul.f32 %v5935, 0.5
    %v5938 = vadd.f32 %v5936, 0.5
    %v5939 = vadd.f32 %v5937, 0.5
    %v5940 = vsel %vm5364, %v5934, %v5938
    %v5941 = vsel %vm5365, %v5935, %v5939
    %v5942 = vmul.f32 %v5940, %v5839
    %5944 = vrot.lane.b32.xlu0 %v5941, 64
    %v5945 = vpop.permute.xlu0 %5944
    %v5947 = vmul.f32 %v5940, %v5945
    %5949 = vrot.lane.b32.xlu0 %v5947, 64
    %v5950 = vpop.permute.xlu0 %5949
    %v5952 = vadd.f32 %v5942, %v5950
    %v5953 = vtanh.pop %v5952
    %5955 = vrot.lane.b32.xlu0 %v5953, 64
    %v5956 = vpop.permute.xlu0 %5955
    %v5958 = vmul.f32 %v5941, %v5956
    %5959 = vst.msk [vmem:[#allocation3 + $0x28] sm:$0xff] %vm330, %v5958
    %5960 = vst.msk [vmem:[#allocation3 + $0x10] sm:$0xff] %vm5394, %v5958
    %v5961 = vld [vmem:[#allocation2 + $0xc0] sm:$0xff]
    %v5962 = vld [vmem:[#allocation2 + $0xc8] sm:$0xff]
    %v5963 = vld [vmem:[#allocation2 + $0x20] sm:$0xff]
    %v5964 = vld [vmem:[#allocation2 + $0x28] sm:$0xff]
    %v5965 = vsel %vm5280, %v5961, %v5963
    %v5966 = vsel %vm5281, %v5962, %v5964
    %v5968 = vsel %vm877, %v5958, 0
    %5970 = vmatprep.subr.mxu0 0.0
    %5971 = vmatpush1.msra.mxu0 0.0
    %5972 = vmatprep.subr.mxu0 0.0
    %5973 = vmatpush1.msra.mxu0 0.0
    %5974 = vmatprep.subr.mxu0 0.0
    %5975 = vmatpush1.msra.mxu0 0.0
    %5976 = vmatprep.subr.mxu0 0.0
    %5977 = vmatpush1.msra.mxu0 0.0
    %5978 = vmatprep.subr.mxu0 0.0
    %5979 = vmatpush1.msra.mxu0 0.0
    %5980 = vmatprep.subr.mxu0 0.0
    %5981 = vmatpush1.msra.mxu0 0.0
    %5982 = vmatprep.subr.mxu0 0.0
    %5983 = vmatpush1.msra.mxu0 0.0
    %5984 = vmatprep.subr.mxu0 0.0
    %5985 = vmatpush1.msra.mxu0 0.0
    %5986 = vmatprep.subr.mxu0 %v5080
    %5987 = vmatpush1.msra.mxu0 %v5079
    %5988 = vmatprep.subr.mxu0 %v5078
    %5989 = vmatpush1.msra.mxu0 %v5077
    %5990 = vmatprep.subr.mxu0 %v5076
    %5991 = vmatpush1.msra.mxu0 %v5075
    %5992 = vmatprep.subr.mxu0 %v5074
    %5993 = vmatpush1.msra.mxu0 %v5073
    %5994 = vmatprep.subr.mxu0 %v5072
    %5995 = vmatpush1.msra.mxu0 %v5071
    %5996 = vmatprep.subr.mxu0 %v5070
    %5997 = vmatpush1.msra.mxu0 %v5069
    %5998 = vmatprep.subr.mxu0 %v5068
    %5999 = vmatpush1.msra.mxu0 %v5067
    %6000 = vmatprep.subr.mxu0 %v5066
    %6001 = vmatpush1.msra.mxu0 %v5065
    %6002 = vmatprep.subr.mxu0 0.0
    %6003 = vmatpush2.msra.mxu0 0.0
    %6004 = vmatprep.subr.mxu0 0.0
    %6005 = vmatpush2.msra.mxu0 0.0
    %6006 = vmatprep.subr.mxu0 0.0
    %6007 = vmatpush2.msra.mxu0 0.0
    %6008 = vmatprep.subr.mxu0 0.0
    %6009 = vmatpush2.msra.mxu0 0.0
    %6010 = vmatprep.subr.mxu0 0.0
    %6011 = vmatpush2.msra.mxu0 0.0
    %6012 = vmatprep.subr.mxu0 0.0
    %6013 = vmatpush2.msra.mxu0 0.0
    %6014 = vmatprep.subr.mxu0 0.0
    %6015 = vmatpush2.msra.mxu0 0.0
    %6016 = vmatprep.subr.mxu0 0.0
    %6017 = vmatpush2.msra.mxu0 0.0
    %6018 = vmatprep.subr.mxu0 0.0
    %6019 = vmatpush2.msra.mxu0 0.0
    %6020 = vmatprep.subr.mxu0 0.0
    %6021 = vmatpush2.msra.mxu0 0.0
    %6022 = vmatprep.subr.mxu0 0.0
    %6023 = vmatpush2.msra.mxu0 0.0
    %6024 = vmatprep.subr.mxu0 0.0
    %6025 = vmatpush2.msra.mxu0 0.0
    %6026 = vmatprep.subr.mxu0 0.0
    %6027 = vmatpush2.msra.mxu0 0.0
    %6028 = vmatprep.subr.mxu0 0.0
    %6029 = vmatpush2.msra.mxu0 0.0
    %6030 = vmatprep.subr.mxu0 0.0
    %6031 = vmatpush2.msra.mxu0 0.0
    %6032 = vmatprep.subr.mxu0 0.0
    %6033 = vmatpush2.msra.mxu0 0.0
    %6034 = vmatprep.mubr.f32.mxu0 0.0
    %6035 = vmatmul.mubr.f32.gmra.mxu0 %v5968
    %v6036 = vpop.f32.mrf.mxu0
    %v6037 = vadd.f32 0.0, %v6036
    %v6038 = vpop.f32.mrf.mxu0
    %v6039 = vadd.f32 0.0, %v6038
    %6040 = vdwg.mxu0
    %v6041 = vadd.f32 %v5965, %v6037
    %v6042 = vadd.f32 %v5966, %v6039
    %v6043 = vmul.f32 %v6041, 0.5
    %v6044 = vmul.f32 %v6042, 0.5
    %v6045 = vsel %vm5364, %v6041, %v6043
    %v6046 = vsel %vm5365, %v6042, %v6044
    %v6047 = vtanh.pop %v6045
    %v6048 = vtanh.pop %v6046
    %v6049 = vmul.f32 %v6047, 0.5
    %v6050 = vmul.f32 %v6048, 0.5
    %v6051 = vadd.f32 %v6049, 0.5
    %v6052 = vadd.f32 %v6050, 0.5
    %v6053 = vsel %vm5364, %v6047, %v6051
    %v6054 = vsel %vm5365, %v6048, %v6052
    %v6055 = vmul.f32 %v6053, %v5952
    %6057 = vrot.lane.b32.xlu0 %v6054, 64
    %v6058 = vpop.permute.xlu0 %6057
    %v6060 = vmul.f32 %v6053, %v6058
    %6062 = vrot.lane.b32.xlu0 %v6060, 64
    %v6063 = vpop.permute.xlu0 %6062
    %v6065 = vadd.f32 %v6055, %v6063
    %v6066 = vtanh.pop %v6065
    %6068 = vrot.lane.b32.xlu0 %v6066, 64
    %v6069 = vpop.permute.xlu0 %6068
    %v6071 = vmul.f32 %v6054, %v6069
    %6072 = vst.msk [vmem:[#allocation3 + $0x30] sm:$0xff] %vm330, %v6071
    %6073 = vst.msk [vmem:[#allocation3 + $0x8] sm:$0xff] %vm5394, %v6071
    %v6074 = vld [vmem:[#allocation2 + $0xe0] sm:$0xff]
    %v6075 = vld [vmem:[#allocation2 + $0xe8] sm:$0xff]
    %v6076 = vld [vmem:[#allocation2] sm:$0xff]
    %v6077 = vld [vmem:[#allocation2 + $0x8] sm:$0xff]
    %v6078 = vsel %vm5280, %v6074, %v6076
    %v6079 = vsel %vm5281, %v6075, %v6077
    %v6081 = vsel %vm877, %v6071, 0
    %6083 = vmatprep.subr.mxu0 0.0
    %6084 = vmatpush1.msra.mxu0 0.0
    %6085 = vmatprep.subr.mxu0 0.0
    %6086 = vmatpush1.msra.mxu0 0.0
    %6087 = vmatprep.subr.mxu0 0.0
    %6088 = vmatpush1.msra.mxu0 0.0
    %6089 = vmatprep.subr.mxu0 0.0
    %6090 = vmatpush1.msra.mxu0 0.0
    %6091 = vmatprep.subr.mxu0 0.0
    %6092 = vmatpush1.msra.mxu0 0.0
    %6093 = vmatprep.subr.mxu0 0.0
    %6094 = vmatpush1.msra.mxu0 0.0
    %6095 = vmatprep.subr.mxu0 0.0
    %6096 = vmatpush1.msra.mxu0 0.0
    %6097 = vmatprep.subr.mxu0 0.0
    %6098 = vmatpush1.msra.mxu0 0.0
    %6099 = vmatprep.subr.mxu0 %v5080
    %6100 = vmatpush1.msra.mxu0 %v5079
    %6101 = vmatprep.subr.mxu0 %v5078
    %6102 = vmatpush1.msra.mxu0 %v5077
    %6103 = vmatprep.subr.mxu0 %v5076
    %6104 = vmatpush1.msra.mxu0 %v5075
    %6105 = vmatprep.subr.mxu0 %v5074
    %6106 = vmatpush1.msra.mxu0 %v5073
    %6107 = vmatprep.subr.mxu0 %v5072
    %6108 = vmatpush1.msra.mxu0 %v5071
    %6109 = vmatprep.subr.mxu0 %v5070
    %6110 = vmatpush1.msra.mxu0 %v5069
    %6111 = vmatprep.subr.mxu0 %v5068
    %6112 = vmatpush1.msra.mxu0 %v5067
    %6113 = vmatprep.subr.mxu0 %v5066
    %6114 = vmatpush1.msra.mxu0 %v5065
    %6115 = vmatprep.subr.mxu0 0.0
    %6116 = vmatpush2.msra.mxu0 0.0
    %6117 = vmatprep.subr.mxu0 0.0
    %6118 = vmatpush2.msra.mxu0 0.0
    %6119 = vmatprep.subr.mxu0 0.0
    %6120 = vmatpush2.msra.mxu0 0.0
    %6121 = vmatprep.subr.mxu0 0.0
    %6122 = vmatpush2.msra.mxu0 0.0
    %6123 = vmatprep.subr.mxu0 0.0
    %6124 = vmatpush2.msra.mxu0 0.0
    %6125 = vmatprep.subr.mxu0 0.0
    %6126 = vmatpush2.msra.mxu0 0.0
    %6127 = vmatprep.subr.mxu0 0.0
    %6128 = vmatpush2.msra.mxu0 0.0
    %6129 = vmatprep.subr.mxu0 0.0
    %6130 = vmatpush2.msra.mxu0 0.0
    %6131 = vmatprep.subr.mxu0 0.0
    %6132 = vmatpush2.msra.mxu0 0.0
    %6133 = vmatprep.subr.mxu0 0.0
    %6134 = vmatpush2.msra.mxu0 0.0
    %6135 = vmatprep.subr.mxu0 0.0
    %6136 = vmatpush2.msra.mxu0 0.0
    %6137 = vmatprep.subr.mxu0 0.0
    %6138 = vmatpush2.msra.mxu0 0.0
    %6139 = vmatprep.subr.mxu0 0.0
    %6140 = vmatpush2.msra.mxu0 0.0
    %6141 = vmatprep.subr.mxu0 0.0
    %6142 = vmatpush2.msra.mxu0 0.0
    %6143 = vmatprep.subr.mxu0 0.0
    %6144 = vmatpush2.msra.mxu0 0.0
    %6145 = vmatprep.subr.mxu0 0.0
    %6146 = vmatpush2.msra.mxu0 0.0
    %6147 = vmatprep.mubr.f32.mxu0 0.0
    %6148 = vmatmul.mubr.f32.gmra.mxu0 %v6081
    %v6149 = vpop.f32.mrf.mxu0
    %v6150 = vadd.f32 0.0, %v6149
    %v6151 = vpop.f32.mrf.mxu0
    %v6152 = vadd.f32 0.0, %v6151
    %6153 = vdwg.mxu0
    %v6154 = vadd.f32 %v6078, %v6150
    %v6155 = vadd.f32 %v6079, %v6152
    %v6156 = vmul.f32 %v6154, 0.5
    %v6157 = vmul.f32 %v6155, 0.5
    %v6158 = vsel %vm5364, %v6154, %v6156
    %v6159 = vsel %vm5365, %v6155, %v6157
    %v6160 = vtanh.pop %v6158
    %v6161 = vtanh.pop %v6159
    %v6162 = vmul.f32 %v6160, 0.5
    %v6163 = vmul.f32 %v6161, 0.5
    %v6164 = vadd.f32 %v6162, 0.5
    %v6165 = vadd.f32 %v6163, 0.5
    %v6166 = vsel %vm5364, %v6160, %v6164
    %v6167 = vsel %vm5365, %v6161, %v6165
    %v6168 = vmul.f32 %v6166, %v6065
    %6170 = vrot.lane.b32.xlu0 %v6167, 64
    %v6171 = vpop.permute.xlu0 %6170
    %v6173 = vmul.f32 %v6166, %v6171
    %6175 = vrot.lane.b32.xlu0 %v6173, 64
    %v6176 = vpop.permute.xlu0 %6175
    %v6178 = vadd.f32 %v6168, %v6176
    %v6179 = vtanh.pop %v6178
    %6181 = vrot.lane.b32.xlu0 %v6179, 64
    %v6182 = vpop.permute.xlu0 %6181
    %v6184 = vmul.f32 %v6167, %v6182
    %6185 = vst.msk [vmem:[#allocation3 + $0x38] sm:$0xff] %vm330, %v6184
    %6186 = vst.msk [vmem:[#allocation3] sm:$0xff] %vm5394, %v6184
    %v6187 = vld [vmem:[#allocation3] sm:$0xff]
    %v6188 = vld [vmem:[#allocation3 + $0x8] sm:$0xff]
    %v6189 = vld [vmem:[#allocation3 + $0x10] sm:$0xff]
    %v6190 = vld [vmem:[#allocation3 + $0x18] sm:$0xff]
    %v6191 = vld [vmem:[#allocation3 + $0x20] sm:$0xff]
    %v6192 = vld [vmem:[#allocation3 + $0x28] sm:$0xff]
    %v6193 = vld [vmem:[#allocation3 + $0x30] sm:$0xff]
    %v6194 = vld [vmem:[#allocation3 + $0x38] sm:$0xff]
    %v6195 = vld [vmem:[#allocation10] sm:$0xff]
    %v6196 = vld [vmem:[#allocation10 + $0x8] sm:$0xff]
    %v6197 = vld [vmem:[#allocation10 + $0x10] sm:$0xff]
    %v6198 = vld [vmem:[#allocation10 + $0x18] sm:$0xff]
    %v6199 = vld [vmem:[#allocation10 + $0x20] sm:$0xff]
    %v6200 = vld [vmem:[#allocation10 + $0x28] sm:$0xff]
    %v6201 = vld [vmem:[#allocation10 + $0x30] sm:$0xff]
    %v6202 = vld [vmem:[#allocation10 + $0x38] sm:$0xff]
    %v6203 = vld [vmem:[#allocation10 + $0x40] sm:$0xff]
    %v6204 = vld [vmem:[#allocation10 + $0x48] sm:$0xff]
    %v6205 = vld [vmem:[#allocation10 + $0x50] sm:$0xff]
    %v6206 = vld [vmem:[#allocation10 + $0x58] sm:$0xff]
    %v6207 = vld [vmem:[#allocation10 + $0x60] sm:$0xff]
    %v6208 = vld [vmem:[#allocation10 + $0x68] sm:$0xff]
    %v6209 = vld [vmem:[#allocation10 + $0x70] sm:$0xff]
    %v6210 = vld [vmem:[#allocation10 + $0x78] sm:$0xff]
    %v6211 = vld [vmem:[#allocation12] sm:$0xff]
    %v6212 = vld [vmem:[#allocation12 + $0x8] sm:$0xff]
    %v6213 = vld [vmem:[#allocation12 + $0x10] sm:$0xff]
    %v6214 = vld [vmem:[#allocation12 + $0x18] sm:$0xff]
    %v6215 = vld [vmem:[#allocation12 + $0x20] sm:$0xff]
    %v6216 = vld [vmem:[#allocation12 + $0x28] sm:$0xff]
    %v6217 = vld [vmem:[#allocation12 + $0x30] sm:$0xff]
    %v6218 = vld [vmem:[#allocation12 + $0x38] sm:$0xff]
    %v6219 = vld [vmem:[#allocation12 + $0x40] sm:$0xff]
    %v6220 = vld [vmem:[#allocation12 + $0x48] sm:$0xff]
    %v6221 = vld [vmem:[#allocation12 + $0x50] sm:$0xff]
    %v6222 = vld [vmem:[#allocation12 + $0x58] sm:$0xff]
    %v6223 = vld [vmem:[#allocation12 + $0x60] sm:$0xff]
    %v6224 = vld [vmem:[#allocation12 + $0x68] sm:$0xff]
    %v6225 = vld [vmem:[#allocation12 + $0x70] sm:$0xff]
    %v6226 = vld [vmem:[#allocation12 + $0x78] sm:$0xff]
    %v6227 = vld [vmem:[#allocation13] sm:$0x3]
    %v6229 = vlaneseq
    %v6230 = vshrl.u32 %v6229, 7
    %v6231 = vsub.s32 0, %v6230
    %v6232 = vrot.slane %v6227, %v6231
    %v6233 = vlaneseq
    %v6234 = vshrl.u32 %v6233, 7
    %v6235 = vsub.s32 1, %v6234
    %v6236 = vrot.slane %v6227, %v6235
    %v6240 = vsel %vm877, %v6187, 0
    %v6243 = vsel %vm877, %v6188, 0
    %v6246 = vsel %vm877, %v6189, 0
    %v6249 = vsel %vm877, %v6190, 0
    %v6252 = vsel %vm877, %v6191, 0
    %v6255 = vsel %vm877, %v6192, 0
    %v6258 = vsel %vm877, %v6193, 0
    %v6261 = vsel %vm877, %v6194, 0
    %6263 = vmatprep.subr.mxu0 0.0
    %6264 = vmatpush1.msra.mxu0 0.0
    %6265 = vmatprep.subr.mxu0 0.0
    %6266 = vmatpush1.msra.mxu0 0.0
    %6267 = vmatprep.subr.mxu0 0.0
    %6268 = vmatpush1.msra.mxu0 0.0
    %6269 = vmatprep.subr.mxu0 0.0
    %6270 = vmatpush1.msra.mxu0 0.0
    %6271 = vmatprep.subr.mxu0 0.0
    %6272 = vmatpush1.msra.mxu0 0.0
    %6273 = vmatprep.subr.mxu0 0.0
    %6274 = vmatpush1.msra.mxu0 0.0
    %6275 = vmatprep.subr.mxu0 0.0
    %6276 = vmatpush1.msra.mxu0 0.0
    %6277 = vmatprep.subr.mxu0 0.0
    %6278 = vmatpush1.msra.mxu0 0.0
    %6279 = vmatprep.subr.mxu0 %v6210
    %6280 = vmatpush1.msra.mxu0 %v6209
    %6281 = vmatprep.subr.mxu0 %v6208
    %6282 = vmatpush1.msra.mxu0 %v6207
    %6283 = vmatprep.subr.mxu0 %v6206
    %6284 = vmatpush1.msra.mxu0 %v6205
    %6285 = vmatprep.subr.mxu0 %v6204
    %6286 = vmatpush1.msra.mxu0 %v6203
    %6287 = vmatprep.subr.mxu0 %v6202
    %6288 = vmatpush1.msra.mxu0 %v6201
    %6289 = vmatprep.subr.mxu0 %v6200
    %6290 = vmatpush1.msra.mxu0 %v6199
    %6291 = vmatprep.subr.mxu0 %v6198
    %6292 = vmatpush1.msra.mxu0 %v6197
    %6293 = vmatprep.subr.mxu0 %v6196
    %6294 = vmatpush1.msra.mxu0 %v6195
    %6295 = vmatprep.subr.mxu0 0.0
    %6296 = vmatpush2.msra.mxu0 0.0
    %6297 = vmatprep.subr.mxu0 0.0
    %6298 = vmatpush2.msra.mxu0 0.0
    %6299 = vmatprep.subr.mxu0 0.0
    %6300 = vmatpush2.msra.mxu0 0.0
    %6301 = vmatprep.subr.mxu0 0.0
    %6302 = vmatpush2.msra.mxu0 0.0
    %6303 = vmatprep.subr.mxu0 0.0
    %6304 = vmatpush2.msra.mxu0 0.0
    %6305 = vmatprep.subr.mxu0 0.0
    %6306 = vmatpush2.msra.mxu0 0.0
    %6307 = vmatprep.subr.mxu0 0.0
    %6308 = vmatpush2.msra.mxu0 0.0
    %6309 = vmatprep.subr.mxu0 0.0
    %6310 = vmatpush2.msra.mxu0 0.0
    %6311 = vmatprep.subr.mxu0 0.0
    %6312 = vmatpush2.msra.mxu0 0.0
    %6313 = vmatprep.subr.mxu0 0.0
    %6314 = vmatpush2.msra.mxu0 0.0
    %6315 = vmatprep.subr.mxu0 0.0
    %6316 = vmatpush2.msra.mxu0 0.0
    %6317 = vmatprep.subr.mxu0 0.0
    %6318 = vmatpush2.msra.mxu0 0.0
    %6319 = vmatprep.subr.mxu0 0.0
    %6320 = vmatpush2.msra.mxu0 0.0
    %6321 = vmatprep.subr.mxu0 0.0
    %6322 = vmatpush2.msra.mxu0 0.0
    %6323 = vmatprep.subr.mxu0 0.0
    %6324 = vmatpush2.msra.mxu0 0.0
    %6325 = vmatprep.subr.mxu0 0.0
    %6326 = vmatpush2.msra.mxu0 0.0
    %6327 = vmatprep.mubr.f32.mxu0 0.0
    %6328 = vmatmul.mubr.f32.gmra.mxu0 %v6240
    %v6329 = vpop.f32.mrf.mxu0
    %v6330 = vadd.f32 %v6232, %v6329
    %v6331 = vpop.f32.mrf.mxu0
    %v6332 = vadd.f32 %v6236, %v6331
    %6333 = vmatprep.mubr.f32.mxu0 0.0
    %6334 = vmatmul.mubr.f32.gmra.mxu0 %v6243
    %v6335 = vpop.f32.mrf.mxu0
    %v6336 = vadd.f32 %v6232, %v6335
    %v6337 = vpop.f32.mrf.mxu0
    %v6338 = vadd.f32 %v6236, %v6337
    %6339 = vmatprep.mubr.f32.mxu0 0.0
    %6340 = vmatmul.mubr.f32.gmra.mxu0 %v6246
    %v6341 = vpop.f32.mrf.mxu0
    %v6342 = vadd.f32 %v6232, %v6341
    %v6343 = vpop.f32.mrf.mxu0
    %v6344 = vadd.f32 %v6236, %v6343
    %6345 = vmatprep.mubr.f32.mxu0 0.0
    %6346 = vmatmul.mubr.f32.gmra.mxu0 %v6249
    %v6347 = vpop.f32.mrf.mxu0
    %v6348 = vadd.f32 %v6232, %v6347
    %v6349 = vpop.f32.mrf.mxu0
    %v6350 = vadd.f32 %v6236, %v6349
    %6351 = vmatprep.mubr.f32.mxu0 0.0
    %6352 = vmatmul.mubr.f32.gmra.mxu0 %v6252
    %v6353 = vpop.f32.mrf.mxu0
    %v6354 = vadd.f32 %v6232, %v6353
    %v6355 = vpop.f32.mrf.mxu0
    %v6356 = vadd.f32 %v6236, %v6355
    %6357 = vmatprep.mubr.f32.mxu0 0.0
    %6358 = vmatmul.mubr.f32.gmra.mxu0 %v6255
    %v6359 = vpop.f32.mrf.mxu0
    %v6360 = vadd.f32 %v6232, %v6359
    %v6361 = vpop.f32.mrf.mxu0
    %v6362 = vadd.f32 %v6236, %v6361
    %6363 = vmatprep.mubr.f32.mxu0 0.0
    %6364 = vmatmul.mubr.f32.gmra.mxu0 %v6258
    %v6365 = vpop.f32.mrf.mxu0
    %v6366 = vadd.f32 %v6232, %v6365
    %v6367 = vpop.f32.mrf.mxu0
    %v6368 = vadd.f32 %v6236, %v6367
    %6369 = vmatprep.mubr.f32.mxu0 0.0
    %6370 = vmatmul.mubr.f32.gmra.mxu0 %v6261
    %v6371 = vpop.f32.mrf.mxu0
    %v6372 = vadd.f32 %v6232, %v6371
    %v6373 = vpop.f32.mrf.mxu0
    %v6374 = vadd.f32 %v6236, %v6373
    %6375 = vdwg.mxu0
    %6376 = vst [vmem:[#allocation2] sm:$0xff] %v6330
    %6377 = vst [vmem:[#allocation2 + $0x8] sm:$0xff] %v6332
    %6378 = vst [vmem:[#allocation2 + $0x20] sm:$0xff] %v6336
    %6379 = vst [vmem:[#allocation2 + $0x28] sm:$0xff] %v6338
    %6380 = vst [vmem:[#allocation2 + $0x40] sm:$0xff] %v6342
    %6381 = vst [vmem:[#allocation2 + $0x48] sm:$0xff] %v6344
    %6382 = vst [vmem:[#allocation2 + $0x60] sm:$0xff] %v6348
    %6383 = vst [vmem:[#allocation2 + $0x68] sm:$0xff] %v6350
    %6384 = vst [vmem:[#allocation2 + $0x80] sm:$0xff] %v6354
    %6385 = vst [vmem:[#allocation2 + $0x88] sm:$0xff] %v6356
    %6386 = vst [vmem:[#allocation2 + $0xa0] sm:$0xff] %v6360
    %6387 = vst [vmem:[#allocation2 + $0xa8] sm:$0xff] %v6362
    %6388 = vst [vmem:[#allocation2 + $0xc0] sm:$0xff] %v6366
    %6389 = vst [vmem:[#allocation2 + $0xc8] sm:$0xff] %v6368
    %6390 = vst [vmem:[#allocation2 + $0xe0] sm:$0xff] %v6372
    %6391 = vst [vmem:[#allocation2 + $0xe8] sm:$0xff] %v6374
    %v6392 = vld [vmem:[#allocation2] sm:$0xff]
    %v6393 = vld [vmem:[#allocation2 + $0x8] sm:$0xff]
    %v6394 = vld [vmem:[#allocation2 + $0xe0] sm:$0xff]
    %v6395 = vld [vmem:[#allocation2 + $0xe8] sm:$0xff]
    %v6396 = vsel %vm5280, %v6392, %v6394
    %v6397 = vsel %vm5281, %v6393, %v6395
    %6398 = vmatprep.subr.mxu0 0.0
    %6399 = vmatpush1.msra.mxu0 0.0
    %6400 = vmatprep.subr.mxu0 0.0
    %6401 = vmatpush1.msra.mxu0 0.0
    %6402 = vmatprep.subr.mxu0 0.0
    %6403 = vmatpush1.msra.mxu0 0.0
    %6404 = vmatprep.subr.mxu0 0.0
    %6405 = vmatpush1.msra.mxu0 0.0
    %6406 = vmatprep.subr.mxu0 0.0
    %6407 = vmatpush1.msra.mxu0 0.0
    %6408 = vmatprep.subr.mxu0 0.0
    %6409 = vmatpush1.msra.mxu0 0.0
    %6410 = vmatprep.subr.mxu0 0.0
    %6411 = vmatpush1.msra.mxu0 0.0
    %6412 = vmatprep.subr.mxu0 0.0
    %6413 = vmatpush1.msra.mxu0 0.0
    %6414 = vmatprep.subr.mxu0 %v6226
    %6415 = vmatpush1.msra.mxu0 %v6225
    %6416 = vmatprep.subr.mxu0 %v6224
    %6417 = vmatpush1.msra.mxu0 %v6223
    %6418 = vmatprep.subr.mxu0 %v6222
    %6419 = vmatpush1.msra.mxu0 %v6221
    %6420 = vmatprep.subr.mxu0 %v6220
    %6421 = vmatpush1.msra.mxu0 %v6219
    %6422 = vmatprep.subr.mxu0 %v6218
    %6423 = vmatpush1.msra.mxu0 %v6217
    %6424 = vmatprep.subr.mxu0 %v6216
    %6425 = vmatpush1.msra.mxu0 %v6215
    %6426 = vmatprep.subr.mxu0 %v6214
    %6427 = vmatpush1.msra.mxu0 %v6213
    %6428 = vmatprep.subr.mxu0 %v6212
    %6429 = vmatpush1.msra.mxu0 %v6211
    %6430 = vmatprep.subr.mxu0 0.0
    %6431 = vmatpush2.msra.mxu0 0.0
    %6432 = vmatprep.subr.mxu0 0.0
    %6433 = vmatpush2.msra.mxu0 0.0
    %6434 = vmatprep.subr.mxu0 0.0
    %6435 = vmatpush2.msra.mxu0 0.0
    %6436 = vmatprep.subr.mxu0 0.0
    %6437 = vmatpush2.msra.mxu0 0.0
    %6438 = vmatprep.subr.mxu0 0.0
    %6439 = vmatpush2.msra.mxu0 0.0
    %6440 = vmatprep.subr.mxu0 0.0
    %6441 = vmatpush2.msra.mxu0 0.0
    %6442 = vmatprep.subr.mxu0 0.0
    %6443 = vmatpush2.msra.mxu0 0.0
    %6444 = vmatprep.subr.mxu0 0.0
    %6445 = vmatpush2.msra.mxu0 0.0
    %6446 = vmatprep.subr.mxu0 0.0
    %6447 = vmatpush2.msra.mxu0 0.0
    %6448 = vmatprep.subr.mxu0 0.0
    %6449 = vmatpush2.msra.mxu0 0.0
    %6450 = vmatprep.subr.mxu0 0.0
    %6451 = vmatpush2.msra.mxu0 0.0
    %6452 = vmatprep.subr.mxu0 0.0
    %6453 = vmatpush2.msra.mxu0 0.0
    %6454 = vmatprep.subr.mxu0 0.0
    %6455 = vmatpush2.msra.mxu0 0.0
    %6456 = vmatprep.subr.mxu0 0.0
    %6457 = vmatpush2.msra.mxu0 0.0
    %6458 = vmatprep.subr.mxu0 0.0
    %6459 = vmatpush2.msra.mxu0 0.0
    %6460 = vmatprep.subr.mxu0 0.0
    %6461 = vmatpush2.msra.mxu0 0.0
    %6462 = vmatprep.mubr.f32.mxu0 0.0
    %6463 = vmatmul.mubr.f32.gmra.mxu0 %v5285
    %v6464 = vpop.f32.mrf.mxu0
    %v6465 = vadd.f32 0.0, %v6464
    %v6466 = vpop.f32.mrf.mxu0
    %v6467 = vadd.f32 0.0, %v6466
    %6468 = vdwg.mxu0
    %v6469 = vadd.f32 %v6396, %v6465
    %v6470 = vadd.f32 %v6397, %v6467
    %v6471 = vmul.f32 %v6469, 0.5
    %v6472 = vmul.f32 %v6470, 0.5
    %v6473 = vsel %vm5364, %v6469, %v6471
    %v6474 = vsel %vm5365, %v6470, %v6472
    %v6475 = vtanh.pop %v6473
    %v6476 = vtanh.pop %v6474
    %v6477 = vmul.f32 %v6475, 0.5
    %v6478 = vmul.f32 %v6476, 0.5
    %v6479 = vadd.f32 %v6477, 0.5
    %v6480 = vadd.f32 %v6478, 0.5
    %v6481 = vsel %vm5364, %v6475, %v6479
    %v6482 = vsel %vm5365, %v6476, %v6480
    %v6483 = vmul.f32 %v6481, 0.0
    %6485 = vrot.lane.b32.xlu0 %v6482, 64
    %v6486 = vpop.permute.xlu0 %6485
    %v6488 = vmul.f32 %v6481, %v6486
    %6490 = vrot.lane.b32.xlu0 %v6488, 64
    %v6491 = vpop.permute.xlu0 %6490
    %v6493 = vadd.f32 %v6483, %v6491
    %v6494 = vtanh.pop %v6493
    %6496 = vrot.lane.b32.xlu0 %v6494, 64
    %v6497 = vpop.permute.xlu0 %6496
    %v6499 = vmul.f32 %v6482, %v6497
    %6500 = vst.msk [vmem:[#allocation4] sm:$0xff] %vm330, %v6499
    %6501 = vst.msk [vmem:[#allocation4 + $0x38] sm:$0xff] %vm5394, %v6499
    %v6502 = vld [vmem:[#allocation2 + $0x20] sm:$0xff]
    %v6503 = vld [vmem:[#allocation2 + $0x28] sm:$0xff]
    %v6504 = vld [vmem:[#allocation2 + $0xc0] sm:$0xff]
    %v6505 = vld [vmem:[#allocation2 + $0xc8] sm:$0xff]
    %v6506 = vsel %vm5280, %v6502, %v6504
    %v6507 = vsel %vm5281, %v6503, %v6505
    %v6509 = vsel %vm877, %v6499, 0
    %6511 = vmatprep.subr.mxu0 0.0
    %6512 = vmatpush1.msra.mxu0 0.0
    %6513 = vmatprep.subr.mxu0 0.0
    %6514 = vmatpush1.msra.mxu0 0.0
    %6515 = vmatprep.subr.mxu0 0.0
    %6516 = vmatpush1.msra.mxu0 0.0
    %6517 = vmatprep.subr.mxu0 0.0
    %6518 = vmatpush1.msra.mxu0 0.0
    %6519 = vmatprep.subr.mxu0 0.0
    %6520 = vmatpush1.msra.mxu0 0.0
    %6521 = vmatprep.subr.mxu0 0.0
    %6522 = vmatpush1.msra.mxu0 0.0
    %6523 = vmatprep.subr.mxu0 0.0
    %6524 = vmatpush1.msra.mxu0 0.0
    %6525 = vmatprep.subr.mxu0 0.0
    %6526 = vmatpush1.msra.mxu0 0.0
    %6527 = vmatprep.subr.mxu0 %v6226
    %6528 = vmatpush1.msra.mxu0 %v6225
    %6529 = vmatprep.subr.mxu0 %v6224
    %6530 = vmatpush1.msra.mxu0 %v6223
    %6531 = vmatprep.subr.mxu0 %v6222
    %6532 = vmatpush1.msra.mxu0 %v6221
    %6533 = vmatprep.subr.mxu0 %v6220
    %6534 = vmatpush1.msra.mxu0 %v6219
    %6535 = vmatprep.subr.mxu0 %v6218
    %6536 = vmatpush1.msra.mxu0 %v6217
    %6537 = vmatprep.subr.mxu0 %v6216
    %6538 = vmatpush1.msra.mxu0 %v6215
    %6539 = vmatprep.subr.mxu0 %v6214
    %6540 = vmatpush1.msra.mxu0 %v6213
    %6541 = vmatprep.subr.mxu0 %v6212
    %6542 = vmatpush1.msra.mxu0 %v6211
    %6543 = vmatprep.subr.mxu0 0.0
    %6544 = vmatpush2.msra.mxu0 0.0
    %6545 = vmatprep.subr.mxu0 0.0
    %6546 = vmatpush2.msra.mxu0 0.0
    %6547 = vmatprep.subr.mxu0 0.0
    %6548 = vmatpush2.msra.mxu0 0.0
    %6549 = vmatprep.subr.mxu0 0.0
    %6550 = vmatpush2.msra.mxu0 0.0
    %6551 = vmatprep.subr.mxu0 0.0
    %6552 = vmatpush2.msra.mxu0 0.0
    %6553 = vmatprep.subr.mxu0 0.0
    %6554 = vmatpush2.msra.mxu0 0.0
    %6555 = vmatprep.subr.mxu0 0.0
    %6556 = vmatpush2.msra.mxu0 0.0
    %6557 = vmatprep.subr.mxu0 0.0
    %6558 = vmatpush2.msra.mxu0 0.0
    %6559 = vmatprep.subr.mxu0 0.0
    %6560 = vmatpush2.msra.mxu0 0.0
    %6561 = vmatprep.subr.mxu0 0.0
    %6562 = vmatpush2.msra.mxu0 0.0
    %6563 = vmatprep.subr.mxu0 0.0
    %6564 = vmatpush2.msra.mxu0 0.0
    %6565 = vmatprep.subr.mxu0 0.0
    %6566 = vmatpush2.msra.mxu0 0.0
    %6567 = vmatprep.subr.mxu0 0.0
    %6568 = vmatpush2.msra.mxu0 0.0
    %6569 = vmatprep.subr.mxu0 0.0
    %6570 = vmatpush2.msra.mxu0 0.0
    %6571 = vmatprep.subr.mxu0 0.0
    %6572 = vmatpush2.msra.mxu0 0.0
    %6573 = vmatprep.subr.mxu0 0.0
    %6574 = vmatpush2.msra.mxu0 0.0
    %6575 = vmatprep.mubr.f32.mxu0 0.0
    %6576 = vmatmul.mubr.f32.gmra.mxu0 %v6509
    %v6577 = vpop.f32.mrf.mxu0
    %v6578 = vadd.f32 0.0, %v6577
    %v6579 = vpop.f32.mrf.mxu0
    %v6580 = vadd.f32 0.0, %v6579
    %6581 = vdwg.mxu0
    %v6582 = vadd.f32 %v6506, %v6578
    %v6583 = vadd.f32 %v6507, %v6580
    %v6584 = vmul.f32 %v6582, 0.5
    %v6585 = vmul.f32 %v6583, 0.5
    %v6586 = vsel %vm5364, %v6582, %v6584
    %v6587 = vsel %vm5365, %v6583, %v6585
    %v6588 = vtanh.pop %v6586
    %v6589 = vtanh.pop %v6587
    %v6590 = vmul.f32 %v6588, 0.5
    %v6591 = vmul.f32 %v6589, 0.5
    %v6592 = vadd.f32 %v6590, 0.5
    %v6593 = vadd.f32 %v6591, 0.5
    %v6594 = vsel %vm5364, %v6588, %v6592
    %v6595 = vsel %vm5365, %v6589, %v6593
    %v6596 = vmul.f32 %v6594, %v6493
    %6598 = vrot.lane.b32.xlu0 %v6595, 64
    %v6599 = vpop.permute.xlu0 %6598
    %v6601 = vmul.f32 %v6594, %v6599
    %6603 = vrot.lane.b32.xlu0 %v6601, 64
    %v6604 = vpop.permute.xlu0 %6603
    %v6606 = vadd.f32 %v6596, %v6604
    %v6607 = vtanh.pop %v6606
    %6609 = vrot.lane.b32.xlu0 %v6607, 64
    %v6610 = vpop.permute.xlu0 %6609
    %v6612 = vmul.f32 %v6595, %v6610
    %6613 = vst.msk [vmem:[#allocation4 + $0x8] sm:$0xff] %vm330, %v6612
    %6614 = vst.msk [vmem:[#allocation4 + $0x30] sm:$0xff] %vm5394, %v6612
    %v6615 = vld [vmem:[#allocation2 + $0x40] sm:$0xff]
    %v6616 = vld [vmem:[#allocation2 + $0x48] sm:$0xff]
    %v6617 = vld [vmem:[#allocation2 + $0xa0] sm:$0xff]
    %v6618 = vld [vmem:[#allocation2 + $0xa8] sm:$0xff]
    %v6619 = vsel %vm5280, %v6615, %v6617
    %v6620 = vsel %vm5281, %v6616, %v6618
    %v6622 = vsel %vm877, %v6612, 0
    %6624 = vmatprep.subr.mxu0 0.0
    %6625 = vmatpush1.msra.mxu0 0.0
    %6626 = vmatprep.subr.mxu0 0.0
    %6627 = vmatpush1.msra.mxu0 0.0
    %6628 = vmatprep.subr.mxu0 0.0
    %6629 = vmatpush1.msra.mxu0 0.0
    %6630 = vmatprep.subr.mxu0 0.0
    %6631 = vmatpush1.msra.mxu0 0.0
    %6632 = vmatprep.subr.mxu0 0.0
    %6633 = vmatpush1.msra.mxu0 0.0
    %6634 = vmatprep.subr.mxu0 0.0
    %6635 = vmatpush1.msra.mxu0 0.0
    %6636 = vmatprep.subr.mxu0 0.0
    %6637 = vmatpush1.msra.mxu0 0.0
    %6638 = vmatprep.subr.mxu0 0.0
    %6639 = vmatpush1.msra.mxu0 0.0
    %6640 = vmatprep.subr.mxu0 %v6226
    %6641 = vmatpush1.msra.mxu0 %v6225
    %6642 = vmatprep.subr.mxu0 %v6224
    %6643 = vmatpush1.msra.mxu0 %v6223
    %6644 = vmatprep.subr.mxu0 %v6222
    %6645 = vmatpush1.msra.mxu0 %v6221
    %6646 = vmatprep.subr.mxu0 %v6220
    %6647 = vmatpush1.msra.mxu0 %v6219
    %6648 = vmatprep.subr.mxu0 %v6218
    %6649 = vmatpush1.msra.mxu0 %v6217
    %6650 = vmatprep.subr.mxu0 %v6216
    %6651 = vmatpush1.msra.mxu0 %v6215
    %6652 = vmatprep.subr.mxu0 %v6214
    %6653 = vmatpush1.msra.mxu0 %v6213
    %6654 = vmatprep.subr.mxu0 %v6212
    %6655 = vmatpush1.msra.mxu0 %v6211
    %6656 = vmatprep.subr.mxu0 0.0
    %6657 = vmatpush2.msra.mxu0 0.0
    %6658 = vmatprep.subr.mxu0 0.0
    %6659 = vmatpush2.msra.mxu0 0.0
    %6660 = vmatprep.subr.mxu0 0.0
    %6661 = vmatpush2.msra.mxu0 0.0
    %6662 = vmatprep.subr.mxu0 0.0
    %6663 = vmatpush2.msra.mxu0 0.0
    %6664 = vmatprep.subr.mxu0 0.0
    %6665 = vmatpush2.msra.mxu0 0.0
    %6666 = vmatprep.subr.mxu0 0.0
    %6667 = vmatpush2.msra.mxu0 0.0
    %6668 = vmatprep.subr.mxu0 0.0
    %6669 = vmatpush2.msra.mxu0 0.0
    %6670 = vmatprep.subr.mxu0 0.0
    %6671 = vmatpush2.msra.mxu0 0.0
    %6672 = vmatprep.subr.mxu0 0.0
    %6673 = vmatpush2.msra.mxu0 0.0
    %6674 = vmatprep.subr.mxu0 0.0
    %6675 = vmatpush2.msra.mxu0 0.0
    %6676 = vmatprep.subr.mxu0 0.0
    %6677 = vmatpush2.msra.mxu0 0.0
    %6678 = vmatprep.subr.mxu0 0.0
    %6679 = vmatpush2.msra.mxu0 0.0
    %6680 = vmatprep.subr.mxu0 0.0
    %6681 = vmatpush2.msra.mxu0 0.0
    %6682 = vmatprep.subr.mxu0 0.0
    %6683 = vmatpush2.msra.mxu0 0.0
    %6684 = vmatprep.subr.mxu0 0.0
    %6685 = vmatpush2.msra.mxu0 0.0
    %6686 = vmatprep.subr.mxu0 0.0
    %6687 = vmatpush2.msra.mxu0 0.0
    %6688 = vmatprep.mubr.f32.mxu0 0.0
    %6689 = vmatmul.mubr.f32.gmra.mxu0 %v6622
    %v6690 = vpop.f32.mrf.mxu0
    %v6691 = vadd.f32 0.0, %v6690
    %v6692 = vpop.f32.mrf.mxu0
    %v6693 = vadd.f32 0.0, %v6692
    %6694 = vdwg.mxu0
    %v6695 = vadd.f32 %v6619, %v6691
    %v6696 = vadd.f32 %v6620, %v6693
    %v6697 = vmul.f32 %v6695, 0.5
    %v6698 = vmul.f32 %v6696, 0.5
    %v6699 = vsel %vm5364, %v6695, %v6697
    %v6700 = vsel %vm5365, %v6696, %v6698
    %v6701 = vtanh.pop %v6699
    %v6702 = vtanh.pop %v6700
    %v6703 = vmul.f32 %v6701, 0.5
    %v6704 = vmul.f32 %v6702, 0.5
    %v6705 = vadd.f32 %v6703, 0.5
    %v6706 = vadd.f32 %v6704, 0.5
    %v6707 = vsel %vm5364, %v6701, %v6705
    %v6708 = vsel %vm5365, %v6702, %v6706
    %v6709 = vmul.f32 %v6707, %v6606
    %6711 = vrot.lane.b32.xlu0 %v6708, 64
    %v6712 = vpop.permute.xlu0 %6711
    %v6714 = vmul.f32 %v6707, %v6712
    %6716 = vrot.lane.b32.xlu0 %v6714, 64
    %v6717 = vpop.permute.xlu0 %6716
    %v6719 = vadd.f32 %v6709, %v6717
    %v6720 = vtanh.pop %v6719
    %6722 = vrot.lane.b32.xlu0 %v6720, 64
    %v6723 = vpop.permute.xlu0 %6722
    %v6725 = vmul.f32 %v6708, %v6723
    %6726 = vst.msk [vmem:[#allocation4 + $0x10] sm:$0xff] %vm330, %v6725
    %6727 = vst.msk [vmem:[#allocation4 + $0x28] sm:$0xff] %vm5394, %v6725
    %v6728 = vld [vmem:[#allocation2 + $0x60] sm:$0xff]
    %v6729 = vld [vmem:[#allocation2 + $0x68] sm:$0xff]
    %v6730 = vld [vmem:[#allocation2 + $0x80] sm:$0xff]
    %v6731 = vld [vmem:[#allocation2 + $0x88] sm:$0xff]
    %v6732 = vsel %vm5280, %v6728, %v6730
    %v6733 = vsel %vm5281, %v6729, %v6731
    %v6735 = vsel %vm877, %v6725, 0
    %6737 = vmatprep.subr.mxu0 0.0
    %6738 = vmatpush1.msra.mxu0 0.0
    %6739 = vmatprep.subr.mxu0 0.0
    %6740 = vmatpush1.msra.mxu0 0.0
    %6741 = vmatprep.subr.mxu0 0.0
    %6742 = vmatpush1.msra.mxu0 0.0
    %6743 = vmatprep.subr.mxu0 0.0
    %6744 = vmatpush1.msra.mxu0 0.0
    %6745 = vmatprep.subr.mxu0 0.0
    %6746 = vmatpush1.msra.mxu0 0.0
    %6747 = vmatprep.subr.mxu0 0.0
    %6748 = vmatpush1.msra.mxu0 0.0
    %6749 = vmatprep.subr.mxu0 0.0
    %6750 = vmatpush1.msra.mxu0 0.0
    %6751 = vmatprep.subr.mxu0 0.0
    %6752 = vmatpush1.msra.mxu0 0.0
    %6753 = vmatprep.subr.mxu0 %v6226
    %6754 = vmatpush1.msra.mxu0 %v6225
    %6755 = vmatprep.subr.mxu0 %v6224
    %6756 = vmatpush1.msra.mxu0 %v6223
    %6757 = vmatprep.subr.mxu0 %v6222
    %6758 = vmatpush1.msra.mxu0 %v6221
    %6759 = vmatprep.subr.mxu0 %v6220
    %6760 = vmatpush1.msra.mxu0 %v6219
    %6761 = vmatprep.subr.mxu0 %v6218
    %6762 = vmatpush1.msra.mxu0 %v6217
    %6763 = vmatprep.subr.mxu0 %v6216
    %6764 = vmatpush1.msra.mxu0 %v6215
    %6765 = vmatprep.subr.mxu0 %v6214
    %6766 = vmatpush1.msra.mxu0 %v6213
    %6767 = vmatprep.subr.mxu0 %v6212
    %6768 = vmatpush1.msra.mxu0 %v6211
    %6769 = vmatprep.subr.mxu0 0.0
    %6770 = vmatpush2.msra.mxu0 0.0
    %6771 = vmatprep.subr.mxu0 0.0
    %6772 = vmatpush2.msra.mxu0 0.0
    %6773 = vmatprep.subr.mxu0 0.0
    %6774 = vmatpush2.msra.mxu0 0.0
    %6775 = vmatprep.subr.mxu0 0.0
    %6776 = vmatpush2.msra.mxu0 0.0
    %6777 = vmatprep.subr.mxu0 0.0
    %6778 = vmatpush2.msra.mxu0 0.0
    %6779 = vmatprep.subr.mxu0 0.0
    %6780 = vmatpush2.msra.mxu0 0.0
    %6781 = vmatprep.subr.mxu0 0.0
    %6782 = vmatpush2.msra.mxu0 0.0
    %6783 = vmatprep.subr.mxu0 0.0
    %6784 = vmatpush2.msra.mxu0 0.0
    %6785 = vmatprep.subr.mxu0 0.0
    %6786 = vmatpush2.msra.mxu0 0.0
    %6787 = vmatprep.subr.mxu0 0.0
    %6788 = vmatpush2.msra.mxu0 0.0
    %6789 = vmatprep.subr.mxu0 0.0
    %6790 = vmatpush2.msra.mxu0 0.0
    %6791 = vmatprep.subr.mxu0 0.0
    %6792 = vmatpush2.msra.mxu0 0.0
    %6793 = vmatprep.subr.mxu0 0.0
    %6794 = vmatpush2.msra.mxu0 0.0
    %6795 = vmatprep.subr.mxu0 0.0
    %6796 = vmatpush2.msra.mxu0 0.0
    %6797 = vmatprep.subr.mxu0 0.0
    %6798 = vmatpush2.msra.mxu0 0.0
    %6799 = vmatprep.subr.mxu0 0.0
    %6800 = vmatpush2.msra.mxu0 0.0
    %6801 = vmatprep.mubr.f32.mxu0 0.0
    %6802 = vmatmul.mubr.f32.gmra.mxu0 %v6735
    %v6803 = vpop.f32.mrf.mxu0
    %v6804 = vadd.f32 0.0, %v6803
    %v6805 = vpop.f32.mrf.mxu0
    %v6806 = vadd.f32 0.0, %v6805
    %6807 = vdwg.mxu0
    %v6808 = vadd.f32 %v6732, %v6804
    %v6809 = vadd.f32 %v6733, %v6806
    %v6810 = vmul.f32 %v6808, 0.5
    %v6811 = vmul.f32 %v6809, 0.5
    %v6812 = vsel %vm5364, %v6808, %v6810
    %v6813 = vsel %vm5365, %v6809, %v6811
    %v6814 = vtanh.pop %v6812
    %v6815 = vtanh.pop %v6813
    %v6816 = vmul.f32 %v6814, 0.5
    %v6817 = vmul.f32 %v6815, 0.5
    %v6818 = vadd.f32 %v6816, 0.5
    %v6819 = vadd.f32 %v6817, 0.5
    %v6820 = vsel %vm5364, %v6814, %v6818
    %v6821 = vsel %vm5365, %v6815, %v6819
    %v6822 = vmul.f32 %v6820, %v6719
    %6824 = vrot.lane.b32.xlu0 %v6821, 64
    %v6825 = vpop.permute.xlu0 %6824
    %v6827 = vmul.f32 %v6820, %v6825
    %6829 = vrot.lane.b32.xlu0 %v6827, 64
    %v6830 = vpop.permute.xlu0 %6829
    %v6832 = vadd.f32 %v6822, %v6830
    %v6833 = vtanh.pop %v6832
    %6835 = vrot.lane.b32.xlu0 %v6833, 64
    %v6836 = vpop.permute.xlu0 %6835
    %v6838 = vmul.f32 %v6821, %v6836
    %6839 = vst.msk [vmem:[#allocation4 + $0x18] sm:$0xff] %vm330, %v6838
    %6840 = vst.msk [vmem:[#allocation4 + $0x20] sm:$0xff] %vm5394, %v6838
    %v6841 = vld [vmem:[#allocation2 + $0x80] sm:$0xff]
    %v6842 = vld [vmem:[#allocation2 + $0x88] sm:$0xff]
    %v6843 = vld [vmem:[#allocation2 + $0x60] sm:$0xff]
    %v6844 = vld [vmem:[#allocation2 + $0x68] sm:$0xff]
    %v6845 = vsel %vm5280, %v6841, %v6843
    %v6846 = vsel %vm5281, %v6842, %v6844
    %v6848 = vsel %vm877, %v6838, 0
    %6850 = vmatprep.subr.mxu0 0.0
    %6851 = vmatpush1.msra.mxu0 0.0
    %6852 = vmatprep.subr.mxu0 0.0
    %6853 = vmatpush1.msra.mxu0 0.0
    %6854 = vmatprep.subr.mxu0 0.0
    %6855 = vmatpush1.msra.mxu0 0.0
    %6856 = vmatprep.subr.mxu0 0.0
    %6857 = vmatpush1.msra.mxu0 0.0
    %6858 = vmatprep.subr.mxu0 0.0
    %6859 = vmatpush1.msra.mxu0 0.0
    %6860 = vmatprep.subr.mxu0 0.0
    %6861 = vmatpush1.msra.mxu0 0.0
    %6862 = vmatprep.subr.mxu0 0.0
    %6863 = vmatpush1.msra.mxu0 0.0
    %6864 = vmatprep.subr.mxu0 0.0
    %6865 = vmatpush1.msra.mxu0 0.0
    %6866 = vmatprep.subr.mxu0 %v6226
    %6867 = vmatpush1.msra.mxu0 %v6225
    %6868 = vmatprep.subr.mxu0 %v6224
    %6869 = vmatpush1.msra.mxu0 %v6223
    %6870 = vmatprep.subr.mxu0 %v6222
    %6871 = vmatpush1.msra.mxu0 %v6221
    %6872 = vmatprep.subr.mxu0 %v6220
    %6873 = vmatpush1.msra.mxu0 %v6219
    %6874 = vmatprep.subr.mxu0 %v6218
    %6875 = vmatpush1.msra.mxu0 %v6217
    %6876 = vmatprep.subr.mxu0 %v6216
    %6877 = vmatpush1.msra.mxu0 %v6215
    %6878 = vmatprep.subr.mxu0 %v6214
    %6879 = vmatpush1.msra.mxu0 %v6213
    %6880 = vmatprep.subr.mxu0 %v6212
    %6881 = vmatpush1.msra.mxu0 %v6211
    %6882 = vmatprep.subr.mxu0 0.0
    %6883 = vmatpush2.msra.mxu0 0.0
    %6884 = vmatprep.subr.mxu0 0.0
    %6885 = vmatpush2.msra.mxu0 0.0
    %6886 = vmatprep.subr.mxu0 0.0
    %6887 = vmatpush2.msra.mxu0 0.0
    %6888 = vmatprep.subr.mxu0 0.0
    %6889 = vmatpush2.msra.mxu0 0.0
    %6890 = vmatprep.subr.mxu0 0.0
    %6891 = vmatpush2.msra.mxu0 0.0
    %6892 = vmatprep.subr.mxu0 0.0
    %6893 = vmatpush2.msra.mxu0 0.0
    %6894 = vmatprep.subr.mxu0 0.0
    %6895 = vmatpush2.msra.mxu0 0.0
    %6896 = vmatprep.subr.mxu0 0.0
    %6897 = vmatpush2.msra.mxu0 0.0
    %6898 = vmatprep.subr.mxu0 0.0
    %6899 = vmatpush2.msra.mxu0 0.0
    %6900 = vmatprep.subr.mxu0 0.0
    %6901 = vmatpush2.msra.mxu0 0.0
    %6902 = vmatprep.subr.mxu0 0.0
    %6903 = vmatpush2.msra.mxu0 0.0
    %6904 = vmatprep.subr.mxu0 0.0
    %6905 = vmatpush2.msra.mxu0 0.0
    %6906 = vmatprep.subr.mxu0 0.0
    %6907 = vmatpush2.msra.mxu0 0.0
    %6908 = vmatprep.subr.mxu0 0.0
    %6909 = vmatpush2.msra.mxu0 0.0
    %6910 = vmatprep.subr.mxu0 0.0
    %6911 = vmatpush2.msra.mxu0 0.0
    %6912 = vmatprep.subr.mxu0 0.0
    %6913 = vmatpush2.msra.mxu0 0.0
    %6914 = vmatprep.mubr.f32.mxu0 0.0
    %6915 = vmatmul.mubr.f32.gmra.mxu0 %v6848
    %v6916 = vpop.f32.mrf.mxu0
    %v6917 = vadd.f32 0.0, %v6916
    %v6918 = vpop.f32.mrf.mxu0
    %v6919 = vadd.f32 0.0, %v6918
    %6920 = vdwg.mxu0
    %v6921 = vadd.f32 %v6845, %v6917
    %v6922 = vadd.f32 %v6846, %v6919
    %v6923 = vmul.f32 %v6921, 0.5
    %v6924 = vmul.f32 %v6922, 0.5
    %v6925 = vsel %vm5364, %v6921, %v6923
    %v6926 = vsel %vm5365, %v6922, %v6924
    %v6927 = vtanh.pop %v6925
    %v6928 = vtanh.pop %v6926
    %v6929 = vmul.f32 %v6927, 0.5
    %v6930 = vmul.f32 %v6928, 0.5
    %v6931 = vadd.f32 %v6929, 0.5
    %v6932 = vadd.f32 %v6930, 0.5
    %v6933 = vsel %vm5364, %v6927, %v6931
    %v6934 = vsel %vm5365, %v6928, %v6932
    %v6935 = vmul.f32 %v6933, %v6832
    %6937 = vrot.lane.b32.xlu0 %v6934, 64
    %v6938 = vpop.permute.xlu0 %6937
    %v6940 = vmul.f32 %v6933, %v6938
    %6942 = vrot.lane.b32.xlu0 %v6940, 64
    %v6943 = vpop.permute.xlu0 %6942
    %v6945 = vadd.f32 %v6935, %v6943
    %v6946 = vtanh.pop %v6945
    %6948 = vrot.lane.b32.xlu0 %v6946, 64
    %v6949 = vpop.permute.xlu0 %6948
    %v6951 = vmul.f32 %v6934, %v6949
    %6952 = vst.msk [vmem:[#allocation4 + $0x20] sm:$0xff] %vm330, %v6951
    %6953 = vst.msk [vmem:[#allocation4 + $0x18] sm:$0xff] %vm5394, %v6951
    %v6954 = vld [vmem:[#allocation2 + $0xa0] sm:$0xff]
    %v6955 = vld [vmem:[#allocation2 + $0xa8] sm:$0xff]
    %v6956 = vld [vmem:[#allocation2 + $0x40] sm:$0xff]
    %v6957 = vld [vmem:[#allocation2 + $0x48] sm:$0xff]
    %v6958 = vsel %vm5280, %v6954, %v6956
    %v6959 = vsel %vm5281, %v6955, %v6957
    %v6961 = vsel %vm877, %v6951, 0
    %6963 = vmatprep.subr.mxu0 0.0
    %6964 = vmatpush1.msra.mxu0 0.0
    %6965 = vmatprep.subr.mxu0 0.0
    %6966 = vmatpush1.msra.mxu0 0.0
    %6967 = vmatprep.subr.mxu0 0.0
    %6968 = vmatpush1.msra.mxu0 0.0
    %6969 = vmatprep.subr.mxu0 0.0
    %6970 = vmatpush1.msra.mxu0 0.0
    %6971 = vmatprep.subr.mxu0 0.0
    %6972 = vmatpush1.msra.mxu0 0.0
    %6973 = vmatprep.subr.mxu0 0.0
    %6974 = vmatpush1.msra.mxu0 0.0
    %6975 = vmatprep.subr.mxu0 0.0
    %6976 = vmatpush1.msra.mxu0 0.0
    %6977 = vmatprep.subr.mxu0 0.0
    %6978 = vmatpush1.msra.mxu0 0.0
    %6979 = vmatprep.subr.mxu0 %v6226
    %6980 = vmatpush1.msra.mxu0 %v6225
    %6981 = vmatprep.subr.mxu0 %v6224
    %6982 = vmatpush1.msra.mxu0 %v6223
    %6983 = vmatprep.subr.mxu0 %v6222
    %6984 = vmatpush1.msra.mxu0 %v6221
    %6985 = vmatprep.subr.mxu0 %v6220
    %6986 = vmatpush1.msra.mxu0 %v6219
    %6987 = vmatprep.subr.mxu0 %v6218
    %6988 = vmatpush1.msra.mxu0 %v6217
    %6989 = vmatprep.subr.mxu0 %v6216
    %6990 = vmatpush1.msra.mxu0 %v6215
    %6991 = vmatprep.subr.mxu0 %v6214
    %6992 = vmatpush1.msra.mxu0 %v6213
    %6993 = vmatprep.subr.mxu0 %v6212
    %6994 = vmatpush1.msra.mxu0 %v6211
    %6995 = vmatprep.subr.mxu0 0.0
    %6996 = vmatpush2.msra.mxu0 0.0
    %6997 = vmatprep.subr.mxu0 0.0
    %6998 = vmatpush2.msra.mxu0 0.0
    %6999 = vmatprep.subr.mxu0 0.0
    %7000 = vmatpush2.msra.mxu0 0.0
    %7001 = vmatprep.subr.mxu0 0.0
    %7002 = vmatpush2.msra.mxu0 0.0
    %7003 = vmatprep.subr.mxu0 0.0
    %7004 = vmatpush2.msra.mxu0 0.0
    %7005 = vmatprep.subr.mxu0 0.0
    %7006 = vmatpush2.msra.mxu0 0.0
    %7007 = vmatprep.subr.mxu0 0.0
    %7008 = vmatpush2.msra.mxu0 0.0
    %7009 = vmatprep.subr.mxu0 0.0
    %7010 = vmatpush2.msra.mxu0 0.0
    %7011 = vmatprep.subr.mxu0 0.0
    %7012 = vmatpush2.msra.mxu0 0.0
    %7013 = vmatprep.subr.mxu0 0.0
    %7014 = vmatpush2.msra.mxu0 0.0
    %7015 = vmatprep.subr.mxu0 0.0
    %7016 = vmatpush2.msra.mxu0 0.0
    %7017 = vmatprep.subr.mxu0 0.0
    %7018 = vmatpush2.msra.mxu0 0.0
    %7019 = vmatprep.subr.mxu0 0.0
    %7020 = vmatpush2.msra.mxu0 0.0
    %7021 = vmatprep.subr.mxu0 0.0
    %7022 = vmatpush2.msra.mxu0 0.0
    %7023 = vmatprep.subr.mxu0 0.0
    %7024 = vmatpush2.msra.mxu0 0.0
    %7025 = vmatprep.subr.mxu0 0.0
    %7026 = vmatpush2.msra.mxu0 0.0
    %7027 = vmatprep.mubr.f32.mxu0 0.0
    %7028 = vmatmul.mubr.f32.gmra.mxu0 %v6961
    %v7029 = vpop.f32.mrf.mxu0
    %v7030 = vadd.f32 0.0, %v7029
    %v7031 = vpop.f32.mrf.mxu0
    %v7032 = vadd.f32 0.0, %v7031
    %7033 = vdwg.mxu0
    %v7034 = vadd.f32 %v6958, %v7030
    %v7035 = vadd.f32 %v6959, %v7032
    %v7036 = vmul.f32 %v7034, 0.5
    %v7037 = vmul.f32 %v7035, 0.5
    %v7038 = vsel %vm5364, %v7034, %v7036
    %v7039 = vsel %vm5365, %v7035, %v7037
    %v7040 = vtanh.pop %v7038
    %v7041 = vtanh.pop %v7039
    %v7042 = vmul.f32 %v7040, 0.5
    %v7043 = vmul.f32 %v7041, 0.5
    %v7044 = vadd.f32 %v7042, 0.5
    %v7045 = vadd.f32 %v7043, 0.5
    %v7046 = vsel %vm5364, %v7040, %v7044
    %v7047 = vsel %vm5365, %v7041, %v7045
    %v7048 = vmul.f32 %v7046, %v6945
    %7050 = vrot.lane.b32.xlu0 %v7047, 64
    %v7051 = vpop.permute.xlu0 %7050
    %v7053 = vmul.f32 %v7046, %v7051
    %7055 = vrot.lane.b32.xlu0 %v7053, 64
    %v7056 = vpop.permute.xlu0 %7055
    %v7058 = vadd.f32 %v7048, %v7056
    %v7059 = vtanh.pop %v7058
    %7061 = vrot.lane.b32.xlu0 %v7059, 64
    %v7062 = vpop.permute.xlu0 %7061
    %v7064 = vmul.f32 %v7047, %v7062
    %7065 = vst.msk [vmem:[#allocation4 + $0x28] sm:$0xff] %vm330, %v7064
    %7066 = vst.msk [vmem:[#allocation4 + $0x10] sm:$0xff] %vm5394, %v7064
    %v7067 = vld [vmem:[#allocation2 + $0xc0] sm:$0xff]
    %v7068 = vld [vmem:[#allocation2 + $0xc8] sm:$0xff]
    %v7069 = vld [vmem:[#allocation2 + $0x20] sm:$0xff]
    %v7070 = vld [vmem:[#allocation2 + $0x28] sm:$0xff]
    %v7071 = vsel %vm5280, %v7067, %v7069
    %v7072 = vsel %vm5281, %v7068, %v7070
    %v7074 = vsel %vm877, %v7064, 0
    %7076 = vmatprep.subr.mxu0 0.0
    %7077 = vmatpush1.msra.mxu0 0.0
    %7078 = vmatprep.subr.mxu0 0.0
    %7079 = vmatpush1.msra.mxu0 0.0
    %7080 = vmatprep.subr.mxu0 0.0
    %7081 = vmatpush1.msra.mxu0 0.0
    %7082 = vmatprep.subr.mxu0 0.0
    %7083 = vmatpush1.msra.mxu0 0.0
    %7084 = vmatprep.subr.mxu0 0.0
    %7085 = vmatpush1.msra.mxu0 0.0
    %7086 = vmatprep.subr.mxu0 0.0
    %7087 = vmatpush1.msra.mxu0 0.0
    %7088 = vmatprep.subr.mxu0 0.0
    %7089 = vmatpush1.msra.mxu0 0.0
    %7090 = vmatprep.subr.mxu0 0.0
    %7091 = vmatpush1.msra.mxu0 0.0
    %7092 = vmatprep.subr.mxu0 %v6226
    %7093 = vmatpush1.msra.mxu0 %v6225
    %7094 = vmatprep.subr.mxu0 %v6224
    %7095 = vmatpush1.msra.mxu0 %v6223
    %7096 = vmatprep.subr.mxu0 %v6222
    %7097 = vmatpush1.msra.mxu0 %v6221
    %7098 = vmatprep.subr.mxu0 %v6220
    %7099 = vmatpush1.msra.mxu0 %v6219
    %7100 = vmatprep.subr.mxu0 %v6218
    %7101 = vmatpush1.msra.mxu0 %v6217
    %7102 = vmatprep.subr.mxu0 %v6216
    %7103 = vmatpush1.msra.mxu0 %v6215
    %7104 = vmatprep.subr.mxu0 %v6214
    %7105 = vmatpush1.msra.mxu0 %v6213
    %7106 = vmatprep.subr.mxu0 %v6212
    %7107 = vmatpush1.msra.mxu0 %v6211
    %7108 = vmatprep.subr.mxu0 0.0
    %7109 = vmatpush2.msra.mxu0 0.0
    %7110 = vmatprep.subr.mxu0 0.0
    %7111 = vmatpush2.msra.mxu0 0.0
    %7112 = vmatprep.subr.mxu0 0.0
    %7113 = vmatpush2.msra.mxu0 0.0
    %7114 = vmatprep.subr.mxu0 0.0
    %7115 = vmatpush2.msra.mxu0 0.0
    %7116 = vmatprep.subr.mxu0 0.0
    %7117 = vmatpush2.msra.mxu0 0.0
    %7118 = vmatprep.subr.mxu0 0.0
    %7119 = vmatpush2.msra.mxu0 0.0
    %7120 = vmatprep.subr.mxu0 0.0
    %7121 = vmatpush2.msra.mxu0 0.0
    %7122 = vmatprep.subr.mxu0 0.0
    %7123 = vmatpush2.msra.mxu0 0.0
    %7124 = vmatprep.subr.mxu0 0.0
    %7125 = vmatpush2.msra.mxu0 0.0
    %7126 = vmatprep.subr.mxu0 0.0
    %7127 = vmatpush2.msra.mxu0 0.0
    %7128 = vmatprep.subr.mxu0 0.0
    %7129 = vmatpush2.msra.mxu0 0.0
    %7130 = vmatprep.subr.mxu0 0.0
    %7131 = vmatpush2.msra.mxu0 0.0
    %7132 = vmatprep.subr.mxu0 0.0
    %7133 = vmatpush2.msra.mxu0 0.0
    %7134 = vmatprep.subr.mxu0 0.0
    %7135 = vmatpush2.msra.mxu0 0.0
    %7136 = vmatprep.subr.mxu0 0.0
    %7137 = vmatpush2.msra.mxu0 0.0
    %7138 = vmatprep.subr.mxu0 0.0
    %7139 = vmatpush2.msra.mxu0 0.0
    %7140 = vmatprep.mubr.f32.mxu0 0.0
    %7141 = vmatmul.mubr.f32.gmra.mxu0 %v7074
    %v7142 = vpop.f32.mrf.mxu0
    %v7143 = vadd.f32 0.0, %v7142
    %v7144 = vpop.f32.mrf.mxu0
    %v7145 = vadd.f32 0.0, %v7144
    %7146 = vdwg.mxu0
    %v7147 = vadd.f32 %v7071, %v7143
    %v7148 = vadd.f32 %v7072, %v7145
    %v7149 = vmul.f32 %v7147, 0.5
    %v7150 = vmul.f32 %v7148, 0.5
    %v7151 = vsel %vm5364, %v7147, %v7149
    %v7152 = vsel %vm5365, %v7148, %v7150
    %v7153 = vtanh.pop %v7151
    %v7154 = vtanh.pop %v7152
    %v7155 = vmul.f32 %v7153, 0.5
    %v7156 = vmul.f32 %v7154, 0.5
    %v7157 = vadd.f32 %v7155, 0.5
    %v7158 = vadd.f32 %v7156, 0.5
    %v7159 = vsel %vm5364, %v7153, %v7157
    %v7160 = vsel %vm5365, %v7154, %v7158
    %v7161 = vmul.f32 %v7159, %v7058
    %7163 = vrot.lane.b32.xlu0 %v7160, 64
    %v7164 = vpop.permute.xlu0 %7163
    %v7166 = vmul.f32 %v7159, %v7164
    %7168 = vrot.lane.b32.xlu0 %v7166, 64
    %v7169 = vpop.permute.xlu0 %7168
    %v7171 = vadd.f32 %v7161, %v7169
    %v7172 = vtanh.pop %v7171
    %7174 = vrot.lane.b32.xlu0 %v7172, 64
    %v7175 = vpop.permute.xlu0 %7174
    %v7177 = vmul.f32 %v7160, %v7175
    %7178 = vst.msk [vmem:[#allocation4 + $0x30] sm:$0xff] %vm330, %v7177
    %7179 = vst.msk [vmem:[#allocation4 + $0x8] sm:$0xff] %vm5394, %v7177
    %v7180 = vld [vmem:[#allocation2 + $0xe0] sm:$0xff]
    %v7181 = vld [vmem:[#allocation2 + $0xe8] sm:$0xff]
    %v7182 = vld [vmem:[#allocation2] sm:$0xff]
    %v7183 = vld [vmem:[#allocation2 + $0x8] sm:$0xff]
    %v7184 = vsel %vm5280, %v7180, %v7182
    %v7185 = vsel %vm5281, %v7181, %v7183
    %v7187 = vsel %vm877, %v7177, 0
    %7189 = vmatprep.subr.mxu0 0.0
    %7190 = vmatpush1.msra.mxu0 0.0
    %7191 = vmatprep.subr.mxu0 0.0
    %7192 = vmatpush1.msra.mxu0 0.0
    %7193 = vmatprep.subr.mxu0 0.0
    %7194 = vmatpush1.msra.mxu0 0.0
    %7195 = vmatprep.subr.mxu0 0.0
    %7196 = vmatpush1.msra.mxu0 0.0
    %7197 = vmatprep.subr.mxu0 0.0
    %7198 = vmatpush1.msra.mxu0 0.0
    %7199 = vmatprep.subr.mxu0 0.0
    %7200 = vmatpush1.msra.mxu0 0.0
    %7201 = vmatprep.subr.mxu0 0.0
    %7202 = vmatpush1.msra.mxu0 0.0
    %7203 = vmatprep.subr.mxu0 0.0
    %7204 = vmatpush1.msra.mxu0 0.0
    %7205 = vmatprep.subr.mxu0 %v6226
    %7206 = vmatpush1.msra.mxu0 %v6225
    %7207 = vmatprep.subr.mxu0 %v6224
    %7208 = vmatpush1.msra.mxu0 %v6223
    %7209 = vmatprep.subr.mxu0 %v6222
    %7210 = vmatpush1.msra.mxu0 %v6221
    %7211 = vmatprep.subr.mxu0 %v6220
    %7212 = vmatpush1.msra.mxu0 %v6219
    %7213 = vmatprep.subr.mxu0 %v6218
    %7214 = vmatpush1.msra.mxu0 %v6217
    %7215 = vmatprep.subr.mxu0 %v6216
    %7216 = vmatpush1.msra.mxu0 %v6215
    %7217 = vmatprep.subr.mxu0 %v6214
    %7218 = vmatpush1.msra.mxu0 %v6213
    %7219 = vmatprep.subr.mxu0 %v6212
    %7220 = vmatpush1.msra.mxu0 %v6211
    %7221 = vmatprep.subr.mxu0 0.0
    %7222 = vmatpush2.msra.mxu0 0.0
    %7223 = vmatprep.subr.mxu0 0.0
    %7224 = vmatpush2.msra.mxu0 0.0
    %7225 = vmatprep.subr.mxu0 0.0
    %7226 = vmatpush2.msra.mxu0 0.0
    %7227 = vmatprep.subr.mxu0 0.0
    %7228 = vmatpush2.msra.mxu0 0.0
    %7229 = vmatprep.subr.mxu0 0.0
    %7230 = vmatpush2.msra.mxu0 0.0
    %7231 = vmatprep.subr.mxu0 0.0
    %7232 = vmatpush2.msra.mxu0 0.0
    %7233 = vmatprep.subr.mxu0 0.0
    %7234 = vmatpush2.msra.mxu0 0.0
    %7235 = vmatprep.subr.mxu0 0.0
    %7236 = vmatpush2.msra.mxu0 0.0
    %7237 = vmatprep.subr.mxu0 0.0
    %7238 = vmatpush2.msra.mxu0 0.0
    %7239 = vmatprep.subr.mxu0 0.0
    %7240 = vmatpush2.msra.mxu0 0.0
    %7241 = vmatprep.subr.mxu0 0.0
    %7242 = vmatpush2.msra.mxu0 0.0
    %7243 = vmatprep.subr.mxu0 0.0
    %7244 = vmatpush2.msra.mxu0 0.0
    %7245 = vmatprep.subr.mxu0 0.0
    %7246 = vmatpush2.msra.mxu0 0.0
    %7247 = vmatprep.subr.mxu0 0.0
    %7248 = vmatpush2.msra.mxu0 0.0
    %7249 = vmatprep.subr.mxu0 0.0
    %7250 = vmatpush2.msra.mxu0 0.0
    %7251 = vmatprep.subr.mxu0 0.0
    %7252 = vmatpush2.msra.mxu0 0.0
    %7253 = vmatprep.mubr.f32.mxu0 0.0
    %7254 = vmatmul.mubr.f32.gmra.mxu0 %v7187
    %v7255 = vpop.f32.mrf.mxu0
    %v7256 = vadd.f32 0.0, %v7255
    %v7257 = vpop.f32.mrf.mxu0
    %v7258 = vadd.f32 0.0, %v7257
    %7259 = vdwg.mxu0
    %v7260 = vadd.f32 %v7184, %v7256
    %v7261 = vadd.f32 %v7185, %v7258
    %v7262 = vmul.f32 %v7260, 0.5
    %v7263 = vmul.f32 %v7261, 0.5
    %v7264 = vsel %vm5364, %v7260, %v7262
    %v7265 = vsel %vm5365, %v7261, %v7263
    %v7266 = vtanh.pop %v7264
    %v7267 = vtanh.pop %v7265
    %v7268 = vmul.f32 %v7266, 0.5
    %v7269 = vmul.f32 %v7267, 0.5
    %v7270 = vadd.f32 %v7268, 0.5
    %v7271 = vadd.f32 %v7269, 0.5
    %v7272 = vsel %vm5364, %v7266, %v7270
    %v7273 = vsel %vm5365, %v7267, %v7271
    %v7274 = vmul.f32 %v7272, %v7171
    %7276 = vrot.lane.b32.xlu0 %v7273, 64
    %v7277 = vpop.permute.xlu0 %7276
    %v7279 = vmul.f32 %v7272, %v7277
    %7281 = vrot.lane.b32.xlu0 %v7279, 64
    %v7282 = vpop.permute.xlu0 %7281
    %v7284 = vadd.f32 %v7274, %v7282
    %v7285 = vtanh.pop %v7284
    %7287 = vrot.lane.b32.xlu0 %v7285, 64
    %v7288 = vpop.permute.xlu0 %7287
    %v7290 = vmul.f32 %v7273, %v7288
    %7291 = vst.msk [vmem:[#allocation4 + $0x38] sm:$0xff] %vm330, %v7290
    %7292 = vst.msk [vmem:[#allocation4] sm:$0xff] %vm5394, %v7290
    %v7293 = vld [vmem:[#allocation4] sm:$0xff]
    %v7294 = vld [vmem:[#allocation4 + $0x8] sm:$0xff]
    %v7295 = vld [vmem:[#allocation4 + $0x10] sm:$0xff]
    %v7296 = vld [vmem:[#allocation4 + $0x18] sm:$0xff]
    %v7297 = vld [vmem:[#allocation4 + $0x20] sm:$0xff]
    %v7298 = vld [vmem:[#allocation4 + $0x28] sm:$0xff]
    %v7299 = vld [vmem:[#allocation4 + $0x30] sm:$0xff]
    %v7300 = vld [vmem:[#allocation4 + $0x38] sm:$0xff]
    %v7301 = vld [vmem:[#allocation19] sm:$0xff]
    %v7302 = vld [vmem:[#allocation19 + $0x8] sm:$0xff]
    %v7303 = vld [vmem:[#allocation19 + $0x10] sm:$0xff]
    %v7304 = vld [vmem:[#allocation19 + $0x18] sm:$0xff]
    %v7305 = vld [vmem:[#allocation19 + $0x20] sm:$0xff]
    %v7306 = vld [vmem:[#allocation19 + $0x28] sm:$0xff]
    %v7307 = vld [vmem:[#allocation19 + $0x30] sm:$0xff]
    %v7308 = vld [vmem:[#allocation19 + $0x38] sm:$0xff]
    %v7309 = vld [vmem:[#allocation21] sm:$0x1]
    %v7311 = vlaneseq
    %v7312 = vshrl.u32 %v7311, 7
    %v7313 = vsub.s32 0, %v7312
    %v7314 = vrot.slane %v7309, %v7313
    %v7317 = vsel %vm877, %v7293, 0
    %v7320 = vsel %vm877, %v7294, 0
    %v7323 = vsel %vm877, %v7295, 0
    %v7326 = vsel %vm877, %v7296, 0
    %v7329 = vsel %vm877, %v7297, 0
    %v7332 = vsel %vm877, %v7298, 0
    %v7335 = vsel %vm877, %v7299, 0
    %v7338 = vsel %vm877, %v7300, 0
    %7340 = vmatprep.subr.mxu0 0.0
    %7341 = vmatpush1.msra.mxu0 0.0
    %7342 = vmatprep.subr.mxu0 0.0
    %7343 = vmatpush1.msra.mxu0 0.0
    %7344 = vmatprep.subr.mxu0 0.0
    %7345 = vmatpush1.msra.mxu0 0.0
    %7346 = vmatprep.subr.mxu0 0.0
    %7347 = vmatpush1.msra.mxu0 0.0
    %7348 = vmatprep.subr.mxu0 0.0
    %7349 = vmatpush1.msra.mxu0 0.0
    %7350 = vmatprep.subr.mxu0 0.0
    %7351 = vmatpush1.msra.mxu0 0.0
    %7352 = vmatprep.subr.mxu0 0.0
    %7353 = vmatpush1.msra.mxu0 0.0
    %7354 = vmatprep.subr.mxu0 0.0
    %7355 = vmatpush1.msra.mxu0 0.0
    %7356 = vmatprep.subr.mxu0 0.0
    %7357 = vmatpush1.msra.mxu0 %v7308
    %7358 = vmatprep.subr.mxu0 0.0
    %7359 = vmatpush1.msra.mxu0 %v7307
    %7360 = vmatprep.subr.mxu0 0.0
    %7361 = vmatpush1.msra.mxu0 %v7306
    %7362 = vmatprep.subr.mxu0 0.0
    %7363 = vmatpush1.msra.mxu0 %v7305
    %7364 = vmatprep.subr.mxu0 0.0
    %7365 = vmatpush1.msra.mxu0 %v7304
    %7366 = vmatprep.subr.mxu0 0.0
    %7367 = vmatpush1.msra.mxu0 %v7303
    %7368 = vmatprep.subr.mxu0 0.0
    %7369 = vmatpush1.msra.mxu0 %v7302
    %7370 = vmatprep.subr.mxu0 0.0
    %7371 = vmatpush1.msra.mxu0 %v7301
    %7372 = vmatprep.subr.mxu0 0.0
    %7373 = vmatpush2.msra.mxu0 0.0
    %7374 = vmatprep.subr.mxu0 0.0
    %7375 = vmatpush2.msra.mxu0 0.0
    %7376 = vmatprep.subr.mxu0 0.0
    %7377 = vmatpush2.msra.mxu0 0.0
    %7378 = vmatprep.subr.mxu0 0.0
    %7379 = vmatpush2.msra.mxu0 0.0
    %7380 = vmatprep.subr.mxu0 0.0
    %7381 = vmatpush2.msra.mxu0 0.0
    %7382 = vmatprep.subr.mxu0 0.0
    %7383 = vmatpush2.msra.mxu0 0.0
    %7384 = vmatprep.subr.mxu0 0.0
    %7385 = vmatpush2.msra.mxu0 0.0
    %7386 = vmatprep.subr.mxu0 0.0
    %7387 = vmatpush2.msra.mxu0 0.0
    %7388 = vmatprep.subr.mxu0 0.0
    %7389 = vmatpush2.msra.mxu0 0.0
    %7390 = vmatprep.subr.mxu0 0.0
    %7391 = vmatpush2.msra.mxu0 0.0
    %7392 = vmatprep.subr.mxu0 0.0
    %7393 = vmatpush2.msra.mxu0 0.0
    %7394 = vmatprep.subr.mxu0 0.0
    %7395 = vmatpush2.msra.mxu0 0.0
    %7396 = vmatprep.subr.mxu0 0.0
    %7397 = vmatpush2.msra.mxu0 0.0
    %7398 = vmatprep.subr.mxu0 0.0
    %7399 = vmatpush2.msra.mxu0 0.0
    %7400 = vmatprep.subr.mxu0 0.0
    %7401 = vmatpush2.msra.mxu0 0.0
    %7402 = vmatprep.subr.mxu0 0.0
    %7403 = vmatpush2.msra.mxu0 0.0
    %7404 = vmatprep.mubr.f32.mxu0 0.0
    %7405 = vmatmul.mubr.f32.gmra.mxu0 %v7317
    %v7406 = vpop.f32.mrf.mxu0
    %v7407 = vadd.f32 %v7314, %v7406
    %v7408 = vpop.f32.mrf.mxu0
    %7409 = vmatprep.mubr.f32.mxu0 0.0
    %7410 = vmatmul.mubr.f32.gmra.mxu0 %v7320
    %v7411 = vpop.f32.mrf.mxu0
    %v7412 = vadd.f32 %v7314, %v7411
    %v7413 = vpop.f32.mrf.mxu0
    %7414 = vmatprep.mubr.f32.mxu0 0.0
    %7415 = vmatmul.mubr.f32.gmra.mxu0 %v7323
    %v7416 = vpop.f32.mrf.mxu0
    %v7417 = vadd.f32 %v7314, %v7416
    %v7418 = vpop.f32.mrf.mxu0
    %7419 = vmatprep.mubr.f32.mxu0 0.0
    %7420 = vmatmul.mubr.f32.gmra.mxu0 %v7326
    %v7421 = vpop.f32.mrf.mxu0
    %v7422 = vadd.f32 %v7314, %v7421
    %v7423 = vpop.f32.mrf.mxu0
    %7424 = vmatprep.mubr.f32.mxu0 0.0
    %7425 = vmatmul.mubr.f32.gmra.mxu0 %v7329
    %v7426 = vpop.f32.mrf.mxu0
    %v7427 = vadd.f32 %v7314, %v7426
    %v7428 = vpop.f32.mrf.mxu0
    %7429 = vmatprep.mubr.f32.mxu0 0.0
    %7430 = vmatmul.mubr.f32.gmra.mxu0 %v7332
    %v7431 = vpop.f32.mrf.mxu0
    %v7432 = vadd.f32 %v7314, %v7431
    %v7433 = vpop.f32.mrf.mxu0
    %7434 = vmatprep.mubr.f32.mxu0 0.0
    %7435 = vmatmul.mubr.f32.gmra.mxu0 %v7335
    %v7436 = vpop.f32.mrf.mxu0
    %v7437 = vadd.f32 %v7314, %v7436
    %v7438 = vpop.f32.mrf.mxu0
    %7439 = vmatprep.mubr.f32.mxu0 0.0
    %7440 = vmatmul.mubr.f32.gmra.mxu0 %v7338
    %v7441 = vpop.f32.mrf.mxu0
    %v7442 = vadd.f32 %v7314, %v7441
    %v7443 = vpop.f32.mrf.mxu0
    %7444 = vdwg.mxu0
    %v7445 = vmax.f32 %v7407, %v7412
    %v7446 = vmax.f32 %v7445, %v7417
    %v7447 = vmax.f32 %v7446, %v7422
    %v7448 = vmax.f32 %v7447, %v7427
    %v7449 = vmax.f32 %v7448, %v7432
    %v7450 = vmax.f32 %v7449, %v7437
    %v7451 = vmax.f32 %v7450, %v7442
    %7452 = vst.msk [vmem:[%s25] sm:$0xff] %vm877, %v7451
    %v7453 = vld [vmem:[%s18] sm:$0xff]
    %v7454 = vld [vmem:[%s18 + $0x8] sm:$0xff]
    %v7455 = vld [vmem:[%s18 + $0x10] sm:$0xff]
    %v7456 = vld [vmem:[%s18 + $0x18] sm:$0xff]
    %v7457 = vld [vmem:[%s18 + $0x20] sm:$0xff]
    %v7458 = vld [vmem:[%s18 + $0x28] sm:$0xff]
    %v7459 = vld [vmem:[%s18 + $0x30] sm:$0xff]
    %v7460 = vld [vmem:[%s18 + $0x38] sm:$0xff]
    %v7461 = vld [vmem:[#allocation16] sm:$0x1]
    %v7462 = vld [vmem:[%s3] sm:$0xff]
    %v7464 = vlaneseq
    %v7465 = vshrl.u32 %v7464, 7
    %v7466 = vsub.s32 0, %v7465
    %v7467 = vrot.slane %v7461, %v7466
    %v7470 = vsel %vm877, %v7451, 0
    %7472 = vmatprep.subr.mxu0 0.0
    %7473 = vmatpush1.msra.mxu0 0.0
    %7474 = vmatprep.subr.mxu0 0.0
    %7475 = vmatpush1.msra.mxu0 0.0
    %7476 = vmatprep.subr.mxu0 0.0
    %7477 = vmatpush1.msra.mxu0 0.0
    %7478 = vmatprep.subr.mxu0 0.0
    %7479 = vmatpush1.msra.mxu0 0.0
    %7480 = vmatprep.subr.mxu0 0.0
    %7481 = vmatpush1.msra.mxu0 0.0
    %7482 = vmatprep.subr.mxu0 0.0
    %7483 = vmatpush1.msra.mxu0 0.0
    %7484 = vmatprep.subr.mxu0 0.0
    %7485 = vmatpush1.msra.mxu0 0.0
    %7486 = vmatprep.subr.mxu0 0.0
    %7487 = vmatpush1.msra.mxu0 0.0
    %7488 = vmatprep.subr.mxu0 0.0
    %7489 = vmatpush1.msra.mxu0 %v7460
    %7490 = vmatprep.subr.mxu0 0.0
    %7491 = vmatpush1.msra.mxu0 %v7459
    %7492 = vmatprep.subr.mxu0 0.0
    %7493 = vmatpush1.msra.mxu0 %v7458
    %7494 = vmatprep.subr.mxu0 0.0
    %7495 = vmatpush1.msra.mxu0 %v7457
    %7496 = vmatprep.subr.mxu0 0.0
    %7497 = vmatpush1.msra.mxu0 %v7456
    %7498 = vmatprep.subr.mxu0 0.0
    %7499 = vmatpush1.msra.mxu0 %v7455
    %7500 = vmatprep.subr.mxu0 0.0
    %7501 = vmatpush1.msra.mxu0 %v7454
    %7502 = vmatprep.subr.mxu0 0.0
    %7503 = vmatpush1.msra.mxu0 %v7453
    %7504 = vmatprep.subr.mxu0 0.0
    %7505 = vmatpush2.msra.mxu0 0.0
    %7506 = vmatprep.subr.mxu0 0.0
    %7507 = vmatpush2.msra.mxu0 0.0
    %7508 = vmatprep.subr.mxu0 0.0
    %7509 = vmatpush2.msra.mxu0 0.0
    %7510 = vmatprep.subr.mxu0 0.0
    %7511 = vmatpush2.msra.mxu0 0.0
    %7512 = vmatprep.subr.mxu0 0.0
    %7513 = vmatpush2.msra.mxu0 0.0
    %7514 = vmatprep.subr.mxu0 0.0
    %7515 = vmatpush2.msra.mxu0 0.0
    %7516 = vmatprep.subr.mxu0 0.0
    %7517 = vmatpush2.msra.mxu0 0.0
    %7518 = vmatprep.subr.mxu0 0.0
    %7519 = vmatpush2.msra.mxu0 0.0
    %7520 = vmatprep.subr.mxu0 0.0
    %7521 = vmatpush2.msra.mxu0 0.0
    %7522 = vmatprep.subr.mxu0 0.0
    %7523 = vmatpush2.msra.mxu0 0.0
    %7524 = vmatprep.subr.mxu0 0.0
    %7525 = vmatpush2.msra.mxu0 0.0
    %7526 = vmatprep.subr.mxu0 0.0
    %7527 = vmatpush2.msra.mxu0 0.0
    %7528 = vmatprep.subr.mxu0 0.0
    %7529 = vmatpush2.msra.mxu0 0.0
    %7530 = vmatprep.subr.mxu0 0.0
    %7531 = vmatpush2.msra.mxu0 0.0
    %7532 = vmatprep.subr.mxu0 0.0
    %7533 = vmatpush2.msra.mxu0 0.0
    %7534 = vmatprep.subr.mxu0 0.0
    %7535 = vmatpush2.msra.mxu0 0.0
    %7536 = vmatprep.mubr.f32.mxu0 0.0
    %7537 = vmatmul.mubr.f32.gmra.mxu0 %v7470
    %v7538 = vpop.f32.mrf.mxu0
    %v7539 = vadd.f32 %v7467, %v7538
    %v7540 = vpop.f32.mrf.mxu0
    %7541 = vdwg.mxu0
    %v7542 = vsel %vm4308, %v7539, -inf
    %7543 = vmax.xlane.f32.xlu0 %v7542
    %v7544 = vpop.xlane.xlu0 %7543
    %v7545 = vsub.f32 %v7539, %v7544
    %v7546 = vmul.f32 %v7545, 1.442695
    %v7547 = vpow.pop %v7546
    %v7548 = vsel %vm4308, %v7547, 0.0
    %7549 = vadd.xlane.f32.xlu0 %v7548
    %v7550 = vpop.xlane.xlu0 %7549
    %v7551 = vlog2.pop %v7550
    %v7552 = vmul.f32 %v7551, 0.6931472
    %v7553 = vadd.f32 %v7552, %v7544
    %v7554 = vsub.f32 %v7539, %v7553
    %7555 = vset.pattern.permute.xlu0 0
    %7556 = vperm.xlu0 %7555, %v7462
    %v7557 = vpop.permute.xlu0 %7556
    %vm7558 = vcmp.eq.s32.totalorder %v614, %v7557
    %v7559 = vsel %vm7558, 1, 0
    %v7560 = vcvt.s32.f32 %v7559
    %v7561 = vmul.f32 %v7554, %v7560
    %v7562 = vsel %vm4308, %v7561, 0.0
    %7563 = vadd.xlane.f32.xlu0 %v7562
    %v7564 = vpop.xlane.xlu0 %7563
    %v7565 = vsub.f32 0.0, %v7564
    %v7566 = vsel %vm4300, %v7565, %v4493
    %v7567 = vsel %vm4302, %v7566, %v4804
    %v7568 = vsel %vm4304, %v7567, 0.0
    %7569 = vst.msk [vmem:[%s26] sm:$0xff] %vm4306, %v7568
    // Predicated region
    $region142: #{forward.1} parent=1 // pred_check
      _
    $region143: #{forward.1} parent=1 // pred_check_branch
      %7571 = sbr.rel (0) target = $region145
    $region144: #{forward.1} parent=1 // pred_region
      _
    $region145: #{forward.1} parent=1 // pred_fallthru
      _
    // Predicated region
    $region146: #{forward.1} parent=1 // pred_check
      _
    $region147: #{forward.1} parent=1 // pred_check_branch
      %7573 = sbr.rel (0) target = $region149
    $region148: #{forward.1} parent=1 // pred_region
      _
    $region149: #{forward.1} parent=1 // pred_fallthru
      _
    // Predicated region
    $region150: #{forward.1} parent=1 // pred_check
      _
    $region151: #{forward.1} parent=1 // pred_check_branch
      %7575 = sbr.rel (0) target = $region153
    $region152: #{forward.1} parent=1 // pred_region
      _
    $region153: #{forward.1} parent=1 // pred_fallthru
      _
    // Predicated region
    $region154: #{forward.1} parent=1 // pred_check
      _
    $region155: #{forward.1} parent=1 // pred_check_branch
      %7577 = sbr.rel (0) target = $region157
    $region156: #{forward.1} parent=1 // pred_region
      _
    $region157: #{forward.1} parent=1 // pred_fallthru
      _
    // Predicated region
    $region158: #{forward.1} parent=1 // pred_check
      _
    $region159: #{forward.1} parent=1 // pred_check_branch
      %7579 = sbr.rel (0) target = $region161
    $region160: #{forward.1} parent=1 // pred_region
      _
    $region161: #{forward.1} parent=1 // pred_fallthru
      _
    // Predicated region
    $region162: #{forward.1} parent=1 // pred_check
      _
    $region163: #{forward.1} parent=1 // pred_check_branch
      %7581 = sbr.rel (0) target = $region165
    $region164: #{forward.1} parent=1 // pred_region
      _
    $region165: #{forward.1} parent=1 // pred_fallthru
      _
    // Predicated region
    $region166: #{forward.1} parent=1 // pred_check
      _
    $region167: #{forward.1} parent=1 // pred_check_branch
      %7583 = sbr.rel (0) target = $region169
    $region168: #{forward.1} parent=1 // pred_region
      _
    $region169: #{forward.1} parent=1 // pred_fallthru
      _
    // Predicated region
    $region170: #{forward.1} parent=1 // pred_check
      _
    $region171: #{forward.1} parent=1 // pred_check_branch
      %7585 = sbr.rel (0) target = $region173
    $region172: #{forward.1} parent=1 // pred_region
      _
    $region173: #{forward.1} parent=1 // pred_fallthru
      _
    %7586 = vsyncpa [#allocation6], 1
    %7587 = vsyncpa [#allocation8], 1
    %7588 = vsyncpa [#allocation11], 1
    %7589 = vsyncpa [#allocation14], 1
    %7590 = vsyncpa [#allocation17], 1
    %7591 = vsyncpa [#allocation20], 1

</llo_original>
